<compile_context>
chip_gen: v5e
topology: v5e:2x2
jax: 0.10.0
libtpu: 0.0.40
codegen_flags: <defaults>
</compile_context>

<pallas_src>
import functools

import jax
import jax.numpy as jnp
from jax.experimental import pallas as pl
from jax.experimental.pallas import tpu as pltpu

EPS = 1e-5


def _fused_kernel(x2_ref, mask_ref, w1_ref, g1_ref, b1_ref, w2_ref, g2_ref,
                  b2_ref, out_ref, patch_ref, *, wp_stride, n_valid):
    """Fused conv3x3 -> BN -> ReLU -> conv1x1 -> BN on the flattened layout.

    x2_ref   : (R + tail, Cin)  compute dtype, flattened zero-padded NHWC input
    mask_ref : (R, 1) f32       1.0 on valid output rows, 0.0 on halo rows
    w1_ref   : (9*Cin, Cmid)    3x3 weights, tap-major rows, compute dtype
    g1_ref,b1_ref : (1, Cmid) f32   BN1 affine
    w2_ref   : (Cmid, Cout)     1x1 weights, compute dtype
    g2_ref,b2_ref : (1, Cout) f32   BN2 affine
    out_ref  : (R, Cout) f32    lane-dense 2-D output (halo rows = garbage)
    patch_ref: (R, 9*Cin)       VMEM im2col scratch, compute dtype
    """
    R = patch_ref.shape[0]
    Cin = x2_ref.shape[1]

    # --- im2col: 9 contiguous row-slab copies (sublane-offset loads, ---------
    # --- lane-block stores); no window gathers, no reshape relayouts. --------
    for kh in range(3):
        for kw in range(3):
            tap = kh * 3 + kw
            s = kh * wp_stride + kw
            patch_ref[:, tap * Cin:(tap + 1) * Cin] = x2_ref[pl.ds(s, R), :]

    inv_n = jnp.float32(1.0 / n_valid)
    mask = mask_ref[...]                                   # (R, 1) f32

    # --- conv1 (3x3) as ONE MXU matmul, K = 9*Cin, f32 accumulation ----------
    y = jnp.dot(patch_ref[...], w1_ref[...],
                preferred_element_type=jnp.float32)        # (R, Cmid)
    y = y * mask                                           # zero halo rows

    # --- BN1: masked single-pass stats -> folded scale/offset ----------------
    s1 = jnp.sum(y, axis=0, keepdims=True)
    ss1 = jnp.sum(y * y, axis=0, keepdims=True)
    mean1 = s1 * inv_n
    var1 = jnp.maximum(ss1 * inv_n - mean1 * mean1, 0.0)
    scale1 = g1_ref[...] * jax.lax.rsqrt(var1 + EPS)
    shift1 = b1_ref[...] - mean1 * scale1

    # --- BN1 + ReLU fused into the 1x1-conv operand; re-mask halo rows so ----
    # --- they do not pollute BN2 statistics. ---------------------------------
    op = (jnp.maximum(y * scale1 + shift1, 0.0) * mask).astype(w2_ref.dtype)

    # --- conv2 (1x1): write straight into out_ref, BN2 stats from out_ref, ---
    # --- apply folded scale/shift in place. -----------------------------------
    out_ref[...] = jnp.dot(op, w2_ref[...],
                           preferred_element_type=jnp.float32)   # (R, Cout)
    z = out_ref[...]
    s2 = jnp.sum(z, axis=0, keepdims=True)
    ss2 = jnp.sum(z * z, axis=0, keepdims=True)
    mean2 = s2 * inv_n
    var2 = jnp.maximum(ss2 * inv_n - mean2 * mean2, 0.0)
    scale2 = g2_ref[...] * jax.lax.rsqrt(var2 + EPS)
    shift2 = b2_ref[...] - mean2 * scale2
    out_ref[...] = z * scale2 + shift2


@functools.partial(jax.jit, static_argnames=("compute_dtype",))
def fused_forward(x_nchw, w1_oihw, g1, b1, w2_oihw, g2, b2,
                  *, compute_dtype=jnp.bfloat16):
    """x_nchw: (N, Cin, H, W) f32.  Returns (N, Cout, H, W) f32."""
    N, Cin, H, W = x_nchw.shape
    Cmid = w1_oihw.shape[0]
    Cout = w2_oihw.shape[0]
    Hp, Wp = H + 2, W + 2
    R = N * Hp * Wp
    tail = 2 * Wp + 2                       # max tap shift -> every slab has R rows
    n_valid = N * H * W

    # Layout glue (NCHW interface is fixed by the spec, so the transpose HBM
    # round trip is unavoidable; the cast, halo pad, flatten and tail pad fuse
    # into that same XLA op).
    x_nhwc = jnp.transpose(x_nchw, (0, 2, 3, 1)).astype(compute_dtype)
    xpad = jnp.pad(x_nhwc, ((0, 0), (1, 1), (1, 1), (0, 0)))       # (N,Hp,Wp,Cin)
    x2 = jnp.pad(xpad.reshape(R, Cin), ((0, tail), (0, 0)))        # (R+tail, Cin)

    # {0,1} mask of valid output rows in the flattened padded index space.
    r = jnp.arange(R)
    mask = (((r % Wp) < W) & (((r // Wp) % Hp) < H)).astype(jnp.float32)
    mask = mask.reshape(R, 1)

    # (Cmid, Cin, 3, 3) -> (kh, kw, ci, co) -> (9*Cin, Cmid), tap-major rows.
    w1 = jnp.transpose(w1_oihw, (2, 3, 1, 0)).reshape(9 * Cin, Cmid)
    w1 = w1.astype(compute_dtype)
    # (Cout, Cmid, 1, 1) -> (Cmid, Cout)
    w2 = jnp.transpose(w2_oihw[:, :, 0, 0], (1, 0)).astype(compute_dtype)

    g1_ = g1.reshape(1, Cmid).astype(jnp.float32)
    b1_ = b1.reshape(1, Cmid).astype(jnp.float32)
    g2_ = g2.reshape(1, Cout).astype(jnp.float32)
    b2_ = b2.reshape(1, Cout).astype(jnp.float32)

    kernel = functools.partial(_fused_kernel, wp_stride=Wp, n_valid=n_valid)
    out2d = pl.pallas_call(
        kernel,
        out_shape=jax.ShapeDtypeStruct((R, Cout), jnp.float32),
        in_specs=[pl.BlockSpec(memory_space=pltpu.MemorySpace.VMEM)] * 8,
        out_specs=pl.BlockSpec(memory_space=pltpu.MemorySpace.VMEM),
        scratch_shapes=[pltpu.VMEM((R, 9 * Cin), compute_dtype)],   # im2col patch
        compiler_params=pltpu.CompilerParams(
            vmem_limit_bytes=32 * 1024 * 1024),
    )(x2, mask, w1, g1_, b1_, w2, g2_, b2_)

    # Halo/garbage rows drop out inside the (already required) output
    # slice + transpose; this fuses into one XLA op.
    out_nhwc = out2d.reshape(N, Hp, Wp, Cout)[:, :H, :W, :]
    return jnp.transpose(out_nhwc, (0, 3, 1, 2))                    # back to NCHW


def _reference_forward(x, w1, g1, b1, w2, g2, b2):
    """Pure-JAX f32 reference (NCHW, matches PyTorch training-mode forward)."""
    y = jax.lax.conv_general_dilated(
        x, w1, window_strides=(1, 1), padding=((1, 1), (1, 1)),
        dimension_numbers=("NCHW", "OIHW", "NCHW"))
    m = jnp.mean(y, axis=(0, 2, 3), keepdims=True)
    v = jnp.mean((y - m) ** 2, axis=(0, 2, 3), keepdims=True)
    y = (y - m) / jnp.sqrt(v + EPS) * g1.reshape(1, -1, 1, 1) + b1.reshape(1, -1, 1, 1)
    y = jnp.maximum(y, 0.0)
    z = jax.lax.conv_general_dilated(
        y, w2, window_strides=(1, 1), padding=((0, 0), (0, 0)),
        dimension_numbers=("NCHW", "OIHW", "NCHW"))
    m2 = jnp.mean(z, axis=(0, 2, 3), keepdims=True)
    v2 = jnp.mean((z - m2) ** 2, axis=(0, 2, 3), keepdims=True)
    return (z - m2) / jnp.sqrt(v2 + EPS) * g2.reshape(1, -1, 1, 1) + b2.reshape(1, -1, 1, 1)


if __name__ == "__main__":
    # Channels fixed by the module (64 -> 64 -> 256); batch/spatial kept small
    # (original spec input is (1, 64, 56, 56)).
    N, Cin, H, W = 2, 64, 16, 16
    Cmid, Cout = 64, 256

    key = jax.random.PRNGKey(0)
    kx, kw1, kw2, kg1, kb1, kg2, kb2 = jax.random.split(key, 7)

    x = jax.random.normal(kx, (N, Cin, H, W), jnp.float32)
    w1 = jax.random.normal(kw1, (Cmid, Cin, 3, 3), jnp.float32) * 0.05
    w2 = jax.random.normal(kw2, (Cout, Cmid, 1, 1), jnp.float32) * 0.05
    gamma1 = 1.0 + 0.1 * jax.random.normal(kg1, (Cmid,), jnp.float32)
    beta1 = 0.1 * jax.random.normal(kb1, (Cmid,), jnp.float32)
    gamma2 = 1.0 + 0.1 * jax.random.normal(kg2, (Cout,), jnp.float32)
    beta2 = 0.1 * jax.random.normal(kb2, (Cout,), jnp.float32)

    ref = jax.block_until_ready(
        _reference_forward(x, w1, gamma1, beta1, w2, gamma2, beta2))

    # 1) f32 MXU path: tight check (validates the shifted-slab im2col indexing,
    #    masking of halo rows and the fused BN folding).
    out_f32 = jax.block_until_ready(
        fused_forward(x, w1, gamma1, beta1, w2, gamma2, beta2,
                      compute_dtype=jnp.float32))
    assert out_f32.shape == (N, Cout, H, W), out_f32.shape
    assert jnp.allclose(out_f32, ref, rtol=1e-3, atol=1e-3), \
        float(jnp.max(jnp.abs(out_f32 - ref)))

    # 2) bf16 MXU path (perf config, f32 accumulation): looser tolerance vs the
    #    pure-f32 reference since matmul operands are rounded to bf16.
    out_bf16 = jax.block_until_ready(
        fused_forward(x, w1, gamma1, beta1, w2, gamma2, beta2,
                      compute_dtype=jnp.bfloat16))
    assert out_bf16.shape == (N, Cout, H, W), out_bf16.shape
    assert jnp.allclose(out_bf16, ref, rtol=2e-2, atol=3e-2), \
        float(jnp.max(jnp.abs(out_bf16 - ref)))

    print("KERNEL_OK")
</pallas_src>

<mosaic_0001>
module attributes {stable_mosaic.version = 11 : i64} {
  func.func @_fused_kernel(%arg0: memref<686x64xf32, #tpu.memory_space<vmem>>, %arg1: memref<648x1xf32, #tpu.memory_space<vmem>>, %arg2: memref<576x64xf32, #tpu.memory_space<vmem>>, %arg3: memref<1x64xf32, #tpu.memory_space<vmem>>, %arg4: memref<1x64xf32, #tpu.memory_space<vmem>>, %arg5: memref<64x256xf32, #tpu.memory_space<vmem>>, %arg6: memref<1x256xf32, #tpu.memory_space<vmem>>, %arg7: memref<1x256xf32, #tpu.memory_space<vmem>>, %arg8: memref<648x256xf32, #tpu.memory_space<vmem>>, %arg9: memref<648x576xf32, #tpu.memory_space<vmem>>) attributes {dimension_semantics = [], scalar_prefetch = 0 : i64, scratch_operands = 1 : i64, tpu.core_type = #tpu.core_type<tc>} {
    %c0 = arith.constant 0 : index
    %c0_0 = arith.constant 0 : index
    %0 = vector.load %arg0[%c0, %c0_0] : memref<686x64xf32, #tpu.memory_space<vmem>>, vector<648x64xf32>
    %c0_1 = arith.constant 0 : index
    %c0_2 = arith.constant 0 : index
    %1 = vector.load %arg9[%c0_1, %c0_2] : memref<648x576xf32, #tpu.memory_space<vmem>>, vector<648x64xf32>
    tpu.vector_store %arg9[%c0_1, %c0_2], %0 {strides = array<i32>} : memref<648x576xf32, #tpu.memory_space<vmem>>, vector<648x64xf32>,
    %c1 = arith.constant 1 : index
    %c0_3 = arith.constant 0 : index
    %2 = vector.load %arg0[%c1, %c0_3] : memref<686x64xf32, #tpu.memory_space<vmem>>, vector<648x64xf32>
    %c0_4 = arith.constant 0 : index
    %c64 = arith.constant 64 : index
    %3 = vector.load %arg9[%c0_4, %c64] : memref<648x576xf32, #tpu.memory_space<vmem>>, vector<648x64xf32>
    tpu.vector_store %arg9[%c0_4, %c64], %2 {strides = array<i32>} : memref<648x576xf32, #tpu.memory_space<vmem>>, vector<648x64xf32>,
    %c2 = arith.constant 2 : index
    %c0_5 = arith.constant 0 : index
    %4 = vector.load %arg0[%c2, %c0_5] : memref<686x64xf32, #tpu.memory_space<vmem>>, vector<648x64xf32>
    %c0_6 = arith.constant 0 : index
    %c128 = arith.constant 128 : index
    %5 = vector.load %arg9[%c0_6, %c128] : memref<648x576xf32, #tpu.memory_space<vmem>>, vector<648x64xf32>
    tpu.vector_store %arg9[%c0_6, %c128], %4 {strides = array<i32>} : memref<648x576xf32, #tpu.memory_space<vmem>>, vector<648x64xf32>,
    %c18 = arith.constant 18 : index
    %c0_7 = arith.constant 0 : index
    %6 = vector.load %arg0[%c18, %c0_7] : memref<686x64xf32, #tpu.memory_space<vmem>>, vector<648x64xf32>
    %c0_8 = arith.constant 0 : index
    %c192 = arith.constant 192 : index
    %7 = vector.load %arg9[%c0_8, %c192] : memref<648x576xf32, #tpu.memory_space<vmem>>, vector<648x64xf32>
    tpu.vector_store %arg9[%c0_8, %c192], %6 {strides = array<i32>} : memref<648x576xf32, #tpu.memory_space<vmem>>, vector<648x64xf32>,
    %c19 = arith.constant 19 : index
    %c0_9 = arith.constant 0 : index
    %8 = vector.load %arg0[%c19, %c0_9] : memref<686x64xf32, #tpu.memory_space<vmem>>, vector<648x64xf32>
    %c0_10 = arith.constant 0 : index
    %c256 = arith.constant 256 : index
    %9 = vector.load %arg9[%c0_10, %c256] : memref<648x576xf32, #tpu.memory_space<vmem>>, vector<648x64xf32>
    tpu.vector_store %arg9[%c0_10, %c256], %8 {strides = array<i32>} : memref<648x576xf32, #tpu.memory_space<vmem>>, vector<648x64xf32>,
    %c20 = arith.constant 20 : index
    %c0_11 = arith.constant 0 : index
    %10 = vector.load %arg0[%c20, %c0_11] : memref<686x64xf32, #tpu.memory_space<vmem>>, vector<648x64xf32>
    %c0_12 = arith.constant 0 : index
    %c320 = arith.constant 320 : index
    %11 = vector.load %arg9[%c0_12, %c320] : memref<648x576xf32, #tpu.memory_space<vmem>>, vector<648x64xf32>
    tpu.vector_store %arg9[%c0_12, %c320], %10 {strides = array<i32>} : memref<648x576xf32, #tpu.memory_space<vmem>>, vector<648x64xf32>,
    %c36 = arith.constant 36 : index
    %c0_13 = arith.constant 0 : index
    %12 = vector.load %arg0[%c36, %c0_13] : memref<686x64xf32, #tpu.memory_space<vmem>>, vector<648x64xf32>
    %c0_14 = arith.constant 0 : index
    %c384 = arith.constant 384 : index
    %13 = vector.load %arg9[%c0_14, %c384] : memref<648x576xf32, #tpu.memory_space<vmem>>, vector<648x64xf32>
    tpu.vector_store %arg9[%c0_14, %c384], %12 {strides = array<i32>} : memref<648x576xf32, #tpu.memory_space<vmem>>, vector<648x64xf32>,
    %c37 = arith.constant 37 : index
    %c0_15 = arith.constant 0 : index
    %14 = vector.load %arg0[%c37, %c0_15] : memref<686x64xf32, #tpu.memory_space<vmem>>, vector<648x64xf32>
    %c0_16 = arith.constant 0 : index
    %c448 = arith.constant 448 : index
    %15 = vector.load %arg9[%c0_16, %c448] : memref<648x576xf32, #tpu.memory_space<vmem>>, vector<648x64xf32>
    tpu.vector_store %arg9[%c0_16, %c448], %14 {strides = array<i32>} : memref<648x576xf32, #tpu.memory_space<vmem>>, vector<648x64xf32>,
    %c38 = arith.constant 38 : index
    %c0_17 = arith.constant 0 : index
    %16 = vector.load %arg0[%c38, %c0_17] : memref<686x64xf32, #tpu.memory_space<vmem>>, vector<648x64xf32>
    %c0_18 = arith.constant 0 : index
    %c512 = arith.constant 512 : index
    %17 = vector.load %arg9[%c0_18, %c512] : memref<648x576xf32, #tpu.memory_space<vmem>>, vector<648x64xf32>
    tpu.vector_store %arg9[%c0_18, %c512], %16 {strides = array<i32>} : memref<648x576xf32, #tpu.memory_space<vmem>>, vector<648x64xf32>,
    %c0_19 = arith.constant 0 : index
    %c0_20 = arith.constant 0 : index
    %18 = vector.load %arg1[%c0_19, %c0_20] : memref<648x1xf32, #tpu.memory_space<vmem>>, vector<648x1xf32>
    %c0_21 = arith.constant 0 : index
    %c0_22 = arith.constant 0 : index
    %19 = vector.load %arg9[%c0_21, %c0_22] : memref<648x576xf32, #tpu.memory_space<vmem>>, vector<648x576xf32>
    %c0_23 = arith.constant 0 : index
    %c0_24 = arith.constant 0 : index
    %20 = vector.load %arg2[%c0_23, %c0_24] : memref<576x64xf32, #tpu.memory_space<vmem>>, vector<576x64xf32>
    %cst = arith.constant dense<0.000000e+00> : vector<648x64xf32>
    %21 = tpu.matmul %19, %20, %cst {dimension_numbers = #tpu.dot_dimension_numbers<[1], [0], [0], [1], [0, 0, 1, 1], [], []>} : vector<648x576xf32>, vector<576x64xf32>, vector<648x64xf32> -> vector<648x64xf32>
    %22 = vector.broadcast %18 : vector<648x1xf32> to vector<648x64xf32>
    %23 = arith.mulf %21, %22 : vector<648x64xf32>
    %cst_25 = arith.constant dense<0.000000e+00> : vector<64xf32>
    %24 = vector.multi_reduction <add>, %23, %cst_25 [0] : vector<648x64xf32> to vector<64xf32>
    %25 = vector.shape_cast %24 : vector<64xf32> to vector<1x64xf32>
    %26 = arith.mulf %23, %23 : vector<648x64xf32>
    %cst_26 = arith.constant dense<0.000000e+00> : vector<64xf32>
    %27 = vector.multi_reduction <add>, %26, %cst_26 [0] : vector<648x64xf32> to vector<64xf32>
    %28 = vector.shape_cast %27 : vector<64xf32> to vector<1x64xf32>
    %cst_27 = arith.constant 0.001953125 : f32
    %29 = vector.broadcast %cst_27 : f32 to vector<1x64xf32>
    %30 = arith.mulf %25, %29 : vector<1x64xf32>
    %cst_28 = arith.constant 0.001953125 : f32
    %31 = vector.broadcast %cst_28 : f32 to vector<1x64xf32>
    %32 = arith.mulf %28, %31 : vector<1x64xf32>
    %33 = arith.mulf %30, %30 : vector<1x64xf32>
    %34 = arith.subf %32, %33 : vector<1x64xf32>
    %cst_29 = arith.constant 0.000000e+00 : f32
    %35 = vector.broadcast %cst_29 : f32 to vector<1x64xf32>
    %36 = arith.maximumf %34, %35 : vector<1x64xf32>
    %c0_30 = arith.constant 0 : index
    %c0_31 = arith.constant 0 : index
    %37 = vector.load %arg3[%c0_30, %c0_31] : memref<1x64xf32, #tpu.memory_space<vmem>>, vector<1x64xf32>
    %cst_32 = arith.constant 9.99999974E-6 : f32
    %38 = vector.broadcast %cst_32 : f32 to vector<1x64xf32>
    %39 = arith.addf %36, %38 : vector<1x64xf32>
    %40 = math.rsqrt %39 : vector<1x64xf32>
    %41 = arith.mulf %37, %40 : vector<1x64xf32>
    %c0_33 = arith.constant 0 : index
    %c0_34 = arith.constant 0 : index
    %42 = vector.load %arg4[%c0_33, %c0_34] : memref<1x64xf32, #tpu.memory_space<vmem>>, vector<1x64xf32>
    %43 = arith.mulf %30, %41 : vector<1x64xf32>
    %44 = arith.subf %42, %43 : vector<1x64xf32>
    %45 = vector.broadcast %41 : vector<1x64xf32> to vector<648x64xf32>
    %46 = arith.mulf %23, %45 : vector<648x64xf32>
    %47 = vector.broadcast %44 : vector<1x64xf32> to vector<648x64xf32>
    %48 = arith.addf %46, %47 : vector<648x64xf32>
    %cst_35 = arith.constant 0.000000e+00 : f32
    %49 = vector.broadcast %cst_35 : f32 to vector<648x64xf32>
    %50 = arith.maximumf %48, %49 : vector<648x64xf32>
    %51 = vector.broadcast %18 : vector<648x1xf32> to vector<648x64xf32>
    %52 = arith.mulf %50, %51 : vector<648x64xf32>
    %c0_36 = arith.constant 0 : index
    %c0_37 = arith.constant 0 : index
    %53 = vector.load %arg5[%c0_36, %c0_37] : memref<64x256xf32, #tpu.memory_space<vmem>>, vector<64x256xf32>
    %cst_38 = arith.constant dense<0.000000e+00> : vector<648x256xf32>
    %54 = tpu.matmul %52, %53, %cst_38 {dimension_numbers = #tpu.dot_dimension_numbers<[1], [0], [0], [1], [0, 0, 1, 1], [], []>} : vector<648x64xf32>, vector<64x256xf32>, vector<648x256xf32> -> vector<648x256xf32>
    %c0_39 = arith.constant 0 : index
    %c0_40 = arith.constant 0 : index
    %55 = vector.load %arg8[%c0_39, %c0_40] : memref<648x256xf32, #tpu.memory_space<vmem>>, vector<648x256xf32>
    tpu.vector_store %arg8[%c0_39, %c0_40], %54 {strides = array<i32>} : memref<648x256xf32, #tpu.memory_space<vmem>>, vector<648x256xf32>,
    %c0_41 = arith.constant 0 : index
    %c0_42 = arith.constant 0 : index
    %56 = vector.load %arg8[%c0_41, %c0_42] : memref<648x256xf32, #tpu.memory_space<vmem>>, vector<648x256xf32>
    %cst_43 = arith.constant dense<0.000000e+00> : vector<256xf32>
    %57 = vector.multi_reduction <add>, %56, %cst_43 [0] : vector<648x256xf32> to vector<256xf32>
    %58 = vector.shape_cast %57 : vector<256xf32> to vector<1x256xf32>
    %59 = arith.mulf %56, %56 : vector<648x256xf32>
    %cst_44 = arith.constant dense<0.000000e+00> : vector<256xf32>
    %60 = vector.multi_reduction <add>, %59, %cst_44 [0] : vector<648x256xf32> to vector<256xf32>
    %61 = vector.shape_cast %60 : vector<256xf32> to vector<1x256xf32>
    %cst_45 = arith.constant 0.001953125 : f32
    %62 = vector.broadcast %cst_45 : f32 to vector<1x256xf32>
    %63 = arith.mulf %58, %62 : vector<1x256xf32>
    %cst_46 = arith.constant 0.001953125 : f32
    %64 = vector.broadcast %cst_46 : f32 to vector<1x256xf32>
    %65 = arith.mulf %61, %64 : vector<1x256xf32>
    %66 = arith.mulf %63, %63 : vector<1x256xf32>
    %67 = arith.subf %65, %66 : vector<1x256xf32>
    %cst_47 = arith.constant 0.000000e+00 : f32
    %68 = vector.broadcast %cst_47 : f32 to vector<1x256xf32>
    %69 = arith.maximumf %67, %68 : vector<1x256xf32>
    %c0_48 = arith.constant 0 : index
    %c0_49 = arith.constant 0 : index
    %70 = vector.load %arg6[%c0_48, %c0_49] : memref<1x256xf32, #tpu.memory_space<vmem>>, vector<1x256xf32>
    %cst_50 = arith.constant 9.99999974E-6 : f32
    %71 = vector.broadcast %cst_50 : f32 to vector<1x256xf32>
    %72 = arith.addf %69, %71 : vector<1x256xf32>
    %73 = math.rsqrt %72 : vector<1x256xf32>
    %74 = arith.mulf %70, %73 : vector<1x256xf32>
    %c0_51 = arith.constant 0 : index
    %c0_52 = arith.constant 0 : index
    %75 = vector.load %arg7[%c0_51, %c0_52] : memref<1x256xf32, #tpu.memory_space<vmem>>, vector<1x256xf32>
    %76 = arith.mulf %63, %74 : vector<1x256xf32>
    %77 = arith.subf %75, %76 : vector<1x256xf32>
    %78 = vector.broadcast %74 : vector<1x256xf32> to vector<648x256xf32>
    %79 = arith.mulf %56, %78 : vector<648x256xf32>
    %80 = vector.broadcast %77 : vector<1x256xf32> to vector<648x256xf32>
    %81 = arith.addf %79, %80 : vector<648x256xf32>
    %c0_53 = arith.constant 0 : index
    %c0_54 = arith.constant 0 : index
    %82 = vector.load %arg8[%c0_53, %c0_54] : memref<648x256xf32, #tpu.memory_space<vmem>>, vector<648x256xf32>
    tpu.vector_store %arg8[%c0_53, %c0_54], %81 {strides = array<i32>} : memref<648x256xf32, #tpu.memory_space<vmem>>, vector<648x256xf32>,
    return
  }
}

</mosaic_0001>

<llo_original>
// kernel: fused_forward.1
$region0: #{fused_forward.1}
  #allocation0 [shape = 'u32[]', space=smem, size = 0x4, offset = 0x4, fixed_abs, tag = 'smem constant byte address 0x4 - core index']
  #allocation1 [shape = 'u32[72,128]{1,0:T(1,128)}', space=vmem, size = 0x9000, scoped, tag = 'internal scratch']
  #allocation2 [shape = 'f32[648,576]{1,0:T(8,128)}', space=vmem, size = 0x195000, scoped, tag = 'scratch operand']
  %s0 = inlined_call_operand.vmem [shape: f32[686,64], index: 0, kind: input, shape index: {}]
  %s1 = inlined_call_operand.vmem [shape: f32[648,1], index: 1, kind: input, shape index: {}]
  %s2 = inlined_call_operand.vmem [shape: f32[576,64], index: 2, kind: input, shape index: {}]
  %s3 = inlined_call_operand.vmem [shape: f32[1,64], index: 3, kind: input, shape index: {}]
  %s4 = inlined_call_operand.vmem [shape: f32[1,64], index: 4, kind: input, shape index: {}]
  %s5 = inlined_call_operand.vmem [shape: f32[64,256], index: 5, kind: input, shape index: {}]
  %s6 = inlined_call_operand.vmem [shape: f32[1,256], index: 6, kind: input, shape index: {}]
  %s7 = inlined_call_operand.vmem [shape: f32[1,256], index: 7, kind: input, shape index: {}]
  %s8 = inlined_call_operand.vmem [shape: f32[648,256], index: 8, kind: output, shape index: {}]
  %s9 = sld [smem:[#allocation0]]
  $region42: #{fused_forward.1} parent=0
    _
  %s11 = ssub.s32 1, %s9
  %s12 = scalar_select 0, %s11, %s9
  // Predicated region
  $region2: #{fused_forward.1} parent=0 // pred_check
    _
  $region3: #{fused_forward.1} parent=0 // pred_check_branch
    %14 = sbr.rel (0) target = $region5
  $region4: #{fused_forward.1} parent=0 // pred_region
    _
  $region5: #{fused_forward.1} parent=0 // pred_fallthru
    _
  // Predicated region
  $region6: #{fused_forward.1} parent=0 // pred_check
    _
  $region7: #{fused_forward.1} parent=0 // pred_check_branch
    %16 = sbr.rel (0) target = $region9
  $region8: #{fused_forward.1} parent=0 // pred_region
    _
  $region9: #{fused_forward.1} parent=0 // pred_fallthru
    _
  // Predicated region
  $region10: #{fused_forward.1} parent=0 // pred_check
    _
  $region11: #{fused_forward.1} parent=0 // pred_check_branch
    %18 = sbr.rel (0) target = $region13
  $region12: #{fused_forward.1} parent=0 // pred_region
    _
  $region13: #{fused_forward.1} parent=0 // pred_fallthru
    _
  // Predicated region
  $region14: #{fused_forward.1} parent=0 // pred_check
    _
  $region15: #{fused_forward.1} parent=0 // pred_check_branch
    %20 = sbr.rel (0) target = $region17
  $region16: #{fused_forward.1} parent=0 // pred_region
    _
  $region17: #{fused_forward.1} parent=0 // pred_fallthru
    _
  // Predicated region
  $region18: #{fused_forward.1} parent=0 // pred_check
    _
  $region19: #{fused_forward.1} parent=0 // pred_check_branch
    %22 = sbr.rel (0) target = $region21
  $region20: #{fused_forward.1} parent=0 // pred_region
    _
  $region21: #{fused_forward.1} parent=0 // pred_fallthru
    _
  // Predicated region
  $region22: #{fused_forward.1} parent=0 // pred_check
    _
  $region23: #{fused_forward.1} parent=0 // pred_check_branch
    %24 = sbr.rel (0) target = $region25
  $region24: #{fused_forward.1} parent=0 // pred_region
    _
  $region25: #{fused_forward.1} parent=0 // pred_fallthru
    _
  // Predicated region
  $region26: #{fused_forward.1} parent=0 // pred_check
    _
  $region27: #{fused_forward.1} parent=0 // pred_check_branch
    %26 = sbr.rel (0) target = $region29
  $region28: #{fused_forward.1} parent=0 // pred_region
    _
  $region29: #{fused_forward.1} parent=0 // pred_fallthru
    _
  // Predicated region
  $region30: #{fused_forward.1} parent=0 // pred_check
    _
  $region31: #{fused_forward.1} parent=0 // pred_check_branch
    %28 = sbr.rel (0) target = $region33
  $region32: #{fused_forward.1} parent=0 // pred_region
    _
  $region33: #{fused_forward.1} parent=0 // pred_fallthru
    _
  %v29 = vld [vmem:[%s0] sm:$0xff]
  %v30 = vld [vmem:[%s0 + $0x8] sm:$0xff]
  %v31 = vld [vmem:[%s0 + $0x10] sm:$0xff]
  %v32 = vld [vmem:[%s0 + $0x18] sm:$0xff]
  %v33 = vld [vmem:[%s0 + $0x20] sm:$0xff]
  %v34 = vld [vmem:[%s0 + $0x28] sm:$0xff]
  %v35 = vld [vmem:[%s0 + $0x30] sm:$0xff]
  %v36 = vld [vmem:[%s0 + $0x38] sm:$0xff]
  %v37 = vld [vmem:[%s0 + $0x40] sm:$0xff]
  %v38 = vld [vmem:[%s0 + $0x48] sm:$0xff]
  %v39 = vld [vmem:[%s0 + $0x50] sm:$0xff]
  %v40 = vld [vmem:[%s0 + $0x58] sm:$0xff]
  %v41 = vld [vmem:[%s0 + $0x60] sm:$0xff]
  %v42 = vld [vmem:[%s0 + $0x68] sm:$0xff]
  %v43 = vld [vmem:[%s0 + $0x70] sm:$0xff]
  %v44 = vld [vmem:[%s0 + $0x78] sm:$0xff]
  %v45 = vld [vmem:[%s0 + $0x80] sm:$0xff]
  %v46 = vld [vmem:[%s0 + $0x88] sm:$0xff]
  %v47 = vld [vmem:[%s0 + $0x90] sm:$0xff]
  %v48 = vld [vmem:[%s0 + $0x98] sm:$0xff]
  %v49 = vld [vmem:[%s0 + $0xa0] sm:$0xff]
  %v50 = vld [vmem:[%s0 + $0xa8] sm:$0xff]
  %v51 = vld [vmem:[%s0 + $0xb0] sm:$0xff]
  %v52 = vld [vmem:[%s0 + $0xb8] sm:$0xff]
  %v53 = vld [vmem:[%s0 + $0xc0] sm:$0xff]
  %v54 = vld [vmem:[%s0 + $0xc8] sm:$0xff]
  %v55 = vld [vmem:[%s0 + $0xd0] sm:$0xff]
  %v56 = vld [vmem:[%s0 + $0xd8] sm:$0xff]
  %v57 = vld [vmem:[%s0 + $0xe0] sm:$0xff]
  %v58 = vld [vmem:[%s0 + $0xe8] sm:$0xff]
  %v59 = vld [vmem:[%s0 + $0xf0] sm:$0xff]
  %v60 = vld [vmem:[%s0 + $0xf8] sm:$0xff]
  %v61 = vld [vmem:[%s0 + $0x100] sm:$0xff]
  %v62 = vld [vmem:[%s0 + $0x108] sm:$0xff]
  %v63 = vld [vmem:[%s0 + $0x110] sm:$0xff]
  %v64 = vld [vmem:[%s0 + $0x118] sm:$0xff]
  %v65 = vld [vmem:[%s0 + $0x120] sm:$0xff]
  %v66 = vld [vmem:[%s0 + $0x128] sm:$0xff]
  %v67 = vld [vmem:[%s0 + $0x130] sm:$0xff]
  %v68 = vld [vmem:[%s0 + $0x138] sm:$0xff]
  %v69 = vld [vmem:[%s0 + $0x140] sm:$0xff]
  %v70 = vld [vmem:[%s0 + $0x148] sm:$0xff]
  %v71 = vld [vmem:[%s0 + $0x150] sm:$0xff]
  %v72 = vld [vmem:[%s0 + $0x158] sm:$0xff]
  %v73 = vld [vmem:[%s0 + $0x160] sm:$0xff]
  %v74 = vld [vmem:[%s0 + $0x168] sm:$0xff]
  %v75 = vld [vmem:[%s0 + $0x170] sm:$0xff]
  %v76 = vld [vmem:[%s0 + $0x178] sm:$0xff]
  %v77 = vld [vmem:[%s0 + $0x180] sm:$0xff]
  %v78 = vld [vmem:[%s0 + $0x188] sm:$0xff]
  %v79 = vld [vmem:[%s0 + $0x190] sm:$0xff]
  %v80 = vld [vmem:[%s0 + $0x198] sm:$0xff]
  %v81 = vld [vmem:[%s0 + $0x1a0] sm:$0xff]
  %v82 = vld [vmem:[%s0 + $0x1a8] sm:$0xff]
  %v83 = vld [vmem:[%s0 + $0x1b0] sm:$0xff]
  %v84 = vld [vmem:[%s0 + $0x1b8] sm:$0xff]
  %v85 = vld [vmem:[%s0 + $0x1c0] sm:$0xff]
  %v86 = vld [vmem:[%s0 + $0x1c8] sm:$0xff]
  %v87 = vld [vmem:[%s0 + $0x1d0] sm:$0xff]
  %v88 = vld [vmem:[%s0 + $0x1d8] sm:$0xff]
  %v89 = vld [vmem:[%s0 + $0x1e0] sm:$0xff]
  %v90 = vld [vmem:[%s0 + $0x1e8] sm:$0xff]
  %v91 = vld [vmem:[%s0 + $0x1f0] sm:$0xff]
  %v92 = vld [vmem:[%s0 + $0x1f8] sm:$0xff]
  %v93 = vld [vmem:[%s0 + $0x200] sm:$0xff]
  %v94 = vld [vmem:[%s0 + $0x208] sm:$0xff]
  %v95 = vld [vmem:[%s0 + $0x210] sm:$0xff]
  %v96 = vld [vmem:[%s0 + $0x218] sm:$0xff]
  %v97 = vld [vmem:[%s0 + $0x220] sm:$0xff]
  %v98 = vld [vmem:[%s0 + $0x228] sm:$0xff]
  %v99 = vld [vmem:[%s0 + $0x230] sm:$0xff]
  %v100 = vld [vmem:[%s0 + $0x238] sm:$0xff]
  %v101 = vld [vmem:[%s0 + $0x240] sm:$0xff]
  %v102 = vld [vmem:[%s0 + $0x248] sm:$0xff]
  %v103 = vld [vmem:[%s0 + $0x250] sm:$0xff]
  %v104 = vld [vmem:[%s0 + $0x258] sm:$0xff]
  %v105 = vld [vmem:[%s0 + $0x260] sm:$0xff]
  %v106 = vld [vmem:[%s0 + $0x268] sm:$0xff]
  %v107 = vld [vmem:[%s0 + $0x270] sm:$0xff]
  %v108 = vld [vmem:[%s0 + $0x278] sm:$0xff]
  %v109 = vld [vmem:[%s0 + $0x280] sm:$0xff]
  %vm110 = vcmask 523264
  %111 = vst.msk [vmem:[#allocation2] sm:$0xff] %vm110, %v29
  %112 = vst.msk [vmem:[#allocation2 + $0x28] sm:$0xff] %vm110, %v30
  %113 = vst.msk [vmem:[#allocation2 + $0x50] sm:$0xff] %vm110, %v31
  %114 = vst.msk [vmem:[#allocation2 + $0x78] sm:$0xff] %vm110, %v32
  %115 = vst.msk [vmem:[#allocation2 + $0xa0] sm:$0xff] %vm110, %v33
  %116 = vst.msk [vmem:[#allocation2 + $0xc8] sm:$0xff] %vm110, %v34
  %117 = vst.msk [vmem:[#allocation2 + $0xf0] sm:$0xff] %vm110, %v35
  %118 = vst.msk [vmem:[#allocation2 + $0x118] sm:$0xff] %vm110, %v36
  %119 = vst.msk [vmem:[#allocation2 + $0x140] sm:$0xff] %vm110, %v37
  %120 = vst.msk [vmem:[#allocation2 + $0x168] sm:$0xff] %vm110, %v38
  %121 = vst.msk [vmem:[#allocation2 + $0x190] sm:$0xff] %vm110, %v39
  %122 = vst.msk [vmem:[#allocation2 + $0x1b8] sm:$0xff] %vm110, %v40
  %123 = vst.msk [vmem:[#allocation2 + $0x1e0] sm:$0xff] %vm110, %v41
  %124 = vst.msk [vmem:[#allocation2 + $0x208] sm:$0xff] %vm110, %v42
  %125 = vst.msk [vmem:[#allocation2 + $0x230] sm:$0xff] %vm110, %v43
  %126 = vst.msk [vmem:[#allocation2 + $0x258] sm:$0xff] %vm110, %v44
  %127 = vst.msk [vmem:[#allocation2 + $0x280] sm:$0xff] %vm110, %v45
  %128 = vst.msk [vmem:[#allocation2 + $0x2a8] sm:$0xff] %vm110, %v46
  %129 = vst.msk [vmem:[#allocation2 + $0x2d0] sm:$0xff] %vm110, %v47
  %130 = vst.msk [vmem:[#allocation2 + $0x2f8] sm:$0xff] %vm110, %v48
  %131 = vst.msk [vmem:[#allocation2 + $0x320] sm:$0xff] %vm110, %v49
  %132 = vst.msk [vmem:[#allocation2 + $0x348] sm:$0xff] %vm110, %v50
  %133 = vst.msk [vmem:[#allocation2 + $0x370] sm:$0xff] %vm110, %v51
  %134 = vst.msk [vmem:[#allocation2 + $0x398] sm:$0xff] %vm110, %v52
  %135 = vst.msk [vmem:[#allocation2 + $0x3c0] sm:$0xff] %vm110, %v53
  %136 = vst.msk [vmem:[#allocation2 + $0x3e8] sm:$0xff] %vm110, %v54
  %137 = vst.msk [vmem:[#allocation2 + $0x410] sm:$0xff] %vm110, %v55
  %138 = vst.msk [vmem:[#allocation2 + $0x438] sm:$0xff] %vm110, %v56
  %139 = vst.msk [vmem:[#allocation2 + $0x460] sm:$0xff] %vm110, %v57
  %140 = vst.msk [vmem:[#allocation2 + $0x488] sm:$0xff] %vm110, %v58
  %141 = vst.msk [vmem:[#allocation2 + $0x4b0] sm:$0xff] %vm110, %v59
  %142 = vst.msk [vmem:[#allocation2 + $0x4d8] sm:$0xff] %vm110, %v60
  %143 = vst.msk [vmem:[#allocation2 + $0x500] sm:$0xff] %vm110, %v61
  %144 = vst.msk [vmem:[#allocation2 + $0x528] sm:$0xff] %vm110, %v62
  %145 = vst.msk [vmem:[#allocation2 + $0x550] sm:$0xff] %vm110, %v63
  %146 = vst.msk [vmem:[#allocation2 + $0x578] sm:$0xff] %vm110, %v64
  %147 = vst.msk [vmem:[#allocation2 + $0x5a0] sm:$0xff] %vm110, %v65
  %148 = vst.msk [vmem:[#allocation2 + $0x5c8] sm:$0xff] %vm110, %v66
  %149 = vst.msk [vmem:[#allocation2 + $0x5f0] sm:$0xff] %vm110, %v67
  %150 = vst.msk [vmem:[#allocation2 + $0x618] sm:$0xff] %vm110, %v68
  %151 = vst.msk [vmem:[#allocation2 + $0x640] sm:$0xff] %vm110, %v69
  %152 = vst.msk [vmem:[#allocation2 + $0x668] sm:$0xff] %vm110, %v70
  %153 = vst.msk [vmem:[#allocation2 + $0x690] sm:$0xff] %vm110, %v71
  %154 = vst.msk [vmem:[#allocation2 + $0x6b8] sm:$0xff] %vm110, %v72
  %155 = vst.msk [vmem:[#allocation2 + $0x6e0] sm:$0xff] %vm110, %v73
  %156 = vst.msk [vmem:[#allocation2 + $0x708] sm:$0xff] %vm110, %v74
  %157 = vst.msk [vmem:[#allocation2 + $0x730] sm:$0xff] %vm110, %v75
  %158 = vst.msk [vmem:[#allocation2 + $0x758] sm:$0xff] %vm110, %v76
  %159 = vst.msk [vmem:[#allocation2 + $0x780] sm:$0xff] %vm110, %v77
  %160 = vst.msk [vmem:[#allocation2 + $0x7a8] sm:$0xff] %vm110, %v78
  %161 = vst.msk [vmem:[#allocation2 + $0x7d0] sm:$0xff] %vm110, %v79
  %162 = vst.msk [vmem:[#allocation2 + $0x7f8] sm:$0xff] %vm110, %v80
  %163 = vst.msk [vmem:[#allocation2 + $0x820] sm:$0xff] %vm110, %v81
  %164 = vst.msk [vmem:[#allocation2 + $0x848] sm:$0xff] %vm110, %v82
  %165 = vst.msk [vmem:[#allocation2 + $0x870] sm:$0xff] %vm110, %v83
  %166 = vst.msk [vmem:[#allocation2 + $0x898] sm:$0xff] %vm110, %v84
  %167 = vst.msk [vmem:[#allocation2 + $0x8c0] sm:$0xff] %vm110, %v85
  %168 = vst.msk [vmem:[#allocation2 + $0x8e8] sm:$0xff] %vm110, %v86
  %169 = vst.msk [vmem:[#allocation2 + $0x910] sm:$0xff] %vm110, %v87
  %170 = vst.msk [vmem:[#allocation2 + $0x938] sm:$0xff] %vm110, %v88
  %171 = vst.msk [vmem:[#allocation2 + $0x960] sm:$0xff] %vm110, %v89
  %172 = vst.msk [vmem:[#allocation2 + $0x988] sm:$0xff] %vm110, %v90
  %173 = vst.msk [vmem:[#allocation2 + $0x9b0] sm:$0xff] %vm110, %v91
  %174 = vst.msk [vmem:[#allocation2 + $0x9d8] sm:$0xff] %vm110, %v92
  %175 = vst.msk [vmem:[#allocation2 + $0xa00] sm:$0xff] %vm110, %v93
  %176 = vst.msk [vmem:[#allocation2 + $0xa28] sm:$0xff] %vm110, %v94
  %177 = vst.msk [vmem:[#allocation2 + $0xa50] sm:$0xff] %vm110, %v95
  %178 = vst.msk [vmem:[#allocation2 + $0xa78] sm:$0xff] %vm110, %v96
  %179 = vst.msk [vmem:[#allocation2 + $0xaa0] sm:$0xff] %vm110, %v97
  %180 = vst.msk [vmem:[#allocation2 + $0xac8] sm:$0xff] %vm110, %v98
  %181 = vst.msk [vmem:[#allocation2 + $0xaf0] sm:$0xff] %vm110, %v99
  %182 = vst.msk [vmem:[#allocation2 + $0xb18] sm:$0xff] %vm110, %v100
  %183 = vst.msk [vmem:[#allocation2 + $0xb40] sm:$0xff] %vm110, %v101
  %184 = vst.msk [vmem:[#allocation2 + $0xb68] sm:$0xff] %vm110, %v102
  %185 = vst.msk [vmem:[#allocation2 + $0xb90] sm:$0xff] %vm110, %v103
  %186 = vst.msk [vmem:[#allocation2 + $0xbb8] sm:$0xff] %vm110, %v104
  %187 = vst.msk [vmem:[#allocation2 + $0xbe0] sm:$0xff] %vm110, %v105
  %188 = vst.msk [vmem:[#allocation2 + $0xc08] sm:$0xff] %vm110, %v106
  %189 = vst.msk [vmem:[#allocation2 + $0xc30] sm:$0xff] %vm110, %v107
  %190 = vst.msk [vmem:[#allocation2 + $0xc58] sm:$0xff] %vm110, %v108
  %191 = vst.msk [vmem:[#allocation2 + $0xc80] sm:$0xff] %vm110, %v109
  %v192 = vld [vmem:[%s0 + $0x1] sm:$0xff]
  %v193 = vld [vmem:[%s0 + $0x9] sm:$0xff]
  %v194 = vld [vmem:[%s0 + $0x11] sm:$0xff]
  %v195 = vld [vmem:[%s0 + $0x19] sm:$0xff]
  %v196 = vld [vmem:[%s0 + $0x21] sm:$0xff]
  %v197 = vld [vmem:[%s0 + $0x29] sm:$0xff]
  %v198 = vld [vmem:[%s0 + $0x31] sm:$0xff]
  %v199 = vld [vmem:[%s0 + $0x39] sm:$0xff]
  %v200 = vld [vmem:[%s0 + $0x41] sm:$0xff]
  %v201 = vld [vmem:[%s0 + $0x49] sm:$0xff]
  %v202 = vld [vmem:[%s0 + $0x51] sm:$0xff]
  %v203 = vld [vmem:[%s0 + $0x59] sm:$0xff]
  %v204 = vld [vmem:[%s0 + $0x61] sm:$0xff]
  %v205 = vld [vmem:[%s0 + $0x69] sm:$0xff]
  %v206 = vld [vmem:[%s0 + $0x71] sm:$0xff]
  %v207 = vld [vmem:[%s0 + $0x79] sm:$0xff]
  %v208 = vld [vmem:[%s0 + $0x81] sm:$0xff]
  %v209 = vld [vmem:[%s0 + $0x89] sm:$0xff]
  %v210 = vld [vmem:[%s0 + $0x91] sm:$0xff]
  %v211 = vld [vmem:[%s0 + $0x99] sm:$0xff]
  %v212 = vld [vmem:[%s0 + $0xa1] sm:$0xff]
  %v213 = vld [vmem:[%s0 + $0xa9] sm:$0xff]
  %v214 = vld [vmem:[%s0 + $0xb1] sm:$0xff]
  %v215 = vld [vmem:[%s0 + $0xb9] sm:$0xff]
  %v216 = vld [vmem:[%s0 + $0xc1] sm:$0xff]
  %v217 = vld [vmem:[%s0 + $0xc9] sm:$0xff]
  %v218 = vld [vmem:[%s0 + $0xd1] sm:$0xff]
  %v219 = vld [vmem:[%s0 + $0xd9] sm:$0xff]
  %v220 = vld [vmem:[%s0 + $0xe1] sm:$0xff]
  %v221 = vld [vmem:[%s0 + $0xe9] sm:$0xff]
  %v222 = vld [vmem:[%s0 + $0xf1] sm:$0xff]
  %v223 = vld [vmem:[%s0 + $0xf9] sm:$0xff]
  %v224 = vld [vmem:[%s0 + $0x101] sm:$0xff]
  %v225 = vld [vmem:[%s0 + $0x109] sm:$0xff]
  %v226 = vld [vmem:[%s0 + $0x111] sm:$0xff]
  %v227 = vld [vmem:[%s0 + $0x119] sm:$0xff]
  %v228 = vld [vmem:[%s0 + $0x121] sm:$0xff]
  %v229 = vld [vmem:[%s0 + $0x129] sm:$0xff]
  %v230 = vld [vmem:[%s0 + $0x131] sm:$0xff]
  %v231 = vld [vmem:[%s0 + $0x139] sm:$0xff]
  %v232 = vld [vmem:[%s0 + $0x141] sm:$0xff]
  %v233 = vld [vmem:[%s0 + $0x149] sm:$0xff]
  %v234 = vld [vmem:[%s0 + $0x151] sm:$0xff]
  %v235 = vld [vmem:[%s0 + $0x159] sm:$0xff]
  %v236 = vld [vmem:[%s0 + $0x161] sm:$0xff]
  %v237 = vld [vmem:[%s0 + $0x169] sm:$0xff]
  %v238 = vld [vmem:[%s0 + $0x171] sm:$0xff]
  %v239 = vld [vmem:[%s0 + $0x179] sm:$0xff]
  %v240 = vld [vmem:[%s0 + $0x181] sm:$0xff]
  %v241 = vld [vmem:[%s0 + $0x189] sm:$0xff]
  %v242 = vld [vmem:[%s0 + $0x191] sm:$0xff]
  %v243 = vld [vmem:[%s0 + $0x199] sm:$0xff]
  %v244 = vld [vmem:[%s0 + $0x1a1] sm:$0xff]
  %v245 = vld [vmem:[%s0 + $0x1a9] sm:$0xff]
  %v246 = vld [vmem:[%s0 + $0x1b1] sm:$0xff]
  %v247 = vld [vmem:[%s0 + $0x1b9] sm:$0xff]
  %v248 = vld [vmem:[%s0 + $0x1c1] sm:$0xff]
  %v249 = vld [vmem:[%s0 + $0x1c9] sm:$0xff]
  %v250 = vld [vmem:[%s0 + $0x1d1] sm:$0xff]
  %v251 = vld [vmem:[%s0 + $0x1d9] sm:$0xff]
  %v252 = vld [vmem:[%s0 + $0x1e1] sm:$0xff]
  %v253 = vld [vmem:[%s0 + $0x1e9] sm:$0xff]
  %v254 = vld [vmem:[%s0 + $0x1f1] sm:$0xff]
  %v255 = vld [vmem:[%s0 + $0x1f9] sm:$0xff]
  %v256 = vld [vmem:[%s0 + $0x201] sm:$0xff]
  %v257 = vld [vmem:[%s0 + $0x209] sm:$0xff]
  %v258 = vld [vmem:[%s0 + $0x211] sm:$0xff]
  %v259 = vld [vmem:[%s0 + $0x219] sm:$0xff]
  %v260 = vld [vmem:[%s0 + $0x221] sm:$0xff]
  %v261 = vld [vmem:[%s0 + $0x229] sm:$0xff]
  %v262 = vld [vmem:[%s0 + $0x231] sm:$0xff]
  %v263 = vld [vmem:[%s0 + $0x239] sm:$0xff]
  %v264 = vld [vmem:[%s0 + $0x241] sm:$0xff]
  %v265 = vld [vmem:[%s0 + $0x249] sm:$0xff]
  %v266 = vld [vmem:[%s0 + $0x251] sm:$0xff]
  %v267 = vld [vmem:[%s0 + $0x259] sm:$0xff]
  %v268 = vld [vmem:[%s0 + $0x261] sm:$0xff]
  %v269 = vld [vmem:[%s0 + $0x269] sm:$0xff]
  %v270 = vld [vmem:[%s0 + $0x271] sm:$0xff]
  %v271 = vld [vmem:[%s0 + $0x279] sm:$0xff]
  %v272 = vld [vmem:[%s0 + $0x281] sm:$0xff]
  %354 = vrot.lane.b32.xlu0 %v192, 64
  %v355 = vpop.permute.xlu0 %354
  %356 = vrot.lane.b32.xlu0 %v193, 64
  %v357 = vpop.permute.xlu0 %356
  %358 = vrot.lane.b32.xlu0 %v194, 64
  %v359 = vpop.permute.xlu0 %358
  %360 = vrot.lane.b32.xlu0 %v195, 64
  %v361 = vpop.permute.xlu0 %360
  %362 = vrot.lane.b32.xlu0 %v196, 64
  %v363 = vpop.permute.xlu0 %362
  %364 = vrot.lane.b32.xlu0 %v197, 64
  %v365 = vpop.permute.xlu0 %364
  %366 = vrot.lane.b32.xlu0 %v198, 64
  %v367 = vpop.permute.xlu0 %366
  %368 = vrot.lane.b32.xlu0 %v199, 64
  %v369 = vpop.permute.xlu0 %368
  %370 = vrot.lane.b32.xlu0 %v200, 64
  %v371 = vpop.permute.xlu0 %370
  %372 = vrot.lane.b32.xlu0 %v201, 64
  %v373 = vpop.permute.xlu0 %372
  %374 = vrot.lane.b32.xlu0 %v202, 64
  %v375 = vpop.permute.xlu0 %374
  %376 = vrot.lane.b32.xlu0 %v203, 64
  %v377 = vpop.permute.xlu0 %376
  %378 = vrot.lane.b32.xlu0 %v204, 64
  %v379 = vpop.permute.xlu0 %378
  %380 = vrot.lane.b32.xlu0 %v205, 64
  %v381 = vpop.permute.xlu0 %380
  %382 = vrot.lane.b32.xlu0 %v206, 64
  %v383 = vpop.permute.xlu0 %382
  %384 = vrot.lane.b32.xlu0 %v207, 64
  %v385 = vpop.permute.xlu0 %384
  %386 = vrot.lane.b32.xlu0 %v208, 64
  %v387 = vpop.permute.xlu0 %386
  %388 = vrot.lane.b32.xlu0 %v209, 64
  %v389 = vpop.permute.xlu0 %388
  %390 = vrot.lane.b32.xlu0 %v210, 64
  %v391 = vpop.permute.xlu0 %390
  %392 = vrot.lane.b32.xlu0 %v211, 64
  %v393 = vpop.permute.xlu0 %392
  %394 = vrot.lane.b32.xlu0 %v212, 64
  %v395 = vpop.permute.xlu0 %394
  %396 = vrot.lane.b32.xlu0 %v213, 64
  %v397 = vpop.permute.xlu0 %396
  %398 = vrot.lane.b32.xlu0 %v214, 64
  %v399 = vpop.permute.xlu0 %398
  %400 = vrot.lane.b32.xlu0 %v215, 64
  %v401 = vpop.permute.xlu0 %400
  %402 = vrot.lane.b32.xlu0 %v216, 64
  %v403 = vpop.permute.xlu0 %402
  %404 = vrot.lane.b32.xlu0 %v217, 64
  %v405 = vpop.permute.xlu0 %404
  %406 = vrot.lane.b32.xlu0 %v218, 64
  %v407 = vpop.permute.xlu0 %406
  %408 = vrot.lane.b32.xlu0 %v219, 64
  %v409 = vpop.permute.xlu0 %408
  %410 = vrot.lane.b32.xlu0 %v220, 64
  %v411 = vpop.permute.xlu0 %410
  %412 = vrot.lane.b32.xlu0 %v221, 64
  %v413 = vpop.permute.xlu0 %412
  %414 = vrot.lane.b32.xlu0 %v222, 64
  %v415 = vpop.permute.xlu0 %414
  %416 = vrot.lane.b32.xlu0 %v223, 64
  %v417 = vpop.permute.xlu0 %416
  %418 = vrot.lane.b32.xlu0 %v224, 64
  %v419 = vpop.permute.xlu0 %418
  %420 = vrot.lane.b32.xlu0 %v225, 64
  %v421 = vpop.permute.xlu0 %420
  %422 = vrot.lane.b32.xlu0 %v226, 64
  %v423 = vpop.permute.xlu0 %422
  %424 = vrot.lane.b32.xlu0 %v227, 64
  %v425 = vpop.permute.xlu0 %424
  %426 = vrot.lane.b32.xlu0 %v228, 64
  %v427 = vpop.permute.xlu0 %426
  %428 = vrot.lane.b32.xlu0 %v229, 64
  %v429 = vpop.permute.xlu0 %428
  %430 = vrot.lane.b32.xlu0 %v230, 64
  %v431 = vpop.permute.xlu0 %430
  %432 = vrot.lane.b32.xlu0 %v231, 64
  %v433 = vpop.permute.xlu0 %432
  %434 = vrot.lane.b32.xlu0 %v232, 64
  %v435 = vpop.permute.xlu0 %434
  %436 = vrot.lane.b32.xlu0 %v233, 64
  %v437 = vpop.permute.xlu0 %436
  %438 = vrot.lane.b32.xlu0 %v234, 64
  %v439 = vpop.permute.xlu0 %438
  %440 = vrot.lane.b32.xlu0 %v235, 64
  %v441 = vpop.permute.xlu0 %440
  %442 = vrot.lane.b32.xlu0 %v236, 64
  %v443 = vpop.permute.xlu0 %442
  %444 = vrot.lane.b32.xlu0 %v237, 64
  %v445 = vpop.permute.xlu0 %444
  %446 = vrot.lane.b32.xlu0 %v238, 64
  %v447 = vpop.permute.xlu0 %446
  %448 = vrot.lane.b32.xlu0 %v239, 64
  %v449 = vpop.permute.xlu0 %448
  %450 = vrot.lane.b32.xlu0 %v240, 64
  %v451 = vpop.permute.xlu0 %450
  %452 = vrot.lane.b32.xlu0 %v241, 64
  %v453 = vpop.permute.xlu0 %452
  %454 = vrot.lane.b32.xlu0 %v242, 64
  %v455 = vpop.permute.xlu0 %454
  %456 = vrot.lane.b32.xlu0 %v243, 64
  %v457 = vpop.permute.xlu0 %456
  %458 = vrot.lane.b32.xlu0 %v244, 64
  %v459 = vpop.permute.xlu0 %458
  %460 = vrot.lane.b32.xlu0 %v245, 64
  %v461 = vpop.permute.xlu0 %460
  %462 = vrot.lane.b32.xlu0 %v246, 64
  %v463 = vpop.permute.xlu0 %462
  %464 = vrot.lane.b32.xlu0 %v247, 64
  %v465 = vpop.permute.xlu0 %464
  %466 = vrot.lane.b32.xlu0 %v248, 64
  %v467 = vpop.permute.xlu0 %466
  %468 = vrot.lane.b32.xlu0 %v249, 64
  %v469 = vpop.permute.xlu0 %468
  %470 = vrot.lane.b32.xlu0 %v250, 64
  %v471 = vpop.permute.xlu0 %470
  %472 = vrot.lane.b32.xlu0 %v251, 64
  %v473 = vpop.permute.xlu0 %472
  %474 = vrot.lane.b32.xlu0 %v252, 64
  %v475 = vpop.permute.xlu0 %474
  %476 = vrot.lane.b32.xlu0 %v253, 64
  %v477 = vpop.permute.xlu0 %476
  %478 = vrot.lane.b32.xlu0 %v254, 64
  %v479 = vpop.permute.xlu0 %478
  %480 = vrot.lane.b32.xlu0 %v255, 64
  %v481 = vpop.permute.xlu0 %480
  %482 = vrot.lane.b32.xlu0 %v256, 64
  %v483 = vpop.permute.xlu0 %482
  %484 = vrot.lane.b32.xlu0 %v257, 64
  %v485 = vpop.permute.xlu0 %484
  %486 = vrot.lane.b32.xlu0 %v258, 64
  %v487 = vpop.permute.xlu0 %486
  %488 = vrot.lane.b32.xlu0 %v259, 64
  %v489 = vpop.permute.xlu0 %488
  %490 = vrot.lane.b32.xlu0 %v260, 64
  %v491 = vpop.permute.xlu0 %490
  %492 = vrot.lane.b32.xlu0 %v261, 64
  %v493 = vpop.permute.xlu0 %492
  %494 = vrot.lane.b32.xlu0 %v262, 64
  %v495 = vpop.permute.xlu0 %494
  %496 = vrot.lane.b32.xlu0 %v263, 64
  %v497 = vpop.permute.xlu0 %496
  %498 = vrot.lane.b32.xlu0 %v264, 64
  %v499 = vpop.permute.xlu0 %498
  %500 = vrot.lane.b32.xlu0 %v265, 64
  %v501 = vpop.permute.xlu0 %500
  %502 = vrot.lane.b32.xlu0 %v266, 64
  %v503 = vpop.permute.xlu0 %502
  %504 = vrot.lane.b32.xlu0 %v267, 64
  %v505 = vpop.permute.xlu0 %504
  %506 = vrot.lane.b32.xlu0 %v268, 64
  %v507 = vpop.permute.xlu0 %506
  %508 = vrot.lane.b32.xlu0 %v269, 64
  %v509 = vpop.permute.xlu0 %508
  %510 = vrot.lane.b32.xlu0 %v270, 64
  %v511 = vpop.permute.xlu0 %510
  %512 = vrot.lane.b32.xlu0 %v271, 64
  %v513 = vpop.permute.xlu0 %512
  %514 = vrot.lane.b32.xlu0 %v272, 64
  %v515 = vpop.permute.xlu0 %514
  %vm597 = vcmask 1048064
  %598 = vst.msk [vmem:[#allocation2] sm:$0xff] %vm597, %v355
  %599 = vst.msk [vmem:[#allocation2 + $0x28] sm:$0xff] %vm597, %v357
  %600 = vst.msk [vmem:[#allocation2 + $0x50] sm:$0xff] %vm597, %v359
  %601 = vst.msk [vmem:[#allocation2 + $0x78] sm:$0xff] %vm597, %v361
  %602 = vst.msk [vmem:[#allocation2 + $0xa0] sm:$0xff] %vm597, %v363
  %603 = vst.msk [vmem:[#allocation2 + $0xc8] sm:$0xff] %vm597, %v365
  %604 = vst.msk [vmem:[#allocation2 + $0xf0] sm:$0xff] %vm597, %v367
  %605 = vst.msk [vmem:[#allocation2 + $0x118] sm:$0xff] %vm597, %v369
  %606 = vst.msk [vmem:[#allocation2 + $0x140] sm:$0xff] %vm597, %v371
  %607 = vst.msk [vmem:[#allocation2 + $0x168] sm:$0xff] %vm597, %v373
  %608 = vst.msk [vmem:[#allocation2 + $0x190] sm:$0xff] %vm597, %v375
  %609 = vst.msk [vmem:[#allocation2 + $0x1b8] sm:$0xff] %vm597, %v377
  %610 = vst.msk [vmem:[#allocation2 + $0x1e0] sm:$0xff] %vm597, %v379
  %611 = vst.msk [vmem:[#allocation2 + $0x208] sm:$0xff] %vm597, %v381
  %612 = vst.msk [vmem:[#allocation2 + $0x230] sm:$0xff] %vm597, %v383
  %613 = vst.msk [vmem:[#allocation2 + $0x258] sm:$0xff] %vm597, %v385
  %614 = vst.msk [vmem:[#allocation2 + $0x280] sm:$0xff] %vm597, %v387
  %615 = vst.msk [vmem:[#allocation2 + $0x2a8] sm:$0xff] %vm597, %v389
  %616 = vst.msk [vmem:[#allocation2 + $0x2d0] sm:$0xff] %vm597, %v391
  %617 = vst.msk [vmem:[#allocation2 + $0x2f8] sm:$0xff] %vm597, %v393
  %618 = vst.msk [vmem:[#allocation2 + $0x320] sm:$0xff] %vm597, %v395
  %619 = vst.msk [vmem:[#allocation2 + $0x348] sm:$0xff] %vm597, %v397
  %620 = vst.msk [vmem:[#allocation2 + $0x370] sm:$0xff] %vm597, %v399
  %621 = vst.msk [vmem:[#allocation2 + $0x398] sm:$0xff] %vm597, %v401
  %622 = vst.msk [vmem:[#allocation2 + $0x3c0] sm:$0xff] %vm597, %v403
  %623 = vst.msk [vmem:[#allocation2 + $0x3e8] sm:$0xff] %vm597, %v405
  %624 = vst.msk [vmem:[#allocation2 + $0x410] sm:$0xff] %vm597, %v407
  %625 = vst.msk [vmem:[#allocation2 + $0x438] sm:$0xff] %vm597, %v409
  %626 = vst.msk [vmem:[#allocation2 + $0x460] sm:$0xff] %vm597, %v411
  %627 = vst.msk [vmem:[#allocation2 + $0x488] sm:$0xff] %vm597, %v413
  %628 = vst.msk [vmem:[#allocation2 + $0x4b0] sm:$0xff] %vm597, %v415
  %629 = vst.msk [vmem:[#allocation2 + $0x4d8] sm:$0xff] %vm597, %v417
  %630 = vst.msk [vmem:[#allocation2 + $0x500] sm:$0xff] %vm597, %v419
  %631 = vst.msk [vmem:[#allocation2 + $0x528] sm:$0xff] %vm597, %v421
  %632 = vst.msk [vmem:[#allocation2 + $0x550] sm:$0xff] %vm597, %v423
  %633 = vst.msk [vmem:[#allocation2 + $0x578] sm:$0xff] %vm597, %v425
  %634 = vst.msk [vmem:[#allocation2 + $0x5a0] sm:$0xff] %vm597, %v427
  %635 = vst.msk [vmem:[#allocation2 + $0x5c8] sm:$0xff] %vm597, %v429
  %636 = vst.msk [vmem:[#allocation2 + $0x5f0] sm:$0xff] %vm597, %v431
  %637 = vst.msk [vmem:[#allocation2 + $0x618] sm:$0xff] %vm597, %v433
  %638 = vst.msk [vmem:[#allocation2 + $0x640] sm:$0xff] %vm597, %v435
  %639 = vst.msk [vmem:[#allocation2 + $0x668] sm:$0xff] %vm597, %v437
  %640 = vst.msk [vmem:[#allocation2 + $0x690] sm:$0xff] %vm597, %v439
  %641 = vst.msk [vmem:[#allocation2 + $0x6b8] sm:$0xff] %vm597, %v441
  %642 = vst.msk [vmem:[#allocation2 + $0x6e0] sm:$0xff] %vm597, %v443
  %643 = vst.msk [vmem:[#allocation2 + $0x708] sm:$0xff] %vm597, %v445
  %644 = vst.msk [vmem:[#allocation2 + $0x730] sm:$0xff] %vm597, %v447
  %645 = vst.msk [vmem:[#allocation2 + $0x758] sm:$0xff] %vm597, %v449
  %646 = vst.msk [vmem:[#allocation2 + $0x780] sm:$0xff] %vm597, %v451
  %647 = vst.msk [vmem:[#allocation2 + $0x7a8] sm:$0xff] %vm597, %v453
  %648 = vst.msk [vmem:[#allocation2 + $0x7d0] sm:$0xff] %vm597, %v455
  %649 = vst.msk [vmem:[#allocation2 + $0x7f8] sm:$0xff] %vm597, %v457
  %650 = vst.msk [vmem:[#allocation2 + $0x820] sm:$0xff] %vm597, %v459
  %651 = vst.msk [vmem:[#allocation2 + $0x848] sm:$0xff] %vm597, %v461
  %652 = vst.msk [vmem:[#allocation2 + $0x870] sm:$0xff] %vm597, %v463
  %653 = vst.msk [vmem:[#allocation2 + $0x898] sm:$0xff] %vm597, %v465
  %654 = vst.msk [vmem:[#allocation2 + $0x8c0] sm:$0xff] %vm597, %v467
  %655 = vst.msk [vmem:[#allocation2 + $0x8e8] sm:$0xff] %vm597, %v469
  %656 = vst.msk [vmem:[#allocation2 + $0x910] sm:$0xff] %vm597, %v471
  %657 = vst.msk [vmem:[#allocation2 + $0x938] sm:$0xff] %vm597, %v473
  %658 = vst.msk [vmem:[#allocation2 + $0x960] sm:$0xff] %vm597, %v475
  %659 = vst.msk [vmem:[#allocation2 + $0x988] sm:$0xff] %vm597, %v477
  %660 = vst.msk [vmem:[#allocation2 + $0x9b0] sm:$0xff] %vm597, %v479
  %661 = vst.msk [vmem:[#allocation2 + $0x9d8] sm:$0xff] %vm597, %v481
  %662 = vst.msk [vmem:[#allocation2 + $0xa00] sm:$0xff] %vm597, %v483
  %663 = vst.msk [vmem:[#allocation2 + $0xa28] sm:$0xff] %vm597, %v485
  %664 = vst.msk [vmem:[#allocation2 + $0xa50] sm:$0xff] %vm597, %v487
  %665 = vst.msk [vmem:[#allocation2 + $0xa78] sm:$0xff] %vm597, %v489
  %666 = vst.msk [vmem:[#allocation2 + $0xaa0] sm:$0xff] %vm597, %v491
  %667 = vst.msk [vmem:[#allocation2 + $0xac8] sm:$0xff] %vm597, %v493
  %668 = vst.msk [vmem:[#allocation2 + $0xaf0] sm:$0xff] %vm597, %v495
  %669 = vst.msk [vmem:[#allocation2 + $0xb18] sm:$0xff] %vm597, %v497
  %670 = vst.msk [vmem:[#allocation2 + $0xb40] sm:$0xff] %vm597, %v499
  %671 = vst.msk [vmem:[#allocation2 + $0xb68] sm:$0xff] %vm597, %v501
  %672 = vst.msk [vmem:[#allocation2 + $0xb90] sm:$0xff] %vm597, %v503
  %673 = vst.msk [vmem:[#allocation2 + $0xbb8] sm:$0xff] %vm597, %v505
  %674 = vst.msk [vmem:[#allocation2 + $0xbe0] sm:$0xff] %vm597, %v507
  %675 = vst.msk [vmem:[#allocation2 + $0xc08] sm:$0xff] %vm597, %v509
  %676 = vst.msk [vmem:[#allocation2 + $0xc30] sm:$0xff] %vm597, %v511
  %677 = vst.msk [vmem:[#allocation2 + $0xc58] sm:$0xff] %vm597, %v513
  %678 = vst.msk [vmem:[#allocation2 + $0xc80] sm:$0xff] %vm597, %v515
  %v679 = vld [vmem:[%s0 + $0x2] sm:$0xff]
  %v680 = vld [vmem:[%s0 + $0xa] sm:$0xff]
  %v681 = vld [vmem:[%s0 + $0x12] sm:$0xff]
  %v682 = vld [vmem:[%s0 + $0x1a] sm:$0xff]
  %v683 = vld [vmem:[%s0 + $0x22] sm:$0xff]
  %v684 = vld [vmem:[%s0 + $0x2a] sm:$0xff]
  %v685 = vld [vmem:[%s0 + $0x32] sm:$0xff]
  %v686 = vld [vmem:[%s0 + $0x3a] sm:$0xff]
  %v687 = vld [vmem:[%s0 + $0x42] sm:$0xff]
  %v688 = vld [vmem:[%s0 + $0x4a] sm:$0xff]
  %v689 = vld [vmem:[%s0 + $0x52] sm:$0xff]
  %v690 = vld [vmem:[%s0 + $0x5a] sm:$0xff]
  %v691 = vld [vmem:[%s0 + $0x62] sm:$0xff]
  %v692 = vld [vmem:[%s0 + $0x6a] sm:$0xff]
  %v693 = vld [vmem:[%s0 + $0x72] sm:$0xff]
  %v694 = vld [vmem:[%s0 + $0x7a] sm:$0xff]
  %v695 = vld [vmem:[%s0 + $0x82] sm:$0xff]
  %v696 = vld [vmem:[%s0 + $0x8a] sm:$0xff]
  %v697 = vld [vmem:[%s0 + $0x92] sm:$0xff]
  %v698 = vld [vmem:[%s0 + $0x9a] sm:$0xff]
  %v699 = vld [vmem:[%s0 + $0xa2] sm:$0xff]
  %v700 = vld [vmem:[%s0 + $0xaa] sm:$0xff]
  %v701 = vld [vmem:[%s0 + $0xb2] sm:$0xff]
  %v702 = vld [vmem:[%s0 + $0xba] sm:$0xff]
  %v703 = vld [vmem:[%s0 + $0xc2] sm:$0xff]
  %v704 = vld [vmem:[%s0 + $0xca] sm:$0xff]
  %v705 = vld [vmem:[%s0 + $0xd2] sm:$0xff]
  %v706 = vld [vmem:[%s0 + $0xda] sm:$0xff]
  %v707 = vld [vmem:[%s0 + $0xe2] sm:$0xff]
  %v708 = vld [vmem:[%s0 + $0xea] sm:$0xff]
  %v709 = vld [vmem:[%s0 + $0xf2] sm:$0xff]
  %v710 = vld [vmem:[%s0 + $0xfa] sm:$0xff]
  %v711 = vld [vmem:[%s0 + $0x102] sm:$0xff]
  %v712 = vld [vmem:[%s0 + $0x10a] sm:$0xff]
  %v713 = vld [vmem:[%s0 + $0x112] sm:$0xff]
  %v714 = vld [vmem:[%s0 + $0x11a] sm:$0xff]
  %v715 = vld [vmem:[%s0 + $0x122] sm:$0xff]
  %v716 = vld [vmem:[%s0 + $0x12a] sm:$0xff]
  %v717 = vld [vmem:[%s0 + $0x132] sm:$0xff]
  %v718 = vld [vmem:[%s0 + $0x13a] sm:$0xff]
  %v719 = vld [vmem:[%s0 + $0x142] sm:$0xff]
  %v720 = vld [vmem:[%s0 + $0x14a] sm:$0xff]
  %v721 = vld [vmem:[%s0 + $0x152] sm:$0xff]
  %v722 = vld [vmem:[%s0 + $0x15a] sm:$0xff]
  %v723 = vld [vmem:[%s0 + $0x162] sm:$0xff]
  %v724 = vld [vmem:[%s0 + $0x16a] sm:$0xff]
  %v725 = vld [vmem:[%s0 + $0x172] sm:$0xff]
  %v726 = vld [vmem:[%s0 + $0x17a] sm:$0xff]
  %v727 = vld [vmem:[%s0 + $0x182] sm:$0xff]
  %v728 = vld [vmem:[%s0 + $0x18a] sm:$0xff]
  %v729 = vld [vmem:[%s0 + $0x192] sm:$0xff]
  %v730 = vld [vmem:[%s0 + $0x19a] sm:$0xff]
  %v731 = vld [vmem:[%s0 + $0x1a2] sm:$0xff]
  %v732 = vld [vmem:[%s0 + $0x1aa] sm:$0xff]
  %v733 = vld [vmem:[%s0 + $0x1b2] sm:$0xff]
  %v734 = vld [vmem:[%s0 + $0x1ba] sm:$0xff]
  %v735 = vld [vmem:[%s0 + $0x1c2] sm:$0xff]
  %v736 = vld [vmem:[%s0 + $0x1ca] sm:$0xff]
  %v737 = vld [vmem:[%s0 + $0x1d2] sm:$0xff]
  %v738 = vld [vmem:[%s0 + $0x1da] sm:$0xff]
  %v739 = vld [vmem:[%s0 + $0x1e2] sm:$0xff]
  %v740 = vld [vmem:[%s0 + $0x1ea] sm:$0xff]
  %v741 = vld [vmem:[%s0 + $0x1f2] sm:$0xff]
  %v742 = vld [vmem:[%s0 + $0x1fa] sm:$0xff]
  %v743 = vld [vmem:[%s0 + $0x202] sm:$0xff]
  %v744 = vld [vmem:[%s0 + $0x20a] sm:$0xff]
  %v745 = vld [vmem:[%s0 + $0x212] sm:$0xff]
  %v746 = vld [vmem:[%s0 + $0x21a] sm:$0xff]
  %v747 = vld [vmem:[%s0 + $0x222] sm:$0xff]
  %v748 = vld [vmem:[%s0 + $0x22a] sm:$0xff]
  %v749 = vld [vmem:[%s0 + $0x232] sm:$0xff]
  %v750 = vld [vmem:[%s0 + $0x23a] sm:$0xff]
  %v751 = vld [vmem:[%s0 + $0x242] sm:$0xff]
  %v752 = vld [vmem:[%s0 + $0x24a] sm:$0xff]
  %v753 = vld [vmem:[%s0 + $0x252] sm:$0xff]
  %v754 = vld [vmem:[%s0 + $0x25a] sm:$0xff]
  %v755 = vld [vmem:[%s0 + $0x262] sm:$0xff]
  %v756 = vld [vmem:[%s0 + $0x26a] sm:$0xff]
  %v757 = vld [vmem:[%s0 + $0x272] sm:$0xff]
  %v758 = vld [vmem:[%s0 + $0x27a] sm:$0xff]
  %v759 = vld [vmem:[%s0 + $0x282] sm:$0xff]
  %760 = vst.msk [vmem:[#allocation2 + $0x8] sm:$0xff] %vm110, %v679
  %761 = vst.msk [vmem:[#allocation2 + $0x30] sm:$0xff] %vm110, %v680
  %762 = vst.msk [vmem:[#allocation2 + $0x58] sm:$0xff] %vm110, %v681
  %763 = vst.msk [vmem:[#allocation2 + $0x80] sm:$0xff] %vm110, %v682
  %764 = vst.msk [vmem:[#allocation2 + $0xa8] sm:$0xff] %vm110, %v683
  %765 = vst.msk [vmem:[#allocation2 + $0xd0] sm:$0xff] %vm110, %v684
  %766 = vst.msk [vmem:[#allocation2 + $0xf8] sm:$0xff] %vm110, %v685
  %767 = vst.msk [vmem:[#allocation2 + $0x120] sm:$0xff] %vm110, %v686
  %768 = vst.msk [vmem:[#allocation2 + $0x148] sm:$0xff] %vm110, %v687
  %769 = vst.msk [vmem:[#allocation2 + $0x170] sm:$0xff] %vm110, %v688
  %770 = vst.msk [vmem:[#allocation2 + $0x198] sm:$0xff] %vm110, %v689
  %771 = vst.msk [vmem:[#allocation2 + $0x1c0] sm:$0xff] %vm110, %v690
  %772 = vst.msk [vmem:[#allocation2 + $0x1e8] sm:$0xff] %vm110, %v691
  %773 = vst.msk [vmem:[#allocation2 + $0x210] sm:$0xff] %vm110, %v692
  %774 = vst.msk [vmem:[#allocation2 + $0x238] sm:$0xff] %vm110, %v693
  %775 = vst.msk [vmem:[#allocation2 + $0x260] sm:$0xff] %vm110, %v694
  %776 = vst.msk [vmem:[#allocation2 + $0x288] sm:$0xff] %vm110, %v695
  %777 = vst.msk [vmem:[#allocation2 + $0x2b0] sm:$0xff] %vm110, %v696
  %778 = vst.msk [vmem:[#allocation2 + $0x2d8] sm:$0xff] %vm110, %v697
  %779 = vst.msk [vmem:[#allocation2 + $0x300] sm:$0xff] %vm110, %v698
  %780 = vst.msk [vmem:[#allocation2 + $0x328] sm:$0xff] %vm110, %v699
  %781 = vst.msk [vmem:[#allocation2 + $0x350] sm:$0xff] %vm110, %v700
  %782 = vst.msk [vmem:[#allocation2 + $0x378] sm:$0xff] %vm110, %v701
  %783 = vst.msk [vmem:[#allocation2 + $0x3a0] sm:$0xff] %vm110, %v702
  %784 = vst.msk [vmem:[#allocation2 + $0x3c8] sm:$0xff] %vm110, %v703
  %785 = vst.msk [vmem:[#allocation2 + $0x3f0] sm:$0xff] %vm110, %v704
  %786 = vst.msk [vmem:[#allocation2 + $0x418] sm:$0xff] %vm110, %v705
  %787 = vst.msk [vmem:[#allocation2 + $0x440] sm:$0xff] %vm110, %v706
  %788 = vst.msk [vmem:[#allocation2 + $0x468] sm:$0xff] %vm110, %v707
  %789 = vst.msk [vmem:[#allocation2 + $0x490] sm:$0xff] %vm110, %v708
  %790 = vst.msk [vmem:[#allocation2 + $0x4b8] sm:$0xff] %vm110, %v709
  %791 = vst.msk [vmem:[#allocation2 + $0x4e0] sm:$0xff] %vm110, %v710
  %792 = vst.msk [vmem:[#allocation2 + $0x508] sm:$0xff] %vm110, %v711
  %793 = vst.msk [vmem:[#allocation2 + $0x530] sm:$0xff] %vm110, %v712
  %794 = vst.msk [vmem:[#allocation2 + $0x558] sm:$0xff] %vm110, %v713
  %795 = vst.msk [vmem:[#allocation2 + $0x580] sm:$0xff] %vm110, %v714
  %796 = vst.msk [vmem:[#allocation2 + $0x5a8] sm:$0xff] %vm110, %v715
  %797 = vst.msk [vmem:[#allocation2 + $0x5d0] sm:$0xff] %vm110, %v716
  %798 = vst.msk [vmem:[#allocation2 + $0x5f8] sm:$0xff] %vm110, %v717
  %799 = vst.msk [vmem:[#allocation2 + $0x620] sm:$0xff] %vm110, %v718
  %800 = vst.msk [vmem:[#allocation2 + $0x648] sm:$0xff] %vm110, %v719
  %801 = vst.msk [vmem:[#allocation2 + $0x670] sm:$0xff] %vm110, %v720
  %802 = vst.msk [vmem:[#allocation2 + $0x698] sm:$0xff] %vm110, %v721
  %803 = vst.msk [vmem:[#allocation2 + $0x6c0] sm:$0xff] %vm110, %v722
  %804 = vst.msk [vmem:[#allocation2 + $0x6e8] sm:$0xff] %vm110, %v723
  %805 = vst.msk [vmem:[#allocation2 + $0x710] sm:$0xff] %vm110, %v724
  %806 = vst.msk [vmem:[#allocation2 + $0x738] sm:$0xff] %vm110, %v725
  %807 = vst.msk [vmem:[#allocation2 + $0x760] sm:$0xff] %vm110, %v726
  %808 = vst.msk [vmem:[#allocation2 + $0x788] sm:$0xff] %vm110, %v727
  %809 = vst.msk [vmem:[#allocation2 + $0x7b0] sm:$0xff] %vm110, %v728
  %810 = vst.msk [vmem:[#allocation2 + $0x7d8] sm:$0xff] %vm110, %v729
  %811 = vst.msk [vmem:[#allocation2 + $0x800] sm:$0xff] %vm110, %v730
  %812 = vst.msk [vmem:[#allocation2 + $0x828] sm:$0xff] %vm110, %v731
  %813 = vst.msk [vmem:[#allocation2 + $0x850] sm:$0xff] %vm110, %v732
  %814 = vst.msk [vmem:[#allocation2 + $0x878] sm:$0xff] %vm110, %v733
  %815 = vst.msk [vmem:[#allocation2 + $0x8a0] sm:$0xff] %vm110, %v734
  %816 = vst.msk [vmem:[#allocation2 + $0x8c8] sm:$0xff] %vm110, %v735
  %817 = vst.msk [vmem:[#allocation2 + $0x8f0] sm:$0xff] %vm110, %v736
  %818 = vst.msk [vmem:[#allocation2 + $0x918] sm:$0xff] %vm110, %v737
  %819 = vst.msk [vmem:[#allocation2 + $0x940] sm:$0xff] %vm110, %v738
  %820 = vst.msk [vmem:[#allocation2 + $0x968] sm:$0xff] %vm110, %v739
  %821 = vst.msk [vmem:[#allocation2 + $0x990] sm:$0xff] %vm110, %v740
  %822 = vst.msk [vmem:[#allocation2 + $0x9b8] sm:$0xff] %vm110, %v741
  %823 = vst.msk [vmem:[#allocation2 + $0x9e0] sm:$0xff] %vm110, %v742
  %824 = vst.msk [vmem:[#allocation2 + $0xa08] sm:$0xff] %vm110, %v743
  %825 = vst.msk [vmem:[#allocation2 + $0xa30] sm:$0xff] %vm110, %v744
  %826 = vst.msk [vmem:[#allocation2 + $0xa58] sm:$0xff] %vm110, %v745
  %827 = vst.msk [vmem:[#allocation2 + $0xa80] sm:$0xff] %vm110, %v746
  %828 = vst.msk [vmem:[#allocation2 + $0xaa8] sm:$0xff] %vm110, %v747
  %829 = vst.msk [vmem:[#allocation2 + $0xad0] sm:$0xff] %vm110, %v748
  %830 = vst.msk [vmem:[#allocation2 + $0xaf8] sm:$0xff] %vm110, %v749
  %831 = vst.msk [vmem:[#allocation2 + $0xb20] sm:$0xff] %vm110, %v750
  %832 = vst.msk [vmem:[#allocation2 + $0xb48] sm:$0xff] %vm110, %v751
  %833 = vst.msk [vmem:[#allocation2 + $0xb70] sm:$0xff] %vm110, %v752
  %834 = vst.msk [vmem:[#allocation2 + $0xb98] sm:$0xff] %vm110, %v753
  %835 = vst.msk [vmem:[#allocation2 + $0xbc0] sm:$0xff] %vm110, %v754
  %836 = vst.msk [vmem:[#allocation2 + $0xbe8] sm:$0xff] %vm110, %v755
  %837 = vst.msk [vmem:[#allocation2 + $0xc10] sm:$0xff] %vm110, %v756
  %838 = vst.msk [vmem:[#allocation2 + $0xc38] sm:$0xff] %vm110, %v757
  %839 = vst.msk [vmem:[#allocation2 + $0xc60] sm:$0xff] %vm110, %v758
  %840 = vst.msk [vmem:[#allocation2 + $0xc88] sm:$0xff] %vm110, %v759
  %v841 = vld [vmem:[%s0 + $0x12] sm:$0xff]
  %v842 = vld [vmem:[%s0 + $0x1a] sm:$0xff]
  %v843 = vld [vmem:[%s0 + $0x22] sm:$0xff]
  %v844 = vld [vmem:[%s0 + $0x2a] sm:$0xff]
  %v845 = vld [vmem:[%s0 + $0x32] sm:$0xff]
  %v846 = vld [vmem:[%s0 + $0x3a] sm:$0xff]
  %v847 = vld [vmem:[%s0 + $0x42] sm:$0xff]
  %v848 = vld [vmem:[%s0 + $0x4a] sm:$0xff]
  %v849 = vld [vmem:[%s0 + $0x52] sm:$0xff]
  %v850 = vld [vmem:[%s0 + $0x5a] sm:$0xff]
  %v851 = vld [vmem:[%s0 + $0x62] sm:$0xff]
  %v852 = vld [vmem:[%s0 + $0x6a] sm:$0xff]
  %v853 = vld [vmem:[%s0 + $0x72] sm:$0xff]
  %v854 = vld [vmem:[%s0 + $0x7a] sm:$0xff]
  %v855 = vld [vmem:[%s0 + $0x82] sm:$0xff]
  %v856 = vld [vmem:[%s0 + $0x8a] sm:$0xff]
  %v857 = vld [vmem:[%s0 + $0x92] sm:$0xff]
  %v858 = vld [vmem:[%s0 + $0x9a] sm:$0xff]
  %v859 = vld [vmem:[%s0 + $0xa2] sm:$0xff]
  %v860 = vld [vmem:[%s0 + $0xaa] sm:$0xff]
  %v861 = vld [vmem:[%s0 + $0xb2] sm:$0xff]
  %v862 = vld [vmem:[%s0 + $0xba] sm:$0xff]
  %v863 = vld [vmem:[%s0 + $0xc2] sm:$0xff]
  %v864 = vld [vmem:[%s0 + $0xca] sm:$0xff]
  %v865 = vld [vmem:[%s0 + $0xd2] sm:$0xff]
  %v866 = vld [vmem:[%s0 + $0xda] sm:$0xff]
  %v867 = vld [vmem:[%s0 + $0xe2] sm:$0xff]
  %v868 = vld [vmem:[%s0 + $0xea] sm:$0xff]
  %v869 = vld [vmem:[%s0 + $0xf2] sm:$0xff]
  %v870 = vld [vmem:[%s0 + $0xfa] sm:$0xff]
  %v871 = vld [vmem:[%s0 + $0x102] sm:$0xff]
  %v872 = vld [vmem:[%s0 + $0x10a] sm:$0xff]
  %v873 = vld [vmem:[%s0 + $0x112] sm:$0xff]
  %v874 = vld [vmem:[%s0 + $0x11a] sm:$0xff]
  %v875 = vld [vmem:[%s0 + $0x122] sm:$0xff]
  %v876 = vld [vmem:[%s0 + $0x12a] sm:$0xff]
  %v877 = vld [vmem:[%s0 + $0x132] sm:$0xff]
  %v878 = vld [vmem:[%s0 + $0x13a] sm:$0xff]
  %v879 = vld [vmem:[%s0 + $0x142] sm:$0xff]
  %v880 = vld [vmem:[%s0 + $0x14a] sm:$0xff]
  %v881 = vld [vmem:[%s0 + $0x152] sm:$0xff]
  %v882 = vld [vmem:[%s0 + $0x15a] sm:$0xff]
  %v883 = vld [vmem:[%s0 + $0x162] sm:$0xff]
  %v884 = vld [vmem:[%s0 + $0x16a] sm:$0xff]
  %v885 = vld [vmem:[%s0 + $0x172] sm:$0xff]
  %v886 = vld [vmem:[%s0 + $0x17a] sm:$0xff]
  %v887 = vld [vmem:[%s0 + $0x182] sm:$0xff]
  %v888 = vld [vmem:[%s0 + $0x18a] sm:$0xff]
  %v889 = vld [vmem:[%s0 + $0x192] sm:$0xff]
  %v890 = vld [vmem:[%s0 + $0x19a] sm:$0xff]
  %v891 = vld [vmem:[%s0 + $0x1a2] sm:$0xff]
  %v892 = vld [vmem:[%s0 + $0x1aa] sm:$0xff]
  %v893 = vld [vmem:[%s0 + $0x1b2] sm:$0xff]
  %v894 = vld [vmem:[%s0 + $0x1ba] sm:$0xff]
  %v895 = vld [vmem:[%s0 + $0x1c2] sm:$0xff]
  %v896 = vld [vmem:[%s0 + $0x1ca] sm:$0xff]
  %v897 = vld [vmem:[%s0 + $0x1d2] sm:$0xff]
  %v898 = vld [vmem:[%s0 + $0x1da] sm:$0xff]
  %v899 = vld [vmem:[%s0 + $0x1e2] sm:$0xff]
  %v900 = vld [vmem:[%s0 + $0x1ea] sm:$0xff]
  %v901 = vld [vmem:[%s0 + $0x1f2] sm:$0xff]
  %v902 = vld [vmem:[%s0 + $0x1fa] sm:$0xff]
  %v903 = vld [vmem:[%s0 + $0x202] sm:$0xff]
  %v904 = vld [vmem:[%s0 + $0x20a] sm:$0xff]
  %v905 = vld [vmem:[%s0 + $0x212] sm:$0xff]
  %v906 = vld [vmem:[%s0 + $0x21a] sm:$0xff]
  %v907 = vld [vmem:[%s0 + $0x222] sm:$0xff]
  %v908 = vld [vmem:[%s0 + $0x22a] sm:$0xff]
  %v909 = vld [vmem:[%s0 + $0x232] sm:$0xff]
  %v910 = vld [vmem:[%s0 + $0x23a] sm:$0xff]
  %v911 = vld [vmem:[%s0 + $0x242] sm:$0xff]
  %v912 = vld [vmem:[%s0 + $0x24a] sm:$0xff]
  %v913 = vld [vmem:[%s0 + $0x252] sm:$0xff]
  %v914 = vld [vmem:[%s0 + $0x25a] sm:$0xff]
  %v915 = vld [vmem:[%s0 + $0x262] sm:$0xff]
  %v916 = vld [vmem:[%s0 + $0x26a] sm:$0xff]
  %v917 = vld [vmem:[%s0 + $0x272] sm:$0xff]
  %v918 = vld [vmem:[%s0 + $0x27a] sm:$0xff]
  %v919 = vld [vmem:[%s0 + $0x282] sm:$0xff]
  %v920 = vld [vmem:[%s0 + $0x28a] sm:$0xff]
  %v921 = vld [vmem:[%s0 + $0x292] sm:$0xff]
  %1003 = vrot.lane.b32.xlu0 %v841, 64
  %v1004 = vpop.permute.xlu0 %1003
  %1005 = vrot.lane.b32.xlu0 %v842, 64
  %v1006 = vpop.permute.xlu0 %1005
  %1007 = vrot.lane.b32.xlu0 %v843, 64
  %v1008 = vpop.permute.xlu0 %1007
  %1009 = vrot.lane.b32.xlu0 %v844, 64
  %v1010 = vpop.permute.xlu0 %1009
  %1011 = vrot.lane.b32.xlu0 %v845, 64
  %v1012 = vpop.permute.xlu0 %1011
  %1013 = vrot.lane.b32.xlu0 %v846, 64
  %v1014 = vpop.permute.xlu0 %1013
  %1015 = vrot.lane.b32.xlu0 %v847, 64
  %v1016 = vpop.permute.xlu0 %1015
  %1017 = vrot.lane.b32.xlu0 %v848, 64
  %v1018 = vpop.permute.xlu0 %1017
  %1019 = vrot.lane.b32.xlu0 %v849, 64
  %v1020 = vpop.permute.xlu0 %1019
  %1021 = vrot.lane.b32.xlu0 %v850, 64
  %v1022 = vpop.permute.xlu0 %1021
  %1023 = vrot.lane.b32.xlu0 %v851, 64
  %v1024 = vpop.permute.xlu0 %1023
  %1025 = vrot.lane.b32.xlu0 %v852, 64
  %v1026 = vpop.permute.xlu0 %1025
  %1027 = vrot.lane.b32.xlu0 %v853, 64
  %v1028 = vpop.permute.xlu0 %1027
  %1029 = vrot.lane.b32.xlu0 %v854, 64
  %v1030 = vpop.permute.xlu0 %1029
  %1031 = vrot.lane.b32.xlu0 %v855, 64
  %v1032 = vpop.permute.xlu0 %1031
  %1033 = vrot.lane.b32.xlu0 %v856, 64
  %v1034 = vpop.permute.xlu0 %1033
  %1035 = vrot.lane.b32.xlu0 %v857, 64
  %v1036 = vpop.permute.xlu0 %1035
  %1037 = vrot.lane.b32.xlu0 %v858, 64
  %v1038 = vpop.permute.xlu0 %1037
  %1039 = vrot.lane.b32.xlu0 %v859, 64
  %v1040 = vpop.permute.xlu0 %1039
  %1041 = vrot.lane.b32.xlu0 %v860, 64
  %v1042 = vpop.permute.xlu0 %1041
  %1043 = vrot.lane.b32.xlu0 %v861, 64
  %v1044 = vpop.permute.xlu0 %1043
  %1045 = vrot.lane.b32.xlu0 %v862, 64
  %v1046 = vpop.permute.xlu0 %1045
  %1047 = vrot.lane.b32.xlu0 %v863, 64
  %v1048 = vpop.permute.xlu0 %1047
  %1049 = vrot.lane.b32.xlu0 %v864, 64
  %v1050 = vpop.permute.xlu0 %1049
  %1051 = vrot.lane.b32.xlu0 %v865, 64
  %v1052 = vpop.permute.xlu0 %1051
  %1053 = vrot.lane.b32.xlu0 %v866, 64
  %v1054 = vpop.permute.xlu0 %1053
  %1055 = vrot.lane.b32.xlu0 %v867, 64
  %v1056 = vpop.permute.xlu0 %1055
  %1057 = vrot.lane.b32.xlu0 %v868, 64
  %v1058 = vpop.permute.xlu0 %1057
  %1059 = vrot.lane.b32.xlu0 %v869, 64
  %v1060 = vpop.permute.xlu0 %1059
  %1061 = vrot.lane.b32.xlu0 %v870, 64
  %v1062 = vpop.permute.xlu0 %1061
  %1063 = vrot.lane.b32.xlu0 %v871, 64
  %v1064 = vpop.permute.xlu0 %1063
  %1065 = vrot.lane.b32.xlu0 %v872, 64
  %v1066 = vpop.permute.xlu0 %1065
  %1067 = vrot.lane.b32.xlu0 %v873, 64
  %v1068 = vpop.permute.xlu0 %1067
  %1069 = vrot.lane.b32.xlu0 %v874, 64
  %v1070 = vpop.permute.xlu0 %1069
  %1071 = vrot.lane.b32.xlu0 %v875, 64
  %v1072 = vpop.permute.xlu0 %1071
  %1073 = vrot.lane.b32.xlu0 %v876, 64
  %v1074 = vpop.permute.xlu0 %1073
  %1075 = vrot.lane.b32.xlu0 %v877, 64
  %v1076 = vpop.permute.xlu0 %1075
  %1077 = vrot.lane.b32.xlu0 %v878, 64
  %v1078 = vpop.permute.xlu0 %1077
  %1079 = vrot.lane.b32.xlu0 %v879, 64
  %v1080 = vpop.permute.xlu0 %1079
  %1081 = vrot.lane.b32.xlu0 %v880, 64
  %v1082 = vpop.permute.xlu0 %1081
  %1083 = vrot.lane.b32.xlu0 %v881, 64
  %v1084 = vpop.permute.xlu0 %1083
  %1085 = vrot.lane.b32.xlu0 %v882, 64
  %v1086 = vpop.permute.xlu0 %1085
  %1087 = vrot.lane.b32.xlu0 %v883, 64
  %v1088 = vpop.permute.xlu0 %1087
  %1089 = vrot.lane.b32.xlu0 %v884, 64
  %v1090 = vpop.permute.xlu0 %1089
  %1091 = vrot.lane.b32.xlu0 %v885, 64
  %v1092 = vpop.permute.xlu0 %1091
  %1093 = vrot.lane.b32.xlu0 %v886, 64
  %v1094 = vpop.permute.xlu0 %1093
  %1095 = vrot.lane.b32.xlu0 %v887, 64
  %v1096 = vpop.permute.xlu0 %1095
  %1097 = vrot.lane.b32.xlu0 %v888, 64
  %v1098 = vpop.permute.xlu0 %1097
  %1099 = vrot.lane.b32.xlu0 %v889, 64
  %v1100 = vpop.permute.xlu0 %1099
  %1101 = vrot.lane.b32.xlu0 %v890, 64
  %v1102 = vpop.permute.xlu0 %1101
  %1103 = vrot.lane.b32.xlu0 %v891, 64
  %v1104 = vpop.permute.xlu0 %1103
  %1105 = vrot.lane.b32.xlu0 %v892, 64
  %v1106 = vpop.permute.xlu0 %1105
  %1107 = vrot.lane.b32.xlu0 %v893, 64
  %v1108 = vpop.permute.xlu0 %1107
  %1109 = vrot.lane.b32.xlu0 %v894, 64
  %v1110 = vpop.permute.xlu0 %1109
  %1111 = vrot.lane.b32.xlu0 %v895, 64
  %v1112 = vpop.permute.xlu0 %1111
  %1113 = vrot.lane.b32.xlu0 %v896, 64
  %v1114 = vpop.permute.xlu0 %1113
  %1115 = vrot.lane.b32.xlu0 %v897, 64
  %v1116 = vpop.permute.xlu0 %1115
  %1117 = vrot.lane.b32.xlu0 %v898, 64
  %v1118 = vpop.permute.xlu0 %1117
  %1119 = vrot.lane.b32.xlu0 %v899, 64
  %v1120 = vpop.permute.xlu0 %1119
  %1121 = vrot.lane.b32.xlu0 %v900, 64
  %v1122 = vpop.permute.xlu0 %1121
  %1123 = vrot.lane.b32.xlu0 %v901, 64
  %v1124 = vpop.permute.xlu0 %1123
  %1125 = vrot.lane.b32.xlu0 %v902, 64
  %v1126 = vpop.permute.xlu0 %1125
  %1127 = vrot.lane.b32.xlu0 %v903, 64
  %v1128 = vpop.permute.xlu0 %1127
  %1129 = vrot.lane.b32.xlu0 %v904, 64
  %v1130 = vpop.permute.xlu0 %1129
  %1131 = vrot.lane.b32.xlu0 %v905, 64
  %v1132 = vpop.permute.xlu0 %1131
  %1133 = vrot.lane.b32.xlu0 %v906, 64
  %v1134 = vpop.permute.xlu0 %1133
  %1135 = vrot.lane.b32.xlu0 %v907, 64
  %v1136 = vpop.permute.xlu0 %1135
  %1137 = vrot.lane.b32.xlu0 %v908, 64
  %v1138 = vpop.permute.xlu0 %1137
  %1139 = vrot.lane.b32.xlu0 %v909, 64
  %v1140 = vpop.permute.xlu0 %1139
  %1141 = vrot.lane.b32.xlu0 %v910, 64
  %v1142 = vpop.permute.xlu0 %1141
  %1143 = vrot.lane.b32.xlu0 %v911, 64
  %v1144 = vpop.permute.xlu0 %1143
  %1145 = vrot.lane.b32.xlu0 %v912, 64
  %v1146 = vpop.permute.xlu0 %1145
  %1147 = vrot.lane.b32.xlu0 %v913, 64
  %v1148 = vpop.permute.xlu0 %1147
  %1149 = vrot.lane.b32.xlu0 %v914, 64
  %v1150 = vpop.permute.xlu0 %1149
  %1151 = vrot.lane.b32.xlu0 %v915, 64
  %v1152 = vpop.permute.xlu0 %1151
  %1153 = vrot.lane.b32.xlu0 %v916, 64
  %v1154 = vpop.permute.xlu0 %1153
  %1155 = vrot.lane.b32.xlu0 %v917, 64
  %v1156 = vpop.permute.xlu0 %1155
  %1157 = vrot.lane.b32.xlu0 %v918, 64
  %v1158 = vpop.permute.xlu0 %1157
  %1159 = vrot.lane.b32.xlu0 %v919, 64
  %v1160 = vpop.permute.xlu0 %1159
  %1161 = vrot.lane.b32.xlu0 %v920, 64
  %v1162 = vpop.permute.xlu0 %1161
  %1163 = vrot.lane.b32.xlu0 %v921, 64
  %v1164 = vpop.permute.xlu0 %1163
  %1246 = vst.msk [vmem:[#allocation2 + $0x8] sm:$0xff] %vm597, %v1004
  %1247 = vst.msk [vmem:[#allocation2 + $0x30] sm:$0xff] %vm597, %v1006
  %1248 = vst.msk [vmem:[#allocation2 + $0x58] sm:$0xff] %vm597, %v1008
  %1249 = vst.msk [vmem:[#allocation2 + $0x80] sm:$0xff] %vm597, %v1010
  %1250 = vst.msk [vmem:[#allocation2 + $0xa8] sm:$0xff] %vm597, %v1012
  %1251 = vst.msk [vmem:[#allocation2 + $0xd0] sm:$0xff] %vm597, %v1014
  %1252 = vst.msk [vmem:[#allocation2 + $0xf8] sm:$0xff] %vm597, %v1016
  %1253 = vst.msk [vmem:[#allocation2 + $0x120] sm:$0xff] %vm597, %v1018
  %1254 = vst.msk [vmem:[#allocation2 + $0x148] sm:$0xff] %vm597, %v1020
  %1255 = vst.msk [vmem:[#allocation2 + $0x170] sm:$0xff] %vm597, %v1022
  %1256 = vst.msk [vmem:[#allocation2 + $0x198] sm:$0xff] %vm597, %v1024
  %1257 = vst.msk [vmem:[#allocation2 + $0x1c0] sm:$0xff] %vm597, %v1026
  %1258 = vst.msk [vmem:[#allocation2 + $0x1e8] sm:$0xff] %vm597, %v1028
  %1259 = vst.msk [vmem:[#allocation2 + $0x210] sm:$0xff] %vm597, %v1030
  %1260 = vst.msk [vmem:[#allocation2 + $0x238] sm:$0xff] %vm597, %v1032
  %1261 = vst.msk [vmem:[#allocation2 + $0x260] sm:$0xff] %vm597, %v1034
  %1262 = vst.msk [vmem:[#allocation2 + $0x288] sm:$0xff] %vm597, %v1036
  %1263 = vst.msk [vmem:[#allocation2 + $0x2b0] sm:$0xff] %vm597, %v1038
  %1264 = vst.msk [vmem:[#allocation2 + $0x2d8] sm:$0xff] %vm597, %v1040
  %1265 = vst.msk [vmem:[#allocation2 + $0x300] sm:$0xff] %vm597, %v1042
  %1266 = vst.msk [vmem:[#allocation2 + $0x328] sm:$0xff] %vm597, %v1044
  %1267 = vst.msk [vmem:[#allocation2 + $0x350] sm:$0xff] %vm597, %v1046
  %1268 = vst.msk [vmem:[#allocation2 + $0x378] sm:$0xff] %vm597, %v1048
  %1269 = vst.msk [vmem:[#allocation2 + $0x3a0] sm:$0xff] %vm597, %v1050
  %1270 = vst.msk [vmem:[#allocation2 + $0x3c8] sm:$0xff] %vm597, %v1052
  %1271 = vst.msk [vmem:[#allocation2 + $0x3f0] sm:$0xff] %vm597, %v1054
  %1272 = vst.msk [vmem:[#allocation2 + $0x418] sm:$0xff] %vm597, %v1056
  %1273 = vst.msk [vmem:[#allocation2 + $0x440] sm:$0xff] %vm597, %v1058
  %1274 = vst.msk [vmem:[#allocation2 + $0x468] sm:$0xff] %vm597, %v1060
  %1275 = vst.msk [vmem:[#allocation2 + $0x490] sm:$0xff] %vm597, %v1062
  %1276 = vst.msk [vmem:[#allocation2 + $0x4b8] sm:$0xff] %vm597, %v1064
  %1277 = vst.msk [vmem:[#allocation2 + $0x4e0] sm:$0xff] %vm597, %v1066
  %1278 = vst.msk [vmem:[#allocation2 + $0x508] sm:$0xff] %vm597, %v1068
  %1279 = vst.msk [vmem:[#allocation2 + $0x530] sm:$0xff] %vm597, %v1070
  %1280 = vst.msk [vmem:[#allocation2 + $0x558] sm:$0xff] %vm597, %v1072
  %1281 = vst.msk [vmem:[#allocation2 + $0x580] sm:$0xff] %vm597, %v1074
  %1282 = vst.msk [vmem:[#allocation2 + $0x5a8] sm:$0xff] %vm597, %v1076
  %1283 = vst.msk [vmem:[#allocation2 + $0x5d0] sm:$0xff] %vm597, %v1078
  %1284 = vst.msk [vmem:[#allocation2 + $0x5f8] sm:$0xff] %vm597, %v1080
  %1285 = vst.msk [vmem:[#allocation2 + $0x620] sm:$0xff] %vm597, %v1082
  %1286 = vst.msk [vmem:[#allocation2 + $0x648] sm:$0xff] %vm597, %v1084
  %1287 = vst.msk [vmem:[#allocation2 + $0x670] sm:$0xff] %vm597, %v1086
  %1288 = vst.msk [vmem:[#allocation2 + $0x698] sm:$0xff] %vm597, %v1088
  %1289 = vst.msk [vmem:[#allocation2 + $0x6c0] sm:$0xff] %vm597, %v1090
  %1290 = vst.msk [vmem:[#allocation2 + $0x6e8] sm:$0xff] %vm597, %v1092
  %1291 = vst.msk [vmem:[#allocation2 + $0x710] sm:$0xff] %vm597, %v1094
  %1292 = vst.msk [vmem:[#allocation2 + $0x738] sm:$0xff] %vm597, %v1096
  %1293 = vst.msk [vmem:[#allocation2 + $0x760] sm:$0xff] %vm597, %v1098
  %1294 = vst.msk [vmem:[#allocation2 + $0x788] sm:$0xff] %vm597, %v1100
  %1295 = vst.msk [vmem:[#allocation2 + $0x7b0] sm:$0xff] %vm597, %v1102
  %1296 = vst.msk [vmem:[#allocation2 + $0x7d8] sm:$0xff] %vm597, %v1104
  %1297 = vst.msk [vmem:[#allocation2 + $0x800] sm:$0xff] %vm597, %v1106
  %1298 = vst.msk [vmem:[#allocation2 + $0x828] sm:$0xff] %vm597, %v1108
  %1299 = vst.msk [vmem:[#allocation2 + $0x850] sm:$0xff] %vm597, %v1110
  %1300 = vst.msk [vmem:[#allocation2 + $0x878] sm:$0xff] %vm597, %v1112
  %1301 = vst.msk [vmem:[#allocation2 + $0x8a0] sm:$0xff] %vm597, %v1114
  %1302 = vst.msk [vmem:[#allocation2 + $0x8c8] sm:$0xff] %vm597, %v1116
  %1303 = vst.msk [vmem:[#allocation2 + $0x8f0] sm:$0xff] %vm597, %v1118
  %1304 = vst.msk [vmem:[#allocation2 + $0x918] sm:$0xff] %vm597, %v1120
  %1305 = vst.msk [vmem:[#allocation2 + $0x940] sm:$0xff] %vm597, %v1122
  %1306 = vst.msk [vmem:[#allocation2 + $0x968] sm:$0xff] %vm597, %v1124
  %1307 = vst.msk [vmem:[#allocation2 + $0x990] sm:$0xff] %vm597, %v1126
  %1308 = vst.msk [vmem:[#allocation2 + $0x9b8] sm:$0xff] %vm597, %v1128
  %1309 = vst.msk [vmem:[#allocation2 + $0x9e0] sm:$0xff] %vm597, %v1130
  %1310 = vst.msk [vmem:[#allocation2 + $0xa08] sm:$0xff] %vm597, %v1132
  %1311 = vst.msk [vmem:[#allocation2 + $0xa30] sm:$0xff] %vm597, %v1134
  %1312 = vst.msk [vmem:[#allocation2 + $0xa58] sm:$0xff] %vm597, %v1136
  %1313 = vst.msk [vmem:[#allocation2 + $0xa80] sm:$0xff] %vm597, %v1138
  %1314 = vst.msk [vmem:[#allocation2 + $0xaa8] sm:$0xff] %vm597, %v1140
  %1315 = vst.msk [vmem:[#allocation2 + $0xad0] sm:$0xff] %vm597, %v1142
  %1316 = vst.msk [vmem:[#allocation2 + $0xaf8] sm:$0xff] %vm597, %v1144
  %1317 = vst.msk [vmem:[#allocation2 + $0xb20] sm:$0xff] %vm597, %v1146
  %1318 = vst.msk [vmem:[#allocation2 + $0xb48] sm:$0xff] %vm597, %v1148
  %1319 = vst.msk [vmem:[#allocation2 + $0xb70] sm:$0xff] %vm597, %v1150
  %1320 = vst.msk [vmem:[#allocation2 + $0xb98] sm:$0xff] %vm597, %v1152
  %1321 = vst.msk [vmem:[#allocation2 + $0xbc0] sm:$0xff] %vm597, %v1154
  %1322 = vst.msk [vmem:[#allocation2 + $0xbe8] sm:$0xff] %vm597, %v1156
  %1323 = vst.msk [vmem:[#allocation2 + $0xc10] sm:$0xff] %vm597, %v1158
  %1324 = vst.msk [vmem:[#allocation2 + $0xc38] sm:$0xff] %vm597, %v1160
  %1325 = vst.msk [vmem:[#allocation2 + $0xc60] sm:$0xff] %vm597, %v1162
  %1326 = vst.msk [vmem:[#allocation2 + $0xc88] sm:$0xff] %vm597, %v1164
  %v1327 = vld [vmem:[%s0 + $0x13] sm:$0xff]
  %v1328 = vld [vmem:[%s0 + $0x1b] sm:$0xff]
  %v1329 = vld [vmem:[%s0 + $0x23] sm:$0xff]
  %v1330 = vld [vmem:[%s0 + $0x2b] sm:$0xff]
  %v1331 = vld [vmem:[%s0 + $0x33] sm:$0xff]
  %v1332 = vld [vmem:[%s0 + $0x3b] sm:$0xff]
  %v1333 = vld [vmem:[%s0 + $0x43] sm:$0xff]
  %v1334 = vld [vmem:[%s0 + $0x4b] sm:$0xff]
  %v1335 = vld [vmem:[%s0 + $0x53] sm:$0xff]
  %v1336 = vld [vmem:[%s0 + $0x5b] sm:$0xff]
  %v1337 = vld [vmem:[%s0 + $0x63] sm:$0xff]
  %v1338 = vld [vmem:[%s0 + $0x6b] sm:$0xff]
  %v1339 = vld [vmem:[%s0 + $0x73] sm:$0xff]
  %v1340 = vld [vmem:[%s0 + $0x7b] sm:$0xff]
  %v1341 = vld [vmem:[%s0 + $0x83] sm:$0xff]
  %v1342 = vld [vmem:[%s0 + $0x8b] sm:$0xff]
  %v1343 = vld [vmem:[%s0 + $0x93] sm:$0xff]
  %v1344 = vld [vmem:[%s0 + $0x9b] sm:$0xff]
  %v1345 = vld [vmem:[%s0 + $0xa3] sm:$0xff]
  %v1346 = vld [vmem:[%s0 + $0xab] sm:$0xff]
  %v1347 = vld [vmem:[%s0 + $0xb3] sm:$0xff]
  %v1348 = vld [vmem:[%s0 + $0xbb] sm:$0xff]
  %v1349 = vld [vmem:[%s0 + $0xc3] sm:$0xff]
  %v1350 = vld [vmem:[%s0 + $0xcb] sm:$0xff]
  %v1351 = vld [vmem:[%s0 + $0xd3] sm:$0xff]
  %v1352 = vld [vmem:[%s0 + $0xdb] sm:$0xff]
  %v1353 = vld [vmem:[%s0 + $0xe3] sm:$0xff]
  %v1354 = vld [vmem:[%s0 + $0xeb] sm:$0xff]
  %v1355 = vld [vmem:[%s0 + $0xf3] sm:$0xff]
  %v1356 = vld [vmem:[%s0 + $0xfb] sm:$0xff]
  %v1357 = vld [vmem:[%s0 + $0x103] sm:$0xff]
  %v1358 = vld [vmem:[%s0 + $0x10b] sm:$0xff]
  %v1359 = vld [vmem:[%s0 + $0x113] sm:$0xff]
  %v1360 = vld [vmem:[%s0 + $0x11b] sm:$0xff]
  %v1361 = vld [vmem:[%s0 + $0x123] sm:$0xff]
  %v1362 = vld [vmem:[%s0 + $0x12b] sm:$0xff]
  %v1363 = vld [vmem:[%s0 + $0x133] sm:$0xff]
  %v1364 = vld [vmem:[%s0 + $0x13b] sm:$0xff]
  %v1365 = vld [vmem:[%s0 + $0x143] sm:$0xff]
  %v1366 = vld [vmem:[%s0 + $0x14b] sm:$0xff]
  %v1367 = vld [vmem:[%s0 + $0x153] sm:$0xff]
  %v1368 = vld [vmem:[%s0 + $0x15b] sm:$0xff]
  %v1369 = vld [vmem:[%s0 + $0x163] sm:$0xff]
  %v1370 = vld [vmem:[%s0 + $0x16b] sm:$0xff]
  %v1371 = vld [vmem:[%s0 + $0x173] sm:$0xff]
  %v1372 = vld [vmem:[%s0 + $0x17b] sm:$0xff]
  %v1373 = vld [vmem:[%s0 + $0x183] sm:$0xff]
  %v1374 = vld [vmem:[%s0 + $0x18b] sm:$0xff]
  %v1375 = vld [vmem:[%s0 + $0x193] sm:$0xff]
  %v1376 = vld [vmem:[%s0 + $0x19b] sm:$0xff]
  %v1377 = vld [vmem:[%s0 + $0x1a3] sm:$0xff]
  %v1378 = vld [vmem:[%s0 + $0x1ab] sm:$0xff]
  %v1379 = vld [vmem:[%s0 + $0x1b3] sm:$0xff]
  %v1380 = vld [vmem:[%s0 + $0x1bb] sm:$0xff]
  %v1381 = vld [vmem:[%s0 + $0x1c3] sm:$0xff]
  %v1382 = vld [vmem:[%s0 + $0x1cb] sm:$0xff]
  %v1383 = vld [vmem:[%s0 + $0x1d3] sm:$0xff]
  %v1384 = vld [vmem:[%s0 + $0x1db] sm:$0xff]
  %v1385 = vld [vmem:[%s0 + $0x1e3] sm:$0xff]
  %v1386 = vld [vmem:[%s0 + $0x1eb] sm:$0xff]
  %v1387 = vld [vmem:[%s0 + $0x1f3] sm:$0xff]
  %v1388 = vld [vmem:[%s0 + $0x1fb] sm:$0xff]
  %v1389 = vld [vmem:[%s0 + $0x203] sm:$0xff]
  %v1390 = vld [vmem:[%s0 + $0x20b] sm:$0xff]
  %v1391 = vld [vmem:[%s0 + $0x213] sm:$0xff]
  %v1392 = vld [vmem:[%s0 + $0x21b] sm:$0xff]
  %v1393 = vld [vmem:[%s0 + $0x223] sm:$0xff]
  %v1394 = vld [vmem:[%s0 + $0x22b] sm:$0xff]
  %v1395 = vld [vmem:[%s0 + $0x233] sm:$0xff]
  %v1396 = vld [vmem:[%s0 + $0x23b] sm:$0xff]
  %v1397 = vld [vmem:[%s0 + $0x243] sm:$0xff]
  %v1398 = vld [vmem:[%s0 + $0x24b] sm:$0xff]
  %v1399 = vld [vmem:[%s0 + $0x253] sm:$0xff]
  %v1400 = vld [vmem:[%s0 + $0x25b] sm:$0xff]
  %v1401 = vld [vmem:[%s0 + $0x263] sm:$0xff]
  %v1402 = vld [vmem:[%s0 + $0x26b] sm:$0xff]
  %v1403 = vld [vmem:[%s0 + $0x273] sm:$0xff]
  %v1404 = vld [vmem:[%s0 + $0x27b] sm:$0xff]
  %v1405 = vld [vmem:[%s0 + $0x283] sm:$0xff]
  %v1406 = vld [vmem:[%s0 + $0x28b] sm:$0xff]
  %v1407 = vld [vmem:[%s0 + $0x293] sm:$0xff]
  %1408 = vst.msk [vmem:[#allocation2 + $0x10] sm:$0xff] %vm110, %v1327
  %1409 = vst.msk [vmem:[#allocation2 + $0x38] sm:$0xff] %vm110, %v1328
  %1410 = vst.msk [vmem:[#allocation2 + $0x60] sm:$0xff] %vm110, %v1329
  %1411 = vst.msk [vmem:[#allocation2 + $0x88] sm:$0xff] %vm110, %v1330
  %1412 = vst.msk [vmem:[#allocation2 + $0xb0] sm:$0xff] %vm110, %v1331
  %1413 = vst.msk [vmem:[#allocation2 + $0xd8] sm:$0xff] %vm110, %v1332
  %1414 = vst.msk [vmem:[#allocation2 + $0x100] sm:$0xff] %vm110, %v1333
  %1415 = vst.msk [vmem:[#allocation2 + $0x128] sm:$0xff] %vm110, %v1334
  %1416 = vst.msk [vmem:[#allocation2 + $0x150] sm:$0xff] %vm110, %v1335
  %1417 = vst.msk [vmem:[#allocation2 + $0x178] sm:$0xff] %vm110, %v1336
  %1418 = vst.msk [vmem:[#allocation2 + $0x1a0] sm:$0xff] %vm110, %v1337
  %1419 = vst.msk [vmem:[#allocation2 + $0x1c8] sm:$0xff] %vm110, %v1338
  %1420 = vst.msk [vmem:[#allocation2 + $0x1f0] sm:$0xff] %vm110, %v1339
  %1421 = vst.msk [vmem:[#allocation2 + $0x218] sm:$0xff] %vm110, %v1340
  %1422 = vst.msk [vmem:[#allocation2 + $0x240] sm:$0xff] %vm110, %v1341
  %1423 = vst.msk [vmem:[#allocation2 + $0x268] sm:$0xff] %vm110, %v1342
  %1424 = vst.msk [vmem:[#allocation2 + $0x290] sm:$0xff] %vm110, %v1343
  %1425 = vst.msk [vmem:[#allocation2 + $0x2b8] sm:$0xff] %vm110, %v1344
  %1426 = vst.msk [vmem:[#allocation2 + $0x2e0] sm:$0xff] %vm110, %v1345
  %1427 = vst.msk [vmem:[#allocation2 + $0x308] sm:$0xff] %vm110, %v1346
  %1428 = vst.msk [vmem:[#allocation2 + $0x330] sm:$0xff] %vm110, %v1347
  %1429 = vst.msk [vmem:[#allocation2 + $0x358] sm:$0xff] %vm110, %v1348
  %1430 = vst.msk [vmem:[#allocation2 + $0x380] sm:$0xff] %vm110, %v1349
  %1431 = vst.msk [vmem:[#allocation2 + $0x3a8] sm:$0xff] %vm110, %v1350
  %1432 = vst.msk [vmem:[#allocation2 + $0x3d0] sm:$0xff] %vm110, %v1351
  %1433 = vst.msk [vmem:[#allocation2 + $0x3f8] sm:$0xff] %vm110, %v1352
  %1434 = vst.msk [vmem:[#allocation2 + $0x420] sm:$0xff] %vm110, %v1353
  %1435 = vst.msk [vmem:[#allocation2 + $0x448] sm:$0xff] %vm110, %v1354
  %1436 = vst.msk [vmem:[#allocation2 + $0x470] sm:$0xff] %vm110, %v1355
  %1437 = vst.msk [vmem:[#allocation2 + $0x498] sm:$0xff] %vm110, %v1356
  %1438 = vst.msk [vmem:[#allocation2 + $0x4c0] sm:$0xff] %vm110, %v1357
  %1439 = vst.msk [vmem:[#allocation2 + $0x4e8] sm:$0xff] %vm110, %v1358
  %1440 = vst.msk [vmem:[#allocation2 + $0x510] sm:$0xff] %vm110, %v1359
  %1441 = vst.msk [vmem:[#allocation2 + $0x538] sm:$0xff] %vm110, %v1360
  %1442 = vst.msk [vmem:[#allocation2 + $0x560] sm:$0xff] %vm110, %v1361
  %1443 = vst.msk [vmem:[#allocation2 + $0x588] sm:$0xff] %vm110, %v1362
  %1444 = vst.msk [vmem:[#allocation2 + $0x5b0] sm:$0xff] %vm110, %v1363
  %1445 = vst.msk [vmem:[#allocation2 + $0x5d8] sm:$0xff] %vm110, %v1364
  %1446 = vst.msk [vmem:[#allocation2 + $0x600] sm:$0xff] %vm110, %v1365
  %1447 = vst.msk [vmem:[#allocation2 + $0x628] sm:$0xff] %vm110, %v1366
  %1448 = vst.msk [vmem:[#allocation2 + $0x650] sm:$0xff] %vm110, %v1367
  %1449 = vst.msk [vmem:[#allocation2 + $0x678] sm:$0xff] %vm110, %v1368
  %1450 = vst.msk [vmem:[#allocation2 + $0x6a0] sm:$0xff] %vm110, %v1369
  %1451 = vst.msk [vmem:[#allocation2 + $0x6c8] sm:$0xff] %vm110, %v1370
  %1452 = vst.msk [vmem:[#allocation2 + $0x6f0] sm:$0xff] %vm110, %v1371
  %1453 = vst.msk [vmem:[#allocation2 + $0x718] sm:$0xff] %vm110, %v1372
  %1454 = vst.msk [vmem:[#allocation2 + $0x740] sm:$0xff] %vm110, %v1373
  %1455 = vst.msk [vmem:[#allocation2 + $0x768] sm:$0xff] %vm110, %v1374
  %1456 = vst.msk [vmem:[#allocation2 + $0x790] sm:$0xff] %vm110, %v1375
  %1457 = vst.msk [vmem:[#allocation2 + $0x7b8] sm:$0xff] %vm110, %v1376
  %1458 = vst.msk [vmem:[#allocation2 + $0x7e0] sm:$0xff] %vm110, %v1377
  %1459 = vst.msk [vmem:[#allocation2 + $0x808] sm:$0xff] %vm110, %v1378
  %1460 = vst.msk [vmem:[#allocation2 + $0x830] sm:$0xff] %vm110, %v1379
  %1461 = vst.msk [vmem:[#allocation2 + $0x858] sm:$0xff] %vm110, %v1380
  %1462 = vst.msk [vmem:[#allocation2 + $0x880] sm:$0xff] %vm110, %v1381
  %1463 = vst.msk [vmem:[#allocation2 + $0x8a8] sm:$0xff] %vm110, %v1382
  %1464 = vst.msk [vmem:[#allocation2 + $0x8d0] sm:$0xff] %vm110, %v1383
  %1465 = vst.msk [vmem:[#allocation2 + $0x8f8] sm:$0xff] %vm110, %v1384
  %1466 = vst.msk [vmem:[#allocation2 + $0x920] sm:$0xff] %vm110, %v1385
  %1467 = vst.msk [vmem:[#allocation2 + $0x948] sm:$0xff] %vm110, %v1386
  %1468 = vst.msk [vmem:[#allocation2 + $0x970] sm:$0xff] %vm110, %v1387
  %1469 = vst.msk [vmem:[#allocation2 + $0x998] sm:$0xff] %vm110, %v1388
  %1470 = vst.msk [vmem:[#allocation2 + $0x9c0] sm:$0xff] %vm110, %v1389
  %1471 = vst.msk [vmem:[#allocation2 + $0x9e8] sm:$0xff] %vm110, %v1390
  %1472 = vst.msk [vmem:[#allocation2 + $0xa10] sm:$0xff] %vm110, %v1391
  %1473 = vst.msk [vmem:[#allocation2 + $0xa38] sm:$0xff] %vm110, %v1392
  %1474 = vst.msk [vmem:[#allocation2 + $0xa60] sm:$0xff] %vm110, %v1393
  %1475 = vst.msk [vmem:[#allocation2 + $0xa88] sm:$0xff] %vm110, %v1394
  %1476 = vst.msk [vmem:[#allocation2 + $0xab0] sm:$0xff] %vm110, %v1395
  %1477 = vst.msk [vmem:[#allocation2 + $0xad8] sm:$0xff] %vm110, %v1396
  %1478 = vst.msk [vmem:[#allocation2 + $0xb00] sm:$0xff] %vm110, %v1397
  %1479 = vst.msk [vmem:[#allocation2 + $0xb28] sm:$0xff] %vm110, %v1398
  %1480 = vst.msk [vmem:[#allocation2 + $0xb50] sm:$0xff] %vm110, %v1399
  %1481 = vst.msk [vmem:[#allocation2 + $0xb78] sm:$0xff] %vm110, %v1400
  %1482 = vst.msk [vmem:[#allocation2 + $0xba0] sm:$0xff] %vm110, %v1401
  %1483 = vst.msk [vmem:[#allocation2 + $0xbc8] sm:$0xff] %vm110, %v1402
  %1484 = vst.msk [vmem:[#allocation2 + $0xbf0] sm:$0xff] %vm110, %v1403
  %1485 = vst.msk [vmem:[#allocation2 + $0xc18] sm:$0xff] %vm110, %v1404
  %1486 = vst.msk [vmem:[#allocation2 + $0xc40] sm:$0xff] %vm110, %v1405
  %1487 = vst.msk [vmem:[#allocation2 + $0xc68] sm:$0xff] %vm110, %v1406
  %1488 = vst.msk [vmem:[#allocation2 + $0xc90] sm:$0xff] %vm110, %v1407
  %v1489 = vld [vmem:[%s0 + $0x14] sm:$0xff]
  %v1490 = vld [vmem:[%s0 + $0x1c] sm:$0xff]
  %v1491 = vld [vmem:[%s0 + $0x24] sm:$0xff]
  %v1492 = vld [vmem:[%s0 + $0x2c] sm:$0xff]
  %v1493 = vld [vmem:[%s0 + $0x34] sm:$0xff]
  %v1494 = vld [vmem:[%s0 + $0x3c] sm:$0xff]
  %v1495 = vld [vmem:[%s0 + $0x44] sm:$0xff]
  %v1496 = vld [vmem:[%s0 + $0x4c] sm:$0xff]
  %v1497 = vld [vmem:[%s0 + $0x54] sm:$0xff]
  %v1498 = vld [vmem:[%s0 + $0x5c] sm:$0xff]
  %v1499 = vld [vmem:[%s0 + $0x64] sm:$0xff]
  %v1500 = vld [vmem:[%s0 + $0x6c] sm:$0xff]
  %v1501 = vld [vmem:[%s0 + $0x74] sm:$0xff]
  %v1502 = vld [vmem:[%s0 + $0x7c] sm:$0xff]
  %v1503 = vld [vmem:[%s0 + $0x84] sm:$0xff]
  %v1504 = vld [vmem:[%s0 + $0x8c] sm:$0xff]
  %v1505 = vld [vmem:[%s0 + $0x94] sm:$0xff]
  %v1506 = vld [vmem:[%s0 + $0x9c] sm:$0xff]
  %v1507 = vld [vmem:[%s0 + $0xa4] sm:$0xff]
  %v1508 = vld [vmem:[%s0 + $0xac] sm:$0xff]
  %v1509 = vld [vmem:[%s0 + $0xb4] sm:$0xff]
  %v1510 = vld [vmem:[%s0 + $0xbc] sm:$0xff]
  %v1511 = vld [vmem:[%s0 + $0xc4] sm:$0xff]
  %v1512 = vld [vmem:[%s0 + $0xcc] sm:$0xff]
  %v1513 = vld [vmem:[%s0 + $0xd4] sm:$0xff]
  %v1514 = vld [vmem:[%s0 + $0xdc] sm:$0xff]
  %v1515 = vld [vmem:[%s0 + $0xe4] sm:$0xff]
  %v1516 = vld [vmem:[%s0 + $0xec] sm:$0xff]
  %v1517 = vld [vmem:[%s0 + $0xf4] sm:$0xff]
  %v1518 = vld [vmem:[%s0 + $0xfc] sm:$0xff]
  %v1519 = vld [vmem:[%s0 + $0x104] sm:$0xff]
  %v1520 = vld [vmem:[%s0 + $0x10c] sm:$0xff]
  %v1521 = vld [vmem:[%s0 + $0x114] sm:$0xff]
  %v1522 = vld [vmem:[%s0 + $0x11c] sm:$0xff]
  %v1523 = vld [vmem:[%s0 + $0x124] sm:$0xff]
  %v1524 = vld [vmem:[%s0 + $0x12c] sm:$0xff]
  %v1525 = vld [vmem:[%s0 + $0x134] sm:$0xff]
  %v1526 = vld [vmem:[%s0 + $0x13c] sm:$0xff]
  %v1527 = vld [vmem:[%s0 + $0x144] sm:$0xff]
  %v1528 = vld [vmem:[%s0 + $0x14c] sm:$0xff]
  %v1529 = vld [vmem:[%s0 + $0x154] sm:$0xff]
  %v1530 = vld [vmem:[%s0 + $0x15c] sm:$0xff]
  %v1531 = vld [vmem:[%s0 + $0x164] sm:$0xff]
  %v1532 = vld [vmem:[%s0 + $0x16c] sm:$0xff]
  %v1533 = vld [vmem:[%s0 + $0x174] sm:$0xff]
  %v1534 = vld [vmem:[%s0 + $0x17c] sm:$0xff]
  %v1535 = vld [vmem:[%s0 + $0x184] sm:$0xff]
  %v1536 = vld [vmem:[%s0 + $0x18c] sm:$0xff]
  %v1537 = vld [vmem:[%s0 + $0x194] sm:$0xff]
  %v1538 = vld [vmem:[%s0 + $0x19c] sm:$0xff]
  %v1539 = vld [vmem:[%s0 + $0x1a4] sm:$0xff]
  %v1540 = vld [vmem:[%s0 + $0x1ac] sm:$0xff]
  %v1541 = vld [vmem:[%s0 + $0x1b4] sm:$0xff]
  %v1542 = vld [vmem:[%s0 + $0x1bc] sm:$0xff]
  %v1543 = vld [vmem:[%s0 + $0x1c4] sm:$0xff]
  %v1544 = vld [vmem:[%s0 + $0x1cc] sm:$0xff]
  %v1545 = vld [vmem:[%s0 + $0x1d4] sm:$0xff]
  %v1546 = vld [vmem:[%s0 + $0x1dc] sm:$0xff]
  %v1547 = vld [vmem:[%s0 + $0x1e4] sm:$0xff]
  %v1548 = vld [vmem:[%s0 + $0x1ec] sm:$0xff]
  %v1549 = vld [vmem:[%s0 + $0x1f4] sm:$0xff]
  %v1550 = vld [vmem:[%s0 + $0x1fc] sm:$0xff]
  %v1551 = vld [vmem:[%s0 + $0x204] sm:$0xff]
  %v1552 = vld [vmem:[%s0 + $0x20c] sm:$0xff]
  %v1553 = vld [vmem:[%s0 + $0x214] sm:$0xff]
  %v1554 = vld [vmem:[%s0 + $0x21c] sm:$0xff]
  %v1555 = vld [vmem:[%s0 + $0x224] sm:$0xff]
  %v1556 = vld [vmem:[%s0 + $0x22c] sm:$0xff]
  %v1557 = vld [vmem:[%s0 + $0x234] sm:$0xff]
  %v1558 = vld [vmem:[%s0 + $0x23c] sm:$0xff]
  %v1559 = vld [vmem:[%s0 + $0x244] sm:$0xff]
  %v1560 = vld [vmem:[%s0 + $0x24c] sm:$0xff]
  %v1561 = vld [vmem:[%s0 + $0x254] sm:$0xff]
  %v1562 = vld [vmem:[%s0 + $0x25c] sm:$0xff]
  %v1563 = vld [vmem:[%s0 + $0x264] sm:$0xff]
  %v1564 = vld [vmem:[%s0 + $0x26c] sm:$0xff]
  %v1565 = vld [vmem:[%s0 + $0x274] sm:$0xff]
  %v1566 = vld [vmem:[%s0 + $0x27c] sm:$0xff]
  %v1567 = vld [vmem:[%s0 + $0x284] sm:$0xff]
  %v1568 = vld [vmem:[%s0 + $0x28c] sm:$0xff]
  %v1569 = vld [vmem:[%s0 + $0x294] sm:$0xff]
  %1651 = vrot.lane.b32.xlu0 %v1489, 64
  %v1652 = vpop.permute.xlu0 %1651
  %1653 = vrot.lane.b32.xlu0 %v1490, 64
  %v1654 = vpop.permute.xlu0 %1653
  %1655 = vrot.lane.b32.xlu0 %v1491, 64
  %v1656 = vpop.permute.xlu0 %1655
  %1657 = vrot.lane.b32.xlu0 %v1492, 64
  %v1658 = vpop.permute.xlu0 %1657
  %1659 = vrot.lane.b32.xlu0 %v1493, 64
  %v1660 = vpop.permute.xlu0 %1659
  %1661 = vrot.lane.b32.xlu0 %v1494, 64
  %v1662 = vpop.permute.xlu0 %1661
  %1663 = vrot.lane.b32.xlu0 %v1495, 64
  %v1664 = vpop.permute.xlu0 %1663
  %1665 = vrot.lane.b32.xlu0 %v1496, 64
  %v1666 = vpop.permute.xlu0 %1665
  %1667 = vrot.lane.b32.xlu0 %v1497, 64
  %v1668 = vpop.permute.xlu0 %1667
  %1669 = vrot.lane.b32.xlu0 %v1498, 64
  %v1670 = vpop.permute.xlu0 %1669
  %1671 = vrot.lane.b32.xlu0 %v1499, 64
  %v1672 = vpop.permute.xlu0 %1671
  %1673 = vrot.lane.b32.xlu0 %v1500, 64
  %v1674 = vpop.permute.xlu0 %1673
  %1675 = vrot.lane.b32.xlu0 %v1501, 64
  %v1676 = vpop.permute.xlu0 %1675
  %1677 = vrot.lane.b32.xlu0 %v1502, 64
  %v1678 = vpop.permute.xlu0 %1677
  %1679 = vrot.lane.b32.xlu0 %v1503, 64
  %v1680 = vpop.permute.xlu0 %1679
  %1681 = vrot.lane.b32.xlu0 %v1504, 64
  %v1682 = vpop.permute.xlu0 %1681
  %1683 = vrot.lane.b32.xlu0 %v1505, 64
  %v1684 = vpop.permute.xlu0 %1683
  %1685 = vrot.lane.b32.xlu0 %v1506, 64
  %v1686 = vpop.permute.xlu0 %1685
  %1687 = vrot.lane.b32.xlu0 %v1507, 64
  %v1688 = vpop.permute.xlu0 %1687
  %1689 = vrot.lane.b32.xlu0 %v1508, 64
  %v1690 = vpop.permute.xlu0 %1689
  %1691 = vrot.lane.b32.xlu0 %v1509, 64
  %v1692 = vpop.permute.xlu0 %1691
  %1693 = vrot.lane.b32.xlu0 %v1510, 64
  %v1694 = vpop.permute.xlu0 %1693
  %1695 = vrot.lane.b32.xlu0 %v1511, 64
  %v1696 = vpop.permute.xlu0 %1695
  %1697 = vrot.lane.b32.xlu0 %v1512, 64
  %v1698 = vpop.permute.xlu0 %1697
  %1699 = vrot.lane.b32.xlu0 %v1513, 64
  %v1700 = vpop.permute.xlu0 %1699
  %1701 = vrot.lane.b32.xlu0 %v1514, 64
  %v1702 = vpop.permute.xlu0 %1701
  %1703 = vrot.lane.b32.xlu0 %v1515, 64
  %v1704 = vpop.permute.xlu0 %1703
  %1705 = vrot.lane.b32.xlu0 %v1516, 64
  %v1706 = vpop.permute.xlu0 %1705
  %1707 = vrot.lane.b32.xlu0 %v1517, 64
  %v1708 = vpop.permute.xlu0 %1707
  %1709 = vrot.lane.b32.xlu0 %v1518, 64
  %v1710 = vpop.permute.xlu0 %1709
  %1711 = vrot.lane.b32.xlu0 %v1519, 64
  %v1712 = vpop.permute.xlu0 %1711
  %1713 = vrot.lane.b32.xlu0 %v1520, 64
  %v1714 = vpop.permute.xlu0 %1713
  %1715 = vrot.lane.b32.xlu0 %v1521, 64
  %v1716 = vpop.permute.xlu0 %1715
  %1717 = vrot.lane.b32.xlu0 %v1522, 64
  %v1718 = vpop.permute.xlu0 %1717
  %1719 = vrot.lane.b32.xlu0 %v1523, 64
  %v1720 = vpop.permute.xlu0 %1719
  %1721 = vrot.lane.b32.xlu0 %v1524, 64
  %v1722 = vpop.permute.xlu0 %1721
  %1723 = vrot.lane.b32.xlu0 %v1525, 64
  %v1724 = vpop.permute.xlu0 %1723
  %1725 = vrot.lane.b32.xlu0 %v1526, 64
  %v1726 = vpop.permute.xlu0 %1725
  %1727 = vrot.lane.b32.xlu0 %v1527, 64
  %v1728 = vpop.permute.xlu0 %1727
  %1729 = vrot.lane.b32.xlu0 %v1528, 64
  %v1730 = vpop.permute.xlu0 %1729
  %1731 = vrot.lane.b32.xlu0 %v1529, 64
  %v1732 = vpop.permute.xlu0 %1731
  %1733 = vrot.lane.b32.xlu0 %v1530, 64
  %v1734 = vpop.permute.xlu0 %1733
  %1735 = vrot.lane.b32.xlu0 %v1531, 64
  %v1736 = vpop.permute.xlu0 %1735
  %1737 = vrot.lane.b32.xlu0 %v1532, 64
  %v1738 = vpop.permute.xlu0 %1737
  %1739 = vrot.lane.b32.xlu0 %v1533, 64
  %v1740 = vpop.permute.xlu0 %1739
  %1741 = vrot.lane.b32.xlu0 %v1534, 64
  %v1742 = vpop.permute.xlu0 %1741
  %1743 = vrot.lane.b32.xlu0 %v1535, 64
  %v1744 = vpop.permute.xlu0 %1743
  %1745 = vrot.lane.b32.xlu0 %v1536, 64
  %v1746 = vpop.permute.xlu0 %1745
  %1747 = vrot.lane.b32.xlu0 %v1537, 64
  %v1748 = vpop.permute.xlu0 %1747
  %1749 = vrot.lane.b32.xlu0 %v1538, 64
  %v1750 = vpop.permute.xlu0 %1749
  %1751 = vrot.lane.b32.xlu0 %v1539, 64
  %v1752 = vpop.permute.xlu0 %1751
  %1753 = vrot.lane.b32.xlu0 %v1540, 64
  %v1754 = vpop.permute.xlu0 %1753
  %1755 = vrot.lane.b32.xlu0 %v1541, 64
  %v1756 = vpop.permute.xlu0 %1755
  %1757 = vrot.lane.b32.xlu0 %v1542, 64
  %v1758 = vpop.permute.xlu0 %1757
  %1759 = vrot.lane.b32.xlu0 %v1543, 64
  %v1760 = vpop.permute.xlu0 %1759
  %1761 = vrot.lane.b32.xlu0 %v1544, 64
  %v1762 = vpop.permute.xlu0 %1761
  %1763 = vrot.lane.b32.xlu0 %v1545, 64
  %v1764 = vpop.permute.xlu0 %1763
  %1765 = vrot.lane.b32.xlu0 %v1546, 64
  %v1766 = vpop.permute.xlu0 %1765
  %1767 = vrot.lane.b32.xlu0 %v1547, 64
  %v1768 = vpop.permute.xlu0 %1767
  %1769 = vrot.lane.b32.xlu0 %v1548, 64
  %v1770 = vpop.permute.xlu0 %1769
  %1771 = vrot.lane.b32.xlu0 %v1549, 64
  %v1772 = vpop.permute.xlu0 %1771
  %1773 = vrot.lane.b32.xlu0 %v1550, 64
  %v1774 = vpop.permute.xlu0 %1773
  %1775 = vrot.lane.b32.xlu0 %v1551, 64
  %v1776 = vpop.permute.xlu0 %1775
  %1777 = vrot.lane.b32.xlu0 %v1552, 64
  %v1778 = vpop.permute.xlu0 %1777
  %1779 = vrot.lane.b32.xlu0 %v1553, 64
  %v1780 = vpop.permute.xlu0 %1779
  %1781 = vrot.lane.b32.xlu0 %v1554, 64
  %v1782 = vpop.permute.xlu0 %1781
  %1783 = vrot.lane.b32.xlu0 %v1555, 64
  %v1784 = vpop.permute.xlu0 %1783
  %1785 = vrot.lane.b32.xlu0 %v1556, 64
  %v1786 = vpop.permute.xlu0 %1785
  %1787 = vrot.lane.b32.xlu0 %v1557, 64
  %v1788 = vpop.permute.xlu0 %1787
  %1789 = vrot.lane.b32.xlu0 %v1558, 64
  %v1790 = vpop.permute.xlu0 %1789
  %1791 = vrot.lane.b32.xlu0 %v1559, 64
  %v1792 = vpop.permute.xlu0 %1791
  %1793 = vrot.lane.b32.xlu0 %v1560, 64
  %v1794 = vpop.permute.xlu0 %1793
  %1795 = vrot.lane.b32.xlu0 %v1561, 64
  %v1796 = vpop.permute.xlu0 %1795
  %1797 = vrot.lane.b32.xlu0 %v1562, 64
  %v1798 = vpop.permute.xlu0 %1797
  %1799 = vrot.lane.b32.xlu0 %v1563, 64
  %v1800 = vpop.permute.xlu0 %1799
  %1801 = vrot.lane.b32.xlu0 %v1564, 64
  %v1802 = vpop.permute.xlu0 %1801
  %1803 = vrot.lane.b32.xlu0 %v1565, 64
  %v1804 = vpop.permute.xlu0 %1803
  %1805 = vrot.lane.b32.xlu0 %v1566, 64
  %v1806 = vpop.permute.xlu0 %1805
  %1807 = vrot.lane.b32.xlu0 %v1567, 64
  %v1808 = vpop.permute.xlu0 %1807
  %1809 = vrot.lane.b32.xlu0 %v1568, 64
  %v1810 = vpop.permute.xlu0 %1809
  %1811 = vrot.lane.b32.xlu0 %v1569, 64
  %v1812 = vpop.permute.xlu0 %1811
  %1894 = vst.msk [vmem:[#allocation2 + $0x10] sm:$0xff] %vm597, %v1652
  %1895 = vst.msk [vmem:[#allocation2 + $0x38] sm:$0xff] %vm597, %v1654
  %1896 = vst.msk [vmem:[#allocation2 + $0x60] sm:$0xff] %vm597, %v1656
  %1897 = vst.msk [vmem:[#allocation2 + $0x88] sm:$0xff] %vm597, %v1658
  %1898 = vst.msk [vmem:[#allocation2 + $0xb0] sm:$0xff] %vm597, %v1660
  %1899 = vst.msk [vmem:[#allocation2 + $0xd8] sm:$0xff] %vm597, %v1662
  %1900 = vst.msk [vmem:[#allocation2 + $0x100] sm:$0xff] %vm597, %v1664
  %1901 = vst.msk [vmem:[#allocation2 + $0x128] sm:$0xff] %vm597, %v1666
  %1902 = vst.msk [vmem:[#allocation2 + $0x150] sm:$0xff] %vm597, %v1668
  %1903 = vst.msk [vmem:[#allocation2 + $0x178] sm:$0xff] %vm597, %v1670
  %1904 = vst.msk [vmem:[#allocation2 + $0x1a0] sm:$0xff] %vm597, %v1672
  %1905 = vst.msk [vmem:[#allocation2 + $0x1c8] sm:$0xff] %vm597, %v1674
  %1906 = vst.msk [vmem:[#allocation2 + $0x1f0] sm:$0xff] %vm597, %v1676
  %1907 = vst.msk [vmem:[#allocation2 + $0x218] sm:$0xff] %vm597, %v1678
  %1908 = vst.msk [vmem:[#allocation2 + $0x240] sm:$0xff] %vm597, %v1680
  %1909 = vst.msk [vmem:[#allocation2 + $0x268] sm:$0xff] %vm597, %v1682
  %1910 = vst.msk [vmem:[#allocation2 + $0x290] sm:$0xff] %vm597, %v1684
  %1911 = vst.msk [vmem:[#allocation2 + $0x2b8] sm:$0xff] %vm597, %v1686
  %1912 = vst.msk [vmem:[#allocation2 + $0x2e0] sm:$0xff] %vm597, %v1688
  %1913 = vst.msk [vmem:[#allocation2 + $0x308] sm:$0xff] %vm597, %v1690
  %1914 = vst.msk [vmem:[#allocation2 + $0x330] sm:$0xff] %vm597, %v1692
  %1915 = vst.msk [vmem:[#allocation2 + $0x358] sm:$0xff] %vm597, %v1694
  %1916 = vst.msk [vmem:[#allocation2 + $0x380] sm:$0xff] %vm597, %v1696
  %1917 = vst.msk [vmem:[#allocation2 + $0x3a8] sm:$0xff] %vm597, %v1698
  %1918 = vst.msk [vmem:[#allocation2 + $0x3d0] sm:$0xff] %vm597, %v1700
  %1919 = vst.msk [vmem:[#allocation2 + $0x3f8] sm:$0xff] %vm597, %v1702
  %1920 = vst.msk [vmem:[#allocation2 + $0x420] sm:$0xff] %vm597, %v1704
  %1921 = vst.msk [vmem:[#allocation2 + $0x448] sm:$0xff] %vm597, %v1706
  %1922 = vst.msk [vmem:[#allocation2 + $0x470] sm:$0xff] %vm597, %v1708
  %1923 = vst.msk [vmem:[#allocation2 + $0x498] sm:$0xff] %vm597, %v1710
  %1924 = vst.msk [vmem:[#allocation2 + $0x4c0] sm:$0xff] %vm597, %v1712
  %1925 = vst.msk [vmem:[#allocation2 + $0x4e8] sm:$0xff] %vm597, %v1714
  %1926 = vst.msk [vmem:[#allocation2 + $0x510] sm:$0xff] %vm597, %v1716
  %1927 = vst.msk [vmem:[#allocation2 + $0x538] sm:$0xff] %vm597, %v1718
  %1928 = vst.msk [vmem:[#allocation2 + $0x560] sm:$0xff] %vm597, %v1720
  %1929 = vst.msk [vmem:[#allocation2 + $0x588] sm:$0xff] %vm597, %v1722
  %1930 = vst.msk [vmem:[#allocation2 + $0x5b0] sm:$0xff] %vm597, %v1724
  %1931 = vst.msk [vmem:[#allocation2 + $0x5d8] sm:$0xff] %vm597, %v1726
  %1932 = vst.msk [vmem:[#allocation2 + $0x600] sm:$0xff] %vm597, %v1728
  %1933 = vst.msk [vmem:[#allocation2 + $0x628] sm:$0xff] %vm597, %v1730
  %1934 = vst.msk [vmem:[#allocation2 + $0x650] sm:$0xff] %vm597, %v1732
  %1935 = vst.msk [vmem:[#allocation2 + $0x678] sm:$0xff] %vm597, %v1734
  %1936 = vst.msk [vmem:[#allocation2 + $0x6a0] sm:$0xff] %vm597, %v1736
  %1937 = vst.msk [vmem:[#allocation2 + $0x6c8] sm:$0xff] %vm597, %v1738
  %1938 = vst.msk [vmem:[#allocation2 + $0x6f0] sm:$0xff] %vm597, %v1740
  %1939 = vst.msk [vmem:[#allocation2 + $0x718] sm:$0xff] %vm597, %v1742
  %1940 = vst.msk [vmem:[#allocation2 + $0x740] sm:$0xff] %vm597, %v1744
  %1941 = vst.msk [vmem:[#allocation2 + $0x768] sm:$0xff] %vm597, %v1746
  %1942 = vst.msk [vmem:[#allocation2 + $0x790] sm:$0xff] %vm597, %v1748
  %1943 = vst.msk [vmem:[#allocation2 + $0x7b8] sm:$0xff] %vm597, %v1750
  %1944 = vst.msk [vmem:[#allocation2 + $0x7e0] sm:$0xff] %vm597, %v1752
  %1945 = vst.msk [vmem:[#allocation2 + $0x808] sm:$0xff] %vm597, %v1754
  %1946 = vst.msk [vmem:[#allocation2 + $0x830] sm:$0xff] %vm597, %v1756
  %1947 = vst.msk [vmem:[#allocation2 + $0x858] sm:$0xff] %vm597, %v1758
  %1948 = vst.msk [vmem:[#allocation2 + $0x880] sm:$0xff] %vm597, %v1760
  %1949 = vst.msk [vmem:[#allocation2 + $0x8a8] sm:$0xff] %vm597, %v1762
  %1950 = vst.msk [vmem:[#allocation2 + $0x8d0] sm:$0xff] %vm597, %v1764
  %1951 = vst.msk [vmem:[#allocation2 + $0x8f8] sm:$0xff] %vm597, %v1766
  %1952 = vst.msk [vmem:[#allocation2 + $0x920] sm:$0xff] %vm597, %v1768
  %1953 = vst.msk [vmem:[#allocation2 + $0x948] sm:$0xff] %vm597, %v1770
  %1954 = vst.msk [vmem:[#allocation2 + $0x970] sm:$0xff] %vm597, %v1772
  %1955 = vst.msk [vmem:[#allocation2 + $0x998] sm:$0xff] %vm597, %v1774
  %1956 = vst.msk [vmem:[#allocation2 + $0x9c0] sm:$0xff] %vm597, %v1776
  %1957 = vst.msk [vmem:[#allocation2 + $0x9e8] sm:$0xff] %vm597, %v1778
  %1958 = vst.msk [vmem:[#allocation2 + $0xa10] sm:$0xff] %vm597, %v1780
  %1959 = vst.msk [vmem:[#allocation2 + $0xa38] sm:$0xff] %vm597, %v1782
  %1960 = vst.msk [vmem:[#allocation2 + $0xa60] sm:$0xff] %vm597, %v1784
  %1961 = vst.msk [vmem:[#allocation2 + $0xa88] sm:$0xff] %vm597, %v1786
  %1962 = vst.msk [vmem:[#allocation2 + $0xab0] sm:$0xff] %vm597, %v1788
  %1963 = vst.msk [vmem:[#allocation2 + $0xad8] sm:$0xff] %vm597, %v1790
  %1964 = vst.msk [vmem:[#allocation2 + $0xb00] sm:$0xff] %vm597, %v1792
  %1965 = vst.msk [vmem:[#allocation2 + $0xb28] sm:$0xff] %vm597, %v1794
  %1966 = vst.msk [vmem:[#allocation2 + $0xb50] sm:$0xff] %vm597, %v1796
  %1967 = vst.msk [vmem:[#allocation2 + $0xb78] sm:$0xff] %vm597, %v1798
  %1968 = vst.msk [vmem:[#allocation2 + $0xba0] sm:$0xff] %vm597, %v1800
  %1969 = vst.msk [vmem:[#allocation2 + $0xbc8] sm:$0xff] %vm597, %v1802
  %1970 = vst.msk [vmem:[#allocation2 + $0xbf0] sm:$0xff] %vm597, %v1804
  %1971 = vst.msk [vmem:[#allocation2 + $0xc18] sm:$0xff] %vm597, %v1806
  %1972 = vst.msk [vmem:[#allocation2 + $0xc40] sm:$0xff] %vm597, %v1808
  %1973 = vst.msk [vmem:[#allocation2 + $0xc68] sm:$0xff] %vm597, %v1810
  %1974 = vst.msk [vmem:[#allocation2 + $0xc90] sm:$0xff] %vm597, %v1812
  %v1975 = vld [vmem:[%s0 + $0x24] sm:$0xff]
  %v1976 = vld [vmem:[%s0 + $0x2c] sm:$0xff]
  %v1977 = vld [vmem:[%s0 + $0x34] sm:$0xff]
  %v1978 = vld [vmem:[%s0 + $0x3c] sm:$0xff]
  %v1979 = vld [vmem:[%s0 + $0x44] sm:$0xff]
  %v1980 = vld [vmem:[%s0 + $0x4c] sm:$0xff]
  %v1981 = vld [vmem:[%s0 + $0x54] sm:$0xff]
  %v1982 = vld [vmem:[%s0 + $0x5c] sm:$0xff]
  %v1983 = vld [vmem:[%s0 + $0x64] sm:$0xff]
  %v1984 = vld [vmem:[%s0 + $0x6c] sm:$0xff]
  %v1985 = vld [vmem:[%s0 + $0x74] sm:$0xff]
  %v1986 = vld [vmem:[%s0 + $0x7c] sm:$0xff]
  %v1987 = vld [vmem:[%s0 + $0x84] sm:$0xff]
  %v1988 = vld [vmem:[%s0 + $0x8c] sm:$0xff]
  %v1989 = vld [vmem:[%s0 + $0x94] sm:$0xff]
  %v1990 = vld [vmem:[%s0 + $0x9c] sm:$0xff]
  %v1991 = vld [vmem:[%s0 + $0xa4] sm:$0xff]
  %v1992 = vld [vmem:[%s0 + $0xac] sm:$0xff]
  %v1993 = vld [vmem:[%s0 + $0xb4] sm:$0xff]
  %v1994 = vld [vmem:[%s0 + $0xbc] sm:$0xff]
  %v1995 = vld [vmem:[%s0 + $0xc4] sm:$0xff]
  %v1996 = vld [vmem:[%s0 + $0xcc] sm:$0xff]
  %v1997 = vld [vmem:[%s0 + $0xd4] sm:$0xff]
  %v1998 = vld [vmem:[%s0 + $0xdc] sm:$0xff]
  %v1999 = vld [vmem:[%s0 + $0xe4] sm:$0xff]
  %v2000 = vld [vmem:[%s0 + $0xec] sm:$0xff]
  %v2001 = vld [vmem:[%s0 + $0xf4] sm:$0xff]
  %v2002 = vld [vmem:[%s0 + $0xfc] sm:$0xff]
  %v2003 = vld [vmem:[%s0 + $0x104] sm:$0xff]
  %v2004 = vld [vmem:[%s0 + $0x10c] sm:$0xff]
  %v2005 = vld [vmem:[%s0 + $0x114] sm:$0xff]
  %v2006 = vld [vmem:[%s0 + $0x11c] sm:$0xff]
  %v2007 = vld [vmem:[%s0 + $0x124] sm:$0xff]
  %v2008 = vld [vmem:[%s0 + $0x12c] sm:$0xff]
  %v2009 = vld [vmem:[%s0 + $0x134] sm:$0xff]
  %v2010 = vld [vmem:[%s0 + $0x13c] sm:$0xff]
  %v2011 = vld [vmem:[%s0 + $0x144] sm:$0xff]
  %v2012 = vld [vmem:[%s0 + $0x14c] sm:$0xff]
  %v2013 = vld [vmem:[%s0 + $0x154] sm:$0xff]
  %v2014 = vld [vmem:[%s0 + $0x15c] sm:$0xff]
  %v2015 = vld [vmem:[%s0 + $0x164] sm:$0xff]
  %v2016 = vld [vmem:[%s0 + $0x16c] sm:$0xff]
  %v2017 = vld [vmem:[%s0 + $0x174] sm:$0xff]
  %v2018 = vld [vmem:[%s0 + $0x17c] sm:$0xff]
  %v2019 = vld [vmem:[%s0 + $0x184] sm:$0xff]
  %v2020 = vld [vmem:[%s0 + $0x18c] sm:$0xff]
  %v2021 = vld [vmem:[%s0 + $0x194] sm:$0xff]
  %v2022 = vld [vmem:[%s0 + $0x19c] sm:$0xff]
  %v2023 = vld [vmem:[%s0 + $0x1a4] sm:$0xff]
  %v2024 = vld [vmem:[%s0 + $0x1ac] sm:$0xff]
  %v2025 = vld [vmem:[%s0 + $0x1b4] sm:$0xff]
  %v2026 = vld [vmem:[%s0 + $0x1bc] sm:$0xff]
  %v2027 = vld [vmem:[%s0 + $0x1c4] sm:$0xff]
  %v2028 = vld [vmem:[%s0 + $0x1cc] sm:$0xff]
  %v2029 = vld [vmem:[%s0 + $0x1d4] sm:$0xff]
  %v2030 = vld [vmem:[%s0 + $0x1dc] sm:$0xff]
  %v2031 = vld [vmem:[%s0 + $0x1e4] sm:$0xff]
  %v2032 = vld [vmem:[%s0 + $0x1ec] sm:$0xff]
  %v2033 = vld [vmem:[%s0 + $0x1f4] sm:$0xff]
  %v2034 = vld [vmem:[%s0 + $0x1fc] sm:$0xff]
  %v2035 = vld [vmem:[%s0 + $0x204] sm:$0xff]
  %v2036 = vld [vmem:[%s0 + $0x20c] sm:$0xff]
  %v2037 = vld [vmem:[%s0 + $0x214] sm:$0xff]
  %v2038 = vld [vmem:[%s0 + $0x21c] sm:$0xff]
  %v2039 = vld [vmem:[%s0 + $0x224] sm:$0xff]
  %v2040 = vld [vmem:[%s0 + $0x22c] sm:$0xff]
  %v2041 = vld [vmem:[%s0 + $0x234] sm:$0xff]
  %v2042 = vld [vmem:[%s0 + $0x23c] sm:$0xff]
  %v2043 = vld [vmem:[%s0 + $0x244] sm:$0xff]
  %v2044 = vld [vmem:[%s0 + $0x24c] sm:$0xff]
  %v2045 = vld [vmem:[%s0 + $0x254] sm:$0xff]
  %v2046 = vld [vmem:[%s0 + $0x25c] sm:$0xff]
  %v2047 = vld [vmem:[%s0 + $0x264] sm:$0xff]
  %v2048 = vld [vmem:[%s0 + $0x26c] sm:$0xff]
  %v2049 = vld [vmem:[%s0 + $0x274] sm:$0xff]
  %v2050 = vld [vmem:[%s0 + $0x27c] sm:$0xff]
  %v2051 = vld [vmem:[%s0 + $0x284] sm:$0xff]
  %v2052 = vld [vmem:[%s0 + $0x28c] sm:$0xff]
  %v2053 = vld [vmem:[%s0 + $0x294] sm:$0xff]
  %v2054 = vld [vmem:[%s0 + $0x29c] sm:$0xff]
  %v2055 = vld [vmem:[%s0 + $0x2a4] sm:$0xff]
  %2056 = vst.msk [vmem:[#allocation2 + $0x18] sm:$0xff] %vm110, %v1975
  %2057 = vst.msk [vmem:[#allocation2 + $0x40] sm:$0xff] %vm110, %v1976
  %2058 = vst.msk [vmem:[#allocation2 + $0x68] sm:$0xff] %vm110, %v1977
  %2059 = vst.msk [vmem:[#allocation2 + $0x90] sm:$0xff] %vm110, %v1978
  %2060 = vst.msk [vmem:[#allocation2 + $0xb8] sm:$0xff] %vm110, %v1979
  %2061 = vst.msk [vmem:[#allocation2 + $0xe0] sm:$0xff] %vm110, %v1980
  %2062 = vst.msk [vmem:[#allocation2 + $0x108] sm:$0xff] %vm110, %v1981
  %2063 = vst.msk [vmem:[#allocation2 + $0x130] sm:$0xff] %vm110, %v1982
  %2064 = vst.msk [vmem:[#allocation2 + $0x158] sm:$0xff] %vm110, %v1983
  %2065 = vst.msk [vmem:[#allocation2 + $0x180] sm:$0xff] %vm110, %v1984
  %2066 = vst.msk [vmem:[#allocation2 + $0x1a8] sm:$0xff] %vm110, %v1985
  %2067 = vst.msk [vmem:[#allocation2 + $0x1d0] sm:$0xff] %vm110, %v1986
  %2068 = vst.msk [vmem:[#allocation2 + $0x1f8] sm:$0xff] %vm110, %v1987
  %2069 = vst.msk [vmem:[#allocation2 + $0x220] sm:$0xff] %vm110, %v1988
  %2070 = vst.msk [vmem:[#allocation2 + $0x248] sm:$0xff] %vm110, %v1989
  %2071 = vst.msk [vmem:[#allocation2 + $0x270] sm:$0xff] %vm110, %v1990
  %2072 = vst.msk [vmem:[#allocation2 + $0x298] sm:$0xff] %vm110, %v1991
  %2073 = vst.msk [vmem:[#allocation2 + $0x2c0] sm:$0xff] %vm110, %v1992
  %2074 = vst.msk [vmem:[#allocation2 + $0x2e8] sm:$0xff] %vm110, %v1993
  %2075 = vst.msk [vmem:[#allocation2 + $0x310] sm:$0xff] %vm110, %v1994
  %2076 = vst.msk [vmem:[#allocation2 + $0x338] sm:$0xff] %vm110, %v1995
  %2077 = vst.msk [vmem:[#allocation2 + $0x360] sm:$0xff] %vm110, %v1996
  %2078 = vst.msk [vmem:[#allocation2 + $0x388] sm:$0xff] %vm110, %v1997
  %2079 = vst.msk [vmem:[#allocation2 + $0x3b0] sm:$0xff] %vm110, %v1998
  %2080 = vst.msk [vmem:[#allocation2 + $0x3d8] sm:$0xff] %vm110, %v1999
  %2081 = vst.msk [vmem:[#allocation2 + $0x400] sm:$0xff] %vm110, %v2000
  %2082 = vst.msk [vmem:[#allocation2 + $0x428] sm:$0xff] %vm110, %v2001
  %2083 = vst.msk [vmem:[#allocation2 + $0x450] sm:$0xff] %vm110, %v2002
  %2084 = vst.msk [vmem:[#allocation2 + $0x478] sm:$0xff] %vm110, %v2003
  %2085 = vst.msk [vmem:[#allocation2 + $0x4a0] sm:$0xff] %vm110, %v2004
  %2086 = vst.msk [vmem:[#allocation2 + $0x4c8] sm:$0xff] %vm110, %v2005
  %2087 = vst.msk [vmem:[#allocation2 + $0x4f0] sm:$0xff] %vm110, %v2006
  %2088 = vst.msk [vmem:[#allocation2 + $0x518] sm:$0xff] %vm110, %v2007
  %2089 = vst.msk [vmem:[#allocation2 + $0x540] sm:$0xff] %vm110, %v2008
  %2090 = vst.msk [vmem:[#allocation2 + $0x568] sm:$0xff] %vm110, %v2009
  %2091 = vst.msk [vmem:[#allocation2 + $0x590] sm:$0xff] %vm110, %v2010
  %2092 = vst.msk [vmem:[#allocation2 + $0x5b8] sm:$0xff] %vm110, %v2011
  %2093 = vst.msk [vmem:[#allocation2 + $0x5e0] sm:$0xff] %vm110, %v2012
  %2094 = vst.msk [vmem:[#allocation2 + $0x608] sm:$0xff] %vm110, %v2013
  %2095 = vst.msk [vmem:[#allocation2 + $0x630] sm:$0xff] %vm110, %v2014
  %2096 = vst.msk [vmem:[#allocation2 + $0x658] sm:$0xff] %vm110, %v2015
  %2097 = vst.msk [vmem:[#allocation2 + $0x680] sm:$0xff] %vm110, %v2016
  %2098 = vst.msk [vmem:[#allocation2 + $0x6a8] sm:$0xff] %vm110, %v2017
  %2099 = vst.msk [vmem:[#allocation2 + $0x6d0] sm:$0xff] %vm110, %v2018
  %2100 = vst.msk [vmem:[#allocation2 + $0x6f8] sm:$0xff] %vm110, %v2019
  %2101 = vst.msk [vmem:[#allocation2 + $0x720] sm:$0xff] %vm110, %v2020
  %2102 = vst.msk [vmem:[#allocation2 + $0x748] sm:$0xff] %vm110, %v2021
  %2103 = vst.msk [vmem:[#allocation2 + $0x770] sm:$0xff] %vm110, %v2022
  %2104 = vst.msk [vmem:[#allocation2 + $0x798] sm:$0xff] %vm110, %v2023
  %2105 = vst.msk [vmem:[#allocation2 + $0x7c0] sm:$0xff] %vm110, %v2024
  %2106 = vst.msk [vmem:[#allocation2 + $0x7e8] sm:$0xff] %vm110, %v2025
  %2107 = vst.msk [vmem:[#allocation2 + $0x810] sm:$0xff] %vm110, %v2026
  %2108 = vst.msk [vmem:[#allocation2 + $0x838] sm:$0xff] %vm110, %v2027
  %2109 = vst.msk [vmem:[#allocation2 + $0x860] sm:$0xff] %vm110, %v2028
  %2110 = vst.msk [vmem:[#allocation2 + $0x888] sm:$0xff] %vm110, %v2029
  %2111 = vst.msk [vmem:[#allocation2 + $0x8b0] sm:$0xff] %vm110, %v2030
  %2112 = vst.msk [vmem:[#allocation2 + $0x8d8] sm:$0xff] %vm110, %v2031
  %2113 = vst.msk [vmem:[#allocation2 + $0x900] sm:$0xff] %vm110, %v2032
  %2114 = vst.msk [vmem:[#allocation2 + $0x928] sm:$0xff] %vm110, %v2033
  %2115 = vst.msk [vmem:[#allocation2 + $0x950] sm:$0xff] %vm110, %v2034
  %2116 = vst.msk [vmem:[#allocation2 + $0x978] sm:$0xff] %vm110, %v2035
  %2117 = vst.msk [vmem:[#allocation2 + $0x9a0] sm:$0xff] %vm110, %v2036
  %2118 = vst.msk [vmem:[#allocation2 + $0x9c8] sm:$0xff] %vm110, %v2037
  %2119 = vst.msk [vmem:[#allocation2 + $0x9f0] sm:$0xff] %vm110, %v2038
  %2120 = vst.msk [vmem:[#allocation2 + $0xa18] sm:$0xff] %vm110, %v2039
  %2121 = vst.msk [vmem:[#allocation2 + $0xa40] sm:$0xff] %vm110, %v2040
  %2122 = vst.msk [vmem:[#allocation2 + $0xa68] sm:$0xff] %vm110, %v2041
  %2123 = vst.msk [vmem:[#allocation2 + $0xa90] sm:$0xff] %vm110, %v2042
  %2124 = vst.msk [vmem:[#allocation2 + $0xab8] sm:$0xff] %vm110, %v2043
  %2125 = vst.msk [vmem:[#allocation2 + $0xae0] sm:$0xff] %vm110, %v2044
  %2126 = vst.msk [vmem:[#allocation2 + $0xb08] sm:$0xff] %vm110, %v2045
  %2127 = vst.msk [vmem:[#allocation2 + $0xb30] sm:$0xff] %vm110, %v2046
  %2128 = vst.msk [vmem:[#allocation2 + $0xb58] sm:$0xff] %vm110, %v2047
  %2129 = vst.msk [vmem:[#allocation2 + $0xb80] sm:$0xff] %vm110, %v2048
  %2130 = vst.msk [vmem:[#allocation2 + $0xba8] sm:$0xff] %vm110, %v2049
  %2131 = vst.msk [vmem:[#allocation2 + $0xbd0] sm:$0xff] %vm110, %v2050
  %2132 = vst.msk [vmem:[#allocation2 + $0xbf8] sm:$0xff] %vm110, %v2051
  %2133 = vst.msk [vmem:[#allocation2 + $0xc20] sm:$0xff] %vm110, %v2052
  %2134 = vst.msk [vmem:[#allocation2 + $0xc48] sm:$0xff] %vm110, %v2053
  %2135 = vst.msk [vmem:[#allocation2 + $0xc70] sm:$0xff] %vm110, %v2054
  %2136 = vst.msk [vmem:[#allocation2 + $0xc98] sm:$0xff] %vm110, %v2055
  %v2137 = vld [vmem:[%s0 + $0x25] sm:$0xff]
  %v2138 = vld [vmem:[%s0 + $0x2d] sm:$0xff]
  %v2139 = vld [vmem:[%s0 + $0x35] sm:$0xff]
  %v2140 = vld [vmem:[%s0 + $0x3d] sm:$0xff]
  %v2141 = vld [vmem:[%s0 + $0x45] sm:$0xff]
  %v2142 = vld [vmem:[%s0 + $0x4d] sm:$0xff]
  %v2143 = vld [vmem:[%s0 + $0x55] sm:$0xff]
  %v2144 = vld [vmem:[%s0 + $0x5d] sm:$0xff]
  %v2145 = vld [vmem:[%s0 + $0x65] sm:$0xff]
  %v2146 = vld [vmem:[%s0 + $0x6d] sm:$0xff]
  %v2147 = vld [vmem:[%s0 + $0x75] sm:$0xff]
  %v2148 = vld [vmem:[%s0 + $0x7d] sm:$0xff]
  %v2149 = vld [vmem:[%s0 + $0x85] sm:$0xff]
  %v2150 = vld [vmem:[%s0 + $0x8d] sm:$0xff]
  %v2151 = vld [vmem:[%s0 + $0x95] sm:$0xff]
  %v2152 = vld [vmem:[%s0 + $0x9d] sm:$0xff]
  %v2153 = vld [vmem:[%s0 + $0xa5] sm:$0xff]
  %v2154 = vld [vmem:[%s0 + $0xad] sm:$0xff]
  %v2155 = vld [vmem:[%s0 + $0xb5] sm:$0xff]
  %v2156 = vld [vmem:[%s0 + $0xbd] sm:$0xff]
  %v2157 = vld [vmem:[%s0 + $0xc5] sm:$0xff]
  %v2158 = vld [vmem:[%s0 + $0xcd] sm:$0xff]
  %v2159 = vld [vmem:[%s0 + $0xd5] sm:$0xff]
  %v2160 = vld [vmem:[%s0 + $0xdd] sm:$0xff]
  %v2161 = vld [vmem:[%s0 + $0xe5] sm:$0xff]
  %v2162 = vld [vmem:[%s0 + $0xed] sm:$0xff]
  %v2163 = vld [vmem:[%s0 + $0xf5] sm:$0xff]
  %v2164 = vld [vmem:[%s0 + $0xfd] sm:$0xff]
  %v2165 = vld [vmem:[%s0 + $0x105] sm:$0xff]
  %v2166 = vld [vmem:[%s0 + $0x10d] sm:$0xff]
  %v2167 = vld [vmem:[%s0 + $0x115] sm:$0xff]
  %v2168 = vld [vmem:[%s0 + $0x11d] sm:$0xff]
  %v2169 = vld [vmem:[%s0 + $0x125] sm:$0xff]
  %v2170 = vld [vmem:[%s0 + $0x12d] sm:$0xff]
  %v2171 = vld [vmem:[%s0 + $0x135] sm:$0xff]
  %v2172 = vld [vmem:[%s0 + $0x13d] sm:$0xff]
  %v2173 = vld [vmem:[%s0 + $0x145] sm:$0xff]
  %v2174 = vld [vmem:[%s0 + $0x14d] sm:$0xff]
  %v2175 = vld [vmem:[%s0 + $0x155] sm:$0xff]
  %v2176 = vld [vmem:[%s0 + $0x15d] sm:$0xff]
  %v2177 = vld [vmem:[%s0 + $0x165] sm:$0xff]
  %v2178 = vld [vmem:[%s0 + $0x16d] sm:$0xff]
  %v2179 = vld [vmem:[%s0 + $0x175] sm:$0xff]
  %v2180 = vld [vmem:[%s0 + $0x17d] sm:$0xff]
  %v2181 = vld [vmem:[%s0 + $0x185] sm:$0xff]
  %v2182 = vld [vmem:[%s0 + $0x18d] sm:$0xff]
  %v2183 = vld [vmem:[%s0 + $0x195] sm:$0xff]
  %v2184 = vld [vmem:[%s0 + $0x19d] sm:$0xff]
  %v2185 = vld [vmem:[%s0 + $0x1a5] sm:$0xff]
  %v2186 = vld [vmem:[%s0 + $0x1ad] sm:$0xff]
  %v2187 = vld [vmem:[%s0 + $0x1b5] sm:$0xff]
  %v2188 = vld [vmem:[%s0 + $0x1bd] sm:$0xff]
  %v2189 = vld [vmem:[%s0 + $0x1c5] sm:$0xff]
  %v2190 = vld [vmem:[%s0 + $0x1cd] sm:$0xff]
  %v2191 = vld [vmem:[%s0 + $0x1d5] sm:$0xff]
  %v2192 = vld [vmem:[%s0 + $0x1dd] sm:$0xff]
  %v2193 = vld [vmem:[%s0 + $0x1e5] sm:$0xff]
  %v2194 = vld [vmem:[%s0 + $0x1ed] sm:$0xff]
  %v2195 = vld [vmem:[%s0 + $0x1f5] sm:$0xff]
  %v2196 = vld [vmem:[%s0 + $0x1fd] sm:$0xff]
  %v2197 = vld [vmem:[%s0 + $0x205] sm:$0xff]
  %v2198 = vld [vmem:[%s0 + $0x20d] sm:$0xff]
  %v2199 = vld [vmem:[%s0 + $0x215] sm:$0xff]
  %v2200 = vld [vmem:[%s0 + $0x21d] sm:$0xff]
  %v2201 = vld [vmem:[%s0 + $0x225] sm:$0xff]
  %v2202 = vld [vmem:[%s0 + $0x22d] sm:$0xff]
  %v2203 = vld [vmem:[%s0 + $0x235] sm:$0xff]
  %v2204 = vld [vmem:[%s0 + $0x23d] sm:$0xff]
  %v2205 = vld [vmem:[%s0 + $0x245] sm:$0xff]
  %v2206 = vld [vmem:[%s0 + $0x24d] sm:$0xff]
  %v2207 = vld [vmem:[%s0 + $0x255] sm:$0xff]
  %v2208 = vld [vmem:[%s0 + $0x25d] sm:$0xff]
  %v2209 = vld [vmem:[%s0 + $0x265] sm:$0xff]
  %v2210 = vld [vmem:[%s0 + $0x26d] sm:$0xff]
  %v2211 = vld [vmem:[%s0 + $0x275] sm:$0xff]
  %v2212 = vld [vmem:[%s0 + $0x27d] sm:$0xff]
  %v2213 = vld [vmem:[%s0 + $0x285] sm:$0xff]
  %v2214 = vld [vmem:[%s0 + $0x28d] sm:$0xff]
  %v2215 = vld [vmem:[%s0 + $0x295] sm:$0xff]
  %v2216 = vld [vmem:[%s0 + $0x29d] sm:$0xff]
  %v2217 = vld [vmem:[%s0 + $0x2a5] sm:$0xff]
  %2299 = vrot.lane.b32.xlu0 %v2137, 64
  %v2300 = vpop.permute.xlu0 %2299
  %2301 = vrot.lane.b32.xlu0 %v2138, 64
  %v2302 = vpop.permute.xlu0 %2301
  %2303 = vrot.lane.b32.xlu0 %v2139, 64
  %v2304 = vpop.permute.xlu0 %2303
  %2305 = vrot.lane.b32.xlu0 %v2140, 64
  %v2306 = vpop.permute.xlu0 %2305
  %2307 = vrot.lane.b32.xlu0 %v2141, 64
  %v2308 = vpop.permute.xlu0 %2307
  %2309 = vrot.lane.b32.xlu0 %v2142, 64
  %v2310 = vpop.permute.xlu0 %2309
  %2311 = vrot.lane.b32.xlu0 %v2143, 64
  %v2312 = vpop.permute.xlu0 %2311
  %2313 = vrot.lane.b32.xlu0 %v2144, 64
  %v2314 = vpop.permute.xlu0 %2313
  %2315 = vrot.lane.b32.xlu0 %v2145, 64
  %v2316 = vpop.permute.xlu0 %2315
  %2317 = vrot.lane.b32.xlu0 %v2146, 64
  %v2318 = vpop.permute.xlu0 %2317
  %2319 = vrot.lane.b32.xlu0 %v2147, 64
  %v2320 = vpop.permute.xlu0 %2319
  %2321 = vrot.lane.b32.xlu0 %v2148, 64
  %v2322 = vpop.permute.xlu0 %2321
  %2323 = vrot.lane.b32.xlu0 %v2149, 64
  %v2324 = vpop.permute.xlu0 %2323
  %2325 = vrot.lane.b32.xlu0 %v2150, 64
  %v2326 = vpop.permute.xlu0 %2325
  %2327 = vrot.lane.b32.xlu0 %v2151, 64
  %v2328 = vpop.permute.xlu0 %2327
  %2329 = vrot.lane.b32.xlu0 %v2152, 64
  %v2330 = vpop.permute.xlu0 %2329
  %2331 = vrot.lane.b32.xlu0 %v2153, 64
  %v2332 = vpop.permute.xlu0 %2331
  %2333 = vrot.lane.b32.xlu0 %v2154, 64
  %v2334 = vpop.permute.xlu0 %2333
  %2335 = vrot.lane.b32.xlu0 %v2155, 64
  %v2336 = vpop.permute.xlu0 %2335
  %2337 = vrot.lane.b32.xlu0 %v2156, 64
  %v2338 = vpop.permute.xlu0 %2337
  %2339 = vrot.lane.b32.xlu0 %v2157, 64
  %v2340 = vpop.permute.xlu0 %2339
  %2341 = vrot.lane.b32.xlu0 %v2158, 64
  %v2342 = vpop.permute.xlu0 %2341
  %2343 = vrot.lane.b32.xlu0 %v2159, 64
  %v2344 = vpop.permute.xlu0 %2343
  %2345 = vrot.lane.b32.xlu0 %v2160, 64
  %v2346 = vpop.permute.xlu0 %2345
  %2347 = vrot.lane.b32.xlu0 %v2161, 64
  %v2348 = vpop.permute.xlu0 %2347
  %2349 = vrot.lane.b32.xlu0 %v2162, 64
  %v2350 = vpop.permute.xlu0 %2349
  %2351 = vrot.lane.b32.xlu0 %v2163, 64
  %v2352 = vpop.permute.xlu0 %2351
  %2353 = vrot.lane.b32.xlu0 %v2164, 64
  %v2354 = vpop.permute.xlu0 %2353
  %2355 = vrot.lane.b32.xlu0 %v2165, 64
  %v2356 = vpop.permute.xlu0 %2355
  %2357 = vrot.lane.b32.xlu0 %v2166, 64
  %v2358 = vpop.permute.xlu0 %2357
  %2359 = vrot.lane.b32.xlu0 %v2167, 64
  %v2360 = vpop.permute.xlu0 %2359
  %2361 = vrot.lane.b32.xlu0 %v2168, 64
  %v2362 = vpop.permute.xlu0 %2361
  %2363 = vrot.lane.b32.xlu0 %v2169, 64
  %v2364 = vpop.permute.xlu0 %2363
  %2365 = vrot.lane.b32.xlu0 %v2170, 64
  %v2366 = vpop.permute.xlu0 %2365
  %2367 = vrot.lane.b32.xlu0 %v2171, 64
  %v2368 = vpop.permute.xlu0 %2367
  %2369 = vrot.lane.b32.xlu0 %v2172, 64
  %v2370 = vpop.permute.xlu0 %2369
  %2371 = vrot.lane.b32.xlu0 %v2173, 64
  %v2372 = vpop.permute.xlu0 %2371
  %2373 = vrot.lane.b32.xlu0 %v2174, 64
  %v2374 = vpop.permute.xlu0 %2373
  %2375 = vrot.lane.b32.xlu0 %v2175, 64
  %v2376 = vpop.permute.xlu0 %2375
  %2377 = vrot.lane.b32.xlu0 %v2176, 64
  %v2378 = vpop.permute.xlu0 %2377
  %2379 = vrot.lane.b32.xlu0 %v2177, 64
  %v2380 = vpop.permute.xlu0 %2379
  %2381 = vrot.lane.b32.xlu0 %v2178, 64
  %v2382 = vpop.permute.xlu0 %2381
  %2383 = vrot.lane.b32.xlu0 %v2179, 64
  %v2384 = vpop.permute.xlu0 %2383
  %2385 = vrot.lane.b32.xlu0 %v2180, 64
  %v2386 = vpop.permute.xlu0 %2385
  %2387 = vrot.lane.b32.xlu0 %v2181, 64
  %v2388 = vpop.permute.xlu0 %2387
  %2389 = vrot.lane.b32.xlu0 %v2182, 64
  %v2390 = vpop.permute.xlu0 %2389
  %2391 = vrot.lane.b32.xlu0 %v2183, 64
  %v2392 = vpop.permute.xlu0 %2391
  %2393 = vrot.lane.b32.xlu0 %v2184, 64
  %v2394 = vpop.permute.xlu0 %2393
  %2395 = vrot.lane.b32.xlu0 %v2185, 64
  %v2396 = vpop.permute.xlu0 %2395
  %2397 = vrot.lane.b32.xlu0 %v2186, 64
  %v2398 = vpop.permute.xlu0 %2397
  %2399 = vrot.lane.b32.xlu0 %v2187, 64
  %v2400 = vpop.permute.xlu0 %2399
  %2401 = vrot.lane.b32.xlu0 %v2188, 64
  %v2402 = vpop.permute.xlu0 %2401
  %2403 = vrot.lane.b32.xlu0 %v2189, 64
  %v2404 = vpop.permute.xlu0 %2403
  %2405 = vrot.lane.b32.xlu0 %v2190, 64
  %v2406 = vpop.permute.xlu0 %2405
  %2407 = vrot.lane.b32.xlu0 %v2191, 64
  %v2408 = vpop.permute.xlu0 %2407
  %2409 = vrot.lane.b32.xlu0 %v2192, 64
  %v2410 = vpop.permute.xlu0 %2409
  %2411 = vrot.lane.b32.xlu0 %v2193, 64
  %v2412 = vpop.permute.xlu0 %2411
  %2413 = vrot.lane.b32.xlu0 %v2194, 64
  %v2414 = vpop.permute.xlu0 %2413
  %2415 = vrot.lane.b32.xlu0 %v2195, 64
  %v2416 = vpop.permute.xlu0 %2415
  %2417 = vrot.lane.b32.xlu0 %v2196, 64
  %v2418 = vpop.permute.xlu0 %2417
  %2419 = vrot.lane.b32.xlu0 %v2197, 64
  %v2420 = vpop.permute.xlu0 %2419
  %2421 = vrot.lane.b32.xlu0 %v2198, 64
  %v2422 = vpop.permute.xlu0 %2421
  %2423 = vrot.lane.b32.xlu0 %v2199, 64
  %v2424 = vpop.permute.xlu0 %2423
  %2425 = vrot.lane.b32.xlu0 %v2200, 64
  %v2426 = vpop.permute.xlu0 %2425
  %2427 = vrot.lane.b32.xlu0 %v2201, 64
  %v2428 = vpop.permute.xlu0 %2427
  %2429 = vrot.lane.b32.xlu0 %v2202, 64
  %v2430 = vpop.permute.xlu0 %2429
  %2431 = vrot.lane.b32.xlu0 %v2203, 64
  %v2432 = vpop.permute.xlu0 %2431
  %2433 = vrot.lane.b32.xlu0 %v2204, 64
  %v2434 = vpop.permute.xlu0 %2433
  %2435 = vrot.lane.b32.xlu0 %v2205, 64
  %v2436 = vpop.permute.xlu0 %2435
  %2437 = vrot.lane.b32.xlu0 %v2206, 64
  %v2438 = vpop.permute.xlu0 %2437
  %2439 = vrot.lane.b32.xlu0 %v2207, 64
  %v2440 = vpop.permute.xlu0 %2439
  %2441 = vrot.lane.b32.xlu0 %v2208, 64
  %v2442 = vpop.permute.xlu0 %2441
  %2443 = vrot.lane.b32.xlu0 %v2209, 64
  %v2444 = vpop.permute.xlu0 %2443
  %2445 = vrot.lane.b32.xlu0 %v2210, 64
  %v2446 = vpop.permute.xlu0 %2445
  %2447 = vrot.lane.b32.xlu0 %v2211, 64
  %v2448 = vpop.permute.xlu0 %2447
  %2449 = vrot.lane.b32.xlu0 %v2212, 64
  %v2450 = vpop.permute.xlu0 %2449
  %2451 = vrot.lane.b32.xlu0 %v2213, 64
  %v2452 = vpop.permute.xlu0 %2451
  %2453 = vrot.lane.b32.xlu0 %v2214, 64
  %v2454 = vpop.permute.xlu0 %2453
  %2455 = vrot.lane.b32.xlu0 %v2215, 64
  %v2456 = vpop.permute.xlu0 %2455
  %2457 = vrot.lane.b32.xlu0 %v2216, 64
  %v2458 = vpop.permute.xlu0 %2457
  %2459 = vrot.lane.b32.xlu0 %v2217, 64
  %v2460 = vpop.permute.xlu0 %2459
  %2542 = vst.msk [vmem:[#allocation2 + $0x18] sm:$0xff] %vm597, %v2300
  %2543 = vst.msk [vmem:[#allocation2 + $0x40] sm:$0xff] %vm597, %v2302
  %2544 = vst.msk [vmem:[#allocation2 + $0x68] sm:$0xff] %vm597, %v2304
  %2545 = vst.msk [vmem:[#allocation2 + $0x90] sm:$0xff] %vm597, %v2306
  %2546 = vst.msk [vmem:[#allocation2 + $0xb8] sm:$0xff] %vm597, %v2308
  %2547 = vst.msk [vmem:[#allocation2 + $0xe0] sm:$0xff] %vm597, %v2310
  %2548 = vst.msk [vmem:[#allocation2 + $0x108] sm:$0xff] %vm597, %v2312
  %2549 = vst.msk [vmem:[#allocation2 + $0x130] sm:$0xff] %vm597, %v2314
  %2550 = vst.msk [vmem:[#allocation2 + $0x158] sm:$0xff] %vm597, %v2316
  %2551 = vst.msk [vmem:[#allocation2 + $0x180] sm:$0xff] %vm597, %v2318
  %2552 = vst.msk [vmem:[#allocation2 + $0x1a8] sm:$0xff] %vm597, %v2320
  %2553 = vst.msk [vmem:[#allocation2 + $0x1d0] sm:$0xff] %vm597, %v2322
  %2554 = vst.msk [vmem:[#allocation2 + $0x1f8] sm:$0xff] %vm597, %v2324
  %2555 = vst.msk [vmem:[#allocation2 + $0x220] sm:$0xff] %vm597, %v2326
  %2556 = vst.msk [vmem:[#allocation2 + $0x248] sm:$0xff] %vm597, %v2328
  %2557 = vst.msk [vmem:[#allocation2 + $0x270] sm:$0xff] %vm597, %v2330
  %2558 = vst.msk [vmem:[#allocation2 + $0x298] sm:$0xff] %vm597, %v2332
  %2559 = vst.msk [vmem:[#allocation2 + $0x2c0] sm:$0xff] %vm597, %v2334
  %2560 = vst.msk [vmem:[#allocation2 + $0x2e8] sm:$0xff] %vm597, %v2336
  %2561 = vst.msk [vmem:[#allocation2 + $0x310] sm:$0xff] %vm597, %v2338
  %2562 = vst.msk [vmem:[#allocation2 + $0x338] sm:$0xff] %vm597, %v2340
  %2563 = vst.msk [vmem:[#allocation2 + $0x360] sm:$0xff] %vm597, %v2342
  %2564 = vst.msk [vmem:[#allocation2 + $0x388] sm:$0xff] %vm597, %v2344
  %2565 = vst.msk [vmem:[#allocation2 + $0x3b0] sm:$0xff] %vm597, %v2346
  %2566 = vst.msk [vmem:[#allocation2 + $0x3d8] sm:$0xff] %vm597, %v2348
  %2567 = vst.msk [vmem:[#allocation2 + $0x400] sm:$0xff] %vm597, %v2350
  %2568 = vst.msk [vmem:[#allocation2 + $0x428] sm:$0xff] %vm597, %v2352
  %2569 = vst.msk [vmem:[#allocation2 + $0x450] sm:$0xff] %vm597, %v2354
  %2570 = vst.msk [vmem:[#allocation2 + $0x478] sm:$0xff] %vm597, %v2356
  %2571 = vst.msk [vmem:[#allocation2 + $0x4a0] sm:$0xff] %vm597, %v2358
  %2572 = vst.msk [vmem:[#allocation2 + $0x4c8] sm:$0xff] %vm597, %v2360
  %2573 = vst.msk [vmem:[#allocation2 + $0x4f0] sm:$0xff] %vm597, %v2362
  %2574 = vst.msk [vmem:[#allocation2 + $0x518] sm:$0xff] %vm597, %v2364
  %2575 = vst.msk [vmem:[#allocation2 + $0x540] sm:$0xff] %vm597, %v2366
  %2576 = vst.msk [vmem:[#allocation2 + $0x568] sm:$0xff] %vm597, %v2368
  %2577 = vst.msk [vmem:[#allocation2 + $0x590] sm:$0xff] %vm597, %v2370
  %2578 = vst.msk [vmem:[#allocation2 + $0x5b8] sm:$0xff] %vm597, %v2372
  %2579 = vst.msk [vmem:[#allocation2 + $0x5e0] sm:$0xff] %vm597, %v2374
  %2580 = vst.msk [vmem:[#allocation2 + $0x608] sm:$0xff] %vm597, %v2376
  %2581 = vst.msk [vmem:[#allocation2 + $0x630] sm:$0xff] %vm597, %v2378
  %2582 = vst.msk [vmem:[#allocation2 + $0x658] sm:$0xff] %vm597, %v2380
  %2583 = vst.msk [vmem:[#allocation2 + $0x680] sm:$0xff] %vm597, %v2382
  %2584 = vst.msk [vmem:[#allocation2 + $0x6a8] sm:$0xff] %vm597, %v2384
  %2585 = vst.msk [vmem:[#allocation2 + $0x6d0] sm:$0xff] %vm597, %v2386
  %2586 = vst.msk [vmem:[#allocation2 + $0x6f8] sm:$0xff] %vm597, %v2388
  %2587 = vst.msk [vmem:[#allocation2 + $0x720] sm:$0xff] %vm597, %v2390
  %2588 = vst.msk [vmem:[#allocation2 + $0x748] sm:$0xff] %vm597, %v2392
  %2589 = vst.msk [vmem:[#allocation2 + $0x770] sm:$0xff] %vm597, %v2394
  %2590 = vst.msk [vmem:[#allocation2 + $0x798] sm:$0xff] %vm597, %v2396
  %2591 = vst.msk [vmem:[#allocation2 + $0x7c0] sm:$0xff] %vm597, %v2398
  %2592 = vst.msk [vmem:[#allocation2 + $0x7e8] sm:$0xff] %vm597, %v2400
  %2593 = vst.msk [vmem:[#allocation2 + $0x810] sm:$0xff] %vm597, %v2402
  %2594 = vst.msk [vmem:[#allocation2 + $0x838] sm:$0xff] %vm597, %v2404
  %2595 = vst.msk [vmem:[#allocation2 + $0x860] sm:$0xff] %vm597, %v2406
  %2596 = vst.msk [vmem:[#allocation2 + $0x888] sm:$0xff] %vm597, %v2408
  %2597 = vst.msk [vmem:[#allocation2 + $0x8b0] sm:$0xff] %vm597, %v2410
  %2598 = vst.msk [vmem:[#allocation2 + $0x8d8] sm:$0xff] %vm597, %v2412
  %2599 = vst.msk [vmem:[#allocation2 + $0x900] sm:$0xff] %vm597, %v2414
  %2600 = vst.msk [vmem:[#allocation2 + $0x928] sm:$0xff] %vm597, %v2416
  %2601 = vst.msk [vmem:[#allocation2 + $0x950] sm:$0xff] %vm597, %v2418
  %2602 = vst.msk [vmem:[#allocation2 + $0x978] sm:$0xff] %vm597, %v2420
  %2603 = vst.msk [vmem:[#allocation2 + $0x9a0] sm:$0xff] %vm597, %v2422
  %2604 = vst.msk [vmem:[#allocation2 + $0x9c8] sm:$0xff] %vm597, %v2424
  %2605 = vst.msk [vmem:[#allocation2 + $0x9f0] sm:$0xff] %vm597, %v2426
  %2606 = vst.msk [vmem:[#allocation2 + $0xa18] sm:$0xff] %vm597, %v2428
  %2607 = vst.msk [vmem:[#allocation2 + $0xa40] sm:$0xff] %vm597, %v2430
  %2608 = vst.msk [vmem:[#allocation2 + $0xa68] sm:$0xff] %vm597, %v2432
  %2609 = vst.msk [vmem:[#allocation2 + $0xa90] sm:$0xff] %vm597, %v2434
  %2610 = vst.msk [vmem:[#allocation2 + $0xab8] sm:$0xff] %vm597, %v2436
  %2611 = vst.msk [vmem:[#allocation2 + $0xae0] sm:$0xff] %vm597, %v2438
  %2612 = vst.msk [vmem:[#allocation2 + $0xb08] sm:$0xff] %vm597, %v2440
  %2613 = vst.msk [vmem:[#allocation2 + $0xb30] sm:$0xff] %vm597, %v2442
  %2614 = vst.msk [vmem:[#allocation2 + $0xb58] sm:$0xff] %vm597, %v2444
  %2615 = vst.msk [vmem:[#allocation2 + $0xb80] sm:$0xff] %vm597, %v2446
  %2616 = vst.msk [vmem:[#allocation2 + $0xba8] sm:$0xff] %vm597, %v2448
  %2617 = vst.msk [vmem:[#allocation2 + $0xbd0] sm:$0xff] %vm597, %v2450
  %2618 = vst.msk [vmem:[#allocation2 + $0xbf8] sm:$0xff] %vm597, %v2452
  %2619 = vst.msk [vmem:[#allocation2 + $0xc20] sm:$0xff] %vm597, %v2454
  %2620 = vst.msk [vmem:[#allocation2 + $0xc48] sm:$0xff] %vm597, %v2456
  %2621 = vst.msk [vmem:[#allocation2 + $0xc70] sm:$0xff] %vm597, %v2458
  %2622 = vst.msk [vmem:[#allocation2 + $0xc98] sm:$0xff] %vm597, %v2460
  %v2623 = vld [vmem:[%s0 + $0x26] sm:$0xff]
  %v2624 = vld [vmem:[%s0 + $0x2e] sm:$0xff]
  %v2625 = vld [vmem:[%s0 + $0x36] sm:$0xff]
  %v2626 = vld [vmem:[%s0 + $0x3e] sm:$0xff]
  %v2627 = vld [vmem:[%s0 + $0x46] sm:$0xff]
  %v2628 = vld [vmem:[%s0 + $0x4e] sm:$0xff]
  %v2629 = vld [vmem:[%s0 + $0x56] sm:$0xff]
  %v2630 = vld [vmem:[%s0 + $0x5e] sm:$0xff]
  %v2631 = vld [vmem:[%s0 + $0x66] sm:$0xff]
  %v2632 = vld [vmem:[%s0 + $0x6e] sm:$0xff]
  %v2633 = vld [vmem:[%s0 + $0x76] sm:$0xff]
  %v2634 = vld [vmem:[%s0 + $0x7e] sm:$0xff]
  %v2635 = vld [vmem:[%s0 + $0x86] sm:$0xff]
  %v2636 = vld [vmem:[%s0 + $0x8e] sm:$0xff]
  %v2637 = vld [vmem:[%s0 + $0x96] sm:$0xff]
  %v2638 = vld [vmem:[%s0 + $0x9e] sm:$0xff]
  %v2639 = vld [vmem:[%s0 + $0xa6] sm:$0xff]
  %v2640 = vld [vmem:[%s0 + $0xae] sm:$0xff]
  %v2641 = vld [vmem:[%s0 + $0xb6] sm:$0xff]
  %v2642 = vld [vmem:[%s0 + $0xbe] sm:$0xff]
  %v2643 = vld [vmem:[%s0 + $0xc6] sm:$0xff]
  %v2644 = vld [vmem:[%s0 + $0xce] sm:$0xff]
  %v2645 = vld [vmem:[%s0 + $0xd6] sm:$0xff]
  %v2646 = vld [vmem:[%s0 + $0xde] sm:$0xff]
  %v2647 = vld [vmem:[%s0 + $0xe6] sm:$0xff]
  %v2648 = vld [vmem:[%s0 + $0xee] sm:$0xff]
  %v2649 = vld [vmem:[%s0 + $0xf6] sm:$0xff]
  %v2650 = vld [vmem:[%s0 + $0xfe] sm:$0xff]
  %v2651 = vld [vmem:[%s0 + $0x106] sm:$0xff]
  %v2652 = vld [vmem:[%s0 + $0x10e] sm:$0xff]
  %v2653 = vld [vmem:[%s0 + $0x116] sm:$0xff]
  %v2654 = vld [vmem:[%s0 + $0x11e] sm:$0xff]
  %v2655 = vld [vmem:[%s0 + $0x126] sm:$0xff]
  %v2656 = vld [vmem:[%s0 + $0x12e] sm:$0xff]
  %v2657 = vld [vmem:[%s0 + $0x136] sm:$0xff]
  %v2658 = vld [vmem:[%s0 + $0x13e] sm:$0xff]
  %v2659 = vld [vmem:[%s0 + $0x146] sm:$0xff]
  %v2660 = vld [vmem:[%s0 + $0x14e] sm:$0xff]
  %v2661 = vld [vmem:[%s0 + $0x156] sm:$0xff]
  %v2662 = vld [vmem:[%s0 + $0x15e] sm:$0xff]
  %v2663 = vld [vmem:[%s0 + $0x166] sm:$0xff]
  %v2664 = vld [vmem:[%s0 + $0x16e] sm:$0xff]
  %v2665 = vld [vmem:[%s0 + $0x176] sm:$0xff]
  %v2666 = vld [vmem:[%s0 + $0x17e] sm:$0xff]
  %v2667 = vld [vmem:[%s0 + $0x186] sm:$0xff]
  %v2668 = vld [vmem:[%s0 + $0x18e] sm:$0xff]
  %v2669 = vld [vmem:[%s0 + $0x196] sm:$0xff]
  %v2670 = vld [vmem:[%s0 + $0x19e] sm:$0xff]
  %v2671 = vld [vmem:[%s0 + $0x1a6] sm:$0xff]
  %v2672 = vld [vmem:[%s0 + $0x1ae] sm:$0xff]
  %v2673 = vld [vmem:[%s0 + $0x1b6] sm:$0xff]
  %v2674 = vld [vmem:[%s0 + $0x1be] sm:$0xff]
  %v2675 = vld [vmem:[%s0 + $0x1c6] sm:$0xff]
  %v2676 = vld [vmem:[%s0 + $0x1ce] sm:$0xff]
  %v2677 = vld [vmem:[%s0 + $0x1d6] sm:$0xff]
  %v2678 = vld [vmem:[%s0 + $0x1de] sm:$0xff]
  %v2679 = vld [vmem:[%s0 + $0x1e6] sm:$0xff]
  %v2680 = vld [vmem:[%s0 + $0x1ee] sm:$0xff]
  %v2681 = vld [vmem:[%s0 + $0x1f6] sm:$0xff]
  %v2682 = vld [vmem:[%s0 + $0x1fe] sm:$0xff]
  %v2683 = vld [vmem:[%s0 + $0x206] sm:$0xff]
  %v2684 = vld [vmem:[%s0 + $0x20e] sm:$0xff]
  %v2685 = vld [vmem:[%s0 + $0x216] sm:$0xff]
  %v2686 = vld [vmem:[%s0 + $0x21e] sm:$0xff]
  %v2687 = vld [vmem:[%s0 + $0x226] sm:$0xff]
  %v2688 = vld [vmem:[%s0 + $0x22e] sm:$0xff]
  %v2689 = vld [vmem:[%s0 + $0x236] sm:$0xff]
  %v2690 = vld [vmem:[%s0 + $0x23e] sm:$0xff]
  %v2691 = vld [vmem:[%s0 + $0x246] sm:$0xff]
  %v2692 = vld [vmem:[%s0 + $0x24e] sm:$0xff]
  %v2693 = vld [vmem:[%s0 + $0x256] sm:$0xff]
  %v2694 = vld [vmem:[%s0 + $0x25e] sm:$0xff]
  %v2695 = vld [vmem:[%s0 + $0x266] sm:$0xff]
  %v2696 = vld [vmem:[%s0 + $0x26e] sm:$0xff]
  %v2697 = vld [vmem:[%s0 + $0x276] sm:$0xff]
  %v2698 = vld [vmem:[%s0 + $0x27e] sm:$0xff]
  %v2699 = vld [vmem:[%s0 + $0x286] sm:$0xff]
  %v2700 = vld [vmem:[%s0 + $0x28e] sm:$0xff]
  %v2701 = vld [vmem:[%s0 + $0x296] sm:$0xff]
  %v2702 = vld [vmem:[%s0 + $0x29e] sm:$0xff]
  %v2703 = vld [vmem:[%s0 + $0x2a6] sm:$0xff]
  %2704 = vst.msk [vmem:[#allocation2 + $0x20] sm:$0xff] %vm110, %v2623
  %2705 = vst.msk [vmem:[#allocation2 + $0x48] sm:$0xff] %vm110, %v2624
  %2706 = vst.msk [vmem:[#allocation2 + $0x70] sm:$0xff] %vm110, %v2625
  %2707 = vst.msk [vmem:[#allocation2 + $0x98] sm:$0xff] %vm110, %v2626
  %2708 = vst.msk [vmem:[#allocation2 + $0xc0] sm:$0xff] %vm110, %v2627
  %2709 = vst.msk [vmem:[#allocation2 + $0xe8] sm:$0xff] %vm110, %v2628
  %2710 = vst.msk [vmem:[#allocation2 + $0x110] sm:$0xff] %vm110, %v2629
  %2711 = vst.msk [vmem:[#allocation2 + $0x138] sm:$0xff] %vm110, %v2630
  %2712 = vst.msk [vmem:[#allocation2 + $0x160] sm:$0xff] %vm110, %v2631
  %2713 = vst.msk [vmem:[#allocation2 + $0x188] sm:$0xff] %vm110, %v2632
  %2714 = vst.msk [vmem:[#allocation2 + $0x1b0] sm:$0xff] %vm110, %v2633
  %2715 = vst.msk [vmem:[#allocation2 + $0x1d8] sm:$0xff] %vm110, %v2634
  %2716 = vst.msk [vmem:[#allocation2 + $0x200] sm:$0xff] %vm110, %v2635
  %2717 = vst.msk [vmem:[#allocation2 + $0x228] sm:$0xff] %vm110, %v2636
  %2718 = vst.msk [vmem:[#allocation2 + $0x250] sm:$0xff] %vm110, %v2637
  %2719 = vst.msk [vmem:[#allocation2 + $0x278] sm:$0xff] %vm110, %v2638
  %2720 = vst.msk [vmem:[#allocation2 + $0x2a0] sm:$0xff] %vm110, %v2639
  %2721 = vst.msk [vmem:[#allocation2 + $0x2c8] sm:$0xff] %vm110, %v2640
  %2722 = vst.msk [vmem:[#allocation2 + $0x2f0] sm:$0xff] %vm110, %v2641
  %2723 = vst.msk [vmem:[#allocation2 + $0x318] sm:$0xff] %vm110, %v2642
  %2724 = vst.msk [vmem:[#allocation2 + $0x340] sm:$0xff] %vm110, %v2643
  %2725 = vst.msk [vmem:[#allocation2 + $0x368] sm:$0xff] %vm110, %v2644
  %2726 = vst.msk [vmem:[#allocation2 + $0x390] sm:$0xff] %vm110, %v2645
  %2727 = vst.msk [vmem:[#allocation2 + $0x3b8] sm:$0xff] %vm110, %v2646
  %2728 = vst.msk [vmem:[#allocation2 + $0x3e0] sm:$0xff] %vm110, %v2647
  %2729 = vst.msk [vmem:[#allocation2 + $0x408] sm:$0xff] %vm110, %v2648
  %2730 = vst.msk [vmem:[#allocation2 + $0x430] sm:$0xff] %vm110, %v2649
  %2731 = vst.msk [vmem:[#allocation2 + $0x458] sm:$0xff] %vm110, %v2650
  %2732 = vst.msk [vmem:[#allocation2 + $0x480] sm:$0xff] %vm110, %v2651
  %2733 = vst.msk [vmem:[#allocation2 + $0x4a8] sm:$0xff] %vm110, %v2652
  %2734 = vst.msk [vmem:[#allocation2 + $0x4d0] sm:$0xff] %vm110, %v2653
  %2735 = vst.msk [vmem:[#allocation2 + $0x4f8] sm:$0xff] %vm110, %v2654
  %2736 = vst.msk [vmem:[#allocation2 + $0x520] sm:$0xff] %vm110, %v2655
  %2737 = vst.msk [vmem:[#allocation2 + $0x548] sm:$0xff] %vm110, %v2656
  %2738 = vst.msk [vmem:[#allocation2 + $0x570] sm:$0xff] %vm110, %v2657
  %2739 = vst.msk [vmem:[#allocation2 + $0x598] sm:$0xff] %vm110, %v2658
  %2740 = vst.msk [vmem:[#allocation2 + $0x5c0] sm:$0xff] %vm110, %v2659
  %2741 = vst.msk [vmem:[#allocation2 + $0x5e8] sm:$0xff] %vm110, %v2660
  %2742 = vst.msk [vmem:[#allocation2 + $0x610] sm:$0xff] %vm110, %v2661
  %2743 = vst.msk [vmem:[#allocation2 + $0x638] sm:$0xff] %vm110, %v2662
  %2744 = vst.msk [vmem:[#allocation2 + $0x660] sm:$0xff] %vm110, %v2663
  %2745 = vst.msk [vmem:[#allocation2 + $0x688] sm:$0xff] %vm110, %v2664
  %2746 = vst.msk [vmem:[#allocation2 + $0x6b0] sm:$0xff] %vm110, %v2665
  %2747 = vst.msk [vmem:[#allocation2 + $0x6d8] sm:$0xff] %vm110, %v2666
  %2748 = vst.msk [vmem:[#allocation2 + $0x700] sm:$0xff] %vm110, %v2667
  %2749 = vst.msk [vmem:[#allocation2 + $0x728] sm:$0xff] %vm110, %v2668
  %2750 = vst.msk [vmem:[#allocation2 + $0x750] sm:$0xff] %vm110, %v2669
  %2751 = vst.msk [vmem:[#allocation2 + $0x778] sm:$0xff] %vm110, %v2670
  %2752 = vst.msk [vmem:[#allocation2 + $0x7a0] sm:$0xff] %vm110, %v2671
  %2753 = vst.msk [vmem:[#allocation2 + $0x7c8] sm:$0xff] %vm110, %v2672
  %2754 = vst.msk [vmem:[#allocation2 + $0x7f0] sm:$0xff] %vm110, %v2673
  %2755 = vst.msk [vmem:[#allocation2 + $0x818] sm:$0xff] %vm110, %v2674
  %2756 = vst.msk [vmem:[#allocation2 + $0x840] sm:$0xff] %vm110, %v2675
  %2757 = vst.msk [vmem:[#allocation2 + $0x868] sm:$0xff] %vm110, %v2676
  %2758 = vst.msk [vmem:[#allocation2 + $0x890] sm:$0xff] %vm110, %v2677
  %2759 = vst.msk [vmem:[#allocation2 + $0x8b8] sm:$0xff] %vm110, %v2678
  %2760 = vst.msk [vmem:[#allocation2 + $0x8e0] sm:$0xff] %vm110, %v2679
  %2761 = vst.msk [vmem:[#allocation2 + $0x908] sm:$0xff] %vm110, %v2680
  %2762 = vst.msk [vmem:[#allocation2 + $0x930] sm:$0xff] %vm110, %v2681
  %2763 = vst.msk [vmem:[#allocation2 + $0x958] sm:$0xff] %vm110, %v2682
  %2764 = vst.msk [vmem:[#allocation2 + $0x980] sm:$0xff] %vm110, %v2683
  %2765 = vst.msk [vmem:[#allocation2 + $0x9a8] sm:$0xff] %vm110, %v2684
  %2766 = vst.msk [vmem:[#allocation2 + $0x9d0] sm:$0xff] %vm110, %v2685
  %2767 = vst.msk [vmem:[#allocation2 + $0x9f8] sm:$0xff] %vm110, %v2686
  %2768 = vst.msk [vmem:[#allocation2 + $0xa20] sm:$0xff] %vm110, %v2687
  %2769 = vst.msk [vmem:[#allocation2 + $0xa48] sm:$0xff] %vm110, %v2688
  %2770 = vst.msk [vmem:[#allocation2 + $0xa70] sm:$0xff] %vm110, %v2689
  %2771 = vst.msk [vmem:[#allocation2 + $0xa98] sm:$0xff] %vm110, %v2690
  %2772 = vst.msk [vmem:[#allocation2 + $0xac0] sm:$0xff] %vm110, %v2691
  %2773 = vst.msk [vmem:[#allocation2 + $0xae8] sm:$0xff] %vm110, %v2692
  %2774 = vst.msk [vmem:[#allocation2 + $0xb10] sm:$0xff] %vm110, %v2693
  %2775 = vst.msk [vmem:[#allocation2 + $0xb38] sm:$0xff] %vm110, %v2694
  %2776 = vst.msk [vmem:[#allocation2 + $0xb60] sm:$0xff] %vm110, %v2695
  %2777 = vst.msk [vmem:[#allocation2 + $0xb88] sm:$0xff] %vm110, %v2696
  %2778 = vst.msk [vmem:[#allocation2 + $0xbb0] sm:$0xff] %vm110, %v2697
  %2779 = vst.msk [vmem:[#allocation2 + $0xbd8] sm:$0xff] %vm110, %v2698
  %2780 = vst.msk [vmem:[#allocation2 + $0xc00] sm:$0xff] %vm110, %v2699
  %2781 = vst.msk [vmem:[#allocation2 + $0xc28] sm:$0xff] %vm110, %v2700
  %2782 = vst.msk [vmem:[#allocation2 + $0xc50] sm:$0xff] %vm110, %v2701
  %2783 = vst.msk [vmem:[#allocation2 + $0xc78] sm:$0xff] %vm110, %v2702
  %2784 = vst.msk [vmem:[#allocation2 + $0xca0] sm:$0xff] %vm110, %v2703
  %v2785 = vld [vmem:[%s1] sm:$0xff]
  %v2786 = vld [vmem:[%s1 + $0x8] sm:$0xff]
  %v2787 = vld [vmem:[%s1 + $0x10] sm:$0xff]
  %v2788 = vld [vmem:[%s1 + $0x18] sm:$0xff]
  %v2789 = vld [vmem:[%s1 + $0x20] sm:$0xff]
  %v2790 = vld [vmem:[%s1 + $0x28] sm:$0xff]
  %v2791 = vld [vmem:[%s1 + $0x30] sm:$0xff]
  %v2792 = vld [vmem:[%s1 + $0x38] sm:$0xff]
  %v2793 = vld [vmem:[%s1 + $0x40] sm:$0xff]
  %v2794 = vld [vmem:[%s1 + $0x48] sm:$0xff]
  %v2795 = vld [vmem:[%s1 + $0x50] sm:$0xff]
  %v2796 = vld [vmem:[%s1 + $0x58] sm:$0xff]
  %v2797 = vld [vmem:[%s1 + $0x60] sm:$0xff]
  %v2798 = vld [vmem:[%s1 + $0x68] sm:$0xff]
  %v2799 = vld [vmem:[%s1 + $0x70] sm:$0xff]
  %v2800 = vld [vmem:[%s1 + $0x78] sm:$0xff]
  %v2801 = vld [vmem:[%s1 + $0x80] sm:$0xff]
  %v2802 = vld [vmem:[%s1 + $0x88] sm:$0xff]
  %v2803 = vld [vmem:[%s1 + $0x90] sm:$0xff]
  %v2804 = vld [vmem:[%s1 + $0x98] sm:$0xff]
  %v2805 = vld [vmem:[%s1 + $0xa0] sm:$0xff]
  %v2806 = vld [vmem:[%s1 + $0xa8] sm:$0xff]
  %v2807 = vld [vmem:[%s1 + $0xb0] sm:$0xff]
  %v2808 = vld [vmem:[%s1 + $0xb8] sm:$0xff]
  %v2809 = vld [vmem:[%s1 + $0xc0] sm:$0xff]
  %v2810 = vld [vmem:[%s1 + $0xc8] sm:$0xff]
  %v2811 = vld [vmem:[%s1 + $0xd0] sm:$0xff]
  %v2812 = vld [vmem:[%s1 + $0xd8] sm:$0xff]
  %v2813 = vld [vmem:[%s1 + $0xe0] sm:$0xff]
  %v2814 = vld [vmem:[%s1 + $0xe8] sm:$0xff]
  %v2815 = vld [vmem:[%s1 + $0xf0] sm:$0xff]
  %v2816 = vld [vmem:[%s1 + $0xf8] sm:$0xff]
  %v2817 = vld [vmem:[%s1 + $0x100] sm:$0xff]
  %v2818 = vld [vmem:[%s1 + $0x108] sm:$0xff]
  %v2819 = vld [vmem:[%s1 + $0x110] sm:$0xff]
  %v2820 = vld [vmem:[%s1 + $0x118] sm:$0xff]
  %v2821 = vld [vmem:[%s1 + $0x120] sm:$0xff]
  %v2822 = vld [vmem:[%s1 + $0x128] sm:$0xff]
  %v2823 = vld [vmem:[%s1 + $0x130] sm:$0xff]
  %v2824 = vld [vmem:[%s1 + $0x138] sm:$0xff]
  %v2825 = vld [vmem:[%s1 + $0x140] sm:$0xff]
  %v2826 = vld [vmem:[%s1 + $0x148] sm:$0xff]
  %v2827 = vld [vmem:[%s1 + $0x150] sm:$0xff]
  %v2828 = vld [vmem:[%s1 + $0x158] sm:$0xff]
  %v2829 = vld [vmem:[%s1 + $0x160] sm:$0xff]
  %v2830 = vld [vmem:[%s1 + $0x168] sm:$0xff]
  %v2831 = vld [vmem:[%s1 + $0x170] sm:$0xff]
  %v2832 = vld [vmem:[%s1 + $0x178] sm:$0xff]
  %v2833 = vld [vmem:[%s1 + $0x180] sm:$0xff]
  %v2834 = vld [vmem:[%s1 + $0x188] sm:$0xff]
  %v2835 = vld [vmem:[%s1 + $0x190] sm:$0xff]
  %v2836 = vld [vmem:[%s1 + $0x198] sm:$0xff]
  %v2837 = vld [vmem:[%s1 + $0x1a0] sm:$0xff]
  %v2838 = vld [vmem:[%s1 + $0x1a8] sm:$0xff]
  %v2839 = vld [vmem:[%s1 + $0x1b0] sm:$0xff]
  %v2840 = vld [vmem:[%s1 + $0x1b8] sm:$0xff]
  %v2841 = vld [vmem:[%s1 + $0x1c0] sm:$0xff]
  %v2842 = vld [vmem:[%s1 + $0x1c8] sm:$0xff]
  %v2843 = vld [vmem:[%s1 + $0x1d0] sm:$0xff]
  %v2844 = vld [vmem:[%s1 + $0x1d8] sm:$0xff]
  %v2845 = vld [vmem:[%s1 + $0x1e0] sm:$0xff]
  %v2846 = vld [vmem:[%s1 + $0x1e8] sm:$0xff]
  %v2847 = vld [vmem:[%s1 + $0x1f0] sm:$0xff]
  %v2848 = vld [vmem:[%s1 + $0x1f8] sm:$0xff]
  %v2849 = vld [vmem:[%s1 + $0x200] sm:$0xff]
  %v2850 = vld [vmem:[%s1 + $0x208] sm:$0xff]
  %v2851 = vld [vmem:[%s1 + $0x210] sm:$0xff]
  %v2852 = vld [vmem:[%s1 + $0x218] sm:$0xff]
  %v2853 = vld [vmem:[%s1 + $0x220] sm:$0xff]
  %v2854 = vld [vmem:[%s1 + $0x228] sm:$0xff]
  %v2855 = vld [vmem:[%s1 + $0x230] sm:$0xff]
  %v2856 = vld [vmem:[%s1 + $0x238] sm:$0xff]
  %v2857 = vld [vmem:[%s1 + $0x240] sm:$0xff]
  %v2858 = vld [vmem:[%s1 + $0x248] sm:$0xff]
  %v2859 = vld [vmem:[%s1 + $0x250] sm:$0xff]
  %v2860 = vld [vmem:[%s1 + $0x258] sm:$0xff]
  %v2861 = vld [vmem:[%s1 + $0x260] sm:$0xff]
  %v2862 = vld [vmem:[%s1 + $0x268] sm:$0xff]
  %v2863 = vld [vmem:[%s1 + $0x270] sm:$0xff]
  %v2864 = vld [vmem:[%s1 + $0x278] sm:$0xff]
  %v2865 = vld [vmem:[%s1 + $0x280] sm:$0xff]
  %v2866 = vld [vmem:[#allocation2] sm:$0xff]
  %v2867 = vld [vmem:[#allocation2 + $0x8] sm:$0xff]
  %v2868 = vld [vmem:[#allocation2 + $0x10] sm:$0xff]
  %v2869 = vld [vmem:[#allocation2 + $0x18] sm:$0xff]
  %v2870 = vld [vmem:[#allocation2 + $0x20] sm:$0xff]
  %v2871 = vld [vmem:[#allocation2 + $0x28] sm:$0xff]
  %v2872 = vld [vmem:[#allocation2 + $0x30] sm:$0xff]
  %v2873 = vld [vmem:[#allocation2 + $0x38] sm:$0xff]
  %v2874 = vld [vmem:[#allocation2 + $0x40] sm:$0xff]
  %v2875 = vld [vmem:[#allocation2 + $0x48] sm:$0xff]
  %v2876 = vld [vmem:[#allocation2 + $0x50] sm:$0xff]
  %v2877 = vld [vmem:[#allocation2 + $0x58] sm:$0xff]
  %v2878 = vld [vmem:[#allocation2 + $0x60] sm:$0xff]
  %v2879 = vld [vmem:[#allocation2 + $0x68] sm:$0xff]
  %v2880 = vld [vmem:[#allocation2 + $0x70] sm:$0xff]
  %v2881 = vld [vmem:[#allocation2 + $0x78] sm:$0xff]
  %v2882 = vld [vmem:[#allocation2 + $0x80] sm:$0xff]
  %v2883 = vld [vmem:[#allocation2 + $0x88] sm:$0xff]
  %v2884 = vld [vmem:[#allocation2 + $0x90] sm:$0xff]
  %v2885 = vld [vmem:[#allocation2 + $0x98] sm:$0xff]
  %v2886 = vld [vmem:[#allocation2 + $0xa0] sm:$0xff]
  %v2887 = vld [vmem:[#allocation2 + $0xa8] sm:$0xff]
  %v2888 = vld [vmem:[#allocation2 + $0xb0] sm:$0xff]
  %v2889 = vld [vmem:[#allocation2 + $0xb8] sm:$0xff]
  %v2890 = vld [vmem:[#allocation2 + $0xc0] sm:$0xff]
  %v2891 = vld [vmem:[#allocation2 + $0xc8] sm:$0xff]
  %v2892 = vld [vmem:[#allocation2 + $0xd0] sm:$0xff]
  %v2893 = vld [vmem:[#allocation2 + $0xd8] sm:$0xff]
  %v2894 = vld [vmem:[#allocation2 + $0xe0] sm:$0xff]
  %v2895 = vld [vmem:[#allocation2 + $0xe8] sm:$0xff]
  %v2896 = vld [vmem:[#allocation2 + $0xf0] sm:$0xff]
  %v2897 = vld [vmem:[#allocation2 + $0xf8] sm:$0xff]
  %v2898 = vld [vmem:[#allocation2 + $0x100] sm:$0xff]
  %v2899 = vld [vmem:[#allocation2 + $0x108] sm:$0xff]
  %v2900 = vld [vmem:[#allocation2 + $0x110] sm:$0xff]
  %v2901 = vld [vmem:[#allocation2 + $0x118] sm:$0xff]
  %v2902 = vld [vmem:[#allocation2 + $0x120] sm:$0xff]
  %v2903 = vld [vmem:[#allocation2 + $0x128] sm:$0xff]
  %v2904 = vld [vmem:[#allocation2 + $0x130] sm:$0xff]
  %v2905 = vld [vmem:[#allocation2 + $0x138] sm:$0xff]
  %v2906 = vld [vmem:[#allocation2 + $0x140] sm:$0xff]
  %v2907 = vld [vmem:[#allocation2 + $0x148] sm:$0xff]
  %v2908 = vld [vmem:[#allocation2 + $0x150] sm:$0xff]
  %v2909 = vld [vmem:[#allocation2 + $0x158] sm:$0xff]
  %v2910 = vld [vmem:[#allocation2 + $0x160] sm:$0xff]
  %v2911 = vld [vmem:[#allocation2 + $0x168] sm:$0xff]
  %v2912 = vld [vmem:[#allocation2 + $0x170] sm:$0xff]
  %v2913 = vld [vmem:[#allocation2 + $0x178] sm:$0xff]
  %v2914 = vld [vmem:[#allocation2 + $0x180] sm:$0xff]
  %v2915 = vld [vmem:[#allocation2 + $0x188] sm:$0xff]
  %v2916 = vld [vmem:[#allocation2 + $0x190] sm:$0xff]
  %v2917 = vld [vmem:[#allocation2 + $0x198] sm:$0xff]
  %v2918 = vld [vmem:[#allocation2 + $0x1a0] sm:$0xff]
  %v2919 = vld [vmem:[#allocation2 + $0x1a8] sm:$0xff]
  %v2920 = vld [vmem:[#allocation2 + $0x1b0] sm:$0xff]
  %v2921 = vld [vmem:[#allocation2 + $0x1b8] sm:$0xff]
  %v2922 = vld [vmem:[#allocation2 + $0x1c0] sm:$0xff]
  %v2923 = vld [vmem:[#allocation2 + $0x1c8] sm:$0xff]
  %v2924 = vld [vmem:[#allocation2 + $0x1d0] sm:$0xff]
  %v2925 = vld [vmem:[#allocation2 + $0x1d8] sm:$0xff]
  %v2926 = vld [vmem:[#allocation2 + $0x1e0] sm:$0xff]
  %v2927 = vld [vmem:[#allocation2 + $0x1e8] sm:$0xff]
  %v2928 = vld [vmem:[#allocation2 + $0x1f0] sm:$0xff]
  %v2929 = vld [vmem:[#allocation2 + $0x1f8] sm:$0xff]
  %v2930 = vld [vmem:[#allocation2 + $0x200] sm:$0xff]
  %v2931 = vld [vmem:[#allocation2 + $0x208] sm:$0xff]
  %v2932 = vld [vmem:[#allocation2 + $0x210] sm:$0xff]
  %v2933 = vld [vmem:[#allocation2 + $0x218] sm:$0xff]
  %v2934 = vld [vmem:[#allocation2 + $0x220] sm:$0xff]
  %v2935 = vld [vmem:[#allocation2 + $0x228] sm:$0xff]
  %v2936 = vld [vmem:[#allocation2 + $0x230] sm:$0xff]
  %v2937 = vld [vmem:[#allocation2 + $0x238] sm:$0xff]
  %v2938 = vld [vmem:[#allocation2 + $0x240] sm:$0xff]
  %v2939 = vld [vmem:[#allocation2 + $0x248] sm:$0xff]
  %v2940 = vld [vmem:[#allocation2 + $0x250] sm:$0xff]
  %v2941 = vld [vmem:[#allocation2 + $0x258] sm:$0xff]
  %v2942 = vld [vmem:[#allocation2 + $0x260] sm:$0xff]
  %v2943 = vld [vmem:[#allocation2 + $0x268] sm:$0xff]
  %v2944 = vld [vmem:[#allocation2 + $0x270] sm:$0xff]
  %v2945 = vld [vmem:[#allocation2 + $0x278] sm:$0xff]
  %v2946 = vld [vmem:[#allocation2 + $0x280] sm:$0xff]
  %v2947 = vld [vmem:[#allocation2 + $0x288] sm:$0xff]
  %v2948 = vld [vmem:[#allocation2 + $0x290] sm:$0xff]
  %v2949 = vld [vmem:[#allocation2 + $0x298] sm:$0xff]
  %v2950 = vld [vmem:[#allocation2 + $0x2a0] sm:$0xff]
  %v2951 = vld [vmem:[#allocation2 + $0x2a8] sm:$0xff]
  %v2952 = vld [vmem:[#allocation2 + $0x2b0] sm:$0xff]
  %v2953 = vld [vmem:[#allocation2 + $0x2b8] sm:$0xff]
  %v2954 = vld [vmem:[#allocation2 + $0x2c0] sm:$0xff]
  %v2955 = vld [vmem:[#allocation2 + $0x2c8] sm:$0xff]
  %v2956 = vld [vmem:[#allocation2 + $0x2d0] sm:$0xff]
  %v2957 = vld [vmem:[#allocation2 + $0x2d8] sm:$0xff]
  %v2958 = vld [vmem:[#allocation2 + $0x2e0] sm:$0xff]
  %v2959 = vld [vmem:[#allocation2 + $0x2e8] sm:$0xff]
  %v2960 = vld [vmem:[#allocation2 + $0x2f0] sm:$0xff]
  %v2961 = vld [vmem:[#allocation2 + $0x2f8] sm:$0xff]
  %v2962 = vld [vmem:[#allocation2 + $0x300] sm:$0xff]
  %v2963 = vld [vmem:[#allocation2 + $0x308] sm:$0xff]
  %v2964 = vld [vmem:[#allocation2 + $0x310] sm:$0xff]
  %v2965 = vld [vmem:[#allocation2 + $0x318] sm:$0xff]
  %v2966 = vld [vmem:[#allocation2 + $0x320] sm:$0xff]
  %v2967 = vld [vmem:[#allocation2 + $0x328] sm:$0xff]
  %v2968 = vld [vmem:[#allocation2 + $0x330] sm:$0xff]
  %v2969 = vld [vmem:[#allocation2 + $0x338] sm:$0xff]
  %v2970 = vld [vmem:[#allocation2 + $0x340] sm:$0xff]
  %v2971 = vld [vmem:[#allocation2 + $0x348] sm:$0xff]
  %v2972 = vld [vmem:[#allocation2 + $0x350] sm:$0xff]
  %v2973 = vld [vmem:[#allocation2 + $0x358] sm:$0xff]
  %v2974 = vld [vmem:[#allocation2 + $0x360] sm:$0xff]
  %v2975 = vld [vmem:[#allocation2 + $0x368] sm:$0xff]
  %v2976 = vld [vmem:[#allocation2 + $0x370] sm:$0xff]
  %v2977 = vld [vmem:[#allocation2 + $0x378] sm:$0xff]
  %v2978 = vld [vmem:[#allocation2 + $0x380] sm:$0xff]
  %v2979 = vld [vmem:[#allocation2 + $0x388] sm:$0xff]
  %v2980 = vld [vmem:[#allocation2 + $0x390] sm:$0xff]
  %v2981 = vld [vmem:[#allocation2 + $0x398] sm:$0xff]
  %v2982 = vld [vmem:[#allocation2 + $0x3a0] sm:$0xff]
  %v2983 = vld [vmem:[#allocation2 + $0x3a8] sm:$0xff]
  %v2984 = vld [vmem:[#allocation2 + $0x3b0] sm:$0xff]
  %v2985 = vld [vmem:[#allocation2 + $0x3b8] sm:$0xff]
  %v2986 = vld [vmem:[#allocation2 + $0x3c0] sm:$0xff]
  %v2987 = vld [vmem:[#allocation2 + $0x3c8] sm:$0xff]
  %v2988 = vld [vmem:[#allocation2 + $0x3d0] sm:$0xff]
  %v2989 = vld [vmem:[#allocation2 + $0x3d8] sm:$0xff]
  %v2990 = vld [vmem:[#allocation2 + $0x3e0] sm:$0xff]
  %v2991 = vld [vmem:[#allocation2 + $0x3e8] sm:$0xff]
  %v2992 = vld [vmem:[#allocation2 + $0x3f0] sm:$0xff]
  %v2993 = vld [vmem:[#allocation2 + $0x3f8] sm:$0xff]
  %v2994 = vld [vmem:[#allocation2 + $0x400] sm:$0xff]
  %v2995 = vld [vmem:[#allocation2 + $0x408] sm:$0xff]
  %v2996 = vld [vmem:[#allocation2 + $0x410] sm:$0xff]
  %v2997 = vld [vmem:[#allocation2 + $0x418] sm:$0xff]
  %v2998 = vld [vmem:[#allocation2 + $0x420] sm:$0xff]
  %v2999 = vld [vmem:[#allocation2 + $0x428] sm:$0xff]
  %v3000 = vld [vmem:[#allocation2 + $0x430] sm:$0xff]
  %v3001 = vld [vmem:[#allocation2 + $0x438] sm:$0xff]
  %v3002 = vld [vmem:[#allocation2 + $0x440] sm:$0xff]
  %v3003 = vld [vmem:[#allocation2 + $0x448] sm:$0xff]
  %v3004 = vld [vmem:[#allocation2 + $0x450] sm:$0xff]
  %v3005 = vld [vmem:[#allocation2 + $0x458] sm:$0xff]
  %v3006 = vld [vmem:[#allocation2 + $0x460] sm:$0xff]
  %v3007 = vld [vmem:[#allocation2 + $0x468] sm:$0xff]
  %v3008 = vld [vmem:[#allocation2 + $0x470] sm:$0xff]
  %v3009 = vld [vmem:[#allocation2 + $0x478] sm:$0xff]
  %v3010 = vld [vmem:[#allocation2 + $0x480] sm:$0xff]
  %v3011 = vld [vmem:[#allocation2 + $0x488] sm:$0xff]
  %v3012 = vld [vmem:[#allocation2 + $0x490] sm:$0xff]
  %v3013 = vld [vmem:[#allocation2 + $0x498] sm:$0xff]
  %v3014 = vld [vmem:[#allocation2 + $0x4a0] sm:$0xff]
  %v3015 = vld [vmem:[#allocation2 + $0x4a8] sm:$0xff]
  %v3016 = vld [vmem:[#allocation2 + $0x4b0] sm:$0xff]
  %v3017 = vld [vmem:[#allocation2 + $0x4b8] sm:$0xff]
  %v3018 = vld [vmem:[#allocation2 + $0x4c0] sm:$0xff]
  %v3019 = vld [vmem:[#allocation2 + $0x4c8] sm:$0xff]
  %v3020 = vld [vmem:[#allocation2 + $0x4d0] sm:$0xff]
  %v3021 = vld [vmem:[#allocation2 + $0x4d8] sm:$0xff]
  %v3022 = vld [vmem:[#allocation2 + $0x4e0] sm:$0xff]
  %v3023 = vld [vmem:[#allocation2 + $0x4e8] sm:$0xff]
  %v3024 = vld [vmem:[#allocation2 + $0x4f0] sm:$0xff]
  %v3025 = vld [vmem:[#allocation2 + $0x4f8] sm:$0xff]
  %v3026 = vld [vmem:[#allocation2 + $0x500] sm:$0xff]
  %v3027 = vld [vmem:[#allocation2 + $0x508] sm:$0xff]
  %v3028 = vld [vmem:[#allocation2 + $0x510] sm:$0xff]
  %v3029 = vld [vmem:[#allocation2 + $0x518] sm:$0xff]
  %v3030 = vld [vmem:[#allocation2 + $0x520] sm:$0xff]
  %v3031 = vld [vmem:[#allocation2 + $0x528] sm:$0xff]
  %v3032 = vld [vmem:[#allocation2 + $0x530] sm:$0xff]
  %v3033 = vld [vmem:[#allocation2 + $0x538] sm:$0xff]
  %v3034 = vld [vmem:[#allocation2 + $0x540] sm:$0xff]
  %v3035 = vld [vmem:[#allocation2 + $0x548] sm:$0xff]
  %v3036 = vld [vmem:[#allocation2 + $0x550] sm:$0xff]
  %v3037 = vld [vmem:[#allocation2 + $0x558] sm:$0xff]
  %v3038 = vld [vmem:[#allocation2 + $0x560] sm:$0xff]
  %v3039 = vld [vmem:[#allocation2 + $0x568] sm:$0xff]
  %v3040 = vld [vmem:[#allocation2 + $0x570] sm:$0xff]
  %v3041 = vld [vmem:[#allocation2 + $0x578] sm:$0xff]
  %v3042 = vld [vmem:[#allocation2 + $0x580] sm:$0xff]
  %v3043 = vld [vmem:[#allocation2 + $0x588] sm:$0xff]
  %v3044 = vld [vmem:[#allocation2 + $0x590] sm:$0xff]
  %v3045 = vld [vmem:[#allocation2 + $0x598] sm:$0xff]
  %v3046 = vld [vmem:[#allocation2 + $0x5a0] sm:$0xff]
  %v3047 = vld [vmem:[#allocation2 + $0x5a8] sm:$0xff]
  %v3048 = vld [vmem:[#allocation2 + $0x5b0] sm:$0xff]
  %v3049 = vld [vmem:[#allocation2 + $0x5b8] sm:$0xff]
  %v3050 = vld [vmem:[#allocation2 + $0x5c0] sm:$0xff]
  %v3051 = vld [vmem:[#allocation2 + $0x5c8] sm:$0xff]
  %v3052 = vld [vmem:[#allocation2 + $0x5d0] sm:$0xff]
  %v3053 = vld [vmem:[#allocation2 + $0x5d8] sm:$0xff]
  %v3054 = vld [vmem:[#allocation2 + $0x5e0] sm:$0xff]
  %v3055 = vld [vmem:[#allocation2 + $0x5e8] sm:$0xff]
  %v3056 = vld [vmem:[#allocation2 + $0x5f0] sm:$0xff]
  %v3057 = vld [vmem:[#allocation2 + $0x5f8] sm:$0xff]
  %v3058 = vld [vmem:[#allocation2 + $0x600] sm:$0xff]
  %v3059 = vld [vmem:[#allocation2 + $0x608] sm:$0xff]
  %v3060 = vld [vmem:[#allocation2 + $0x610] sm:$0xff]
  %v3061 = vld [vmem:[#allocation2 + $0x618] sm:$0xff]
  %v3062 = vld [vmem:[#allocation2 + $0x620] sm:$0xff]
  %v3063 = vld [vmem:[#allocation2 + $0x628] sm:$0xff]
  %v3064 = vld [vmem:[#allocation2 + $0x630] sm:$0xff]
  %v3065 = vld [vmem:[#allocation2 + $0x638] sm:$0xff]
  %v3066 = vld [vmem:[#allocation2 + $0x640] sm:$0xff]
  %v3067 = vld [vmem:[#allocation2 + $0x648] sm:$0xff]
  %v3068 = vld [vmem:[#allocation2 + $0x650] sm:$0xff]
  %v3069 = vld [vmem:[#allocation2 + $0x658] sm:$0xff]
  %v3070 = vld [vmem:[#allocation2 + $0x660] sm:$0xff]
  %v3071 = vld [vmem:[#allocation2 + $0x668] sm:$0xff]
  %v3072 = vld [vmem:[#allocation2 + $0x670] sm:$0xff]
  %v3073 = vld [vmem:[#allocation2 + $0x678] sm:$0xff]
  %v3074 = vld [vmem:[#allocation2 + $0x680] sm:$0xff]
  %v3075 = vld [vmem:[#allocation2 + $0x688] sm:$0xff]
  %v3076 = vld [vmem:[#allocation2 + $0x690] sm:$0xff]
  %v3077 = vld [vmem:[#allocation2 + $0x698] sm:$0xff]
  %v3078 = vld [vmem:[#allocation2 + $0x6a0] sm:$0xff]
  %v3079 = vld [vmem:[#allocation2 + $0x6a8] sm:$0xff]
  %v3080 = vld [vmem:[#allocation2 + $0x6b0] sm:$0xff]
  %v3081 = vld [vmem:[#allocation2 + $0x6b8] sm:$0xff]
  %v3082 = vld [vmem:[#allocation2 + $0x6c0] sm:$0xff]
  %v3083 = vld [vmem:[#allocation2 + $0x6c8] sm:$0xff]
  %v3084 = vld [vmem:[#allocation2 + $0x6d0] sm:$0xff]
  %v3085 = vld [vmem:[#allocation2 + $0x6d8] sm:$0xff]
  %v3086 = vld [vmem:[#allocation2 + $0x6e0] sm:$0xff]
  %v3087 = vld [vmem:[#allocation2 + $0x6e8] sm:$0xff]
  %v3088 = vld [vmem:[#allocation2 + $0x6f0] sm:$0xff]
  %v3089 = vld [vmem:[#allocation2 + $0x6f8] sm:$0xff]
  %v3090 = vld [vmem:[#allocation2 + $0x700] sm:$0xff]
  %v3091 = vld [vmem:[#allocation2 + $0x708] sm:$0xff]
  %v3092 = vld [vmem:[#allocation2 + $0x710] sm:$0xff]
  %v3093 = vld [vmem:[#allocation2 + $0x718] sm:$0xff]
  %v3094 = vld [vmem:[#allocation2 + $0x720] sm:$0xff]
  %v3095 = vld [vmem:[#allocation2 + $0x728] sm:$0xff]
  %v3096 = vld [vmem:[#allocation2 + $0x730] sm:$0xff]
  %v3097 = vld [vmem:[#allocation2 + $0x738] sm:$0xff]
  %v3098 = vld [vmem:[#allocation2 + $0x740] sm:$0xff]
  %v3099 = vld [vmem:[#allocation2 + $0x748] sm:$0xff]
  %v3100 = vld [vmem:[#allocation2 + $0x750] sm:$0xff]
  %v3101 = vld [vmem:[#allocation2 + $0x758] sm:$0xff]
  %v3102 = vld [vmem:[#allocation2 + $0x760] sm:$0xff]
  %v3103 = vld [vmem:[#allocation2 + $0x768] sm:$0xff]
  %v3104 = vld [vmem:[#allocation2 + $0x770] sm:$0xff]
  %v3105 = vld [vmem:[#allocation2 + $0x778] sm:$0xff]
  %v3106 = vld [vmem:[#allocation2 + $0x780] sm:$0xff]
  %v3107 = vld [vmem:[#allocation2 + $0x788] sm:$0xff]
  %v3108 = vld [vmem:[#allocation2 + $0x790] sm:$0xff]
  %v3109 = vld [vmem:[#allocation2 + $0x798] sm:$0xff]
  %v3110 = vld [vmem:[#allocation2 + $0x7a0] sm:$0xff]
  %v3111 = vld [vmem:[#allocation2 + $0x7a8] sm:$0xff]
  %v3112 = vld [vmem:[#allocation2 + $0x7b0] sm:$0xff]
  %v3113 = vld [vmem:[#allocation2 + $0x7b8] sm:$0xff]
  %v3114 = vld [vmem:[#allocation2 + $0x7c0] sm:$0xff]
  %v3115 = vld [vmem:[#allocation2 + $0x7c8] sm:$0xff]
  %v3116 = vld [vmem:[#allocation2 + $0x7d0] sm:$0xff]
  %v3117 = vld [vmem:[#allocation2 + $0x7d8] sm:$0xff]
  %v3118 = vld [vmem:[#allocation2 + $0x7e0] sm:$0xff]
  %v3119 = vld [vmem:[#allocation2 + $0x7e8] sm:$0xff]
  %v3120 = vld [vmem:[#allocation2 + $0x7f0] sm:$0xff]
  %v3121 = vld [vmem:[#allocation2 + $0x7f8] sm:$0xff]
  %v3122 = vld [vmem:[#allocation2 + $0x800] sm:$0xff]
  %v3123 = vld [vmem:[#allocation2 + $0x808] sm:$0xff]
  %v3124 = vld [vmem:[#allocation2 + $0x810] sm:$0xff]
  %v3125 = vld [vmem:[#allocation2 + $0x818] sm:$0xff]
  %v3126 = vld [vmem:[#allocation2 + $0x820] sm:$0xff]
  %v3127 = vld [vmem:[#allocation2 + $0x828] sm:$0xff]
  %v3128 = vld [vmem:[#allocation2 + $0x830] sm:$0xff]
  %v3129 = vld [vmem:[#allocation2 + $0x838] sm:$0xff]
  %v3130 = vld [vmem:[#allocation2 + $0x840] sm:$0xff]
  %v3131 = vld [vmem:[#allocation2 + $0x848] sm:$0xff]
  %v3132 = vld [vmem:[#allocation2 + $0x850] sm:$0xff]
  %v3133 = vld [vmem:[#allocation2 + $0x858] sm:$0xff]
  %v3134 = vld [vmem:[#allocation2 + $0x860] sm:$0xff]
  %v3135 = vld [vmem:[#allocation2 + $0x868] sm:$0xff]
  %v3136 = vld [vmem:[#allocation2 + $0x870] sm:$0xff]
  %v3137 = vld [vmem:[#allocation2 + $0x878] sm:$0xff]
  %v3138 = vld [vmem:[#allocation2 + $0x880] sm:$0xff]
  %v3139 = vld [vmem:[#allocation2 + $0x888] sm:$0xff]
  %v3140 = vld [vmem:[#allocation2 + $0x890] sm:$0xff]
  %v3141 = vld [vmem:[#allocation2 + $0x898] sm:$0xff]
  %v3142 = vld [vmem:[#allocation2 + $0x8a0] sm:$0xff]
  %v3143 = vld [vmem:[#allocation2 + $0x8a8] sm:$0xff]
  %v3144 = vld [vmem:[#allocation2 + $0x8b0] sm:$0xff]
  %v3145 = vld [vmem:[#allocation2 + $0x8b8] sm:$0xff]
  %v3146 = vld [vmem:[#allocation2 + $0x8c0] sm:$0xff]
  %v3147 = vld [vmem:[#allocation2 + $0x8c8] sm:$0xff]
  %v3148 = vld [vmem:[#allocation2 + $0x8d0] sm:$0xff]
  %v3149 = vld [vmem:[#allocation2 + $0x8d8] sm:$0xff]
  %v3150 = vld [vmem:[#allocation2 + $0x8e0] sm:$0xff]
  %v3151 = vld [vmem:[#allocation2 + $0x8e8] sm:$0xff]
  %v3152 = vld [vmem:[#allocation2 + $0x8f0] sm:$0xff]
  %v3153 = vld [vmem:[#allocation2 + $0x8f8] sm:$0xff]
  %v3154 = vld [vmem:[#allocation2 + $0x900] sm:$0xff]
  %v3155 = vld [vmem:[#allocation2 + $0x908] sm:$0xff]
  %v3156 = vld [vmem:[#allocation2 + $0x910] sm:$0xff]
  %v3157 = vld [vmem:[#allocation2 + $0x918] sm:$0xff]
  %v3158 = vld [vmem:[#allocation2 + $0x920] sm:$0xff]
  %v3159 = vld [vmem:[#allocation2 + $0x928] sm:$0xff]
  %v3160 = vld [vmem:[#allocation2 + $0x930] sm:$0xff]
  %v3161 = vld [vmem:[#allocation2 + $0x938] sm:$0xff]
  %v3162 = vld [vmem:[#allocation2 + $0x940] sm:$0xff]
  %v3163 = vld [vmem:[#allocation2 + $0x948] sm:$0xff]
  %v3164 = vld [vmem:[#allocation2 + $0x950] sm:$0xff]
  %v3165 = vld [vmem:[#allocation2 + $0x958] sm:$0xff]
  %v3166 = vld [vmem:[#allocation2 + $0x960] sm:$0xff]
  %v3167 = vld [vmem:[#allocation2 + $0x968] sm:$0xff]
  %v3168 = vld [vmem:[#allocation2 + $0x970] sm:$0xff]
  %v3169 = vld [vmem:[#allocation2 + $0x978] sm:$0xff]
  %v3170 = vld [vmem:[#allocation2 + $0x980] sm:$0xff]
  %v3171 = vld [vmem:[#allocation2 + $0x988] sm:$0xff]
  %v3172 = vld [vmem:[#allocation2 + $0x990] sm:$0xff]
  %v3173 = vld [vmem:[#allocation2 + $0x998] sm:$0xff]
  %v3174 = vld [vmem:[#allocation2 + $0x9a0] sm:$0xff]
  %v3175 = vld [vmem:[#allocation2 + $0x9a8] sm:$0xff]
  %v3176 = vld [vmem:[#allocation2 + $0x9b0] sm:$0xff]
  %v3177 = vld [vmem:[#allocation2 + $0x9b8] sm:$0xff]
  %v3178 = vld [vmem:[#allocation2 + $0x9c0] sm:$0xff]
  %v3179 = vld [vmem:[#allocation2 + $0x9c8] sm:$0xff]
  %v3180 = vld [vmem:[#allocation2 + $0x9d0] sm:$0xff]
  %v3181 = vld [vmem:[#allocation2 + $0x9d8] sm:$0xff]
  %v3182 = vld [vmem:[#allocation2 + $0x9e0] sm:$0xff]
  %v3183 = vld [vmem:[#allocation2 + $0x9e8] sm:$0xff]
  %v3184 = vld [vmem:[#allocation2 + $0x9f0] sm:$0xff]
  %v3185 = vld [vmem:[#allocation2 + $0x9f8] sm:$0xff]
  %v3186 = vld [vmem:[#allocation2 + $0xa00] sm:$0xff]
  %v3187 = vld [vmem:[#allocation2 + $0xa08] sm:$0xff]
  %v3188 = vld [vmem:[#allocation2 + $0xa10] sm:$0xff]
  %v3189 = vld [vmem:[#allocation2 + $0xa18] sm:$0xff]
  %v3190 = vld [vmem:[#allocation2 + $0xa20] sm:$0xff]
  %v3191 = vld [vmem:[#allocation2 + $0xa28] sm:$0xff]
  %v3192 = vld [vmem:[#allocation2 + $0xa30] sm:$0xff]
  %v3193 = vld [vmem:[#allocation2 + $0xa38] sm:$0xff]
  %v3194 = vld [vmem:[#allocation2 + $0xa40] sm:$0xff]
  %v3195 = vld [vmem:[#allocation2 + $0xa48] sm:$0xff]
  %v3196 = vld [vmem:[#allocation2 + $0xa50] sm:$0xff]
  %v3197 = vld [vmem:[#allocation2 + $0xa58] sm:$0xff]
  %v3198 = vld [vmem:[#allocation2 + $0xa60] sm:$0xff]
  %v3199 = vld [vmem:[#allocation2 + $0xa68] sm:$0xff]
  %v3200 = vld [vmem:[#allocation2 + $0xa70] sm:$0xff]
  %v3201 = vld [vmem:[#allocation2 + $0xa78] sm:$0xff]
  %v3202 = vld [vmem:[#allocation2 + $0xa80] sm:$0xff]
  %v3203 = vld [vmem:[#allocation2 + $0xa88] sm:$0xff]
  %v3204 = vld [vmem:[#allocation2 + $0xa90] sm:$0xff]
  %v3205 = vld [vmem:[#allocation2 + $0xa98] sm:$0xff]
  %v3206 = vld [vmem:[#allocation2 + $0xaa0] sm:$0xff]
  %v3207 = vld [vmem:[#allocation2 + $0xaa8] sm:$0xff]
  %v3208 = vld [vmem:[#allocation2 + $0xab0] sm:$0xff]
  %v3209 = vld [vmem:[#allocation2 + $0xab8] sm:$0xff]
  %v3210 = vld [vmem:[#allocation2 + $0xac0] sm:$0xff]
  %v3211 = vld [vmem:[#allocation2 + $0xac8] sm:$0xff]
  %v3212 = vld [vmem:[#allocation2 + $0xad0] sm:$0xff]
  %v3213 = vld [vmem:[#allocation2 + $0xad8] sm:$0xff]
  %v3214 = vld [vmem:[#allocation2 + $0xae0] sm:$0xff]
  %v3215 = vld [vmem:[#allocation2 + $0xae8] sm:$0xff]
  %v3216 = vld [vmem:[#allocation2 + $0xaf0] sm:$0xff]
  %v3217 = vld [vmem:[#allocation2 + $0xaf8] sm:$0xff]
  %v3218 = vld [vmem:[#allocation2 + $0xb00] sm:$0xff]
  %v3219 = vld [vmem:[#allocation2 + $0xb08] sm:$0xff]
  %v3220 = vld [vmem:[#allocation2 + $0xb10] sm:$0xff]
  %v3221 = vld [vmem:[#allocation2 + $0xb18] sm:$0xff]
  %v3222 = vld [vmem:[#allocation2 + $0xb20] sm:$0xff]
  %v3223 = vld [vmem:[#allocation2 + $0xb28] sm:$0xff]
  %v3224 = vld [vmem:[#allocation2 + $0xb30] sm:$0xff]
  %v3225 = vld [vmem:[#allocation2 + $0xb38] sm:$0xff]
  %v3226 = vld [vmem:[#allocation2 + $0xb40] sm:$0xff]
  %v3227 = vld [vmem:[#allocation2 + $0xb48] sm:$0xff]
  %v3228 = vld [vmem:[#allocation2 + $0xb50] sm:$0xff]
  %v3229 = vld [vmem:[#allocation2 + $0xb58] sm:$0xff]
  %v3230 = vld [vmem:[#allocation2 + $0xb60] sm:$0xff]
  %v3231 = vld [vmem:[#allocation2 + $0xb68] sm:$0xff]
  %v3232 = vld [vmem:[#allocation2 + $0xb70] sm:$0xff]
  %v3233 = vld [vmem:[#allocation2 + $0xb78] sm:$0xff]
  %v3234 = vld [vmem:[#allocation2 + $0xb80] sm:$0xff]
  %v3235 = vld [vmem:[#allocation2 + $0xb88] sm:$0xff]
  %v3236 = vld [vmem:[#allocation2 + $0xb90] sm:$0xff]
  %v3237 = vld [vmem:[#allocation2 + $0xb98] sm:$0xff]
  %v3238 = vld [vmem:[#allocation2 + $0xba0] sm:$0xff]
  %v3239 = vld [vmem:[#allocation2 + $0xba8] sm:$0xff]
  %v3240 = vld [vmem:[#allocation2 + $0xbb0] sm:$0xff]
  %v3241 = vld [vmem:[#allocation2 + $0xbb8] sm:$0xff]
  %v3242 = vld [vmem:[#allocation2 + $0xbc0] sm:$0xff]
  %v3243 = vld [vmem:[#allocation2 + $0xbc8] sm:$0xff]
  %v3244 = vld [vmem:[#allocation2 + $0xbd0] sm:$0xff]
  %v3245 = vld [vmem:[#allocation2 + $0xbd8] sm:$0xff]
  %v3246 = vld [vmem:[#allocation2 + $0xbe0] sm:$0xff]
  %v3247 = vld [vmem:[#allocation2 + $0xbe8] sm:$0xff]
  %v3248 = vld [vmem:[#allocation2 + $0xbf0] sm:$0xff]
  %v3249 = vld [vmem:[#allocation2 + $0xbf8] sm:$0xff]
  %v3250 = vld [vmem:[#allocation2 + $0xc00] sm:$0xff]
  %v3251 = vld [vmem:[#allocation2 + $0xc08] sm:$0xff]
  %v3252 = vld [vmem:[#allocation2 + $0xc10] sm:$0xff]
  %v3253 = vld [vmem:[#allocation2 + $0xc18] sm:$0xff]
  %v3254 = vld [vmem:[#allocation2 + $0xc20] sm:$0xff]
  %v3255 = vld [vmem:[#allocation2 + $0xc28] sm:$0xff]
  %v3256 = vld [vmem:[#allocation2 + $0xc30] sm:$0xff]
  %v3257 = vld [vmem:[#allocation2 + $0xc38] sm:$0xff]
  %v3258 = vld [vmem:[#allocation2 + $0xc40] sm:$0xff]
  %v3259 = vld [vmem:[#allocation2 + $0xc48] sm:$0xff]
  %v3260 = vld [vmem:[#allocation2 + $0xc50] sm:$0xff]
  %v3261 = vld [vmem:[#allocation2 + $0xc58] sm:$0xff]
  %v3262 = vld [vmem:[#allocation2 + $0xc60] sm:$0xff]
  %v3263 = vld [vmem:[#allocation2 + $0xc68] sm:$0xff]
  %v3264 = vld [vmem:[#allocation2 + $0xc70] sm:$0xff]
  %v3265 = vld [vmem:[#allocation2 + $0xc78] sm:$0xff]
  %v3266 = vld [vmem:[#allocation2 + $0xc80] sm:$0xff]
  %v3267 = vld [vmem:[#allocation2 + $0xc88] sm:$0xff]
  %v3268 = vld [vmem:[#allocation2 + $0xc90] sm:$0xff]
  %v3269 = vld [vmem:[#allocation2 + $0xc98] sm:$0xff]
  %v3270 = vld [vmem:[#allocation2 + $0xca0] sm:$0xff]
  %v3271 = vld [vmem:[%s2] sm:$0xff]
  %v3272 = vld [vmem:[%s2 + $0x8] sm:$0xff]
  %v3273 = vld [vmem:[%s2 + $0x10] sm:$0xff]
  %v3274 = vld [vmem:[%s2 + $0x18] sm:$0xff]
  %v3275 = vld [vmem:[%s2 + $0x20] sm:$0xff]
  %v3276 = vld [vmem:[%s2 + $0x28] sm:$0xff]
  %v3277 = vld [vmem:[%s2 + $0x30] sm:$0xff]
  %v3278 = vld [vmem:[%s2 + $0x38] sm:$0xff]
  %v3279 = vld [vmem:[%s2 + $0x40] sm:$0xff]
  %v3280 = vld [vmem:[%s2 + $0x48] sm:$0xff]
  %v3281 = vld [vmem:[%s2 + $0x50] sm:$0xff]
  %v3282 = vld [vmem:[%s2 + $0x58] sm:$0xff]
  %v3283 = vld [vmem:[%s2 + $0x60] sm:$0xff]
  %v3284 = vld [vmem:[%s2 + $0x68] sm:$0xff]
  %v3285 = vld [vmem:[%s2 + $0x70] sm:$0xff]
  %v3286 = vld [vmem:[%s2 + $0x78] sm:$0xff]
  %v3287 = vld [vmem:[%s2 + $0x80] sm:$0xff]
  %v3288 = vld [vmem:[%s2 + $0x88] sm:$0xff]
  %v3289 = vld [vmem:[%s2 + $0x90] sm:$0xff]
  %v3290 = vld [vmem:[%s2 + $0x98] sm:$0xff]
  %v3291 = vld [vmem:[%s2 + $0xa0] sm:$0xff]
  %v3292 = vld [vmem:[%s2 + $0xa8] sm:$0xff]
  %v3293 = vld [vmem:[%s2 + $0xb0] sm:$0xff]
  %v3294 = vld [vmem:[%s2 + $0xb8] sm:$0xff]
  %v3295 = vld [vmem:[%s2 + $0xc0] sm:$0xff]
  %v3296 = vld [vmem:[%s2 + $0xc8] sm:$0xff]
  %v3297 = vld [vmem:[%s2 + $0xd0] sm:$0xff]
  %v3298 = vld [vmem:[%s2 + $0xd8] sm:$0xff]
  %v3299 = vld [vmem:[%s2 + $0xe0] sm:$0xff]
  %v3300 = vld [vmem:[%s2 + $0xe8] sm:$0xff]
  %v3301 = vld [vmem:[%s2 + $0xf0] sm:$0xff]
  %v3302 = vld [vmem:[%s2 + $0xf8] sm:$0xff]
  %v3303 = vld [vmem:[%s2 + $0x100] sm:$0xff]
  %v3304 = vld [vmem:[%s2 + $0x108] sm:$0xff]
  %v3305 = vld [vmem:[%s2 + $0x110] sm:$0xff]
  %v3306 = vld [vmem:[%s2 + $0x118] sm:$0xff]
  %v3307 = vld [vmem:[%s2 + $0x120] sm:$0xff]
  %v3308 = vld [vmem:[%s2 + $0x128] sm:$0xff]
  %v3309 = vld [vmem:[%s2 + $0x130] sm:$0xff]
  %v3310 = vld [vmem:[%s2 + $0x138] sm:$0xff]
  %v3311 = vld [vmem:[%s2 + $0x140] sm:$0xff]
  %v3312 = vld [vmem:[%s2 + $0x148] sm:$0xff]
  %v3313 = vld [vmem:[%s2 + $0x150] sm:$0xff]
  %v3314 = vld [vmem:[%s2 + $0x158] sm:$0xff]
  %v3315 = vld [vmem:[%s2 + $0x160] sm:$0xff]
  %v3316 = vld [vmem:[%s2 + $0x168] sm:$0xff]
  %v3317 = vld [vmem:[%s2 + $0x170] sm:$0xff]
  %v3318 = vld [vmem:[%s2 + $0x178] sm:$0xff]
  %v3319 = vld [vmem:[%s2 + $0x180] sm:$0xff]
  %v3320 = vld [vmem:[%s2 + $0x188] sm:$0xff]
  %v3321 = vld [vmem:[%s2 + $0x190] sm:$0xff]
  %v3322 = vld [vmem:[%s2 + $0x198] sm:$0xff]
  %v3323 = vld [vmem:[%s2 + $0x1a0] sm:$0xff]
  %v3324 = vld [vmem:[%s2 + $0x1a8] sm:$0xff]
  %v3325 = vld [vmem:[%s2 + $0x1b0] sm:$0xff]
  %v3326 = vld [vmem:[%s2 + $0x1b8] sm:$0xff]
  %v3327 = vld [vmem:[%s2 + $0x1c0] sm:$0xff]
  %v3328 = vld [vmem:[%s2 + $0x1c8] sm:$0xff]
  %v3329 = vld [vmem:[%s2 + $0x1d0] sm:$0xff]
  %v3330 = vld [vmem:[%s2 + $0x1d8] sm:$0xff]
  %v3331 = vld [vmem:[%s2 + $0x1e0] sm:$0xff]
  %v3332 = vld [vmem:[%s2 + $0x1e8] sm:$0xff]
  %v3333 = vld [vmem:[%s2 + $0x1f0] sm:$0xff]
  %v3334 = vld [vmem:[%s2 + $0x1f8] sm:$0xff]
  %v3335 = vld [vmem:[%s2 + $0x200] sm:$0xff]
  %v3336 = vld [vmem:[%s2 + $0x208] sm:$0xff]
  %v3337 = vld [vmem:[%s2 + $0x210] sm:$0xff]
  %v3338 = vld [vmem:[%s2 + $0x218] sm:$0xff]
  %v3339 = vld [vmem:[%s2 + $0x220] sm:$0xff]
  %v3340 = vld [vmem:[%s2 + $0x228] sm:$0xff]
  %v3341 = vld [vmem:[%s2 + $0x230] sm:$0xff]
  %v3342 = vld [vmem:[%s2 + $0x238] sm:$0xff]
  %v3344 = vsel %vm110, %v2870, 0
  %v3347 = vsel %vm110, %v2875, 0
  %v3350 = vsel %vm110, %v2880, 0
  %v3353 = vsel %vm110, %v2885, 0
  %v3356 = vsel %vm110, %v2890, 0
  %v3359 = vsel %vm110, %v2895, 0
  %v3362 = vsel %vm110, %v2900, 0
  %v3365 = vsel %vm110, %v2905, 0
  %v3368 = vsel %vm110, %v2910, 0
  %v3371 = vsel %vm110, %v2915, 0
  %v3374 = vsel %vm110, %v2920, 0
  %v3377 = vsel %vm110, %v2925, 0
  %v3380 = vsel %vm110, %v2930, 0
  %v3383 = vsel %vm110, %v2935, 0
  %v3386 = vsel %vm110, %v2940, 0
  %v3389 = vsel %vm110, %v2945, 0
  %v3392 = vsel %vm110, %v2950, 0
  %v3395 = vsel %vm110, %v2955, 0
  %v3398 = vsel %vm110, %v2960, 0
  %v3401 = vsel %vm110, %v2965, 0
  %v3404 = vsel %vm110, %v2970, 0
  %v3407 = vsel %vm110, %v2975, 0
  %v3410 = vsel %vm110, %v2980, 0
  %v3413 = vsel %vm110, %v2985, 0
  %v3416 = vsel %vm110, %v2990, 0
  %v3419 = vsel %vm110, %v2995, 0
  %v3422 = vsel %vm110, %v3000, 0
  %v3425 = vsel %vm110, %v3005, 0
  %v3428 = vsel %vm110, %v3010, 0
  %v3431 = vsel %vm110, %v3015, 0
  %v3434 = vsel %vm110, %v3020, 0
  %v3437 = vsel %vm110, %v3025, 0
  %v3440 = vsel %vm110, %v3030, 0
  %v3443 = vsel %vm110, %v3035, 0
  %v3446 = vsel %vm110, %v3040, 0
  %v3449 = vsel %vm110, %v3045, 0
  %v3452 = vsel %vm110, %v3050, 0
  %v3455 = vsel %vm110, %v3055, 0
  %v3458 = vsel %vm110, %v3060, 0
  %v3461 = vsel %vm110, %v3065, 0
  %v3464 = vsel %vm110, %v3070, 0
  %v3467 = vsel %vm110, %v3075, 0
  %v3470 = vsel %vm110, %v3080, 0
  %v3473 = vsel %vm110, %v3085, 0
  %v3476 = vsel %vm110, %v3090, 0
  %v3479 = vsel %vm110, %v3095, 0
  %v3482 = vsel %vm110, %v3100, 0
  %v3485 = vsel %vm110, %v3105, 0
  %v3488 = vsel %vm110, %v3110, 0
  %v3491 = vsel %vm110, %v3115, 0
  %v3494 = vsel %vm110, %v3120, 0
  %v3497 = vsel %vm110, %v3125, 0
  %v3500 = vsel %vm110, %v3130, 0
  %v3503 = vsel %vm110, %v3135, 0
  %v3506 = vsel %vm110, %v3140, 0
  %v3509 = vsel %vm110, %v3145, 0
  %v3512 = vsel %vm110, %v3150, 0
  %v3515 = vsel %vm110, %v3155, 0
  %v3518 = vsel %vm110, %v3160, 0
  %v3521 = vsel %vm110, %v3165, 0
  %v3524 = vsel %vm110, %v3170, 0
  %v3527 = vsel %vm110, %v3175, 0
  %v3530 = vsel %vm110, %v3180, 0
  %v3533 = vsel %vm110, %v3185, 0
  %v3536 = vsel %vm110, %v3190, 0
  %v3539 = vsel %vm110, %v3195, 0
  %v3542 = vsel %vm110, %v3200, 0
  %v3545 = vsel %vm110, %v3205, 0
  %v3548 = vsel %vm110, %v3210, 0
  %v3551 = vsel %vm110, %v3215, 0
  %v3554 = vsel %vm110, %v3220, 0
  %v3557 = vsel %vm110, %v3225, 0
  %v3560 = vsel %vm110, %v3230, 0
  %v3563 = vsel %vm110, %v3235, 0
  %v3566 = vsel %vm110, %v3240, 0
  %v3569 = vsel %vm110, %v3245, 0
  %v3572 = vsel %vm110, %v3250, 0
  %v3575 = vsel %vm110, %v3255, 0
  %v3578 = vsel %vm110, %v3260, 0
  %v3581 = vsel %vm110, %v3265, 0
  %v3584 = vsel %vm110, %v3270, 0
  %3586 = vmatpush.msra.mxu0 %v3286
  %3587 = vmatpush.msra.mxu0 %v3285
  %3588 = vmatpush.msra.mxu0 %v3284
  %3589 = vmatpush.msra.mxu0 %v3283
  %3590 = vmatpush.msra.mxu0 %v3282
  %3591 = vmatpush.msra.mxu0 %v3281
  %3592 = vmatpush.msra.mxu0 %v3280
  %3593 = vmatpush.msra.mxu0 %v3279
  %3594 = vmatpush.msra.mxu0 %v3278
  %3595 = vmatpush.msra.mxu0 %v3277
  %3596 = vmatpush.msra.mxu0 %v3276
  %3597 = vmatpush.msra.mxu0 %v3275
  %3598 = vmatpush.msra.mxu0 %v3274
  %3599 = vmatpush.msra.mxu0 %v3273
  %3600 = vmatpush.msra.mxu0 %v3272
  %3601 = vmatpush.msra.mxu0 %v3271
  %3602 = vmatmul.f32.gmra.mxu0 %v2866
  %v3603 = vpop.f32.mrf.mxu0
  %v3604 = vadd.f32 0.0, %v3603
  %3605 = vmatmul.f32.gmra.mxu0 %v2871
  %v3606 = vpop.f32.mrf.mxu0
  %v3607 = vadd.f32 0.0, %v3606
  %3608 = vmatmul.f32.gmra.mxu0 %v2876
  %v3609 = vpop.f32.mrf.mxu0
  %v3610 = vadd.f32 0.0, %v3609
  %3611 = vmatmul.f32.gmra.mxu0 %v2881
  %v3612 = vpop.f32.mrf.mxu0
  %v3613 = vadd.f32 0.0, %v3612
  %3614 = vmatmul.f32.gmra.mxu0 %v2886
  %v3615 = vpop.f32.mrf.mxu0
  %v3616 = vadd.f32 0.0, %v3615
  %3617 = vmatmul.f32.gmra.mxu0 %v2891
  %v3618 = vpop.f32.mrf.mxu0
  %v3619 = vadd.f32 0.0, %v3618
  %3620 = vmatmul.f32.gmra.mxu0 %v2896
  %v3621 = vpop.f32.mrf.mxu0
  %v3622 = vadd.f32 0.0, %v3621
  %3623 = vmatmul.f32.gmra.mxu0 %v2901
  %v3624 = vpop.f32.mrf.mxu0
  %v3625 = vadd.f32 0.0, %v3624
  %3626 = vmatmul.f32.gmra.mxu0 %v2906
  %v3627 = vpop.f32.mrf.mxu0
  %v3628 = vadd.f32 0.0, %v3627
  %3629 = vmatmul.f32.gmra.mxu0 %v2911
  %v3630 = vpop.f32.mrf.mxu0
  %v3631 = vadd.f32 0.0, %v3630
  %3632 = vmatmul.f32.gmra.mxu0 %v2916
  %v3633 = vpop.f32.mrf.mxu0
  %v3634 = vadd.f32 0.0, %v3633
  %3635 = vmatmul.f32.gmra.mxu0 %v2921
  %v3636 = vpop.f32.mrf.mxu0
  %v3637 = vadd.f32 0.0, %v3636
  %3638 = vmatmul.f32.gmra.mxu0 %v2926
  %v3639 = vpop.f32.mrf.mxu0
  %v3640 = vadd.f32 0.0, %v3639
  %3641 = vmatmul.f32.gmra.mxu0 %v2931
  %v3642 = vpop.f32.mrf.mxu0
  %v3643 = vadd.f32 0.0, %v3642
  %3644 = vmatmul.f32.gmra.mxu0 %v2936
  %v3645 = vpop.f32.mrf.mxu0
  %v3646 = vadd.f32 0.0, %v3645
  %3647 = vmatmul.f32.gmra.mxu0 %v2941
  %v3648 = vpop.f32.mrf.mxu0
  %v3649 = vadd.f32 0.0, %v3648
  %3650 = vmatmul.f32.gmra.mxu0 %v2946
  %v3651 = vpop.f32.mrf.mxu0
  %v3652 = vadd.f32 0.0, %v3651
  %3653 = vmatmul.f32.gmra.mxu0 %v2951
  %v3654 = vpop.f32.mrf.mxu0
  %v3655 = vadd.f32 0.0, %v3654
  %3656 = vmatmul.f32.gmra.mxu0 %v2956
  %v3657 = vpop.f32.mrf.mxu0
  %v3658 = vadd.f32 0.0, %v3657
  %3659 = vmatmul.f32.gmra.mxu0 %v2961
  %v3660 = vpop.f32.mrf.mxu0
  %v3661 = vadd.f32 0.0, %v3660
  %3662 = vmatmul.f32.gmra.mxu0 %v2966
  %v3663 = vpop.f32.mrf.mxu0
  %v3664 = vadd.f32 0.0, %v3663
  %3665 = vmatmul.f32.gmra.mxu0 %v2971
  %v3666 = vpop.f32.mrf.mxu0
  %v3667 = vadd.f32 0.0, %v3666
  %3668 = vmatmul.f32.gmra.mxu0 %v2976
  %v3669 = vpop.f32.mrf.mxu0
  %v3670 = vadd.f32 0.0, %v3669
  %3671 = vmatmul.f32.gmra.mxu0 %v2981
  %v3672 = vpop.f32.mrf.mxu0
  %v3673 = vadd.f32 0.0, %v3672
  %3674 = vmatmul.f32.gmra.mxu0 %v2986
  %v3675 = vpop.f32.mrf.mxu0
  %v3676 = vadd.f32 0.0, %v3675
  %3677 = vmatmul.f32.gmra.mxu0 %v2991
  %v3678 = vpop.f32.mrf.mxu0
  %v3679 = vadd.f32 0.0, %v3678
  %3680 = vmatmul.f32.gmra.mxu0 %v2996
  %v3681 = vpop.f32.mrf.mxu0
  %v3682 = vadd.f32 0.0, %v3681
  %3683 = vmatmul.f32.gmra.mxu0 %v3001
  %v3684 = vpop.f32.mrf.mxu0
  %v3685 = vadd.f32 0.0, %v3684
  %3686 = vmatmul.f32.gmra.mxu0 %v3006
  %v3687 = vpop.f32.mrf.mxu0
  %v3688 = vadd.f32 0.0, %v3687
  %3689 = vmatmul.f32.gmra.mxu0 %v3011
  %v3690 = vpop.f32.mrf.mxu0
  %v3691 = vadd.f32 0.0, %v3690
  %3692 = vmatmul.f32.gmra.mxu0 %v3016
  %v3693 = vpop.f32.mrf.mxu0
  %v3694 = vadd.f32 0.0, %v3693
  %3695 = vmatmul.f32.gmra.mxu0 %v3021
  %v3696 = vpop.f32.mrf.mxu0
  %v3697 = vadd.f32 0.0, %v3696
  %3698 = vmatmul.f32.gmra.mxu0 %v3026
  %v3699 = vpop.f32.mrf.mxu0
  %v3700 = vadd.f32 0.0, %v3699
  %3701 = vmatmul.f32.gmra.mxu0 %v3031
  %v3702 = vpop.f32.mrf.mxu0
  %v3703 = vadd.f32 0.0, %v3702
  %3704 = vmatmul.f32.gmra.mxu0 %v3036
  %v3705 = vpop.f32.mrf.mxu0
  %v3706 = vadd.f32 0.0, %v3705
  %3707 = vmatmul.f32.gmra.mxu0 %v3041
  %v3708 = vpop.f32.mrf.mxu0
  %v3709 = vadd.f32 0.0, %v3708
  %3710 = vmatmul.f32.gmra.mxu0 %v3046
  %v3711 = vpop.f32.mrf.mxu0
  %v3712 = vadd.f32 0.0, %v3711
  %3713 = vmatmul.f32.gmra.mxu0 %v3051
  %v3714 = vpop.f32.mrf.mxu0
  %v3715 = vadd.f32 0.0, %v3714
  %3716 = vmatmul.f32.gmra.mxu0 %v3056
  %v3717 = vpop.f32.mrf.mxu0
  %v3718 = vadd.f32 0.0, %v3717
  %3719 = vmatmul.f32.gmra.mxu0 %v3061
  %v3720 = vpop.f32.mrf.mxu0
  %v3721 = vadd.f32 0.0, %v3720
  %3722 = vmatmul.f32.gmra.mxu0 %v3066
  %v3723 = vpop.f32.mrf.mxu0
  %v3724 = vadd.f32 0.0, %v3723
  %3725 = vmatmul.f32.gmra.mxu0 %v3071
  %v3726 = vpop.f32.mrf.mxu0
  %v3727 = vadd.f32 0.0, %v3726
  %3728 = vmatmul.f32.gmra.mxu0 %v3076
  %v3729 = vpop.f32.mrf.mxu0
  %v3730 = vadd.f32 0.0, %v3729
  %3731 = vmatmul.f32.gmra.mxu0 %v3081
  %v3732 = vpop.f32.mrf.mxu0
  %v3733 = vadd.f32 0.0, %v3732
  %3734 = vmatmul.f32.gmra.mxu0 %v3086
  %v3735 = vpop.f32.mrf.mxu0
  %v3736 = vadd.f32 0.0, %v3735
  %3737 = vmatmul.f32.gmra.mxu0 %v3091
  %v3738 = vpop.f32.mrf.mxu0
  %v3739 = vadd.f32 0.0, %v3738
  %3740 = vmatmul.f32.gmra.mxu0 %v3096
  %v3741 = vpop.f32.mrf.mxu0
  %v3742 = vadd.f32 0.0, %v3741
  %3743 = vmatmul.f32.gmra.mxu0 %v3101
  %v3744 = vpop.f32.mrf.mxu0
  %v3745 = vadd.f32 0.0, %v3744
  %3746 = vmatmul.f32.gmra.mxu0 %v3106
  %v3747 = vpop.f32.mrf.mxu0
  %v3748 = vadd.f32 0.0, %v3747
  %3749 = vmatmul.f32.gmra.mxu0 %v3111
  %v3750 = vpop.f32.mrf.mxu0
  %v3751 = vadd.f32 0.0, %v3750
  %3752 = vmatmul.f32.gmra.mxu0 %v3116
  %v3753 = vpop.f32.mrf.mxu0
  %v3754 = vadd.f32 0.0, %v3753
  %3755 = vmatmul.f32.gmra.mxu0 %v3121
  %v3756 = vpop.f32.mrf.mxu0
  %v3757 = vadd.f32 0.0, %v3756
  %3758 = vmatmul.f32.gmra.mxu0 %v3126
  %v3759 = vpop.f32.mrf.mxu0
  %v3760 = vadd.f32 0.0, %v3759
  %3761 = vmatmul.f32.gmra.mxu0 %v3131
  %v3762 = vpop.f32.mrf.mxu0
  %v3763 = vadd.f32 0.0, %v3762
  %3764 = vmatmul.f32.gmra.mxu0 %v3136
  %v3765 = vpop.f32.mrf.mxu0
  %v3766 = vadd.f32 0.0, %v3765
  %3767 = vmatmul.f32.gmra.mxu0 %v3141
  %v3768 = vpop.f32.mrf.mxu0
  %v3769 = vadd.f32 0.0, %v3768
  %3770 = vmatmul.f32.gmra.mxu0 %v3146
  %v3771 = vpop.f32.mrf.mxu0
  %v3772 = vadd.f32 0.0, %v3771
  %3773 = vmatmul.f32.gmra.mxu0 %v3151
  %v3774 = vpop.f32.mrf.mxu0
  %v3775 = vadd.f32 0.0, %v3774
  %3776 = vmatmul.f32.gmra.mxu0 %v3156
  %v3777 = vpop.f32.mrf.mxu0
  %v3778 = vadd.f32 0.0, %v3777
  %3779 = vmatmul.f32.gmra.mxu0 %v3161
  %v3780 = vpop.f32.mrf.mxu0
  %v3781 = vadd.f32 0.0, %v3780
  %3782 = vmatmul.f32.gmra.mxu0 %v3166
  %v3783 = vpop.f32.mrf.mxu0
  %v3784 = vadd.f32 0.0, %v3783
  %3785 = vmatmul.f32.gmra.mxu0 %v3171
  %v3786 = vpop.f32.mrf.mxu0
  %v3787 = vadd.f32 0.0, %v3786
  %3788 = vmatmul.f32.gmra.mxu0 %v3176
  %v3789 = vpop.f32.mrf.mxu0
  %v3790 = vadd.f32 0.0, %v3789
  %3791 = vmatmul.f32.gmra.mxu0 %v3181
  %v3792 = vpop.f32.mrf.mxu0
  %v3793 = vadd.f32 0.0, %v3792
  %3794 = vmatmul.f32.gmra.mxu0 %v3186
  %v3795 = vpop.f32.mrf.mxu0
  %v3796 = vadd.f32 0.0, %v3795
  %3797 = vmatmul.f32.gmra.mxu0 %v3191
  %v3798 = vpop.f32.mrf.mxu0
  %v3799 = vadd.f32 0.0, %v3798
  %3800 = vmatmul.f32.gmra.mxu0 %v3196
  %v3801 = vpop.f32.mrf.mxu0
  %v3802 = vadd.f32 0.0, %v3801
  %3803 = vmatmul.f32.gmra.mxu0 %v3201
  %v3804 = vpop.f32.mrf.mxu0
  %v3805 = vadd.f32 0.0, %v3804
  %3806 = vmatmul.f32.gmra.mxu0 %v3206
  %v3807 = vpop.f32.mrf.mxu0
  %v3808 = vadd.f32 0.0, %v3807
  %3809 = vmatmul.f32.gmra.mxu0 %v3211
  %v3810 = vpop.f32.mrf.mxu0
  %v3811 = vadd.f32 0.0, %v3810
  %3812 = vmatmul.f32.gmra.mxu0 %v3216
  %v3813 = vpop.f32.mrf.mxu0
  %v3814 = vadd.f32 0.0, %v3813
  %3815 = vmatmul.f32.gmra.mxu0 %v3221
  %v3816 = vpop.f32.mrf.mxu0
  %v3817 = vadd.f32 0.0, %v3816
  %3818 = vmatmul.f32.gmra.mxu0 %v3226
  %v3819 = vpop.f32.mrf.mxu0
  %v3820 = vadd.f32 0.0, %v3819
  %3821 = vmatmul.f32.gmra.mxu0 %v3231
  %v3822 = vpop.f32.mrf.mxu0
  %v3823 = vadd.f32 0.0, %v3822
  %3824 = vmatmul.f32.gmra.mxu0 %v3236
  %v3825 = vpop.f32.mrf.mxu0
  %v3826 = vadd.f32 0.0, %v3825
  %3827 = vmatmul.f32.gmra.mxu0 %v3241
  %v3828 = vpop.f32.mrf.mxu0
  %v3829 = vadd.f32 0.0, %v3828
  %3830 = vmatmul.f32.gmra.mxu0 %v3246
  %v3831 = vpop.f32.mrf.mxu0
  %v3832 = vadd.f32 0.0, %v3831
  %3833 = vmatmul.f32.gmra.mxu0 %v3251
  %v3834 = vpop.f32.mrf.mxu0
  %v3835 = vadd.f32 0.0, %v3834
  %3836 = vmatmul.f32.gmra.mxu0 %v3256
  %v3837 = vpop.f32.mrf.mxu0
  %v3838 = vadd.f32 0.0, %v3837
  %3839 = vmatmul.f32.gmra.mxu0 %v3261
  %v3840 = vpop.f32.mrf.mxu0
  %v3841 = vadd.f32 0.0, %v3840
  %3842 = vmatmul.f32.gmra.mxu0 %v3266
  %v3843 = vpop.f32.mrf.mxu0
  %v3844 = vadd.f32 0.0, %v3843
  %3845 = vdwg.mxu0
  %3846 = vmatpush.msra.mxu0 %v3302
  %3847 = vmatpush.msra.mxu0 %v3301
  %3848 = vmatpush.msra.mxu0 %v3300
  %3849 = vmatpush.msra.mxu0 %v3299
  %3850 = vmatpush.msra.mxu0 %v3298
  %3851 = vmatpush.msra.mxu0 %v3297
  %3852 = vmatpush.msra.mxu0 %v3296
  %3853 = vmatpush.msra.mxu0 %v3295
  %3854 = vmatpush.msra.mxu0 %v3294
  %3855 = vmatpush.msra.mxu0 %v3293
  %3856 = vmatpush.msra.mxu0 %v3292
  %3857 = vmatpush.msra.mxu0 %v3291
  %3858 = vmatpush.msra.mxu0 %v3290
  %3859 = vmatpush.msra.mxu0 %v3289
  %3860 = vmatpush.msra.mxu0 %v3288
  %3861 = vmatpush.msra.mxu0 %v3287
  %3862 = vmatmul.f32.gmra.mxu0 %v2867
  %v3863 = vpop.f32.mrf.mxu0
  %v3864 = vadd.f32 %v3604, %v3863
  %3865 = vmatmul.f32.gmra.mxu0 %v2872
  %v3866 = vpop.f32.mrf.mxu0
  %v3867 = vadd.f32 %v3607, %v3866
  %3868 = vmatmul.f32.gmra.mxu0 %v2877
  %v3869 = vpop.f32.mrf.mxu0
  %v3870 = vadd.f32 %v3610, %v3869
  %3871 = vmatmul.f32.gmra.mxu0 %v2882
  %v3872 = vpop.f32.mrf.mxu0
  %v3873 = vadd.f32 %v3613, %v3872
  %3874 = vmatmul.f32.gmra.mxu0 %v2887
  %v3875 = vpop.f32.mrf.mxu0
  %v3876 = vadd.f32 %v3616, %v3875
  %3877 = vmatmul.f32.gmra.mxu0 %v2892
  %v3878 = vpop.f32.mrf.mxu0
  %v3879 = vadd.f32 %v3619, %v3878
  %3880 = vmatmul.f32.gmra.mxu0 %v2897
  %v3881 = vpop.f32.mrf.mxu0
  %v3882 = vadd.f32 %v3622, %v3881
  %3883 = vmatmul.f32.gmra.mxu0 %v2902
  %v3884 = vpop.f32.mrf.mxu0
  %v3885 = vadd.f32 %v3625, %v3884
  %3886 = vmatmul.f32.gmra.mxu0 %v2907
  %v3887 = vpop.f32.mrf.mxu0
  %v3888 = vadd.f32 %v3628, %v3887
  %3889 = vmatmul.f32.gmra.mxu0 %v2912
  %v3890 = vpop.f32.mrf.mxu0
  %v3891 = vadd.f32 %v3631, %v3890
  %3892 = vmatmul.f32.gmra.mxu0 %v2917
  %v3893 = vpop.f32.mrf.mxu0
  %v3894 = vadd.f32 %v3634, %v3893
  %3895 = vmatmul.f32.gmra.mxu0 %v2922
  %v3896 = vpop.f32.mrf.mxu0
  %v3897 = vadd.f32 %v3637, %v3896
  %3898 = vmatmul.f32.gmra.mxu0 %v2927
  %v3899 = vpop.f32.mrf.mxu0
  %v3900 = vadd.f32 %v3640, %v3899
  %3901 = vmatmul.f32.gmra.mxu0 %v2932
  %v3902 = vpop.f32.mrf.mxu0
  %v3903 = vadd.f32 %v3643, %v3902
  %3904 = vmatmul.f32.gmra.mxu0 %v2937
  %v3905 = vpop.f32.mrf.mxu0
  %v3906 = vadd.f32 %v3646, %v3905
  %3907 = vmatmul.f32.gmra.mxu0 %v2942
  %v3908 = vpop.f32.mrf.mxu0
  %v3909 = vadd.f32 %v3649, %v3908
  %3910 = vmatmul.f32.gmra.mxu0 %v2947
  %v3911 = vpop.f32.mrf.mxu0
  %v3912 = vadd.f32 %v3652, %v3911
  %3913 = vmatmul.f32.gmra.mxu0 %v2952
  %v3914 = vpop.f32.mrf.mxu0
  %v3915 = vadd.f32 %v3655, %v3914
  %3916 = vmatmul.f32.gmra.mxu0 %v2957
  %v3917 = vpop.f32.mrf.mxu0
  %v3918 = vadd.f32 %v3658, %v3917
  %3919 = vmatmul.f32.gmra.mxu0 %v2962
  %v3920 = vpop.f32.mrf.mxu0
  %v3921 = vadd.f32 %v3661, %v3920
  %3922 = vmatmul.f32.gmra.mxu0 %v2967
  %v3923 = vpop.f32.mrf.mxu0
  %v3924 = vadd.f32 %v3664, %v3923
  %3925 = vmatmul.f32.gmra.mxu0 %v2972
  %v3926 = vpop.f32.mrf.mxu0
  %v3927 = vadd.f32 %v3667, %v3926
  %3928 = vmatmul.f32.gmra.mxu0 %v2977
  %v3929 = vpop.f32.mrf.mxu0
  %v3930 = vadd.f32 %v3670, %v3929
  %3931 = vmatmul.f32.gmra.mxu0 %v2982
  %v3932 = vpop.f32.mrf.mxu0
  %v3933 = vadd.f32 %v3673, %v3932
  %3934 = vmatmul.f32.gmra.mxu0 %v2987
  %v3935 = vpop.f32.mrf.mxu0
  %v3936 = vadd.f32 %v3676, %v3935
  %3937 = vmatmul.f32.gmra.mxu0 %v2992
  %v3938 = vpop.f32.mrf.mxu0
  %v3939 = vadd.f32 %v3679, %v3938
  %3940 = vmatmul.f32.gmra.mxu0 %v2997
  %v3941 = vpop.f32.mrf.mxu0
  %v3942 = vadd.f32 %v3682, %v3941
  %3943 = vmatmul.f32.gmra.mxu0 %v3002
  %v3944 = vpop.f32.mrf.mxu0
  %v3945 = vadd.f32 %v3685, %v3944
  %3946 = vmatmul.f32.gmra.mxu0 %v3007
  %v3947 = vpop.f32.mrf.mxu0
  %v3948 = vadd.f32 %v3688, %v3947
  %3949 = vmatmul.f32.gmra.mxu0 %v3012
  %v3950 = vpop.f32.mrf.mxu0
  %v3951 = vadd.f32 %v3691, %v3950
  %3952 = vmatmul.f32.gmra.mxu0 %v3017
  %v3953 = vpop.f32.mrf.mxu0
  %v3954 = vadd.f32 %v3694, %v3953
  %3955 = vmatmul.f32.gmra.mxu0 %v3022
  %v3956 = vpop.f32.mrf.mxu0
  %v3957 = vadd.f32 %v3697, %v3956
  %3958 = vmatmul.f32.gmra.mxu0 %v3027
  %v3959 = vpop.f32.mrf.mxu0
  %v3960 = vadd.f32 %v3700, %v3959
  %3961 = vmatmul.f32.gmra.mxu0 %v3032
  %v3962 = vpop.f32.mrf.mxu0
  %v3963 = vadd.f32 %v3703, %v3962
  %3964 = vmatmul.f32.gmra.mxu0 %v3037
  %v3965 = vpop.f32.mrf.mxu0
  %v3966 = vadd.f32 %v3706, %v3965
  %3967 = vmatmul.f32.gmra.mxu0 %v3042
  %v3968 = vpop.f32.mrf.mxu0
  %v3969 = vadd.f32 %v3709, %v3968
  %3970 = vmatmul.f32.gmra.mxu0 %v3047
  %v3971 = vpop.f32.mrf.mxu0
  %v3972 = vadd.f32 %v3712, %v3971
  %3973 = vmatmul.f32.gmra.mxu0 %v3052
  %v3974 = vpop.f32.mrf.mxu0
  %v3975 = vadd.f32 %v3715, %v3974
  %3976 = vmatmul.f32.gmra.mxu0 %v3057
  %v3977 = vpop.f32.mrf.mxu0
  %v3978 = vadd.f32 %v3718, %v3977
  %3979 = vmatmul.f32.gmra.mxu0 %v3062
  %v3980 = vpop.f32.mrf.mxu0
  %v3981 = vadd.f32 %v3721, %v3980
  %3982 = vmatmul.f32.gmra.mxu0 %v3067
  %v3983 = vpop.f32.mrf.mxu0
  %v3984 = vadd.f32 %v3724, %v3983
  %3985 = vmatmul.f32.gmra.mxu0 %v3072
  %v3986 = vpop.f32.mrf.mxu0
  %v3987 = vadd.f32 %v3727, %v3986
  %3988 = vmatmul.f32.gmra.mxu0 %v3077
  %v3989 = vpop.f32.mrf.mxu0
  %v3990 = vadd.f32 %v3730, %v3989
  %3991 = vmatmul.f32.gmra.mxu0 %v3082
  %v3992 = vpop.f32.mrf.mxu0
  %v3993 = vadd.f32 %v3733, %v3992
  %3994 = vmatmul.f32.gmra.mxu0 %v3087
  %v3995 = vpop.f32.mrf.mxu0
  %v3996 = vadd.f32 %v3736, %v3995
  %3997 = vmatmul.f32.gmra.mxu0 %v3092
  %v3998 = vpop.f32.mrf.mxu0
  %v3999 = vadd.f32 %v3739, %v3998
  %4000 = vmatmul.f32.gmra.mxu0 %v3097
  %v4001 = vpop.f32.mrf.mxu0
  %v4002 = vadd.f32 %v3742, %v4001
  %4003 = vmatmul.f32.gmra.mxu0 %v3102
  %v4004 = vpop.f32.mrf.mxu0
  %v4005 = vadd.f32 %v3745, %v4004
  %4006 = vmatmul.f32.gmra.mxu0 %v3107
  %v4007 = vpop.f32.mrf.mxu0
  %v4008 = vadd.f32 %v3748, %v4007
  %4009 = vmatmul.f32.gmra.mxu0 %v3112
  %v4010 = vpop.f32.mrf.mxu0
  %v4011 = vadd.f32 %v3751, %v4010
  %4012 = vmatmul.f32.gmra.mxu0 %v3117
  %v4013 = vpop.f32.mrf.mxu0
  %v4014 = vadd.f32 %v3754, %v4013
  %4015 = vmatmul.f32.gmra.mxu0 %v3122
  %v4016 = vpop.f32.mrf.mxu0
  %v4017 = vadd.f32 %v3757, %v4016
  %4018 = vmatmul.f32.gmra.mxu0 %v3127
  %v4019 = vpop.f32.mrf.mxu0
  %v4020 = vadd.f32 %v3760, %v4019
  %4021 = vmatmul.f32.gmra.mxu0 %v3132
  %v4022 = vpop.f32.mrf.mxu0
  %v4023 = vadd.f32 %v3763, %v4022
  %4024 = vmatmul.f32.gmra.mxu0 %v3137
  %v4025 = vpop.f32.mrf.mxu0
  %v4026 = vadd.f32 %v3766, %v4025
  %4027 = vmatmul.f32.gmra.mxu0 %v3142
  %v4028 = vpop.f32.mrf.mxu0
  %v4029 = vadd.f32 %v3769, %v4028
  %4030 = vmatmul.f32.gmra.mxu0 %v3147
  %v4031 = vpop.f32.mrf.mxu0
  %v4032 = vadd.f32 %v3772, %v4031
  %4033 = vmatmul.f32.gmra.mxu0 %v3152
  %v4034 = vpop.f32.mrf.mxu0
  %v4035 = vadd.f32 %v3775, %v4034
  %4036 = vmatmul.f32.gmra.mxu0 %v3157
  %v4037 = vpop.f32.mrf.mxu0
  %v4038 = vadd.f32 %v3778, %v4037
  %4039 = vmatmul.f32.gmra.mxu0 %v3162
  %v4040 = vpop.f32.mrf.mxu0
  %v4041 = vadd.f32 %v3781, %v4040
  %4042 = vmatmul.f32.gmra.mxu0 %v3167
  %v4043 = vpop.f32.mrf.mxu0
  %v4044 = vadd.f32 %v3784, %v4043
  %4045 = vmatmul.f32.gmra.mxu0 %v3172
  %v4046 = vpop.f32.mrf.mxu0
  %v4047 = vadd.f32 %v3787, %v4046
  %4048 = vmatmul.f32.gmra.mxu0 %v3177
  %v4049 = vpop.f32.mrf.mxu0
  %v4050 = vadd.f32 %v3790, %v4049
  %4051 = vmatmul.f32.gmra.mxu0 %v3182
  %v4052 = vpop.f32.mrf.mxu0
  %v4053 = vadd.f32 %v3793, %v4052
  %4054 = vmatmul.f32.gmra.mxu0 %v3187
  %v4055 = vpop.f32.mrf.mxu0
  %v4056 = vadd.f32 %v3796, %v4055
  %4057 = vmatmul.f32.gmra.mxu0 %v3192
  %v4058 = vpop.f32.mrf.mxu0
  %v4059 = vadd.f32 %v3799, %v4058
  %4060 = vmatmul.f32.gmra.mxu0 %v3197
  %v4061 = vpop.f32.mrf.mxu0
  %v4062 = vadd.f32 %v3802, %v4061
  %4063 = vmatmul.f32.gmra.mxu0 %v3202
  %v4064 = vpop.f32.mrf.mxu0
  %v4065 = vadd.f32 %v3805, %v4064
  %4066 = vmatmul.f32.gmra.mxu0 %v3207
  %v4067 = vpop.f32.mrf.mxu0
  %v4068 = vadd.f32 %v3808, %v4067
  %4069 = vmatmul.f32.gmra.mxu0 %v3212
  %v4070 = vpop.f32.mrf.mxu0
  %v4071 = vadd.f32 %v3811, %v4070
  %4072 = vmatmul.f32.gmra.mxu0 %v3217
  %v4073 = vpop.f32.mrf.mxu0
  %v4074 = vadd.f32 %v3814, %v4073
  %4075 = vmatmul.f32.gmra.mxu0 %v3222
  %v4076 = vpop.f32.mrf.mxu0
  %v4077 = vadd.f32 %v3817, %v4076
  %4078 = vmatmul.f32.gmra.mxu0 %v3227
  %v4079 = vpop.f32.mrf.mxu0
  %v4080 = vadd.f32 %v3820, %v4079
  %4081 = vmatmul.f32.gmra.mxu0 %v3232
  %v4082 = vpop.f32.mrf.mxu0
  %v4083 = vadd.f32 %v3823, %v4082
  %4084 = vmatmul.f32.gmra.mxu0 %v3237
  %v4085 = vpop.f32.mrf.mxu0
  %v4086 = vadd.f32 %v3826, %v4085
  %4087 = vmatmul.f32.gmra.mxu0 %v3242
  %v4088 = vpop.f32.mrf.mxu0
  %v4089 = vadd.f32 %v3829, %v4088
  %4090 = vmatmul.f32.gmra.mxu0 %v3247
  %v4091 = vpop.f32.mrf.mxu0
  %v4092 = vadd.f32 %v3832, %v4091
  %4093 = vmatmul.f32.gmra.mxu0 %v3252
  %v4094 = vpop.f32.mrf.mxu0
  %v4095 = vadd.f32 %v3835, %v4094
  %4096 = vmatmul.f32.gmra.mxu0 %v3257
  %v4097 = vpop.f32.mrf.mxu0
  %v4098 = vadd.f32 %v3838, %v4097
  %4099 = vmatmul.f32.gmra.mxu0 %v3262
  %v4100 = vpop.f32.mrf.mxu0
  %v4101 = vadd.f32 %v3841, %v4100
  %4102 = vmatmul.f32.gmra.mxu0 %v3267
  %v4103 = vpop.f32.mrf.mxu0
  %v4104 = vadd.f32 %v3844, %v4103
  %4105 = vdwg.mxu0
  %4106 = vmatpush.msra.mxu0 %v3318
  %4107 = vmatpush.msra.mxu0 %v3317
  %4108 = vmatpush.msra.mxu0 %v3316
  %4109 = vmatpush.msra.mxu0 %v3315
  %4110 = vmatpush.msra.mxu0 %v3314
  %4111 = vmatpush.msra.mxu0 %v3313
  %4112 = vmatpush.msra.mxu0 %v3312
  %4113 = vmatpush.msra.mxu0 %v3311
  %4114 = vmatpush.msra.mxu0 %v3310
  %4115 = vmatpush.msra.mxu0 %v3309
  %4116 = vmatpush.msra.mxu0 %v3308
  %4117 = vmatpush.msra.mxu0 %v3307
  %4118 = vmatpush.msra.mxu0 %v3306
  %4119 = vmatpush.msra.mxu0 %v3305
  %4120 = vmatpush.msra.mxu0 %v3304
  %4121 = vmatpush.msra.mxu0 %v3303
  %4122 = vmatmul.f32.gmra.mxu0 %v2868
  %v4123 = vpop.f32.mrf.mxu0
  %v4124 = vadd.f32 %v3864, %v4123
  %4125 = vmatmul.f32.gmra.mxu0 %v2873
  %v4126 = vpop.f32.mrf.mxu0
  %v4127 = vadd.f32 %v3867, %v4126
  %4128 = vmatmul.f32.gmra.mxu0 %v2878
  %v4129 = vpop.f32.mrf.mxu0
  %v4130 = vadd.f32 %v3870, %v4129
  %4131 = vmatmul.f32.gmra.mxu0 %v2883
  %v4132 = vpop.f32.mrf.mxu0
  %v4133 = vadd.f32 %v3873, %v4132
  %4134 = vmatmul.f32.gmra.mxu0 %v2888
  %v4135 = vpop.f32.mrf.mxu0
  %v4136 = vadd.f32 %v3876, %v4135
  %4137 = vmatmul.f32.gmra.mxu0 %v2893
  %v4138 = vpop.f32.mrf.mxu0
  %v4139 = vadd.f32 %v3879, %v4138
  %4140 = vmatmul.f32.gmra.mxu0 %v2898
  %v4141 = vpop.f32.mrf.mxu0
  %v4142 = vadd.f32 %v3882, %v4141
  %4143 = vmatmul.f32.gmra.mxu0 %v2903
  %v4144 = vpop.f32.mrf.mxu0
  %v4145 = vadd.f32 %v3885, %v4144
  %4146 = vmatmul.f32.gmra.mxu0 %v2908
  %v4147 = vpop.f32.mrf.mxu0
  %v4148 = vadd.f32 %v3888, %v4147
  %4149 = vmatmul.f32.gmra.mxu0 %v2913
  %v4150 = vpop.f32.mrf.mxu0
  %v4151 = vadd.f32 %v3891, %v4150
  %4152 = vmatmul.f32.gmra.mxu0 %v2918
  %v4153 = vpop.f32.mrf.mxu0
  %v4154 = vadd.f32 %v3894, %v4153
  %4155 = vmatmul.f32.gmra.mxu0 %v2923
  %v4156 = vpop.f32.mrf.mxu0
  %v4157 = vadd.f32 %v3897, %v4156
  %4158 = vmatmul.f32.gmra.mxu0 %v2928
  %v4159 = vpop.f32.mrf.mxu0
  %v4160 = vadd.f32 %v3900, %v4159
  %4161 = vmatmul.f32.gmra.mxu0 %v2933
  %v4162 = vpop.f32.mrf.mxu0
  %v4163 = vadd.f32 %v3903, %v4162
  %4164 = vmatmul.f32.gmra.mxu0 %v2938
  %v4165 = vpop.f32.mrf.mxu0
  %v4166 = vadd.f32 %v3906, %v4165
  %4167 = vmatmul.f32.gmra.mxu0 %v2943
  %v4168 = vpop.f32.mrf.mxu0
  %v4169 = vadd.f32 %v3909, %v4168
  %4170 = vmatmul.f32.gmra.mxu0 %v2948
  %v4171 = vpop.f32.mrf.mxu0
  %v4172 = vadd.f32 %v3912, %v4171
  %4173 = vmatmul.f32.gmra.mxu0 %v2953
  %v4174 = vpop.f32.mrf.mxu0
  %v4175 = vadd.f32 %v3915, %v4174
  %4176 = vmatmul.f32.gmra.mxu0 %v2958
  %v4177 = vpop.f32.mrf.mxu0
  %v4178 = vadd.f32 %v3918, %v4177
  %4179 = vmatmul.f32.gmra.mxu0 %v2963
  %v4180 = vpop.f32.mrf.mxu0
  %v4181 = vadd.f32 %v3921, %v4180
  %4182 = vmatmul.f32.gmra.mxu0 %v2968
  %v4183 = vpop.f32.mrf.mxu0
  %v4184 = vadd.f32 %v3924, %v4183
  %4185 = vmatmul.f32.gmra.mxu0 %v2973
  %v4186 = vpop.f32.mrf.mxu0
  %v4187 = vadd.f32 %v3927, %v4186
  %4188 = vmatmul.f32.gmra.mxu0 %v2978
  %v4189 = vpop.f32.mrf.mxu0
  %v4190 = vadd.f32 %v3930, %v4189
  %4191 = vmatmul.f32.gmra.mxu0 %v2983
  %v4192 = vpop.f32.mrf.mxu0
  %v4193 = vadd.f32 %v3933, %v4192
  %4194 = vmatmul.f32.gmra.mxu0 %v2988
  %v4195 = vpop.f32.mrf.mxu0
  %v4196 = vadd.f32 %v3936, %v4195
  %4197 = vmatmul.f32.gmra.mxu0 %v2993
  %v4198 = vpop.f32.mrf.mxu0
  %v4199 = vadd.f32 %v3939, %v4198
  %4200 = vmatmul.f32.gmra.mxu0 %v2998
  %v4201 = vpop.f32.mrf.mxu0
  %v4202 = vadd.f32 %v3942, %v4201
  %4203 = vmatmul.f32.gmra.mxu0 %v3003
  %v4204 = vpop.f32.mrf.mxu0
  %v4205 = vadd.f32 %v3945, %v4204
  %4206 = vmatmul.f32.gmra.mxu0 %v3008
  %v4207 = vpop.f32.mrf.mxu0
  %v4208 = vadd.f32 %v3948, %v4207
  %4209 = vmatmul.f32.gmra.mxu0 %v3013
  %v4210 = vpop.f32.mrf.mxu0
  %v4211 = vadd.f32 %v3951, %v4210
  %4212 = vmatmul.f32.gmra.mxu0 %v3018
  %v4213 = vpop.f32.mrf.mxu0
  %v4214 = vadd.f32 %v3954, %v4213
  %4215 = vmatmul.f32.gmra.mxu0 %v3023
  %v4216 = vpop.f32.mrf.mxu0
  %v4217 = vadd.f32 %v3957, %v4216
  %4218 = vmatmul.f32.gmra.mxu0 %v3028
  %v4219 = vpop.f32.mrf.mxu0
  %v4220 = vadd.f32 %v3960, %v4219
  %4221 = vmatmul.f32.gmra.mxu0 %v3033
  %v4222 = vpop.f32.mrf.mxu0
  %v4223 = vadd.f32 %v3963, %v4222
  %4224 = vmatmul.f32.gmra.mxu0 %v3038
  %v4225 = vpop.f32.mrf.mxu0
  %v4226 = vadd.f32 %v3966, %v4225
  %4227 = vmatmul.f32.gmra.mxu0 %v3043
  %v4228 = vpop.f32.mrf.mxu0
  %v4229 = vadd.f32 %v3969, %v4228
  %4230 = vmatmul.f32.gmra.mxu0 %v3048
  %v4231 = vpop.f32.mrf.mxu0
  %v4232 = vadd.f32 %v3972, %v4231
  %4233 = vmatmul.f32.gmra.mxu0 %v3053
  %v4234 = vpop.f32.mrf.mxu0
  %v4235 = vadd.f32 %v3975, %v4234
  %4236 = vmatmul.f32.gmra.mxu0 %v3058
  %v4237 = vpop.f32.mrf.mxu0
  %v4238 = vadd.f32 %v3978, %v4237
  %4239 = vmatmul.f32.gmra.mxu0 %v3063
  %v4240 = vpop.f32.mrf.mxu0
  %v4241 = vadd.f32 %v3981, %v4240
  %4242 = vmatmul.f32.gmra.mxu0 %v3068
  %v4243 = vpop.f32.mrf.mxu0
  %v4244 = vadd.f32 %v3984, %v4243
  %4245 = vmatmul.f32.gmra.mxu0 %v3073
  %v4246 = vpop.f32.mrf.mxu0
  %v4247 = vadd.f32 %v3987, %v4246
  %4248 = vmatmul.f32.gmra.mxu0 %v3078
  %v4249 = vpop.f32.mrf.mxu0
  %v4250 = vadd.f32 %v3990, %v4249
  %4251 = vmatmul.f32.gmra.mxu0 %v3083
  %v4252 = vpop.f32.mrf.mxu0
  %v4253 = vadd.f32 %v3993, %v4252
  %4254 = vmatmul.f32.gmra.mxu0 %v3088
  %v4255 = vpop.f32.mrf.mxu0
  %v4256 = vadd.f32 %v3996, %v4255
  %4257 = vmatmul.f32.gmra.mxu0 %v3093
  %v4258 = vpop.f32.mrf.mxu0
  %v4259 = vadd.f32 %v3999, %v4258
  %4260 = vmatmul.f32.gmra.mxu0 %v3098
  %v4261 = vpop.f32.mrf.mxu0
  %v4262 = vadd.f32 %v4002, %v4261
  %4263 = vmatmul.f32.gmra.mxu0 %v3103
  %v4264 = vpop.f32.mrf.mxu0
  %v4265 = vadd.f32 %v4005, %v4264
  %4266 = vmatmul.f32.gmra.mxu0 %v3108
  %v4267 = vpop.f32.mrf.mxu0
  %v4268 = vadd.f32 %v4008, %v4267
  %4269 = vmatmul.f32.gmra.mxu0 %v3113
  %v4270 = vpop.f32.mrf.mxu0
  %v4271 = vadd.f32 %v4011, %v4270
  %4272 = vmatmul.f32.gmra.mxu0 %v3118
  %v4273 = vpop.f32.mrf.mxu0
  %v4274 = vadd.f32 %v4014, %v4273
  %4275 = vmatmul.f32.gmra.mxu0 %v3123
  %v4276 = vpop.f32.mrf.mxu0
  %v4277 = vadd.f32 %v4017, %v4276
  %4278 = vmatmul.f32.gmra.mxu0 %v3128
  %v4279 = vpop.f32.mrf.mxu0
  %v4280 = vadd.f32 %v4020, %v4279
  %4281 = vmatmul.f32.gmra.mxu0 %v3133
  %v4282 = vpop.f32.mrf.mxu0
  %v4283 = vadd.f32 %v4023, %v4282
  %4284 = vmatmul.f32.gmra.mxu0 %v3138
  %v4285 = vpop.f32.mrf.mxu0
  %v4286 = vadd.f32 %v4026, %v4285
  %4287 = vmatmul.f32.gmra.mxu0 %v3143
  %v4288 = vpop.f32.mrf.mxu0
  %v4289 = vadd.f32 %v4029, %v4288
  %4290 = vmatmul.f32.gmra.mxu0 %v3148
  %v4291 = vpop.f32.mrf.mxu0
  %v4292 = vadd.f32 %v4032, %v4291
  %4293 = vmatmul.f32.gmra.mxu0 %v3153
  %v4294 = vpop.f32.mrf.mxu0
  %v4295 = vadd.f32 %v4035, %v4294
  %4296 = vmatmul.f32.gmra.mxu0 %v3158
  %v4297 = vpop.f32.mrf.mxu0
  %v4298 = vadd.f32 %v4038, %v4297
  %4299 = vmatmul.f32.gmra.mxu0 %v3163
  %v4300 = vpop.f32.mrf.mxu0
  %v4301 = vadd.f32 %v4041, %v4300
  %4302 = vmatmul.f32.gmra.mxu0 %v3168
  %v4303 = vpop.f32.mrf.mxu0
  %v4304 = vadd.f32 %v4044, %v4303
  %4305 = vmatmul.f32.gmra.mxu0 %v3173
  %v4306 = vpop.f32.mrf.mxu0
  %v4307 = vadd.f32 %v4047, %v4306
  %4308 = vmatmul.f32.gmra.mxu0 %v3178
  %v4309 = vpop.f32.mrf.mxu0
  %v4310 = vadd.f32 %v4050, %v4309
  %4311 = vmatmul.f32.gmra.mxu0 %v3183
  %v4312 = vpop.f32.mrf.mxu0
  %v4313 = vadd.f32 %v4053, %v4312
  %4314 = vmatmul.f32.gmra.mxu0 %v3188
  %v4315 = vpop.f32.mrf.mxu0
  %v4316 = vadd.f32 %v4056, %v4315
  %4317 = vmatmul.f32.gmra.mxu0 %v3193
  %v4318 = vpop.f32.mrf.mxu0
  %v4319 = vadd.f32 %v4059, %v4318
  %4320 = vmatmul.f32.gmra.mxu0 %v3198
  %v4321 = vpop.f32.mrf.mxu0
  %v4322 = vadd.f32 %v4062, %v4321
  %4323 = vmatmul.f32.gmra.mxu0 %v3203
  %v4324 = vpop.f32.mrf.mxu0
  %v4325 = vadd.f32 %v4065, %v4324
  %4326 = vmatmul.f32.gmra.mxu0 %v3208
  %v4327 = vpop.f32.mrf.mxu0
  %v4328 = vadd.f32 %v4068, %v4327
  %4329 = vmatmul.f32.gmra.mxu0 %v3213
  %v4330 = vpop.f32.mrf.mxu0
  %v4331 = vadd.f32 %v4071, %v4330
  %4332 = vmatmul.f32.gmra.mxu0 %v3218
  %v4333 = vpop.f32.mrf.mxu0
  %v4334 = vadd.f32 %v4074, %v4333
  %4335 = vmatmul.f32.gmra.mxu0 %v3223
  %v4336 = vpop.f32.mrf.mxu0
  %v4337 = vadd.f32 %v4077, %v4336
  %4338 = vmatmul.f32.gmra.mxu0 %v3228
  %v4339 = vpop.f32.mrf.mxu0
  %v4340 = vadd.f32 %v4080, %v4339
  %4341 = vmatmul.f32.gmra.mxu0 %v3233
  %v4342 = vpop.f32.mrf.mxu0
  %v4343 = vadd.f32 %v4083, %v4342
  %4344 = vmatmul.f32.gmra.mxu0 %v3238
  %v4345 = vpop.f32.mrf.mxu0
  %v4346 = vadd.f32 %v4086, %v4345
  %4347 = vmatmul.f32.gmra.mxu0 %v3243
  %v4348 = vpop.f32.mrf.mxu0
  %v4349 = vadd.f32 %v4089, %v4348
  %4350 = vmatmul.f32.gmra.mxu0 %v3248
  %v4351 = vpop.f32.mrf.mxu0
  %v4352 = vadd.f32 %v4092, %v4351
  %4353 = vmatmul.f32.gmra.mxu0 %v3253
  %v4354 = vpop.f32.mrf.mxu0
  %v4355 = vadd.f32 %v4095, %v4354
  %4356 = vmatmul.f32.gmra.mxu0 %v3258
  %v4357 = vpop.f32.mrf.mxu0
  %v4358 = vadd.f32 %v4098, %v4357
  %4359 = vmatmul.f32.gmra.mxu0 %v3263
  %v4360 = vpop.f32.mrf.mxu0
  %v4361 = vadd.f32 %v4101, %v4360
  %4362 = vmatmul.f32.gmra.mxu0 %v3268
  %v4363 = vpop.f32.mrf.mxu0
  %v4364 = vadd.f32 %v4104, %v4363
  %4365 = vdwg.mxu0
  %4366 = vmatpush.msra.mxu0 %v3334
  %4367 = vmatpush.msra.mxu0 %v3333
  %4368 = vmatpush.msra.mxu0 %v3332
  %4369 = vmatpush.msra.mxu0 %v3331
  %4370 = vmatpush.msra.mxu0 %v3330
  %4371 = vmatpush.msra.mxu0 %v3329
  %4372 = vmatpush.msra.mxu0 %v3328
  %4373 = vmatpush.msra.mxu0 %v3327
  %4374 = vmatpush.msra.mxu0 %v3326
  %4375 = vmatpush.msra.mxu0 %v3325
  %4376 = vmatpush.msra.mxu0 %v3324
  %4377 = vmatpush.msra.mxu0 %v3323
  %4378 = vmatpush.msra.mxu0 %v3322
  %4379 = vmatpush.msra.mxu0 %v3321
  %4380 = vmatpush.msra.mxu0 %v3320
  %4381 = vmatpush.msra.mxu0 %v3319
  %4382 = vmatmul.f32.gmra.mxu0 %v2869
  %v4383 = vpop.f32.mrf.mxu0
  %v4384 = vadd.f32 %v4124, %v4383
  %4385 = vmatmul.f32.gmra.mxu0 %v2874
  %v4386 = vpop.f32.mrf.mxu0
  %v4387 = vadd.f32 %v4127, %v4386
  %4388 = vmatmul.f32.gmra.mxu0 %v2879
  %v4389 = vpop.f32.mrf.mxu0
  %v4390 = vadd.f32 %v4130, %v4389
  %4391 = vmatmul.f32.gmra.mxu0 %v2884
  %v4392 = vpop.f32.mrf.mxu0
  %v4393 = vadd.f32 %v4133, %v4392
  %4394 = vmatmul.f32.gmra.mxu0 %v2889
  %v4395 = vpop.f32.mrf.mxu0
  %v4396 = vadd.f32 %v4136, %v4395
  %4397 = vmatmul.f32.gmra.mxu0 %v2894
  %v4398 = vpop.f32.mrf.mxu0
  %v4399 = vadd.f32 %v4139, %v4398
  %4400 = vmatmul.f32.gmra.mxu0 %v2899
  %v4401 = vpop.f32.mrf.mxu0
  %v4402 = vadd.f32 %v4142, %v4401
  %4403 = vmatmul.f32.gmra.mxu0 %v2904
  %v4404 = vpop.f32.mrf.mxu0
  %v4405 = vadd.f32 %v4145, %v4404
  %4406 = vmatmul.f32.gmra.mxu0 %v2909
  %v4407 = vpop.f32.mrf.mxu0
  %v4408 = vadd.f32 %v4148, %v4407
  %4409 = vmatmul.f32.gmra.mxu0 %v2914
  %v4410 = vpop.f32.mrf.mxu0
  %v4411 = vadd.f32 %v4151, %v4410
  %4412 = vmatmul.f32.gmra.mxu0 %v2919
  %v4413 = vpop.f32.mrf.mxu0
  %v4414 = vadd.f32 %v4154, %v4413
  %4415 = vmatmul.f32.gmra.mxu0 %v2924
  %v4416 = vpop.f32.mrf.mxu0
  %v4417 = vadd.f32 %v4157, %v4416
  %4418 = vmatmul.f32.gmra.mxu0 %v2929
  %v4419 = vpop.f32.mrf.mxu0
  %v4420 = vadd.f32 %v4160, %v4419
  %4421 = vmatmul.f32.gmra.mxu0 %v2934
  %v4422 = vpop.f32.mrf.mxu0
  %v4423 = vadd.f32 %v4163, %v4422
  %4424 = vmatmul.f32.gmra.mxu0 %v2939
  %v4425 = vpop.f32.mrf.mxu0
  %v4426 = vadd.f32 %v4166, %v4425
  %4427 = vmatmul.f32.gmra.mxu0 %v2944
  %v4428 = vpop.f32.mrf.mxu0
  %v4429 = vadd.f32 %v4169, %v4428
  %4430 = vmatmul.f32.gmra.mxu0 %v2949
  %v4431 = vpop.f32.mrf.mxu0
  %v4432 = vadd.f32 %v4172, %v4431
  %4433 = vmatmul.f32.gmra.mxu0 %v2954
  %v4434 = vpop.f32.mrf.mxu0
  %v4435 = vadd.f32 %v4175, %v4434
  %4436 = vmatmul.f32.gmra.mxu0 %v2959
  %v4437 = vpop.f32.mrf.mxu0
  %v4438 = vadd.f32 %v4178, %v4437
  %4439 = vmatmul.f32.gmra.mxu0 %v2964
  %v4440 = vpop.f32.mrf.mxu0
  %v4441 = vadd.f32 %v4181, %v4440
  %4442 = vmatmul.f32.gmra.mxu0 %v2969
  %v4443 = vpop.f32.mrf.mxu0
  %v4444 = vadd.f32 %v4184, %v4443
  %4445 = vmatmul.f32.gmra.mxu0 %v2974
  %v4446 = vpop.f32.mrf.mxu0
  %v4447 = vadd.f32 %v4187, %v4446
  %4448 = vmatmul.f32.gmra.mxu0 %v2979
  %v4449 = vpop.f32.mrf.mxu0
  %v4450 = vadd.f32 %v4190, %v4449
  %4451 = vmatmul.f32.gmra.mxu0 %v2984
  %v4452 = vpop.f32.mrf.mxu0
  %v4453 = vadd.f32 %v4193, %v4452
  %4454 = vmatmul.f32.gmra.mxu0 %v2989
  %v4455 = vpop.f32.mrf.mxu0
  %v4456 = vadd.f32 %v4196, %v4455
  %4457 = vmatmul.f32.gmra.mxu0 %v2994
  %v4458 = vpop.f32.mrf.mxu0
  %v4459 = vadd.f32 %v4199, %v4458
  %4460 = vmatmul.f32.gmra.mxu0 %v2999
  %v4461 = vpop.f32.mrf.mxu0
  %v4462 = vadd.f32 %v4202, %v4461
  %4463 = vmatmul.f32.gmra.mxu0 %v3004
  %v4464 = vpop.f32.mrf.mxu0
  %v4465 = vadd.f32 %v4205, %v4464
  %4466 = vmatmul.f32.gmra.mxu0 %v3009
  %v4467 = vpop.f32.mrf.mxu0
  %v4468 = vadd.f32 %v4208, %v4467
  %4469 = vmatmul.f32.gmra.mxu0 %v3014
  %v4470 = vpop.f32.mrf.mxu0
  %v4471 = vadd.f32 %v4211, %v4470
  %4472 = vmatmul.f32.gmra.mxu0 %v3019
  %v4473 = vpop.f32.mrf.mxu0
  %v4474 = vadd.f32 %v4214, %v4473
  %4475 = vmatmul.f32.gmra.mxu0 %v3024
  %v4476 = vpop.f32.mrf.mxu0
  %v4477 = vadd.f32 %v4217, %v4476
  %4478 = vmatmul.f32.gmra.mxu0 %v3029
  %v4479 = vpop.f32.mrf.mxu0
  %v4480 = vadd.f32 %v4220, %v4479
  %4481 = vmatmul.f32.gmra.mxu0 %v3034
  %v4482 = vpop.f32.mrf.mxu0
  %v4483 = vadd.f32 %v4223, %v4482
  %4484 = vmatmul.f32.gmra.mxu0 %v3039
  %v4485 = vpop.f32.mrf.mxu0
  %v4486 = vadd.f32 %v4226, %v4485
  %4487 = vmatmul.f32.gmra.mxu0 %v3044
  %v4488 = vpop.f32.mrf.mxu0
  %v4489 = vadd.f32 %v4229, %v4488
  %4490 = vmatmul.f32.gmra.mxu0 %v3049
  %v4491 = vpop.f32.mrf.mxu0
  %v4492 = vadd.f32 %v4232, %v4491
  %4493 = vmatmul.f32.gmra.mxu0 %v3054
  %v4494 = vpop.f32.mrf.mxu0
  %v4495 = vadd.f32 %v4235, %v4494
  %4496 = vmatmul.f32.gmra.mxu0 %v3059
  %v4497 = vpop.f32.mrf.mxu0
  %v4498 = vadd.f32 %v4238, %v4497
  %4499 = vmatmul.f32.gmra.mxu0 %v3064
  %v4500 = vpop.f32.mrf.mxu0
  %v4501 = vadd.f32 %v4241, %v4500
  %4502 = vmatmul.f32.gmra.mxu0 %v3069
  %v4503 = vpop.f32.mrf.mxu0
  %v4504 = vadd.f32 %v4244, %v4503
  %4505 = vmatmul.f32.gmra.mxu0 %v3074
  %v4506 = vpop.f32.mrf.mxu0
  %v4507 = vadd.f32 %v4247, %v4506
  %4508 = vmatmul.f32.gmra.mxu0 %v3079
  %v4509 = vpop.f32.mrf.mxu0
  %v4510 = vadd.f32 %v4250, %v4509
  %4511 = vmatmul.f32.gmra.mxu0 %v3084
  %v4512 = vpop.f32.mrf.mxu0
  %v4513 = vadd.f32 %v4253, %v4512
  %4514 = vmatmul.f32.gmra.mxu0 %v3089
  %v4515 = vpop.f32.mrf.mxu0
  %v4516 = vadd.f32 %v4256, %v4515
  %4517 = vmatmul.f32.gmra.mxu0 %v3094
  %v4518 = vpop.f32.mrf.mxu0
  %v4519 = vadd.f32 %v4259, %v4518
  %4520 = vmatmul.f32.gmra.mxu0 %v3099
  %v4521 = vpop.f32.mrf.mxu0
  %v4522 = vadd.f32 %v4262, %v4521
  %4523 = vmatmul.f32.gmra.mxu0 %v3104
  %v4524 = vpop.f32.mrf.mxu0
  %v4525 = vadd.f32 %v4265, %v4524
  %4526 = vmatmul.f32.gmra.mxu0 %v3109
  %v4527 = vpop.f32.mrf.mxu0
  %v4528 = vadd.f32 %v4268, %v4527
  %4529 = vmatmul.f32.gmra.mxu0 %v3114
  %v4530 = vpop.f32.mrf.mxu0
  %v4531 = vadd.f32 %v4271, %v4530
  %4532 = vmatmul.f32.gmra.mxu0 %v3119
  %v4533 = vpop.f32.mrf.mxu0
  %v4534 = vadd.f32 %v4274, %v4533
  %4535 = vmatmul.f32.gmra.mxu0 %v3124
  %v4536 = vpop.f32.mrf.mxu0
  %v4537 = vadd.f32 %v4277, %v4536
  %4538 = vmatmul.f32.gmra.mxu0 %v3129
  %v4539 = vpop.f32.mrf.mxu0
  %v4540 = vadd.f32 %v4280, %v4539
  %4541 = vmatmul.f32.gmra.mxu0 %v3134
  %v4542 = vpop.f32.mrf.mxu0
  %v4543 = vadd.f32 %v4283, %v4542
  %4544 = vmatmul.f32.gmra.mxu0 %v3139
  %v4545 = vpop.f32.mrf.mxu0
  %v4546 = vadd.f32 %v4286, %v4545
  %4547 = vmatmul.f32.gmra.mxu0 %v3144
  %v4548 = vpop.f32.mrf.mxu0
  %v4549 = vadd.f32 %v4289, %v4548
  %4550 = vmatmul.f32.gmra.mxu0 %v3149
  %v4551 = vpop.f32.mrf.mxu0
  %v4552 = vadd.f32 %v4292, %v4551
  %4553 = vmatmul.f32.gmra.mxu0 %v3154
  %v4554 = vpop.f32.mrf.mxu0
  %v4555 = vadd.f32 %v4295, %v4554
  %4556 = vmatmul.f32.gmra.mxu0 %v3159
  %v4557 = vpop.f32.mrf.mxu0
  %v4558 = vadd.f32 %v4298, %v4557
  %4559 = vmatmul.f32.gmra.mxu0 %v3164
  %v4560 = vpop.f32.mrf.mxu0
  %v4561 = vadd.f32 %v4301, %v4560
  %4562 = vmatmul.f32.gmra.mxu0 %v3169
  %v4563 = vpop.f32.mrf.mxu0
  %v4564 = vadd.f32 %v4304, %v4563
  %4565 = vmatmul.f32.gmra.mxu0 %v3174
  %v4566 = vpop.f32.mrf.mxu0
  %v4567 = vadd.f32 %v4307, %v4566
  %4568 = vmatmul.f32.gmra.mxu0 %v3179
  %v4569 = vpop.f32.mrf.mxu0
  %v4570 = vadd.f32 %v4310, %v4569
  %4571 = vmatmul.f32.gmra.mxu0 %v3184
  %v4572 = vpop.f32.mrf.mxu0
  %v4573 = vadd.f32 %v4313, %v4572
  %4574 = vmatmul.f32.gmra.mxu0 %v3189
  %v4575 = vpop.f32.mrf.mxu0
  %v4576 = vadd.f32 %v4316, %v4575
  %4577 = vmatmul.f32.gmra.mxu0 %v3194
  %v4578 = vpop.f32.mrf.mxu0
  %v4579 = vadd.f32 %v4319, %v4578
  %4580 = vmatmul.f32.gmra.mxu0 %v3199
  %v4581 = vpop.f32.mrf.mxu0
  %v4582 = vadd.f32 %v4322, %v4581
  %4583 = vmatmul.f32.gmra.mxu0 %v3204
  %v4584 = vpop.f32.mrf.mxu0
  %v4585 = vadd.f32 %v4325, %v4584
  %4586 = vmatmul.f32.gmra.mxu0 %v3209
  %v4587 = vpop.f32.mrf.mxu0
  %v4588 = vadd.f32 %v4328, %v4587
  %4589 = vmatmul.f32.gmra.mxu0 %v3214
  %v4590 = vpop.f32.mrf.mxu0
  %v4591 = vadd.f32 %v4331, %v4590
  %4592 = vmatmul.f32.gmra.mxu0 %v3219
  %v4593 = vpop.f32.mrf.mxu0
  %v4594 = vadd.f32 %v4334, %v4593
  %4595 = vmatmul.f32.gmra.mxu0 %v3224
  %v4596 = vpop.f32.mrf.mxu0
  %v4597 = vadd.f32 %v4337, %v4596
  %4598 = vmatmul.f32.gmra.mxu0 %v3229
  %v4599 = vpop.f32.mrf.mxu0
  %v4600 = vadd.f32 %v4340, %v4599
  %4601 = vmatmul.f32.gmra.mxu0 %v3234
  %v4602 = vpop.f32.mrf.mxu0
  %v4603 = vadd.f32 %v4343, %v4602
  %4604 = vmatmul.f32.gmra.mxu0 %v3239
  %v4605 = vpop.f32.mrf.mxu0
  %v4606 = vadd.f32 %v4346, %v4605
  %4607 = vmatmul.f32.gmra.mxu0 %v3244
  %v4608 = vpop.f32.mrf.mxu0
  %v4609 = vadd.f32 %v4349, %v4608
  %4610 = vmatmul.f32.gmra.mxu0 %v3249
  %v4611 = vpop.f32.mrf.mxu0
  %v4612 = vadd.f32 %v4352, %v4611
  %4613 = vmatmul.f32.gmra.mxu0 %v3254
  %v4614 = vpop.f32.mrf.mxu0
  %v4615 = vadd.f32 %v4355, %v4614
  %4616 = vmatmul.f32.gmra.mxu0 %v3259
  %v4617 = vpop.f32.mrf.mxu0
  %v4618 = vadd.f32 %v4358, %v4617
  %4619 = vmatmul.f32.gmra.mxu0 %v3264
  %v4620 = vpop.f32.mrf.mxu0
  %v4621 = vadd.f32 %v4361, %v4620
  %4622 = vmatmul.f32.gmra.mxu0 %v3269
  %v4623 = vpop.f32.mrf.mxu0
  %v4624 = vadd.f32 %v4364, %v4623
  %4625 = vdwg.mxu0
  %4626 = vmatpush.msra.mxu0 0.0
  %4627 = vmatpush.msra.mxu0 0.0
  %4628 = vmatpush.msra.mxu0 0.0
  %4629 = vmatpush.msra.mxu0 0.0
  %4630 = vmatpush.msra.mxu0 0.0
  %4631 = vmatpush.msra.mxu0 0.0
  %4632 = vmatpush.msra.mxu0 0.0
  %4633 = vmatpush.msra.mxu0 0.0
  %4634 = vmatpush.msra.mxu0 %v3342
  %4635 = vmatpush.msra.mxu0 %v3341
  %4636 = vmatpush.msra.mxu0 %v3340
  %4637 = vmatpush.msra.mxu0 %v3339
  %4638 = vmatpush.msra.mxu0 %v3338
  %4639 = vmatpush.msra.mxu0 %v3337
  %4640 = vmatpush.msra.mxu0 %v3336
  %4641 = vmatpush.msra.mxu0 %v3335
  %4642 = vmatmul.f32.gmra.mxu0 %v3344
  %v4643 = vpop.f32.mrf.mxu0
  %v4644 = vadd.f32 %v4384, %v4643
  %4645 = vmatmul.f32.gmra.mxu0 %v3347
  %v4646 = vpop.f32.mrf.mxu0
  %v4647 = vadd.f32 %v4387, %v4646
  %4648 = vmatmul.f32.gmra.mxu0 %v3350
  %v4649 = vpop.f32.mrf.mxu0
  %v4650 = vadd.f32 %v4390, %v4649
  %4651 = vmatmul.f32.gmra.mxu0 %v3353
  %v4652 = vpop.f32.mrf.mxu0
  %v4653 = vadd.f32 %v4393, %v4652
  %4654 = vmatmul.f32.gmra.mxu0 %v3356
  %v4655 = vpop.f32.mrf.mxu0
  %v4656 = vadd.f32 %v4396, %v4655
  %4657 = vmatmul.f32.gmra.mxu0 %v3359
  %v4658 = vpop.f32.mrf.mxu0
  %v4659 = vadd.f32 %v4399, %v4658
  %4660 = vmatmul.f32.gmra.mxu0 %v3362
  %v4661 = vpop.f32.mrf.mxu0
  %v4662 = vadd.f32 %v4402, %v4661
  %4663 = vmatmul.f32.gmra.mxu0 %v3365
  %v4664 = vpop.f32.mrf.mxu0
  %v4665 = vadd.f32 %v4405, %v4664
  %4666 = vmatmul.f32.gmra.mxu0 %v3368
  %v4667 = vpop.f32.mrf.mxu0
  %v4668 = vadd.f32 %v4408, %v4667
  %4669 = vmatmul.f32.gmra.mxu0 %v3371
  %v4670 = vpop.f32.mrf.mxu0
  %v4671 = vadd.f32 %v4411, %v4670
  %4672 = vmatmul.f32.gmra.mxu0 %v3374
  %v4673 = vpop.f32.mrf.mxu0
  %v4674 = vadd.f32 %v4414, %v4673
  %4675 = vmatmul.f32.gmra.mxu0 %v3377
  %v4676 = vpop.f32.mrf.mxu0
  %v4677 = vadd.f32 %v4417, %v4676
  %4678 = vmatmul.f32.gmra.mxu0 %v3380
  %v4679 = vpop.f32.mrf.mxu0
  %v4680 = vadd.f32 %v4420, %v4679
  %4681 = vmatmul.f32.gmra.mxu0 %v3383
  %v4682 = vpop.f32.mrf.mxu0
  %v4683 = vadd.f32 %v4423, %v4682
  %4684 = vmatmul.f32.gmra.mxu0 %v3386
  %v4685 = vpop.f32.mrf.mxu0
  %v4686 = vadd.f32 %v4426, %v4685
  %4687 = vmatmul.f32.gmra.mxu0 %v3389
  %v4688 = vpop.f32.mrf.mxu0
  %v4689 = vadd.f32 %v4429, %v4688
  %4690 = vmatmul.f32.gmra.mxu0 %v3392
  %v4691 = vpop.f32.mrf.mxu0
  %v4692 = vadd.f32 %v4432, %v4691
  %4693 = vmatmul.f32.gmra.mxu0 %v3395
  %v4694 = vpop.f32.mrf.mxu0
  %v4695 = vadd.f32 %v4435, %v4694
  %4696 = vmatmul.f32.gmra.mxu0 %v3398
  %v4697 = vpop.f32.mrf.mxu0
  %v4698 = vadd.f32 %v4438, %v4697
  %4699 = vmatmul.f32.gmra.mxu0 %v3401
  %v4700 = vpop.f32.mrf.mxu0
  %v4701 = vadd.f32 %v4441, %v4700
  %4702 = vmatmul.f32.gmra.mxu0 %v3404
  %v4703 = vpop.f32.mrf.mxu0
  %v4704 = vadd.f32 %v4444, %v4703
  %4705 = vmatmul.f32.gmra.mxu0 %v3407
  %v4706 = vpop.f32.mrf.mxu0
  %v4707 = vadd.f32 %v4447, %v4706
  %4708 = vmatmul.f32.gmra.mxu0 %v3410
  %v4709 = vpop.f32.mrf.mxu0
  %v4710 = vadd.f32 %v4450, %v4709
  %4711 = vmatmul.f32.gmra.mxu0 %v3413
  %v4712 = vpop.f32.mrf.mxu0
  %v4713 = vadd.f32 %v4453, %v4712
  %4714 = vmatmul.f32.gmra.mxu0 %v3416
  %v4715 = vpop.f32.mrf.mxu0
  %v4716 = vadd.f32 %v4456, %v4715
  %4717 = vmatmul.f32.gmra.mxu0 %v3419
  %v4718 = vpop.f32.mrf.mxu0
  %v4719 = vadd.f32 %v4459, %v4718
  %4720 = vmatmul.f32.gmra.mxu0 %v3422
  %v4721 = vpop.f32.mrf.mxu0
  %v4722 = vadd.f32 %v4462, %v4721
  %4723 = vmatmul.f32.gmra.mxu0 %v3425
  %v4724 = vpop.f32.mrf.mxu0
  %v4725 = vadd.f32 %v4465, %v4724
  %4726 = vmatmul.f32.gmra.mxu0 %v3428
  %v4727 = vpop.f32.mrf.mxu0
  %v4728 = vadd.f32 %v4468, %v4727
  %4729 = vmatmul.f32.gmra.mxu0 %v3431
  %v4730 = vpop.f32.mrf.mxu0
  %v4731 = vadd.f32 %v4471, %v4730
  %4732 = vmatmul.f32.gmra.mxu0 %v3434
  %v4733 = vpop.f32.mrf.mxu0
  %v4734 = vadd.f32 %v4474, %v4733
  %4735 = vmatmul.f32.gmra.mxu0 %v3437
  %v4736 = vpop.f32.mrf.mxu0
  %v4737 = vadd.f32 %v4477, %v4736
  %4738 = vmatmul.f32.gmra.mxu0 %v3440
  %v4739 = vpop.f32.mrf.mxu0
  %v4740 = vadd.f32 %v4480, %v4739
  %4741 = vmatmul.f32.gmra.mxu0 %v3443
  %v4742 = vpop.f32.mrf.mxu0
  %v4743 = vadd.f32 %v4483, %v4742
  %4744 = vmatmul.f32.gmra.mxu0 %v3446
  %v4745 = vpop.f32.mrf.mxu0
  %v4746 = vadd.f32 %v4486, %v4745
  %4747 = vmatmul.f32.gmra.mxu0 %v3449
  %v4748 = vpop.f32.mrf.mxu0
  %v4749 = vadd.f32 %v4489, %v4748
  %4750 = vmatmul.f32.gmra.mxu0 %v3452
  %v4751 = vpop.f32.mrf.mxu0
  %v4752 = vadd.f32 %v4492, %v4751
  %4753 = vmatmul.f32.gmra.mxu0 %v3455
  %v4754 = vpop.f32.mrf.mxu0
  %v4755 = vadd.f32 %v4495, %v4754
  %4756 = vmatmul.f32.gmra.mxu0 %v3458
  %v4757 = vpop.f32.mrf.mxu0
  %v4758 = vadd.f32 %v4498, %v4757
  %4759 = vmatmul.f32.gmra.mxu0 %v3461
  %v4760 = vpop.f32.mrf.mxu0
  %v4761 = vadd.f32 %v4501, %v4760
  %4762 = vmatmul.f32.gmra.mxu0 %v3464
  %v4763 = vpop.f32.mrf.mxu0
  %v4764 = vadd.f32 %v4504, %v4763
  %4765 = vmatmul.f32.gmra.mxu0 %v3467
  %v4766 = vpop.f32.mrf.mxu0
  %v4767 = vadd.f32 %v4507, %v4766
  %4768 = vmatmul.f32.gmra.mxu0 %v3470
  %v4769 = vpop.f32.mrf.mxu0
  %v4770 = vadd.f32 %v4510, %v4769
  %4771 = vmatmul.f32.gmra.mxu0 %v3473
  %v4772 = vpop.f32.mrf.mxu0
  %v4773 = vadd.f32 %v4513, %v4772
  %4774 = vmatmul.f32.gmra.mxu0 %v3476
  %v4775 = vpop.f32.mrf.mxu0
  %v4776 = vadd.f32 %v4516, %v4775
  %4777 = vmatmul.f32.gmra.mxu0 %v3479
  %v4778 = vpop.f32.mrf.mxu0
  %v4779 = vadd.f32 %v4519, %v4778
  %4780 = vmatmul.f32.gmra.mxu0 %v3482
  %v4781 = vpop.f32.mrf.mxu0
  %v4782 = vadd.f32 %v4522, %v4781
  %4783 = vmatmul.f32.gmra.mxu0 %v3485
  %v4784 = vpop.f32.mrf.mxu0
  %v4785 = vadd.f32 %v4525, %v4784
  %4786 = vmatmul.f32.gmra.mxu0 %v3488
  %v4787 = vpop.f32.mrf.mxu0
  %v4788 = vadd.f32 %v4528, %v4787
  %4789 = vmatmul.f32.gmra.mxu0 %v3491
  %v4790 = vpop.f32.mrf.mxu0
  %v4791 = vadd.f32 %v4531, %v4790
  %4792 = vmatmul.f32.gmra.mxu0 %v3494
  %v4793 = vpop.f32.mrf.mxu0
  %v4794 = vadd.f32 %v4534, %v4793
  %4795 = vmatmul.f32.gmra.mxu0 %v3497
  %v4796 = vpop.f32.mrf.mxu0
  %v4797 = vadd.f32 %v4537, %v4796
  %4798 = vmatmul.f32.gmra.mxu0 %v3500
  %v4799 = vpop.f32.mrf.mxu0
  %v4800 = vadd.f32 %v4540, %v4799
  %4801 = vmatmul.f32.gmra.mxu0 %v3503
  %v4802 = vpop.f32.mrf.mxu0
  %v4803 = vadd.f32 %v4543, %v4802
  %4804 = vmatmul.f32.gmra.mxu0 %v3506
  %v4805 = vpop.f32.mrf.mxu0
  %v4806 = vadd.f32 %v4546, %v4805
  %4807 = vmatmul.f32.gmra.mxu0 %v3509
  %v4808 = vpop.f32.mrf.mxu0
  %v4809 = vadd.f32 %v4549, %v4808
  %4810 = vmatmul.f32.gmra.mxu0 %v3512
  %v4811 = vpop.f32.mrf.mxu0
  %v4812 = vadd.f32 %v4552, %v4811
  %4813 = vmatmul.f32.gmra.mxu0 %v3515
  %v4814 = vpop.f32.mrf.mxu0
  %v4815 = vadd.f32 %v4555, %v4814
  %4816 = vmatmul.f32.gmra.mxu0 %v3518
  %v4817 = vpop.f32.mrf.mxu0
  %v4818 = vadd.f32 %v4558, %v4817
  %4819 = vmatmul.f32.gmra.mxu0 %v3521
  %v4820 = vpop.f32.mrf.mxu0
  %v4821 = vadd.f32 %v4561, %v4820
  %4822 = vmatmul.f32.gmra.mxu0 %v3524
  %v4823 = vpop.f32.mrf.mxu0
  %v4824 = vadd.f32 %v4564, %v4823
  %4825 = vmatmul.f32.gmra.mxu0 %v3527
  %v4826 = vpop.f32.mrf.mxu0
  %v4827 = vadd.f32 %v4567, %v4826
  %4828 = vmatmul.f32.gmra.mxu0 %v3530
  %v4829 = vpop.f32.mrf.mxu0
  %v4830 = vadd.f32 %v4570, %v4829
  %4831 = vmatmul.f32.gmra.mxu0 %v3533
  %v4832 = vpop.f32.mrf.mxu0
  %v4833 = vadd.f32 %v4573, %v4832
  %4834 = vmatmul.f32.gmra.mxu0 %v3536
  %v4835 = vpop.f32.mrf.mxu0
  %v4836 = vadd.f32 %v4576, %v4835
  %4837 = vmatmul.f32.gmra.mxu0 %v3539
  %v4838 = vpop.f32.mrf.mxu0
  %v4839 = vadd.f32 %v4579, %v4838
  %4840 = vmatmul.f32.gmra.mxu0 %v3542
  %v4841 = vpop.f32.mrf.mxu0
  %v4842 = vadd.f32 %v4582, %v4841
  %4843 = vmatmul.f32.gmra.mxu0 %v3545
  %v4844 = vpop.f32.mrf.mxu0
  %v4845 = vadd.f32 %v4585, %v4844
  %4846 = vmatmul.f32.gmra.mxu0 %v3548
  %v4847 = vpop.f32.mrf.mxu0
  %v4848 = vadd.f32 %v4588, %v4847
  %4849 = vmatmul.f32.gmra.mxu0 %v3551
  %v4850 = vpop.f32.mrf.mxu0
  %v4851 = vadd.f32 %v4591, %v4850
  %4852 = vmatmul.f32.gmra.mxu0 %v3554
  %v4853 = vpop.f32.mrf.mxu0
  %v4854 = vadd.f32 %v4594, %v4853
  %4855 = vmatmul.f32.gmra.mxu0 %v3557
  %v4856 = vpop.f32.mrf.mxu0
  %v4857 = vadd.f32 %v4597, %v4856
  %4858 = vmatmul.f32.gmra.mxu0 %v3560
  %v4859 = vpop.f32.mrf.mxu0
  %v4860 = vadd.f32 %v4600, %v4859
  %4861 = vmatmul.f32.gmra.mxu0 %v3563
  %v4862 = vpop.f32.mrf.mxu0
  %v4863 = vadd.f32 %v4603, %v4862
  %4864 = vmatmul.f32.gmra.mxu0 %v3566
  %v4865 = vpop.f32.mrf.mxu0
  %v4866 = vadd.f32 %v4606, %v4865
  %4867 = vmatmul.f32.gmra.mxu0 %v3569
  %v4868 = vpop.f32.mrf.mxu0
  %v4869 = vadd.f32 %v4609, %v4868
  %4870 = vmatmul.f32.gmra.mxu0 %v3572
  %v4871 = vpop.f32.mrf.mxu0
  %v4872 = vadd.f32 %v4612, %v4871
  %4873 = vmatmul.f32.gmra.mxu0 %v3575
  %v4874 = vpop.f32.mrf.mxu0
  %v4875 = vadd.f32 %v4615, %v4874
  %4876 = vmatmul.f32.gmra.mxu0 %v3578
  %v4877 = vpop.f32.mrf.mxu0
  %v4878 = vadd.f32 %v4618, %v4877
  %4879 = vmatmul.f32.gmra.mxu0 %v3581
  %v4880 = vpop.f32.mrf.mxu0
  %v4881 = vadd.f32 %v4621, %v4880
  %4882 = vmatmul.f32.gmra.mxu0 %v3584
  %v4883 = vpop.f32.mrf.mxu0
  %v4884 = vadd.f32 %v4624, %v4883
  %4885 = vdwg.mxu0
  %4887 = vset.pattern.permute.xlu0 0
  %4888 = vperm.xlu0 %4887, %v2785
  %v4889 = vpop.permute.xlu0 %4888
  %4892 = vset.pattern.permute.xlu0 0
  %4893 = vperm.xlu0 %4892, %v2786
  %v4894 = vpop.permute.xlu0 %4893
  %4897 = vset.pattern.permute.xlu0 0
  %4898 = vperm.xlu0 %4897, %v2787
  %v4899 = vpop.permute.xlu0 %4898
  %4902 = vset.pattern.permute.xlu0 0
  %4903 = vperm.xlu0 %4902, %v2788
  %v4904 = vpop.permute.xlu0 %4903
  %4907 = vset.pattern.permute.xlu0 0
  %4908 = vperm.xlu0 %4907, %v2789
  %v4909 = vpop.permute.xlu0 %4908
  %4912 = vset.pattern.permute.xlu0 0
  %4913 = vperm.xlu0 %4912, %v2790
  %v4914 = vpop.permute.xlu0 %4913
  %4917 = vset.pattern.permute.xlu0 0
  %4918 = vperm.xlu0 %4917, %v2791
  %v4919 = vpop.permute.xlu0 %4918
  %4922 = vset.pattern.permute.xlu0 0
  %4923 = vperm.xlu0 %4922, %v2792
  %v4924 = vpop.permute.xlu0 %4923
  %4927 = vset.pattern.permute.xlu0 0
  %4928 = vperm.xlu0 %4927, %v2793
  %v4929 = vpop.permute.xlu0 %4928
  %4932 = vset.pattern.permute.xlu0 0
  %4933 = vperm.xlu0 %4932, %v2794
  %v4934 = vpop.permute.xlu0 %4933
  %4937 = vset.pattern.permute.xlu0 0
  %4938 = vperm.xlu0 %4937, %v2795
  %v4939 = vpop.permute.xlu0 %4938
  %4942 = vset.pattern.permute.xlu0 0
  %4943 = vperm.xlu0 %4942, %v2796
  %v4944 = vpop.permute.xlu0 %4943
  %4947 = vset.pattern.permute.xlu0 0
  %4948 = vperm.xlu0 %4947, %v2797
  %v4949 = vpop.permute.xlu0 %4948
  %4952 = vset.pattern.permute.xlu0 0
  %4953 = vperm.xlu0 %4952, %v2798
  %v4954 = vpop.permute.xlu0 %4953
  %4957 = vset.pattern.permute.xlu0 0
  %4958 = vperm.xlu0 %4957, %v2799
  %v4959 = vpop.permute.xlu0 %4958
  %4962 = vset.pattern.permute.xlu0 0
  %4963 = vperm.xlu0 %4962, %v2800
  %v4964 = vpop.permute.xlu0 %4963
  %4967 = vset.pattern.permute.xlu0 0
  %4968 = vperm.xlu0 %4967, %v2801
  %v4969 = vpop.permute.xlu0 %4968
  %4972 = vset.pattern.permute.xlu0 0
  %4973 = vperm.xlu0 %4972, %v2802
  %v4974 = vpop.permute.xlu0 %4973
  %4977 = vset.pattern.permute.xlu0 0
  %4978 = vperm.xlu0 %4977, %v2803
  %v4979 = vpop.permute.xlu0 %4978
  %4982 = vset.pattern.permute.xlu0 0
  %4983 = vperm.xlu0 %4982, %v2804
  %v4984 = vpop.permute.xlu0 %4983
  %4987 = vset.pattern.permute.xlu0 0
  %4988 = vperm.xlu0 %4987, %v2805
  %v4989 = vpop.permute.xlu0 %4988
  %4992 = vset.pattern.permute.xlu0 0
  %4993 = vperm.xlu0 %4992, %v2806
  %v4994 = vpop.permute.xlu0 %4993
  %4997 = vset.pattern.permute.xlu0 0
  %4998 = vperm.xlu0 %4997, %v2807
  %v4999 = vpop.permute.xlu0 %4998
  %5002 = vset.pattern.permute.xlu0 0
  %5003 = vperm.xlu0 %5002, %v2808
  %v5004 = vpop.permute.xlu0 %5003
  %5007 = vset.pattern.permute.xlu0 0
  %5008 = vperm.xlu0 %5007, %v2809
  %v5009 = vpop.permute.xlu0 %5008
  %5012 = vset.pattern.permute.xlu0 0
  %5013 = vperm.xlu0 %5012, %v2810
  %v5014 = vpop.permute.xlu0 %5013
  %5017 = vset.pattern.permute.xlu0 0
  %5018 = vperm.xlu0 %5017, %v2811
  %v5019 = vpop.permute.xlu0 %5018
  %5022 = vset.pattern.permute.xlu0 0
  %5023 = vperm.xlu0 %5022, %v2812
  %v5024 = vpop.permute.xlu0 %5023
  %5027 = vset.pattern.permute.xlu0 0
  %5028 = vperm.xlu0 %5027, %v2813
  %v5029 = vpop.permute.xlu0 %5028
  %5032 = vset.pattern.permute.xlu0 0
  %5033 = vperm.xlu0 %5032, %v2814
  %v5034 = vpop.permute.xlu0 %5033
  %5037 = vset.pattern.permute.xlu0 0
  %5038 = vperm.xlu0 %5037, %v2815
  %v5039 = vpop.permute.xlu0 %5038
  %5042 = vset.pattern.permute.xlu0 0
  %5043 = vperm.xlu0 %5042, %v2816
  %v5044 = vpop.permute.xlu0 %5043
  %5047 = vset.pattern.permute.xlu0 0
  %5048 = vperm.xlu0 %5047, %v2817
  %v5049 = vpop.permute.xlu0 %5048
  %5052 = vset.pattern.permute.xlu0 0
  %5053 = vperm.xlu0 %5052, %v2818
  %v5054 = vpop.permute.xlu0 %5053
  %5057 = vset.pattern.permute.xlu0 0
  %5058 = vperm.xlu0 %5057, %v2819
  %v5059 = vpop.permute.xlu0 %5058
  %5062 = vset.pattern.permute.xlu0 0
  %5063 = vperm.xlu0 %5062, %v2820
  %v5064 = vpop.permute.xlu0 %5063
  %5067 = vset.pattern.permute.xlu0 0
  %5068 = vperm.xlu0 %5067, %v2821
  %v5069 = vpop.permute.xlu0 %5068
  %5072 = vset.pattern.permute.xlu0 0
  %5073 = vperm.xlu0 %5072, %v2822
  %v5074 = vpop.permute.xlu0 %5073
  %5077 = vset.pattern.permute.xlu0 0
  %5078 = vperm.xlu0 %5077, %v2823
  %v5079 = vpop.permute.xlu0 %5078
  %5082 = vset.pattern.permute.xlu0 0
  %5083 = vperm.xlu0 %5082, %v2824
  %v5084 = vpop.permute.xlu0 %5083
  %5087 = vset.pattern.permute.xlu0 0
  %5088 = vperm.xlu0 %5087, %v2825
  %v5089 = vpop.permute.xlu0 %5088
  %5092 = vset.pattern.permute.xlu0 0
  %5093 = vperm.xlu0 %5092, %v2826
  %v5094 = vpop.permute.xlu0 %5093
  %5097 = vset.pattern.permute.xlu0 0
  %5098 = vperm.xlu0 %5097, %v2827
  %v5099 = vpop.permute.xlu0 %5098
  %5102 = vset.pattern.permute.xlu0 0
  %5103 = vperm.xlu0 %5102, %v2828
  %v5104 = vpop.permute.xlu0 %5103
  %5107 = vset.pattern.permute.xlu0 0
  %5108 = vperm.xlu0 %5107, %v2829
  %v5109 = vpop.permute.xlu0 %5108
  %5112 = vset.pattern.permute.xlu0 0
  %5113 = vperm.xlu0 %5112, %v2830
  %v5114 = vpop.permute.xlu0 %5113
  %5117 = vset.pattern.permute.xlu0 0
  %5118 = vperm.xlu0 %5117, %v2831
  %v5119 = vpop.permute.xlu0 %5118
  %5122 = vset.pattern.permute.xlu0 0
  %5123 = vperm.xlu0 %5122, %v2832
  %v5124 = vpop.permute.xlu0 %5123
  %5127 = vset.pattern.permute.xlu0 0
  %5128 = vperm.xlu0 %5127, %v2833
  %v5129 = vpop.permute.xlu0 %5128
  %5132 = vset.pattern.permute.xlu0 0
  %5133 = vperm.xlu0 %5132, %v2834
  %v5134 = vpop.permute.xlu0 %5133
  %5137 = vset.pattern.permute.xlu0 0
  %5138 = vperm.xlu0 %5137, %v2835
  %v5139 = vpop.permute.xlu0 %5138
  %5142 = vset.pattern.permute.xlu0 0
  %5143 = vperm.xlu0 %5142, %v2836
  %v5144 = vpop.permute.xlu0 %5143
  %5147 = vset.pattern.permute.xlu0 0
  %5148 = vperm.xlu0 %5147, %v2837
  %v5149 = vpop.permute.xlu0 %5148
  %5152 = vset.pattern.permute.xlu0 0
  %5153 = vperm.xlu0 %5152, %v2838
  %v5154 = vpop.permute.xlu0 %5153
  %5157 = vset.pattern.permute.xlu0 0
  %5158 = vperm.xlu0 %5157, %v2839
  %v5159 = vpop.permute.xlu0 %5158
  %5162 = vset.pattern.permute.xlu0 0
  %5163 = vperm.xlu0 %5162, %v2840
  %v5164 = vpop.permute.xlu0 %5163
  %5167 = vset.pattern.permute.xlu0 0
  %5168 = vperm.xlu0 %5167, %v2841
  %v5169 = vpop.permute.xlu0 %5168
  %5172 = vset.pattern.permute.xlu0 0
  %5173 = vperm.xlu0 %5172, %v2842
  %v5174 = vpop.permute.xlu0 %5173
  %5177 = vset.pattern.permute.xlu0 0
  %5178 = vperm.xlu0 %5177, %v2843
  %v5179 = vpop.permute.xlu0 %5178
  %5182 = vset.pattern.permute.xlu0 0
  %5183 = vperm.xlu0 %5182, %v2844
  %v5184 = vpop.permute.xlu0 %5183
  %5187 = vset.pattern.permute.xlu0 0
  %5188 = vperm.xlu0 %5187, %v2845
  %v5189 = vpop.permute.xlu0 %5188
  %5192 = vset.pattern.permute.xlu0 0
  %5193 = vperm.xlu0 %5192, %v2846
  %v5194 = vpop.permute.xlu0 %5193
  %5197 = vset.pattern.permute.xlu0 0
  %5198 = vperm.xlu0 %5197, %v2847
  %v5199 = vpop.permute.xlu0 %5198
  %5202 = vset.pattern.permute.xlu0 0
  %5203 = vperm.xlu0 %5202, %v2848
  %v5204 = vpop.permute.xlu0 %5203
  %5207 = vset.pattern.permute.xlu0 0
  %5208 = vperm.xlu0 %5207, %v2849
  %v5209 = vpop.permute.xlu0 %5208
  %5212 = vset.pattern.permute.xlu0 0
  %5213 = vperm.xlu0 %5212, %v2850
  %v5214 = vpop.permute.xlu0 %5213
  %5217 = vset.pattern.permute.xlu0 0
  %5218 = vperm.xlu0 %5217, %v2851
  %v5219 = vpop.permute.xlu0 %5218
  %5222 = vset.pattern.permute.xlu0 0
  %5223 = vperm.xlu0 %5222, %v2852
  %v5224 = vpop.permute.xlu0 %5223
  %5227 = vset.pattern.permute.xlu0 0
  %5228 = vperm.xlu0 %5227, %v2853
  %v5229 = vpop.permute.xlu0 %5228
  %5232 = vset.pattern.permute.xlu0 0
  %5233 = vperm.xlu0 %5232, %v2854
  %v5234 = vpop.permute.xlu0 %5233
  %5237 = vset.pattern.permute.xlu0 0
  %5238 = vperm.xlu0 %5237, %v2855
  %v5239 = vpop.permute.xlu0 %5238
  %5242 = vset.pattern.permute.xlu0 0
  %5243 = vperm.xlu0 %5242, %v2856
  %v5244 = vpop.permute.xlu0 %5243
  %5247 = vset.pattern.permute.xlu0 0
  %5248 = vperm.xlu0 %5247, %v2857
  %v5249 = vpop.permute.xlu0 %5248
  %5252 = vset.pattern.permute.xlu0 0
  %5253 = vperm.xlu0 %5252, %v2858
  %v5254 = vpop.permute.xlu0 %5253
  %5257 = vset.pattern.permute.xlu0 0
  %5258 = vperm.xlu0 %5257, %v2859
  %v5259 = vpop.permute.xlu0 %5258
  %5262 = vset.pattern.permute.xlu0 0
  %5263 = vperm.xlu0 %5262, %v2860
  %v5264 = vpop.permute.xlu0 %5263
  %5267 = vset.pattern.permute.xlu0 0
  %5268 = vperm.xlu0 %5267, %v2861
  %v5269 = vpop.permute.xlu0 %5268
  %5272 = vset.pattern.permute.xlu0 0
  %5273 = vperm.xlu0 %5272, %v2862
  %v5274 = vpop.permute.xlu0 %5273
  %5277 = vset.pattern.permute.xlu0 0
  %5278 = vperm.xlu0 %5277, %v2863
  %v5279 = vpop.permute.xlu0 %5278
  %5282 = vset.pattern.permute.xlu0 0
  %5283 = vperm.xlu0 %5282, %v2864
  %v5284 = vpop.permute.xlu0 %5283
  %5287 = vset.pattern.permute.xlu0 0
  %5288 = vperm.xlu0 %5287, %v2865
  %v5289 = vpop.permute.xlu0 %5288
  %v5291 = vmul.f32 %v4644, %v4889
  %v5292 = vmul.f32 %v4647, %v4894
  %v5293 = vmul.f32 %v4650, %v4899
  %v5294 = vmul.f32 %v4653, %v4904
  %v5295 = vmul.f32 %v4656, %v4909
  %v5296 = vmul.f32 %v4659, %v4914
  %v5297 = vmul.f32 %v4662, %v4919
  %v5298 = vmul.f32 %v4665, %v4924
  %v5299 = vmul.f32 %v4668, %v4929
  %v5300 = vmul.f32 %v4671, %v4934
  %v5301 = vmul.f32 %v4674, %v4939
  %v5302 = vmul.f32 %v4677, %v4944
  %v5303 = vmul.f32 %v4680, %v4949
  %v5304 = vmul.f32 %v4683, %v4954
  %v5305 = vmul.f32 %v4686, %v4959
  %v5306 = vmul.f32 %v4689, %v4964
  %v5307 = vmul.f32 %v4692, %v4969
  %v5308 = vmul.f32 %v4695, %v4974
  %v5309 = vmul.f32 %v4698, %v4979
  %v5310 = vmul.f32 %v4701, %v4984
  %v5311 = vmul.f32 %v4704, %v4989
  %v5312 = vmul.f32 %v4707, %v4994
  %v5313 = vmul.f32 %v4710, %v4999
  %v5314 = vmul.f32 %v4713, %v5004
  %v5315 = vmul.f32 %v4716, %v5009
  %v5316 = vmul.f32 %v4719, %v5014
  %v5317 = vmul.f32 %v4722, %v5019
  %v5318 = vmul.f32 %v4725, %v5024
  %v5319 = vmul.f32 %v4728, %v5029
  %v5320 = vmul.f32 %v4731, %v5034
  %v5321 = vmul.f32 %v4734, %v5039
  %v5322 = vmul.f32 %v4737, %v5044
  %v5323 = vmul.f32 %v4740, %v5049
  %v5324 = vmul.f32 %v4743, %v5054
  %v5325 = vmul.f32 %v4746, %v5059
  %v5326 = vmul.f32 %v4749, %v5064
  %v5327 = vmul.f32 %v4752, %v5069
  %v5328 = vmul.f32 %v4755, %v5074
  %v5329 = vmul.f32 %v4758, %v5079
  %v5330 = vmul.f32 %v4761, %v5084
  %v5331 = vmul.f32 %v4764, %v5089
  %v5332 = vmul.f32 %v4767, %v5094
  %v5333 = vmul.f32 %v4770, %v5099
  %v5334 = vmul.f32 %v4773, %v5104
  %v5335 = vmul.f32 %v4776, %v5109
  %v5336 = vmul.f32 %v4779, %v5114
  %v5337 = vmul.f32 %v4782, %v5119
  %v5338 = vmul.f32 %v4785, %v5124
  %v5339 = vmul.f32 %v4788, %v5129
  %v5340 = vmul.f32 %v4791, %v5134
  %v5341 = vmul.f32 %v4794, %v5139
  %v5342 = vmul.f32 %v4797, %v5144
  %v5343 = vmul.f32 %v4800, %v5149
  %v5344 = vmul.f32 %v4803, %v5154
  %v5345 = vmul.f32 %v4806, %v5159
  %v5346 = vmul.f32 %v4809, %v5164
  %v5347 = vmul.f32 %v4812, %v5169
  %v5348 = vmul.f32 %v4815, %v5174
  %v5349 = vmul.f32 %v4818, %v5179
  %v5350 = vmul.f32 %v4821, %v5184
  %v5351 = vmul.f32 %v4824, %v5189
  %v5352 = vmul.f32 %v4827, %v5194
  %v5353 = vmul.f32 %v4830, %v5199
  %v5354 = vmul.f32 %v4833, %v5204
  %v5355 = vmul.f32 %v4836, %v5209
  %v5356 = vmul.f32 %v4839, %v5214
  %v5357 = vmul.f32 %v4842, %v5219
  %v5358 = vmul.f32 %v4845, %v5224
  %v5359 = vmul.f32 %v4848, %v5229
  %v5360 = vmul.f32 %v4851, %v5234
  %v5361 = vmul.f32 %v4854, %v5239
  %v5362 = vmul.f32 %v4857, %v5244
  %v5363 = vmul.f32 %v4860, %v5249
  %v5364 = vmul.f32 %v4863, %v5254
  %v5365 = vmul.f32 %v4866, %v5259
  %v5366 = vmul.f32 %v4869, %v5264
  %v5367 = vmul.f32 %v4872, %v5269
  %v5368 = vmul.f32 %v4875, %v5274
  %v5369 = vmul.f32 %v4878, %v5279
  %v5370 = vmul.f32 %v4881, %v5284
  %v5371 = vmul.f32 %v4884, %v5289
  %v5372 = vsel %vm110, %v5291, 0.0
  %v5373 = vsel %vm110, %v5292, 0.0
  %v5374 = vadd.f32 %v5372, %v5373
  %v5375 = vsel %vm110, %v5293, 0.0
  %v5376 = vadd.f32 %v5374, %v5375
  %v5377 = vsel %vm110, %v5294, 0.0
  %v5378 = vadd.f32 %v5376, %v5377
  %v5379 = vsel %vm110, %v5295, 0.0
  %v5380 = vadd.f32 %v5378, %v5379
  %v5381 = vsel %vm110, %v5296, 0.0
  %v5382 = vadd.f32 %v5380, %v5381
  %v5383 = vsel %vm110, %v5297, 0.0
  %v5384 = vadd.f32 %v5382, %v5383
  %v5385 = vsel %vm110, %v5298, 0.0
  %v5386 = vadd.f32 %v5384, %v5385
  %v5387 = vsel %vm110, %v5299, 0.0
  %v5388 = vadd.f32 %v5386, %v5387
  %v5389 = vsel %vm110, %v5300, 0.0
  %v5390 = vadd.f32 %v5388, %v5389
  %v5391 = vsel %vm110, %v5301, 0.0
  %v5392 = vadd.f32 %v5390, %v5391
  %v5393 = vsel %vm110, %v5302, 0.0
  %v5394 = vadd.f32 %v5392, %v5393
  %v5395 = vsel %vm110, %v5303, 0.0
  %v5396 = vadd.f32 %v5394, %v5395
  %v5397 = vsel %vm110, %v5304, 0.0
  %v5398 = vadd.f32 %v5396, %v5397
  %v5399 = vsel %vm110, %v5305, 0.0
  %v5400 = vadd.f32 %v5398, %v5399
  %v5401 = vsel %vm110, %v5306, 0.0
  %v5402 = vadd.f32 %v5400, %v5401
  %v5403 = vsel %vm110, %v5307, 0.0
  %v5404 = vadd.f32 %v5402, %v5403
  %v5405 = vsel %vm110, %v5308, 0.0
  %v5406 = vadd.f32 %v5404, %v5405
  %v5407 = vsel %vm110, %v5309, 0.0
  %v5408 = vadd.f32 %v5406, %v5407
  %v5409 = vsel %vm110, %v5310, 0.0
  %v5410 = vadd.f32 %v5408, %v5409
  %v5411 = vsel %vm110, %v5311, 0.0
  %v5412 = vadd.f32 %v5410, %v5411
  %v5413 = vsel %vm110, %v5312, 0.0
  %v5414 = vadd.f32 %v5412, %v5413
  %v5415 = vsel %vm110, %v5313, 0.0
  %v5416 = vadd.f32 %v5414, %v5415
  %v5417 = vsel %vm110, %v5314, 0.0
  %v5418 = vadd.f32 %v5416, %v5417
  %v5419 = vsel %vm110, %v5315, 0.0
  %v5420 = vadd.f32 %v5418, %v5419
  %v5421 = vsel %vm110, %v5316, 0.0
  %v5422 = vadd.f32 %v5420, %v5421
  %v5423 = vsel %vm110, %v5317, 0.0
  %v5424 = vadd.f32 %v5422, %v5423
  %v5425 = vsel %vm110, %v5318, 0.0
  %v5426 = vadd.f32 %v5424, %v5425
  %v5427 = vsel %vm110, %v5319, 0.0
  %v5428 = vadd.f32 %v5426, %v5427
  %v5429 = vsel %vm110, %v5320, 0.0
  %v5430 = vadd.f32 %v5428, %v5429
  %v5431 = vsel %vm110, %v5321, 0.0
  %v5432 = vadd.f32 %v5430, %v5431
  %v5433 = vsel %vm110, %v5322, 0.0
  %v5434 = vadd.f32 %v5432, %v5433
  %v5435 = vsel %vm110, %v5323, 0.0
  %v5436 = vadd.f32 %v5434, %v5435
  %v5437 = vsel %vm110, %v5324, 0.0
  %v5438 = vadd.f32 %v5436, %v5437
  %v5439 = vsel %vm110, %v5325, 0.0
  %v5440 = vadd.f32 %v5438, %v5439
  %v5441 = vsel %vm110, %v5326, 0.0
  %v5442 = vadd.f32 %v5440, %v5441
  %v5443 = vsel %vm110, %v5327, 0.0
  %v5444 = vadd.f32 %v5442, %v5443
  %v5445 = vsel %vm110, %v5328, 0.0
  %v5446 = vadd.f32 %v5444, %v5445
  %v5447 = vsel %vm110, %v5329, 0.0
  %v5448 = vadd.f32 %v5446, %v5447
  %v5449 = vsel %vm110, %v5330, 0.0
  %v5450 = vadd.f32 %v5448, %v5449
  %v5451 = vsel %vm110, %v5331, 0.0
  %v5452 = vadd.f32 %v5450, %v5451
  %v5453 = vsel %vm110, %v5332, 0.0
  %v5454 = vadd.f32 %v5452, %v5453
  %v5455 = vsel %vm110, %v5333, 0.0
  %v5456 = vadd.f32 %v5454, %v5455
  %v5457 = vsel %vm110, %v5334, 0.0
  %v5458 = vadd.f32 %v5456, %v5457
  %v5459 = vsel %vm110, %v5335, 0.0
  %v5460 = vadd.f32 %v5458, %v5459
  %v5461 = vsel %vm110, %v5336, 0.0
  %v5462 = vadd.f32 %v5460, %v5461
  %v5463 = vsel %vm110, %v5337, 0.0
  %v5464 = vadd.f32 %v5462, %v5463
  %v5465 = vsel %vm110, %v5338, 0.0
  %v5466 = vadd.f32 %v5464, %v5465
  %v5467 = vsel %vm110, %v5339, 0.0
  %v5468 = vadd.f32 %v5466, %v5467
  %v5469 = vsel %vm110, %v5340, 0.0
  %v5470 = vadd.f32 %v5468, %v5469
  %v5471 = vsel %vm110, %v5341, 0.0
  %v5472 = vadd.f32 %v5470, %v5471
  %v5473 = vsel %vm110, %v5342, 0.0
  %v5474 = vadd.f32 %v5472, %v5473
  %v5475 = vsel %vm110, %v5343, 0.0
  %v5476 = vadd.f32 %v5474, %v5475
  %v5477 = vsel %vm110, %v5344, 0.0
  %v5478 = vadd.f32 %v5476, %v5477
  %v5479 = vsel %vm110, %v5345, 0.0
  %v5480 = vadd.f32 %v5478, %v5479
  %v5481 = vsel %vm110, %v5346, 0.0
  %v5482 = vadd.f32 %v5480, %v5481
  %v5483 = vsel %vm110, %v5347, 0.0
  %v5484 = vadd.f32 %v5482, %v5483
  %v5485 = vsel %vm110, %v5348, 0.0
  %v5486 = vadd.f32 %v5484, %v5485
  %v5487 = vsel %vm110, %v5349, 0.0
  %v5488 = vadd.f32 %v5486, %v5487
  %v5489 = vsel %vm110, %v5350, 0.0
  %v5490 = vadd.f32 %v5488, %v5489
  %v5491 = vsel %vm110, %v5351, 0.0
  %v5492 = vadd.f32 %v5490, %v5491
  %v5493 = vsel %vm110, %v5352, 0.0
  %v5494 = vadd.f32 %v5492, %v5493
  %v5495 = vsel %vm110, %v5353, 0.0
  %v5496 = vadd.f32 %v5494, %v5495
  %v5497 = vsel %vm110, %v5354, 0.0
  %v5498 = vadd.f32 %v5496, %v5497
  %v5499 = vsel %vm110, %v5355, 0.0
  %v5500 = vadd.f32 %v5498, %v5499
  %v5501 = vsel %vm110, %v5356, 0.0
  %v5502 = vadd.f32 %v5500, %v5501
  %v5503 = vsel %vm110, %v5357, 0.0
  %v5504 = vadd.f32 %v5502, %v5503
  %v5505 = vsel %vm110, %v5358, 0.0
  %v5506 = vadd.f32 %v5504, %v5505
  %v5507 = vsel %vm110, %v5359, 0.0
  %v5508 = vadd.f32 %v5506, %v5507
  %v5509 = vsel %vm110, %v5360, 0.0
  %v5510 = vadd.f32 %v5508, %v5509
  %v5511 = vsel %vm110, %v5361, 0.0
  %v5512 = vadd.f32 %v5510, %v5511
  %v5513 = vsel %vm110, %v5362, 0.0
  %v5514 = vadd.f32 %v5512, %v5513
  %v5515 = vsel %vm110, %v5363, 0.0
  %v5516 = vadd.f32 %v5514, %v5515
  %v5517 = vsel %vm110, %v5364, 0.0
  %v5518 = vadd.f32 %v5516, %v5517
  %v5519 = vsel %vm110, %v5365, 0.0
  %v5520 = vadd.f32 %v5518, %v5519
  %v5521 = vsel %vm110, %v5366, 0.0
  %v5522 = vadd.f32 %v5520, %v5521
  %v5523 = vsel %vm110, %v5367, 0.0
  %v5524 = vadd.f32 %v5522, %v5523
  %v5525 = vsel %vm110, %v5368, 0.0
  %v5526 = vadd.f32 %v5524, %v5525
  %v5527 = vsel %vm110, %v5369, 0.0
  %v5528 = vadd.f32 %v5526, %v5527
  %v5529 = vsel %vm110, %v5370, 0.0
  %v5530 = vadd.f32 %v5528, %v5529
  %v5531 = vsel %vm110, %v5371, 0.0
  %v5532 = vadd.f32 %v5530, %v5531
  %v5533 = vrot.slane %v5532, 4
  %v5534 = vadd.f32 %v5532, %v5533
  %v5535 = vrot.slane %v5534, 2
  %v5536 = vadd.f32 %v5534, %v5535
  %v5537 = vrot.slane %v5536, 1
  %v5538 = vadd.f32 %v5536, %v5537
  %v5539 = vmul.f32 %v5291, %v5291
  %v5540 = vmul.f32 %v5292, %v5292
  %v5541 = vmul.f32 %v5293, %v5293
  %v5542 = vmul.f32 %v5294, %v5294
  %v5543 = vmul.f32 %v5295, %v5295
  %v5544 = vmul.f32 %v5296, %v5296
  %v5545 = vmul.f32 %v5297, %v5297
  %v5546 = vmul.f32 %v5298, %v5298
  %v5547 = vmul.f32 %v5299, %v5299
  %v5548 = vmul.f32 %v5300, %v5300
  %v5549 = vmul.f32 %v5301, %v5301
  %v5550 = vmul.f32 %v5302, %v5302
  %v5551 = vmul.f32 %v5303, %v5303
  %v5552 = vmul.f32 %v5304, %v5304
  %v5553 = vmul.f32 %v5305, %v5305
  %v5554 = vmul.f32 %v5306, %v5306
  %v5555 = vmul.f32 %v5307, %v5307
  %v5556 = vmul.f32 %v5308, %v5308
  %v5557 = vmul.f32 %v5309, %v5309
  %v5558 = vmul.f32 %v5310, %v5310
  %v5559 = vmul.f32 %v5311, %v5311
  %v5560 = vmul.f32 %v5312, %v5312
  %v5561 = vmul.f32 %v5313, %v5313
  %v5562 = vmul.f32 %v5314, %v5314
  %v5563 = vmul.f32 %v5315, %v5315
  %v5564 = vmul.f32 %v5316, %v5316
  %v5565 = vmul.f32 %v5317, %v5317
  %v5566 = vmul.f32 %v5318, %v5318
  %v5567 = vmul.f32 %v5319, %v5319
  %v5568 = vmul.f32 %v5320, %v5320
  %v5569 = vmul.f32 %v5321, %v5321
  %v5570 = vmul.f32 %v5322, %v5322
  %v5571 = vmul.f32 %v5323, %v5323
  %v5572 = vmul.f32 %v5324, %v5324
  %v5573 = vmul.f32 %v5325, %v5325
  %v5574 = vmul.f32 %v5326, %v5326
  %v5575 = vmul.f32 %v5327, %v5327
  %v5576 = vmul.f32 %v5328, %v5328
  %v5577 = vmul.f32 %v5329, %v5329
  %v5578 = vmul.f32 %v5330, %v5330
  %v5579 = vmul.f32 %v5331, %v5331
  %v5580 = vmul.f32 %v5332, %v5332
  %v5581 = vmul.f32 %v5333, %v5333
  %v5582 = vmul.f32 %v5334, %v5334
  %v5583 = vmul.f32 %v5335, %v5335
  %v5584 = vmul.f32 %v5336, %v5336
  %v5585 = vmul.f32 %v5337, %v5337
  %v5586 = vmul.f32 %v5338, %v5338
  %v5587 = vmul.f32 %v5339, %v5339
  %v5588 = vmul.f32 %v5340, %v5340
  %v5589 = vmul.f32 %v5341, %v5341
  %v5590 = vmul.f32 %v5342, %v5342
  %v5591 = vmul.f32 %v5343, %v5343
  %v5592 = vmul.f32 %v5344, %v5344
  %v5593 = vmul.f32 %v5345, %v5345
  %v5594 = vmul.f32 %v5346, %v5346
  %v5595 = vmul.f32 %v5347, %v5347
  %v5596 = vmul.f32 %v5348, %v5348
  %v5597 = vmul.f32 %v5349, %v5349
  %v5598 = vmul.f32 %v5350, %v5350
  %v5599 = vmul.f32 %v5351, %v5351
  %v5600 = vmul.f32 %v5352, %v5352
  %v5601 = vmul.f32 %v5353, %v5353
  %v5602 = vmul.f32 %v5354, %v5354
  %v5603 = vmul.f32 %v5355, %v5355
  %v5604 = vmul.f32 %v5356, %v5356
  %v5605 = vmul.f32 %v5357, %v5357
  %v5606 = vmul.f32 %v5358, %v5358
  %v5607 = vmul.f32 %v5359, %v5359
  %v5608 = vmul.f32 %v5360, %v5360
  %v5609 = vmul.f32 %v5361, %v5361
  %v5610 = vmul.f32 %v5362, %v5362
  %v5611 = vmul.f32 %v5363, %v5363
  %v5612 = vmul.f32 %v5364, %v5364
  %v5613 = vmul.f32 %v5365, %v5365
  %v5614 = vmul.f32 %v5366, %v5366
  %v5615 = vmul.f32 %v5367, %v5367
  %v5616 = vmul.f32 %v5368, %v5368
  %v5617 = vmul.f32 %v5369, %v5369
  %v5618 = vmul.f32 %v5370, %v5370
  %v5619 = vmul.f32 %v5371, %v5371
  %v5620 = vsel %vm110, %v5539, 0.0
  %v5621 = vsel %vm110, %v5540, 0.0
  %v5622 = vadd.f32 %v5620, %v5621
  %v5623 = vsel %vm110, %v5541, 0.0
  %v5624 = vadd.f32 %v5622, %v5623
  %v5625 = vsel %vm110, %v5542, 0.0
  %v5626 = vadd.f32 %v5624, %v5625
  %v5627 = vsel %vm110, %v5543, 0.0
  %v5628 = vadd.f32 %v5626, %v5627
  %v5629 = vsel %vm110, %v5544, 0.0
  %v5630 = vadd.f32 %v5628, %v5629
  %v5631 = vsel %vm110, %v5545, 0.0
  %v5632 = vadd.f32 %v5630, %v5631
  %v5633 = vsel %vm110, %v5546, 0.0
  %v5634 = vadd.f32 %v5632, %v5633
  %v5635 = vsel %vm110, %v5547, 0.0
  %v5636 = vadd.f32 %v5634, %v5635
  %v5637 = vsel %vm110, %v5548, 0.0
  %v5638 = vadd.f32 %v5636, %v5637
  %v5639 = vsel %vm110, %v5549, 0.0
  %v5640 = vadd.f32 %v5638, %v5639
  %v5641 = vsel %vm110, %v5550, 0.0
  %v5642 = vadd.f32 %v5640, %v5641
  %v5643 = vsel %vm110, %v5551, 0.0
  %v5644 = vadd.f32 %v5642, %v5643
  %v5645 = vsel %vm110, %v5552, 0.0
  %v5646 = vadd.f32 %v5644, %v5645
  %v5647 = vsel %vm110, %v5553, 0.0
  %v5648 = vadd.f32 %v5646, %v5647
  %v5649 = vsel %vm110, %v5554, 0.0
  %v5650 = vadd.f32 %v5648, %v5649
  %v5651 = vsel %vm110, %v5555, 0.0
  %v5652 = vadd.f32 %v5650, %v5651
  %v5653 = vsel %vm110, %v5556, 0.0
  %v5654 = vadd.f32 %v5652, %v5653
  %v5655 = vsel %vm110, %v5557, 0.0
  %v5656 = vadd.f32 %v5654, %v5655
  %v5657 = vsel %vm110, %v5558, 0.0
  %v5658 = vadd.f32 %v5656, %v5657
  %v5659 = vsel %vm110, %v5559, 0.0
  %v5660 = vadd.f32 %v5658, %v5659
  %v5661 = vsel %vm110, %v5560, 0.0
  %v5662 = vadd.f32 %v5660, %v5661
  %v5663 = vsel %vm110, %v5561, 0.0
  %v5664 = vadd.f32 %v5662, %v5663
  %v5665 = vsel %vm110, %v5562, 0.0
  %v5666 = vadd.f32 %v5664, %v5665
  %v5667 = vsel %vm110, %v5563, 0.0
  %v5668 = vadd.f32 %v5666, %v5667
  %v5669 = vsel %vm110, %v5564, 0.0
  %v5670 = vadd.f32 %v5668, %v5669
  %v5671 = vsel %vm110, %v5565, 0.0
  %v5672 = vadd.f32 %v5670, %v5671
  %v5673 = vsel %vm110, %v5566, 0.0
  %v5674 = vadd.f32 %v5672, %v5673
  %v5675 = vsel %vm110, %v5567, 0.0
  %v5676 = vadd.f32 %v5674, %v5675
  %v5677 = vsel %vm110, %v5568, 0.0
  %v5678 = vadd.f32 %v5676, %v5677
  %v5679 = vsel %vm110, %v5569, 0.0
  %v5680 = vadd.f32 %v5678, %v5679
  %v5681 = vsel %vm110, %v5570, 0.0
  %v5682 = vadd.f32 %v5680, %v5681
  %v5683 = vsel %vm110, %v5571, 0.0
  %v5684 = vadd.f32 %v5682, %v5683
  %v5685 = vsel %vm110, %v5572, 0.0
  %v5686 = vadd.f32 %v5684, %v5685
  %v5687 = vsel %vm110, %v5573, 0.0
  %v5688 = vadd.f32 %v5686, %v5687
  %v5689 = vsel %vm110, %v5574, 0.0
  %v5690 = vadd.f32 %v5688, %v5689
  %v5691 = vsel %vm110, %v5575, 0.0
  %v5692 = vadd.f32 %v5690, %v5691
  %v5693 = vsel %vm110, %v5576, 0.0
  %v5694 = vadd.f32 %v5692, %v5693
  %v5695 = vsel %vm110, %v5577, 0.0
  %v5696 = vadd.f32 %v5694, %v5695
  %v5697 = vsel %vm110, %v5578, 0.0
  %v5698 = vadd.f32 %v5696, %v5697
  %v5699 = vsel %vm110, %v5579, 0.0
  %v5700 = vadd.f32 %v5698, %v5699
  %v5701 = vsel %vm110, %v5580, 0.0
  %v5702 = vadd.f32 %v5700, %v5701
  %v5703 = vsel %vm110, %v5581, 0.0
  %v5704 = vadd.f32 %v5702, %v5703
  %v5705 = vsel %vm110, %v5582, 0.0
  %v5706 = vadd.f32 %v5704, %v5705
  %v5707 = vsel %vm110, %v5583, 0.0
  %v5708 = vadd.f32 %v5706, %v5707
  %v5709 = vsel %vm110, %v5584, 0.0
  %v5710 = vadd.f32 %v5708, %v5709
  %v5711 = vsel %vm110, %v5585, 0.0
  %v5712 = vadd.f32 %v5710, %v5711
  %v5713 = vsel %vm110, %v5586, 0.0
  %v5714 = vadd.f32 %v5712, %v5713
  %v5715 = vsel %vm110, %v5587, 0.0
  %v5716 = vadd.f32 %v5714, %v5715
  %v5717 = vsel %vm110, %v5588, 0.0
  %v5718 = vadd.f32 %v5716, %v5717
  %v5719 = vsel %vm110, %v5589, 0.0
  %v5720 = vadd.f32 %v5718, %v5719
  %v5721 = vsel %vm110, %v5590, 0.0
  %v5722 = vadd.f32 %v5720, %v5721
  %v5723 = vsel %vm110, %v5591, 0.0
  %v5724 = vadd.f32 %v5722, %v5723
  %v5725 = vsel %vm110, %v5592, 0.0
  %v5726 = vadd.f32 %v5724, %v5725
  %v5727 = vsel %vm110, %v5593, 0.0
  %v5728 = vadd.f32 %v5726, %v5727
  %v5729 = vsel %vm110, %v5594, 0.0
  %v5730 = vadd.f32 %v5728, %v5729
  %v5731 = vsel %vm110, %v5595, 0.0
  %v5732 = vadd.f32 %v5730, %v5731
  %v5733 = vsel %vm110, %v5596, 0.0
  %v5734 = vadd.f32 %v5732, %v5733
  %v5735 = vsel %vm110, %v5597, 0.0
  %v5736 = vadd.f32 %v5734, %v5735
  %v5737 = vsel %vm110, %v5598, 0.0
  %v5738 = vadd.f32 %v5736, %v5737
  %v5739 = vsel %vm110, %v5599, 0.0
  %v5740 = vadd.f32 %v5738, %v5739
  %v5741 = vsel %vm110, %v5600, 0.0
  %v5742 = vadd.f32 %v5740, %v5741
  %v5743 = vsel %vm110, %v5601, 0.0
  %v5744 = vadd.f32 %v5742, %v5743
  %v5745 = vsel %vm110, %v5602, 0.0
  %v5746 = vadd.f32 %v5744, %v5745
  %v5747 = vsel %vm110, %v5603, 0.0
  %v5748 = vadd.f32 %v5746, %v5747
  %v5749 = vsel %vm110, %v5604, 0.0
  %v5750 = vadd.f32 %v5748, %v5749
  %v5751 = vsel %vm110, %v5605, 0.0
  %v5752 = vadd.f32 %v5750, %v5751
  %v5753 = vsel %vm110, %v5606, 0.0
  %v5754 = vadd.f32 %v5752, %v5753
  %v5755 = vsel %vm110, %v5607, 0.0
  %v5756 = vadd.f32 %v5754, %v5755
  %v5757 = vsel %vm110, %v5608, 0.0
  %v5758 = vadd.f32 %v5756, %v5757
  %v5759 = vsel %vm110, %v5609, 0.0
  %v5760 = vadd.f32 %v5758, %v5759
  %v5761 = vsel %vm110, %v5610, 0.0
  %v5762 = vadd.f32 %v5760, %v5761
  %v5763 = vsel %vm110, %v5611, 0.0
  %v5764 = vadd.f32 %v5762, %v5763
  %v5765 = vsel %vm110, %v5612, 0.0
  %v5766 = vadd.f32 %v5764, %v5765
  %v5767 = vsel %vm110, %v5613, 0.0
  %v5768 = vadd.f32 %v5766, %v5767
  %v5769 = vsel %vm110, %v5614, 0.0
  %v5770 = vadd.f32 %v5768, %v5769
  %v5771 = vsel %vm110, %v5615, 0.0
  %v5772 = vadd.f32 %v5770, %v5771
  %v5773 = vsel %vm110, %v5616, 0.0
  %v5774 = vadd.f32 %v5772, %v5773
  %v5775 = vsel %vm110, %v5617, 0.0
  %v5776 = vadd.f32 %v5774, %v5775
  %v5777 = vsel %vm110, %v5618, 0.0
  %v5778 = vadd.f32 %v5776, %v5777
  %v5779 = vsel %vm110, %v5619, 0.0
  %v5780 = vadd.f32 %v5778, %v5779
  %v5781 = vrot.slane %v5780, 4
  %v5782 = vadd.f32 %v5780, %v5781
  %v5783 = vrot.slane %v5782, 2
  %v5784 = vadd.f32 %v5782, %v5783
  %v5785 = vrot.slane %v5784, 1
  %v5786 = vadd.f32 %v5784, %v5785
  %v5787 = vmul.f32 %v5538, 0.001953125
  %v5788 = vmul.f32 %v5786, 0.001953125
  %v5789 = vmul.f32 %v5787, %v5787
  %v5790 = vsub.f32 %v5788, %v5789
  %v5791 = vmax.f32 %v5790, 0.0
  %v5792 = vld [vmem:[%s3] sm:$0x1]
  %v5793 = vadd.f32 %v5791, 1e-05
  %v5794 = vrsqrt.pop %v5793
  %v5795 = vmul.f32 %v5794, %v5793
  %v5796 = vmul.f32 %v5795, %v5794
  %v5797 = vmul.f32 0.5, %v5796
  %v5798 = vsub.f32 1.5, %v5797
  %v5799 = vmul.f32 %v5794, %v5798
  %vm5800 = vweird.f32 %v5793
  %vm5801 = vweird.f32 %v5794
  %vm5802 = vmor %vm5800, %vm5801
  %v5803 = vsel %vm5802, %v5794, %v5799
  %v5804 = vmul.f32 %v5792, %v5803
  %v5805 = vld [vmem:[%s4] sm:$0x1]
  %v5806 = vmul.f32 %v5787, %v5804
  %v5807 = vsub.f32 %v5805, %v5806
  %v5809 = vperm.slane %v5804, 0
  %v5811 = vmul.f32 %v5291, %v5809
  %v5812 = vmul.f32 %v5292, %v5809
  %v5813 = vmul.f32 %v5293, %v5809
  %v5814 = vmul.f32 %v5294, %v5809
  %v5815 = vmul.f32 %v5295, %v5809
  %v5816 = vmul.f32 %v5296, %v5809
  %v5817 = vmul.f32 %v5297, %v5809
  %v5818 = vmul.f32 %v5298, %v5809
  %v5819 = vmul.f32 %v5299, %v5809
  %v5820 = vmul.f32 %v5300, %v5809
  %v5821 = vmul.f32 %v5301, %v5809
  %v5822 = vmul.f32 %v5302, %v5809
  %v5823 = vmul.f32 %v5303, %v5809
  %v5824 = vmul.f32 %v5304, %v5809
  %v5825 = vmul.f32 %v5305, %v5809
  %v5826 = vmul.f32 %v5306, %v5809
  %v5827 = vmul.f32 %v5307, %v5809
  %v5828 = vmul.f32 %v5308, %v5809
  %v5829 = vmul.f32 %v5309, %v5809
  %v5830 = vmul.f32 %v5310, %v5809
  %v5831 = vmul.f32 %v5311, %v5809
  %v5832 = vmul.f32 %v5312, %v5809
  %v5833 = vmul.f32 %v5313, %v5809
  %v5834 = vmul.f32 %v5314, %v5809
  %v5835 = vmul.f32 %v5315, %v5809
  %v5836 = vmul.f32 %v5316, %v5809
  %v5837 = vmul.f32 %v5317, %v5809
  %v5838 = vmul.f32 %v5318, %v5809
  %v5839 = vmul.f32 %v5319, %v5809
  %v5840 = vmul.f32 %v5320, %v5809
  %v5841 = vmul.f32 %v5321, %v5809
  %v5842 = vmul.f32 %v5322, %v5809
  %v5843 = vmul.f32 %v5323, %v5809
  %v5844 = vmul.f32 %v5324, %v5809
  %v5845 = vmul.f32 %v5325, %v5809
  %v5846 = vmul.f32 %v5326, %v5809
  %v5847 = vmul.f32 %v5327, %v5809
  %v5848 = vmul.f32 %v5328, %v5809
  %v5849 = vmul.f32 %v5329, %v5809
  %v5850 = vmul.f32 %v5330, %v5809
  %v5851 = vmul.f32 %v5331, %v5809
  %v5852 = vmul.f32 %v5332, %v5809
  %v5853 = vmul.f32 %v5333, %v5809
  %v5854 = vmul.f32 %v5334, %v5809
  %v5855 = vmul.f32 %v5335, %v5809
  %v5856 = vmul.f32 %v5336, %v5809
  %v5857 = vmul.f32 %v5337, %v5809
  %v5858 = vmul.f32 %v5338, %v5809
  %v5859 = vmul.f32 %v5339, %v5809
  %v5860 = vmul.f32 %v5340, %v5809
  %v5861 = vmul.f32 %v5341, %v5809
  %v5862 = vmul.f32 %v5342, %v5809
  %v5863 = vmul.f32 %v5343, %v5809
  %v5864 = vmul.f32 %v5344, %v5809
  %v5865 = vmul.f32 %v5345, %v5809
  %v5866 = vmul.f32 %v5346, %v5809
  %v5867 = vmul.f32 %v5347, %v5809
  %v5868 = vmul.f32 %v5348, %v5809
  %v5869 = vmul.f32 %v5349, %v5809
  %v5870 = vmul.f32 %v5350, %v5809
  %v5871 = vmul.f32 %v5351, %v5809
  %v5872 = vmul.f32 %v5352, %v5809
  %v5873 = vmul.f32 %v5353, %v5809
  %v5874 = vmul.f32 %v5354, %v5809
  %v5875 = vmul.f32 %v5355, %v5809
  %v5876 = vmul.f32 %v5356, %v5809
  %v5877 = vmul.f32 %v5357, %v5809
  %v5878 = vmul.f32 %v5358, %v5809
  %v5879 = vmul.f32 %v5359, %v5809
  %v5880 = vmul.f32 %v5360, %v5809
  %v5881 = vmul.f32 %v5361, %v5809
  %v5882 = vmul.f32 %v5362, %v5809
  %v5883 = vmul.f32 %v5363, %v5809
  %v5884 = vmul.f32 %v5364, %v5809
  %v5885 = vmul.f32 %v5365, %v5809
  %v5886 = vmul.f32 %v5366, %v5809
  %v5887 = vmul.f32 %v5367, %v5809
  %v5888 = vmul.f32 %v5368, %v5809
  %v5889 = vmul.f32 %v5369, %v5809
  %v5890 = vmul.f32 %v5370, %v5809
  %v5891 = vmul.f32 %v5371, %v5809
  %v5893 = vperm.slane %v5807, 0
  %v5895 = vadd.f32 %v5811, %v5893
  %v5896 = vadd.f32 %v5812, %v5893
  %v5897 = vadd.f32 %v5813, %v5893
  %v5898 = vadd.f32 %v5814, %v5893
  %v5899 = vadd.f32 %v5815, %v5893
  %v5900 = vadd.f32 %v5816, %v5893
  %v5901 = vadd.f32 %v5817, %v5893
  %v5902 = vadd.f32 %v5818, %v5893
  %v5903 = vadd.f32 %v5819, %v5893
  %v5904 = vadd.f32 %v5820, %v5893
  %v5905 = vadd.f32 %v5821, %v5893
  %v5906 = vadd.f32 %v5822, %v5893
  %v5907 = vadd.f32 %v5823, %v5893
  %v5908 = vadd.f32 %v5824, %v5893
  %v5909 = vadd.f32 %v5825, %v5893
  %v5910 = vadd.f32 %v5826, %v5893
  %v5911 = vadd.f32 %v5827, %v5893
  %v5912 = vadd.f32 %v5828, %v5893
  %v5913 = vadd.f32 %v5829, %v5893
  %v5914 = vadd.f32 %v5830, %v5893
  %v5915 = vadd.f32 %v5831, %v5893
  %v5916 = vadd.f32 %v5832, %v5893
  %v5917 = vadd.f32 %v5833, %v5893
  %v5918 = vadd.f32 %v5834, %v5893
  %v5919 = vadd.f32 %v5835, %v5893
  %v5920 = vadd.f32 %v5836, %v5893
  %v5921 = vadd.f32 %v5837, %v5893
  %v5922 = vadd.f32 %v5838, %v5893
  %v5923 = vadd.f32 %v5839, %v5893
  %v5924 = vadd.f32 %v5840, %v5893
  %v5925 = vadd.f32 %v5841, %v5893
  %v5926 = vadd.f32 %v5842, %v5893
  %v5927 = vadd.f32 %v5843, %v5893
  %v5928 = vadd.f32 %v5844, %v5893
  %v5929 = vadd.f32 %v5845, %v5893
  %v5930 = vadd.f32 %v5846, %v5893
  %v5931 = vadd.f32 %v5847, %v5893
  %v5932 = vadd.f32 %v5848, %v5893
  %v5933 = vadd.f32 %v5849, %v5893
  %v5934 = vadd.f32 %v5850, %v5893
  %v5935 = vadd.f32 %v5851, %v5893
  %v5936 = vadd.f32 %v5852, %v5893
  %v5937 = vadd.f32 %v5853, %v5893
  %v5938 = vadd.f32 %v5854, %v5893
  %v5939 = vadd.f32 %v5855, %v5893
  %v5940 = vadd.f32 %v5856, %v5893
  %v5941 = vadd.f32 %v5857, %v5893
  %v5942 = vadd.f32 %v5858, %v5893
  %v5943 = vadd.f32 %v5859, %v5893
  %v5944 = vadd.f32 %v5860, %v5893
  %v5945 = vadd.f32 %v5861, %v5893
  %v5946 = vadd.f32 %v5862, %v5893
  %v5947 = vadd.f32 %v5863, %v5893
  %v5948 = vadd.f32 %v5864, %v5893
  %v5949 = vadd.f32 %v5865, %v5893
  %v5950 = vadd.f32 %v5866, %v5893
  %v5951 = vadd.f32 %v5867, %v5893
  %v5952 = vadd.f32 %v5868, %v5893
  %v5953 = vadd.f32 %v5869, %v5893
  %v5954 = vadd.f32 %v5870, %v5893
  %v5955 = vadd.f32 %v5871, %v5893
  %v5956 = vadd.f32 %v5872, %v5893
  %v5957 = vadd.f32 %v5873, %v5893
  %v5958 = vadd.f32 %v5874, %v5893
  %v5959 = vadd.f32 %v5875, %v5893
  %v5960 = vadd.f32 %v5876, %v5893
  %v5961 = vadd.f32 %v5877, %v5893
  %v5962 = vadd.f32 %v5878, %v5893
  %v5963 = vadd.f32 %v5879, %v5893
  %v5964 = vadd.f32 %v5880, %v5893
  %v5965 = vadd.f32 %v5881, %v5893
  %v5966 = vadd.f32 %v5882, %v5893
  %v5967 = vadd.f32 %v5883, %v5893
  %v5968 = vadd.f32 %v5884, %v5893
  %v5969 = vadd.f32 %v5885, %v5893
  %v5970 = vadd.f32 %v5886, %v5893
  %v5971 = vadd.f32 %v5887, %v5893
  %v5972 = vadd.f32 %v5888, %v5893
  %v5973 = vadd.f32 %v5889, %v5893
  %v5974 = vadd.f32 %v5890, %v5893
  %v5975 = vadd.f32 %v5891, %v5893
  %v5976 = vmax.f32 %v5895, 0.0
  %v5977 = vmax.f32 %v5896, 0.0
  %v5978 = vmax.f32 %v5897, 0.0
  %v5979 = vmax.f32 %v5898, 0.0
  %v5980 = vmax.f32 %v5899, 0.0
  %v5981 = vmax.f32 %v5900, 0.0
  %v5982 = vmax.f32 %v5901, 0.0
  %v5983 = vmax.f32 %v5902, 0.0
  %v5984 = vmax.f32 %v5903, 0.0
  %v5985 = vmax.f32 %v5904, 0.0
  %v5986 = vmax.f32 %v5905, 0.0
  %v5987 = vmax.f32 %v5906, 0.0
  %v5988 = vmax.f32 %v5907, 0.0
  %v5989 = vmax.f32 %v5908, 0.0
  %v5990 = vmax.f32 %v5909, 0.0
  %v5991 = vmax.f32 %v5910, 0.0
  %v5992 = vmax.f32 %v5911, 0.0
  %v5993 = vmax.f32 %v5912, 0.0
  %v5994 = vmax.f32 %v5913, 0.0
  %v5995 = vmax.f32 %v5914, 0.0
  %v5996 = vmax.f32 %v5915, 0.0
  %v5997 = vmax.f32 %v5916, 0.0
  %v5998 = vmax.f32 %v5917, 0.0
  %v5999 = vmax.f32 %v5918, 0.0
  %v6000 = vmax.f32 %v5919, 0.0
  %v6001 = vmax.f32 %v5920, 0.0
  %v6002 = vmax.f32 %v5921, 0.0
  %v6003 = vmax.f32 %v5922, 0.0
  %v6004 = vmax.f32 %v5923, 0.0
  %v6005 = vmax.f32 %v5924, 0.0
  %v6006 = vmax.f32 %v5925, 0.0
  %v6007 = vmax.f32 %v5926, 0.0
  %v6008 = vmax.f32 %v5927, 0.0
  %v6009 = vmax.f32 %v5928, 0.0
  %v6010 = vmax.f32 %v5929, 0.0
  %v6011 = vmax.f32 %v5930, 0.0
  %v6012 = vmax.f32 %v5931, 0.0
  %v6013 = vmax.f32 %v5932, 0.0
  %v6014 = vmax.f32 %v5933, 0.0
  %v6015 = vmax.f32 %v5934, 0.0
  %v6016 = vmax.f32 %v5935, 0.0
  %v6017 = vmax.f32 %v5936, 0.0
  %v6018 = vmax.f32 %v5937, 0.0
  %v6019 = vmax.f32 %v5938, 0.0
  %v6020 = vmax.f32 %v5939, 0.0
  %v6021 = vmax.f32 %v5940, 0.0
  %v6022 = vmax.f32 %v5941, 0.0
  %v6023 = vmax.f32 %v5942, 0.0
  %v6024 = vmax.f32 %v5943, 0.0
  %v6025 = vmax.f32 %v5944, 0.0
  %v6026 = vmax.f32 %v5945, 0.0
  %v6027 = vmax.f32 %v5946, 0.0
  %v6028 = vmax.f32 %v5947, 0.0
  %v6029 = vmax.f32 %v5948, 0.0
  %v6030 = vmax.f32 %v5949, 0.0
  %v6031 = vmax.f32 %v5950, 0.0
  %v6032 = vmax.f32 %v5951, 0.0
  %v6033 = vmax.f32 %v5952, 0.0
  %v6034 = vmax.f32 %v5953, 0.0
  %v6035 = vmax.f32 %v5954, 0.0
  %v6036 = vmax.f32 %v5955, 0.0
  %v6037 = vmax.f32 %v5956, 0.0
  %v6038 = vmax.f32 %v5957, 0.0
  %v6039 = vmax.f32 %v5958, 0.0
  %v6040 = vmax.f32 %v5959, 0.0
  %v6041 = vmax.f32 %v5960, 0.0
  %v6042 = vmax.f32 %v5961, 0.0
  %v6043 = vmax.f32 %v5962, 0.0
  %v6044 = vmax.f32 %v5963, 0.0
  %v6045 = vmax.f32 %v5964, 0.0
  %v6046 = vmax.f32 %v5965, 0.0
  %v6047 = vmax.f32 %v5966, 0.0
  %v6048 = vmax.f32 %v5967, 0.0
  %v6049 = vmax.f32 %v5968, 0.0
  %v6050 = vmax.f32 %v5969, 0.0
  %v6051 = vmax.f32 %v5970, 0.0
  %v6052 = vmax.f32 %v5971, 0.0
  %v6053 = vmax.f32 %v5972, 0.0
  %v6054 = vmax.f32 %v5973, 0.0
  %v6055 = vmax.f32 %v5974, 0.0
  %v6056 = vmax.f32 %v5975, 0.0
  %v6057 = vmul.f32 %v5976, %v4889
  %v6058 = vmul.f32 %v5977, %v4894
  %v6059 = vmul.f32 %v5978, %v4899
  %v6060 = vmul.f32 %v5979, %v4904
  %v6061 = vmul.f32 %v5980, %v4909
  %v6062 = vmul.f32 %v5981, %v4914
  %v6063 = vmul.f32 %v5982, %v4919
  %v6064 = vmul.f32 %v5983, %v4924
  %v6065 = vmul.f32 %v5984, %v4929
  %v6066 = vmul.f32 %v5985, %v4934
  %v6067 = vmul.f32 %v5986, %v4939
  %v6068 = vmul.f32 %v5987, %v4944
  %v6069 = vmul.f32 %v5988, %v4949
  %v6070 = vmul.f32 %v5989, %v4954
  %v6071 = vmul.f32 %v5990, %v4959
  %v6072 = vmul.f32 %v5991, %v4964
  %v6073 = vmul.f32 %v5992, %v4969
  %v6074 = vmul.f32 %v5993, %v4974
  %v6075 = vmul.f32 %v5994, %v4979
  %v6076 = vmul.f32 %v5995, %v4984
  %v6077 = vmul.f32 %v5996, %v4989
  %v6078 = vmul.f32 %v5997, %v4994
  %v6079 = vmul.f32 %v5998, %v4999
  %v6080 = vmul.f32 %v5999, %v5004
  %v6081 = vmul.f32 %v6000, %v5009
  %v6082 = vmul.f32 %v6001, %v5014
  %v6083 = vmul.f32 %v6002, %v5019
  %v6084 = vmul.f32 %v6003, %v5024
  %v6085 = vmul.f32 %v6004, %v5029
  %v6086 = vmul.f32 %v6005, %v5034
  %v6087 = vmul.f32 %v6006, %v5039
  %v6088 = vmul.f32 %v6007, %v5044
  %v6089 = vmul.f32 %v6008, %v5049
  %v6090 = vmul.f32 %v6009, %v5054
  %v6091 = vmul.f32 %v6010, %v5059
  %v6092 = vmul.f32 %v6011, %v5064
  %v6093 = vmul.f32 %v6012, %v5069
  %v6094 = vmul.f32 %v6013, %v5074
  %v6095 = vmul.f32 %v6014, %v5079
  %v6096 = vmul.f32 %v6015, %v5084
  %v6097 = vmul.f32 %v6016, %v5089
  %v6098 = vmul.f32 %v6017, %v5094
  %v6099 = vmul.f32 %v6018, %v5099
  %v6100 = vmul.f32 %v6019, %v5104
  %v6101 = vmul.f32 %v6020, %v5109
  %v6102 = vmul.f32 %v6021, %v5114
  %v6103 = vmul.f32 %v6022, %v5119
  %v6104 = vmul.f32 %v6023, %v5124
  %v6105 = vmul.f32 %v6024, %v5129
  %v6106 = vmul.f32 %v6025, %v5134
  %v6107 = vmul.f32 %v6026, %v5139
  %v6108 = vmul.f32 %v6027, %v5144
  %v6109 = vmul.f32 %v6028, %v5149
  %v6110 = vmul.f32 %v6029, %v5154
  %v6111 = vmul.f32 %v6030, %v5159
  %v6112 = vmul.f32 %v6031, %v5164
  %v6113 = vmul.f32 %v6032, %v5169
  %v6114 = vmul.f32 %v6033, %v5174
  %v6115 = vmul.f32 %v6034, %v5179
  %v6116 = vmul.f32 %v6035, %v5184
  %v6117 = vmul.f32 %v6036, %v5189
  %v6118 = vmul.f32 %v6037, %v5194
  %v6119 = vmul.f32 %v6038, %v5199
  %v6120 = vmul.f32 %v6039, %v5204
  %v6121 = vmul.f32 %v6040, %v5209
  %v6122 = vmul.f32 %v6041, %v5214
  %v6123 = vmul.f32 %v6042, %v5219
  %v6124 = vmul.f32 %v6043, %v5224
  %v6125 = vmul.f32 %v6044, %v5229
  %v6126 = vmul.f32 %v6045, %v5234
  %v6127 = vmul.f32 %v6046, %v5239
  %v6128 = vmul.f32 %v6047, %v5244
  %v6129 = vmul.f32 %v6048, %v5249
  %v6130 = vmul.f32 %v6049, %v5254
  %v6131 = vmul.f32 %v6050, %v5259
  %v6132 = vmul.f32 %v6051, %v5264
  %v6133 = vmul.f32 %v6052, %v5269
  %v6134 = vmul.f32 %v6053, %v5274
  %v6135 = vmul.f32 %v6054, %v5279
  %v6136 = vmul.f32 %v6055, %v5284
  %v6137 = vmul.f32 %v6056, %v5289
  %v6138 = vld [vmem:[%s5] sm:$0xff]
  %v6139 = vld [vmem:[%s5 + $0x8] sm:$0xff]
  %v6140 = vld [vmem:[%s5 + $0x10] sm:$0xff]
  %v6141 = vld [vmem:[%s5 + $0x18] sm:$0xff]
  %v6142 = vld [vmem:[%s5 + $0x20] sm:$0xff]
  %v6143 = vld [vmem:[%s5 + $0x28] sm:$0xff]
  %v6144 = vld [vmem:[%s5 + $0x30] sm:$0xff]
  %v6145 = vld [vmem:[%s5 + $0x38] sm:$0xff]
  %v6146 = vld [vmem:[%s5 + $0x40] sm:$0xff]
  %v6147 = vld [vmem:[%s5 + $0x48] sm:$0xff]
  %v6148 = vld [vmem:[%s5 + $0x50] sm:$0xff]
  %v6149 = vld [vmem:[%s5 + $0x58] sm:$0xff]
  %v6150 = vld [vmem:[%s5 + $0x60] sm:$0xff]
  %v6151 = vld [vmem:[%s5 + $0x68] sm:$0xff]
  %v6152 = vld [vmem:[%s5 + $0x70] sm:$0xff]
  %v6153 = vld [vmem:[%s5 + $0x78] sm:$0xff]
  %v6155 = vsel %vm110, %v6057, 0
  %v6158 = vsel %vm110, %v6058, 0
  %v6161 = vsel %vm110, %v6059, 0
  %v6164 = vsel %vm110, %v6060, 0
  %v6167 = vsel %vm110, %v6061, 0
  %v6170 = vsel %vm110, %v6062, 0
  %v6173 = vsel %vm110, %v6063, 0
  %v6176 = vsel %vm110, %v6064, 0
  %v6179 = vsel %vm110, %v6065, 0
  %v6182 = vsel %vm110, %v6066, 0
  %v6185 = vsel %vm110, %v6067, 0
  %v6188 = vsel %vm110, %v6068, 0
  %v6191 = vsel %vm110, %v6069, 0
  %v6194 = vsel %vm110, %v6070, 0
  %v6197 = vsel %vm110, %v6071, 0
  %v6200 = vsel %vm110, %v6072, 0
  %v6203 = vsel %vm110, %v6073, 0
  %v6206 = vsel %vm110, %v6074, 0
  %v6209 = vsel %vm110, %v6075, 0
  %v6212 = vsel %vm110, %v6076, 0
  %v6215 = vsel %vm110, %v6077, 0
  %v6218 = vsel %vm110, %v6078, 0
  %v6221 = vsel %vm110, %v6079, 0
  %v6224 = vsel %vm110, %v6080, 0
  %v6227 = vsel %vm110, %v6081, 0
  %v6230 = vsel %vm110, %v6082, 0
  %v6233 = vsel %vm110, %v6083, 0
  %v6236 = vsel %vm110, %v6084, 0
  %v6239 = vsel %vm110, %v6085, 0
  %v6242 = vsel %vm110, %v6086, 0
  %v6245 = vsel %vm110, %v6087, 0
  %v6248 = vsel %vm110, %v6088, 0
  %v6251 = vsel %vm110, %v6089, 0
  %v6254 = vsel %vm110, %v6090, 0
  %v6257 = vsel %vm110, %v6091, 0
  %v6260 = vsel %vm110, %v6092, 0
  %v6263 = vsel %vm110, %v6093, 0
  %v6266 = vsel %vm110, %v6094, 0
  %v6269 = vsel %vm110, %v6095, 0
  %v6272 = vsel %vm110, %v6096, 0
  %v6275 = vsel %vm110, %v6097, 0
  %v6278 = vsel %vm110, %v6098, 0
  %v6281 = vsel %vm110, %v6099, 0
  %v6284 = vsel %vm110, %v6100, 0
  %v6287 = vsel %vm110, %v6101, 0
  %v6290 = vsel %vm110, %v6102, 0
  %v6293 = vsel %vm110, %v6103, 0
  %v6296 = vsel %vm110, %v6104, 0
  %v6299 = vsel %vm110, %v6105, 0
  %v6302 = vsel %vm110, %v6106, 0
  %v6305 = vsel %vm110, %v6107, 0
  %v6308 = vsel %vm110, %v6108, 0
  %v6311 = vsel %vm110, %v6109, 0
  %v6314 = vsel %vm110, %v6110, 0
  %v6317 = vsel %vm110, %v6111, 0
  %v6320 = vsel %vm110, %v6112, 0
  %v6323 = vsel %vm110, %v6113, 0
  %v6326 = vsel %vm110, %v6114, 0
  %v6329 = vsel %vm110, %v6115, 0
  %v6332 = vsel %vm110, %v6116, 0
  %v6335 = vsel %vm110, %v6117, 0
  %v6338 = vsel %vm110, %v6118, 0
  %v6341 = vsel %vm110, %v6119, 0
  %v6344 = vsel %vm110, %v6120, 0
  %v6347 = vsel %vm110, %v6121, 0
  %v6350 = vsel %vm110, %v6122, 0
  %v6353 = vsel %vm110, %v6123, 0
  %v6356 = vsel %vm110, %v6124, 0
  %v6359 = vsel %vm110, %v6125, 0
  %v6362 = vsel %vm110, %v6126, 0
  %v6365 = vsel %vm110, %v6127, 0
  %v6368 = vsel %vm110, %v6128, 0
  %v6371 = vsel %vm110, %v6129, 0
  %v6374 = vsel %vm110, %v6130, 0
  %v6377 = vsel %vm110, %v6131, 0
  %v6380 = vsel %vm110, %v6132, 0
  %v6383 = vsel %vm110, %v6133, 0
  %v6386 = vsel %vm110, %v6134, 0
  %v6389 = vsel %vm110, %v6135, 0
  %v6392 = vsel %vm110, %v6136, 0
  %v6395 = vsel %vm110, %v6137, 0
  %6397 = vmatpush.msra.mxu0 0.0
  %6398 = vmatpush.msra.mxu0 0.0
  %6399 = vmatpush.msra.mxu0 0.0
  %6400 = vmatpush.msra.mxu0 0.0
  %6401 = vmatpush.msra.mxu0 0.0
  %6402 = vmatpush.msra.mxu0 0.0
  %6403 = vmatpush.msra.mxu0 0.0
  %6404 = vmatpush.msra.mxu0 0.0
  %6405 = vmatpush.msra.mxu0 %v6152
  %6406 = vmatpush.msra.mxu0 %v6150
  %6407 = vmatpush.msra.mxu0 %v6148
  %6408 = vmatpush.msra.mxu0 %v6146
  %6409 = vmatpush.msra.mxu0 %v6144
  %6410 = vmatpush.msra.mxu0 %v6142
  %6411 = vmatpush.msra.mxu0 %v6140
  %6412 = vmatpush.msra.mxu0 %v6138
  %6413 = vmatmul.f32.gmra.mxu0 %v6155
  %v6414 = vpop.f32.mrf.mxu0
  %v6415 = vadd.f32 0.0, %v6414
  %6416 = vmatmul.f32.gmra.mxu0 %v6158
  %v6417 = vpop.f32.mrf.mxu0
  %v6418 = vadd.f32 0.0, %v6417
  %6419 = vmatmul.f32.gmra.mxu0 %v6161
  %v6420 = vpop.f32.mrf.mxu0
  %v6421 = vadd.f32 0.0, %v6420
  %6422 = vmatmul.f32.gmra.mxu0 %v6164
  %v6423 = vpop.f32.mrf.mxu0
  %v6424 = vadd.f32 0.0, %v6423
  %6425 = vmatmul.f32.gmra.mxu0 %v6167
  %v6426 = vpop.f32.mrf.mxu0
  %v6427 = vadd.f32 0.0, %v6426
  %6428 = vmatmul.f32.gmra.mxu0 %v6170
  %v6429 = vpop.f32.mrf.mxu0
  %v6430 = vadd.f32 0.0, %v6429
  %6431 = vmatmul.f32.gmra.mxu0 %v6173
  %v6432 = vpop.f32.mrf.mxu0
  %v6433 = vadd.f32 0.0, %v6432
  %6434 = vmatmul.f32.gmra.mxu0 %v6176
  %v6435 = vpop.f32.mrf.mxu0
  %v6436 = vadd.f32 0.0, %v6435
  %6437 = vmatmul.f32.gmra.mxu0 %v6179
  %v6438 = vpop.f32.mrf.mxu0
  %v6439 = vadd.f32 0.0, %v6438
  %6440 = vmatmul.f32.gmra.mxu0 %v6182
  %v6441 = vpop.f32.mrf.mxu0
  %v6442 = vadd.f32 0.0, %v6441
  %6443 = vmatmul.f32.gmra.mxu0 %v6185
  %v6444 = vpop.f32.mrf.mxu0
  %v6445 = vadd.f32 0.0, %v6444
  %6446 = vmatmul.f32.gmra.mxu0 %v6188
  %v6447 = vpop.f32.mrf.mxu0
  %v6448 = vadd.f32 0.0, %v6447
  %6449 = vmatmul.f32.gmra.mxu0 %v6191
  %v6450 = vpop.f32.mrf.mxu0
  %v6451 = vadd.f32 0.0, %v6450
  %6452 = vmatmul.f32.gmra.mxu0 %v6194
  %v6453 = vpop.f32.mrf.mxu0
  %v6454 = vadd.f32 0.0, %v6453
  %6455 = vmatmul.f32.gmra.mxu0 %v6197
  %v6456 = vpop.f32.mrf.mxu0
  %v6457 = vadd.f32 0.0, %v6456
  %6458 = vmatmul.f32.gmra.mxu0 %v6200
  %v6459 = vpop.f32.mrf.mxu0
  %v6460 = vadd.f32 0.0, %v6459
  %6461 = vmatmul.f32.gmra.mxu0 %v6203
  %v6462 = vpop.f32.mrf.mxu0
  %v6463 = vadd.f32 0.0, %v6462
  %6464 = vmatmul.f32.gmra.mxu0 %v6206
  %v6465 = vpop.f32.mrf.mxu0
  %v6466 = vadd.f32 0.0, %v6465
  %6467 = vmatmul.f32.gmra.mxu0 %v6209
  %v6468 = vpop.f32.mrf.mxu0
  %v6469 = vadd.f32 0.0, %v6468
  %6470 = vmatmul.f32.gmra.mxu0 %v6212
  %v6471 = vpop.f32.mrf.mxu0
  %v6472 = vadd.f32 0.0, %v6471
  %6473 = vmatmul.f32.gmra.mxu0 %v6215
  %v6474 = vpop.f32.mrf.mxu0
  %v6475 = vadd.f32 0.0, %v6474
  %6476 = vmatmul.f32.gmra.mxu0 %v6218
  %v6477 = vpop.f32.mrf.mxu0
  %v6478 = vadd.f32 0.0, %v6477
  %6479 = vmatmul.f32.gmra.mxu0 %v6221
  %v6480 = vpop.f32.mrf.mxu0
  %v6481 = vadd.f32 0.0, %v6480
  %6482 = vmatmul.f32.gmra.mxu0 %v6224
  %v6483 = vpop.f32.mrf.mxu0
  %v6484 = vadd.f32 0.0, %v6483
  %6485 = vmatmul.f32.gmra.mxu0 %v6227
  %v6486 = vpop.f32.mrf.mxu0
  %v6487 = vadd.f32 0.0, %v6486
  %6488 = vmatmul.f32.gmra.mxu0 %v6230
  %v6489 = vpop.f32.mrf.mxu0
  %v6490 = vadd.f32 0.0, %v6489
  %6491 = vmatmul.f32.gmra.mxu0 %v6233
  %v6492 = vpop.f32.mrf.mxu0
  %v6493 = vadd.f32 0.0, %v6492
  %6494 = vmatmul.f32.gmra.mxu0 %v6236
  %v6495 = vpop.f32.mrf.mxu0
  %v6496 = vadd.f32 0.0, %v6495
  %6497 = vmatmul.f32.gmra.mxu0 %v6239
  %v6498 = vpop.f32.mrf.mxu0
  %v6499 = vadd.f32 0.0, %v6498
  %6500 = vmatmul.f32.gmra.mxu0 %v6242
  %v6501 = vpop.f32.mrf.mxu0
  %v6502 = vadd.f32 0.0, %v6501
  %6503 = vmatmul.f32.gmra.mxu0 %v6245
  %v6504 = vpop.f32.mrf.mxu0
  %v6505 = vadd.f32 0.0, %v6504
  %6506 = vmatmul.f32.gmra.mxu0 %v6248
  %v6507 = vpop.f32.mrf.mxu0
  %v6508 = vadd.f32 0.0, %v6507
  %6509 = vmatmul.f32.gmra.mxu0 %v6251
  %v6510 = vpop.f32.mrf.mxu0
  %v6511 = vadd.f32 0.0, %v6510
  %6512 = vmatmul.f32.gmra.mxu0 %v6254
  %v6513 = vpop.f32.mrf.mxu0
  %v6514 = vadd.f32 0.0, %v6513
  %6515 = vmatmul.f32.gmra.mxu0 %v6257
  %v6516 = vpop.f32.mrf.mxu0
  %v6517 = vadd.f32 0.0, %v6516
  %6518 = vmatmul.f32.gmra.mxu0 %v6260
  %v6519 = vpop.f32.mrf.mxu0
  %v6520 = vadd.f32 0.0, %v6519
  %6521 = vmatmul.f32.gmra.mxu0 %v6263
  %v6522 = vpop.f32.mrf.mxu0
  %v6523 = vadd.f32 0.0, %v6522
  %6524 = vmatmul.f32.gmra.mxu0 %v6266
  %v6525 = vpop.f32.mrf.mxu0
  %v6526 = vadd.f32 0.0, %v6525
  %6527 = vmatmul.f32.gmra.mxu0 %v6269
  %v6528 = vpop.f32.mrf.mxu0
  %v6529 = vadd.f32 0.0, %v6528
  %6530 = vmatmul.f32.gmra.mxu0 %v6272
  %v6531 = vpop.f32.mrf.mxu0
  %v6532 = vadd.f32 0.0, %v6531
  %6533 = vmatmul.f32.gmra.mxu0 %v6275
  %v6534 = vpop.f32.mrf.mxu0
  %v6535 = vadd.f32 0.0, %v6534
  %6536 = vmatmul.f32.gmra.mxu0 %v6278
  %v6537 = vpop.f32.mrf.mxu0
  %v6538 = vadd.f32 0.0, %v6537
  %6539 = vmatmul.f32.gmra.mxu0 %v6281
  %v6540 = vpop.f32.mrf.mxu0
  %v6541 = vadd.f32 0.0, %v6540
  %6542 = vmatmul.f32.gmra.mxu0 %v6284
  %v6543 = vpop.f32.mrf.mxu0
  %v6544 = vadd.f32 0.0, %v6543
  %6545 = vmatmul.f32.gmra.mxu0 %v6287
  %v6546 = vpop.f32.mrf.mxu0
  %v6547 = vadd.f32 0.0, %v6546
  %6548 = vmatmul.f32.gmra.mxu0 %v6290
  %v6549 = vpop.f32.mrf.mxu0
  %v6550 = vadd.f32 0.0, %v6549
  %6551 = vmatmul.f32.gmra.mxu0 %v6293
  %v6552 = vpop.f32.mrf.mxu0
  %v6553 = vadd.f32 0.0, %v6552
  %6554 = vmatmul.f32.gmra.mxu0 %v6296
  %v6555 = vpop.f32.mrf.mxu0
  %v6556 = vadd.f32 0.0, %v6555
  %6557 = vmatmul.f32.gmra.mxu0 %v6299
  %v6558 = vpop.f32.mrf.mxu0
  %v6559 = vadd.f32 0.0, %v6558
  %6560 = vmatmul.f32.gmra.mxu0 %v6302
  %v6561 = vpop.f32.mrf.mxu0
  %v6562 = vadd.f32 0.0, %v6561
  %6563 = vmatmul.f32.gmra.mxu0 %v6305
  %v6564 = vpop.f32.mrf.mxu0
  %v6565 = vadd.f32 0.0, %v6564
  %6566 = vmatmul.f32.gmra.mxu0 %v6308
  %v6567 = vpop.f32.mrf.mxu0
  %v6568 = vadd.f32 0.0, %v6567
  %6569 = vmatmul.f32.gmra.mxu0 %v6311
  %v6570 = vpop.f32.mrf.mxu0
  %v6571 = vadd.f32 0.0, %v6570
  %6572 = vmatmul.f32.gmra.mxu0 %v6314
  %v6573 = vpop.f32.mrf.mxu0
  %v6574 = vadd.f32 0.0, %v6573
  %6575 = vmatmul.f32.gmra.mxu0 %v6317
  %v6576 = vpop.f32.mrf.mxu0
  %v6577 = vadd.f32 0.0, %v6576
  %6578 = vmatmul.f32.gmra.mxu0 %v6320
  %v6579 = vpop.f32.mrf.mxu0
  %v6580 = vadd.f32 0.0, %v6579
  %6581 = vmatmul.f32.gmra.mxu0 %v6323
  %v6582 = vpop.f32.mrf.mxu0
  %v6583 = vadd.f32 0.0, %v6582
  %6584 = vmatmul.f32.gmra.mxu0 %v6326
  %v6585 = vpop.f32.mrf.mxu0
  %v6586 = vadd.f32 0.0, %v6585
  %6587 = vmatmul.f32.gmra.mxu0 %v6329
  %v6588 = vpop.f32.mrf.mxu0
  %v6589 = vadd.f32 0.0, %v6588
  %6590 = vmatmul.f32.gmra.mxu0 %v6332
  %v6591 = vpop.f32.mrf.mxu0
  %v6592 = vadd.f32 0.0, %v6591
  %6593 = vmatmul.f32.gmra.mxu0 %v6335
  %v6594 = vpop.f32.mrf.mxu0
  %v6595 = vadd.f32 0.0, %v6594
  %6596 = vmatmul.f32.gmra.mxu0 %v6338
  %v6597 = vpop.f32.mrf.mxu0
  %v6598 = vadd.f32 0.0, %v6597
  %6599 = vmatmul.f32.gmra.mxu0 %v6341
  %v6600 = vpop.f32.mrf.mxu0
  %v6601 = vadd.f32 0.0, %v6600
  %6602 = vmatmul.f32.gmra.mxu0 %v6344
  %v6603 = vpop.f32.mrf.mxu0
  %v6604 = vadd.f32 0.0, %v6603
  %6605 = vmatmul.f32.gmra.mxu0 %v6347
  %v6606 = vpop.f32.mrf.mxu0
  %v6607 = vadd.f32 0.0, %v6606
  %6608 = vmatmul.f32.gmra.mxu0 %v6350
  %v6609 = vpop.f32.mrf.mxu0
  %v6610 = vadd.f32 0.0, %v6609
  %6611 = vmatmul.f32.gmra.mxu0 %v6353
  %v6612 = vpop.f32.mrf.mxu0
  %v6613 = vadd.f32 0.0, %v6612
  %6614 = vmatmul.f32.gmra.mxu0 %v6356
  %v6615 = vpop.f32.mrf.mxu0
  %v6616 = vadd.f32 0.0, %v6615
  %6617 = vmatmul.f32.gmra.mxu0 %v6359
  %v6618 = vpop.f32.mrf.mxu0
  %v6619 = vadd.f32 0.0, %v6618
  %6620 = vmatmul.f32.gmra.mxu0 %v6362
  %v6621 = vpop.f32.mrf.mxu0
  %v6622 = vadd.f32 0.0, %v6621
  %6623 = vmatmul.f32.gmra.mxu0 %v6365
  %v6624 = vpop.f32.mrf.mxu0
  %v6625 = vadd.f32 0.0, %v6624
  %6626 = vmatmul.f32.gmra.mxu0 %v6368
  %v6627 = vpop.f32.mrf.mxu0
  %v6628 = vadd.f32 0.0, %v6627
  %6629 = vmatmul.f32.gmra.mxu0 %v6371
  %v6630 = vpop.f32.mrf.mxu0
  %v6631 = vadd.f32 0.0, %v6630
  %6632 = vmatmul.f32.gmra.mxu0 %v6374
  %v6633 = vpop.f32.mrf.mxu0
  %v6634 = vadd.f32 0.0, %v6633
  %6635 = vmatmul.f32.gmra.mxu0 %v6377
  %v6636 = vpop.f32.mrf.mxu0
  %v6637 = vadd.f32 0.0, %v6636
  %6638 = vmatmul.f32.gmra.mxu0 %v6380
  %v6639 = vpop.f32.mrf.mxu0
  %v6640 = vadd.f32 0.0, %v6639
  %6641 = vmatmul.f32.gmra.mxu0 %v6383
  %v6642 = vpop.f32.mrf.mxu0
  %v6643 = vadd.f32 0.0, %v6642
  %6644 = vmatmul.f32.gmra.mxu0 %v6386
  %v6645 = vpop.f32.mrf.mxu0
  %v6646 = vadd.f32 0.0, %v6645
  %6647 = vmatmul.f32.gmra.mxu0 %v6389
  %v6648 = vpop.f32.mrf.mxu0
  %v6649 = vadd.f32 0.0, %v6648
  %6650 = vmatmul.f32.gmra.mxu0 %v6392
  %v6651 = vpop.f32.mrf.mxu0
  %v6652 = vadd.f32 0.0, %v6651
  %6653 = vmatmul.f32.gmra.mxu0 %v6395
  %v6654 = vpop.f32.mrf.mxu0
  %v6655 = vadd.f32 0.0, %v6654
  %6656 = vdwg.mxu0
  %6657 = vmatpush.msra.mxu0 0.0
  %6658 = vmatpush.msra.mxu0 0.0
  %6659 = vmatpush.msra.mxu0 0.0
  %6660 = vmatpush.msra.mxu0 0.0
  %6661 = vmatpush.msra.mxu0 0.0
  %6662 = vmatpush.msra.mxu0 0.0
  %6663 = vmatpush.msra.mxu0 0.0
  %6664 = vmatpush.msra.mxu0 0.0
  %6665 = vmatpush.msra.mxu0 %v6153
  %6666 = vmatpush.msra.mxu0 %v6151
  %6667 = vmatpush.msra.mxu0 %v6149
  %6668 = vmatpush.msra.mxu0 %v6147
  %6669 = vmatpush.msra.mxu0 %v6145
  %6670 = vmatpush.msra.mxu0 %v6143
  %6671 = vmatpush.msra.mxu0 %v6141
  %6672 = vmatpush.msra.mxu0 %v6139
  %6673 = vmatmul.f32.gmra.mxu0 %v6155
  %v6674 = vpop.f32.mrf.mxu0
  %v6675 = vadd.f32 0.0, %v6674
  %6676 = vmatmul.f32.gmra.mxu0 %v6158
  %v6677 = vpop.f32.mrf.mxu0
  %v6678 = vadd.f32 0.0, %v6677
  %6679 = vmatmul.f32.gmra.mxu0 %v6161
  %v6680 = vpop.f32.mrf.mxu0
  %v6681 = vadd.f32 0.0, %v6680
  %6682 = vmatmul.f32.gmra.mxu0 %v6164
  %v6683 = vpop.f32.mrf.mxu0
  %v6684 = vadd.f32 0.0, %v6683
  %6685 = vmatmul.f32.gmra.mxu0 %v6167
  %v6686 = vpop.f32.mrf.mxu0
  %v6687 = vadd.f32 0.0, %v6686
  %6688 = vmatmul.f32.gmra.mxu0 %v6170
  %v6689 = vpop.f32.mrf.mxu0
  %v6690 = vadd.f32 0.0, %v6689
  %6691 = vmatmul.f32.gmra.mxu0 %v6173
  %v6692 = vpop.f32.mrf.mxu0
  %v6693 = vadd.f32 0.0, %v6692
  %6694 = vmatmul.f32.gmra.mxu0 %v6176
  %v6695 = vpop.f32.mrf.mxu0
  %v6696 = vadd.f32 0.0, %v6695
  %6697 = vmatmul.f32.gmra.mxu0 %v6179
  %v6698 = vpop.f32.mrf.mxu0
  %v6699 = vadd.f32 0.0, %v6698
  %6700 = vmatmul.f32.gmra.mxu0 %v6182
  %v6701 = vpop.f32.mrf.mxu0
  %v6702 = vadd.f32 0.0, %v6701
  %6703 = vmatmul.f32.gmra.mxu0 %v6185
  %v6704 = vpop.f32.mrf.mxu0
  %v6705 = vadd.f32 0.0, %v6704
  %6706 = vmatmul.f32.gmra.mxu0 %v6188
  %v6707 = vpop.f32.mrf.mxu0
  %v6708 = vadd.f32 0.0, %v6707
  %6709 = vmatmul.f32.gmra.mxu0 %v6191
  %v6710 = vpop.f32.mrf.mxu0
  %v6711 = vadd.f32 0.0, %v6710
  %6712 = vmatmul.f32.gmra.mxu0 %v6194
  %v6713 = vpop.f32.mrf.mxu0
  %v6714 = vadd.f32 0.0, %v6713
  %6715 = vmatmul.f32.gmra.mxu0 %v6197
  %v6716 = vpop.f32.mrf.mxu0
  %v6717 = vadd.f32 0.0, %v6716
  %6718 = vmatmul.f32.gmra.mxu0 %v6200
  %v6719 = vpop.f32.mrf.mxu0
  %v6720 = vadd.f32 0.0, %v6719
  %6721 = vmatmul.f32.gmra.mxu0 %v6203
  %v6722 = vpop.f32.mrf.mxu0
  %v6723 = vadd.f32 0.0, %v6722
  %6724 = vmatmul.f32.gmra.mxu0 %v6206
  %v6725 = vpop.f32.mrf.mxu0
  %v6726 = vadd.f32 0.0, %v6725
  %6727 = vmatmul.f32.gmra.mxu0 %v6209
  %v6728 = vpop.f32.mrf.mxu0
  %v6729 = vadd.f32 0.0, %v6728
  %6730 = vmatmul.f32.gmra.mxu0 %v6212
  %v6731 = vpop.f32.mrf.mxu0
  %v6732 = vadd.f32 0.0, %v6731
  %6733 = vmatmul.f32.gmra.mxu0 %v6215
  %v6734 = vpop.f32.mrf.mxu0
  %v6735 = vadd.f32 0.0, %v6734
  %6736 = vmatmul.f32.gmra.mxu0 %v6218
  %v6737 = vpop.f32.mrf.mxu0
  %v6738 = vadd.f32 0.0, %v6737
  %6739 = vmatmul.f32.gmra.mxu0 %v6221
  %v6740 = vpop.f32.mrf.mxu0
  %v6741 = vadd.f32 0.0, %v6740
  %6742 = vmatmul.f32.gmra.mxu0 %v6224
  %v6743 = vpop.f32.mrf.mxu0
  %v6744 = vadd.f32 0.0, %v6743
  %6745 = vmatmul.f32.gmra.mxu0 %v6227
  %v6746 = vpop.f32.mrf.mxu0
  %v6747 = vadd.f32 0.0, %v6746
  %6748 = vmatmul.f32.gmra.mxu0 %v6230
  %v6749 = vpop.f32.mrf.mxu0
  %v6750 = vadd.f32 0.0, %v6749
  %6751 = vmatmul.f32.gmra.mxu0 %v6233
  %v6752 = vpop.f32.mrf.mxu0
  %v6753 = vadd.f32 0.0, %v6752
  %6754 = vmatmul.f32.gmra.mxu0 %v6236
  %v6755 = vpop.f32.mrf.mxu0
  %v6756 = vadd.f32 0.0, %v6755
  %6757 = vmatmul.f32.gmra.mxu0 %v6239
  %v6758 = vpop.f32.mrf.mxu0
  %v6759 = vadd.f32 0.0, %v6758
  %6760 = vmatmul.f32.gmra.mxu0 %v6242
  %v6761 = vpop.f32.mrf.mxu0
  %v6762 = vadd.f32 0.0, %v6761
  %6763 = vmatmul.f32.gmra.mxu0 %v6245
  %v6764 = vpop.f32.mrf.mxu0
  %v6765 = vadd.f32 0.0, %v6764
  %6766 = vmatmul.f32.gmra.mxu0 %v6248
  %v6767 = vpop.f32.mrf.mxu0
  %v6768 = vadd.f32 0.0, %v6767
  %6769 = vmatmul.f32.gmra.mxu0 %v6251
  %v6770 = vpop.f32.mrf.mxu0
  %v6771 = vadd.f32 0.0, %v6770
  %6772 = vmatmul.f32.gmra.mxu0 %v6254
  %v6773 = vpop.f32.mrf.mxu0
  %v6774 = vadd.f32 0.0, %v6773
  %6775 = vmatmul.f32.gmra.mxu0 %v6257
  %v6776 = vpop.f32.mrf.mxu0
  %v6777 = vadd.f32 0.0, %v6776
  %6778 = vmatmul.f32.gmra.mxu0 %v6260
  %v6779 = vpop.f32.mrf.mxu0
  %v6780 = vadd.f32 0.0, %v6779
  %6781 = vmatmul.f32.gmra.mxu0 %v6263
  %v6782 = vpop.f32.mrf.mxu0
  %v6783 = vadd.f32 0.0, %v6782
  %6784 = vmatmul.f32.gmra.mxu0 %v6266
  %v6785 = vpop.f32.mrf.mxu0
  %v6786 = vadd.f32 0.0, %v6785
  %6787 = vmatmul.f32.gmra.mxu0 %v6269
  %v6788 = vpop.f32.mrf.mxu0
  %v6789 = vadd.f32 0.0, %v6788
  %6790 = vmatmul.f32.gmra.mxu0 %v6272
  %v6791 = vpop.f32.mrf.mxu0
  %v6792 = vadd.f32 0.0, %v6791
  %6793 = vmatmul.f32.gmra.mxu0 %v6275
  %v6794 = vpop.f32.mrf.mxu0
  %v6795 = vadd.f32 0.0, %v6794
  %6796 = vmatmul.f32.gmra.mxu0 %v6278
  %v6797 = vpop.f32.mrf.mxu0
  %v6798 = vadd.f32 0.0, %v6797
  %6799 = vmatmul.f32.gmra.mxu0 %v6281
  %v6800 = vpop.f32.mrf.mxu0
  %v6801 = vadd.f32 0.0, %v6800
  %6802 = vmatmul.f32.gmra.mxu0 %v6284
  %v6803 = vpop.f32.mrf.mxu0
  %v6804 = vadd.f32 0.0, %v6803
  %6805 = vmatmul.f32.gmra.mxu0 %v6287
  %v6806 = vpop.f32.mrf.mxu0
  %v6807 = vadd.f32 0.0, %v6806
  %6808 = vmatmul.f32.gmra.mxu0 %v6290
  %v6809 = vpop.f32.mrf.mxu0
  %v6810 = vadd.f32 0.0, %v6809
  %6811 = vmatmul.f32.gmra.mxu0 %v6293
  %v6812 = vpop.f32.mrf.mxu0
  %v6813 = vadd.f32 0.0, %v6812
  %6814 = vmatmul.f32.gmra.mxu0 %v6296
  %v6815 = vpop.f32.mrf.mxu0
  %v6816 = vadd.f32 0.0, %v6815
  %6817 = vmatmul.f32.gmra.mxu0 %v6299
  %v6818 = vpop.f32.mrf.mxu0
  %v6819 = vadd.f32 0.0, %v6818
  %6820 = vmatmul.f32.gmra.mxu0 %v6302
  %v6821 = vpop.f32.mrf.mxu0
  %v6822 = vadd.f32 0.0, %v6821
  %6823 = vmatmul.f32.gmra.mxu0 %v6305
  %v6824 = vpop.f32.mrf.mxu0
  %v6825 = vadd.f32 0.0, %v6824
  %6826 = vmatmul.f32.gmra.mxu0 %v6308
  %v6827 = vpop.f32.mrf.mxu0
  %v6828 = vadd.f32 0.0, %v6827
  %6829 = vmatmul.f32.gmra.mxu0 %v6311
  %v6830 = vpop.f32.mrf.mxu0
  %v6831 = vadd.f32 0.0, %v6830
  %6832 = vmatmul.f32.gmra.mxu0 %v6314
  %v6833 = vpop.f32.mrf.mxu0
  %v6834 = vadd.f32 0.0, %v6833
  %6835 = vmatmul.f32.gmra.mxu0 %v6317
  %v6836 = vpop.f32.mrf.mxu0
  %v6837 = vadd.f32 0.0, %v6836
  %6838 = vmatmul.f32.gmra.mxu0 %v6320
  %v6839 = vpop.f32.mrf.mxu0
  %v6840 = vadd.f32 0.0, %v6839
  %6841 = vmatmul.f32.gmra.mxu0 %v6323
  %v6842 = vpop.f32.mrf.mxu0
  %v6843 = vadd.f32 0.0, %v6842
  %6844 = vmatmul.f32.gmra.mxu0 %v6326
  %v6845 = vpop.f32.mrf.mxu0
  %v6846 = vadd.f32 0.0, %v6845
  %6847 = vmatmul.f32.gmra.mxu0 %v6329
  %v6848 = vpop.f32.mrf.mxu0
  %v6849 = vadd.f32 0.0, %v6848
  %6850 = vmatmul.f32.gmra.mxu0 %v6332
  %v6851 = vpop.f32.mrf.mxu0
  %v6852 = vadd.f32 0.0, %v6851
  %6853 = vmatmul.f32.gmra.mxu0 %v6335
  %v6854 = vpop.f32.mrf.mxu0
  %v6855 = vadd.f32 0.0, %v6854
  %6856 = vmatmul.f32.gmra.mxu0 %v6338
  %v6857 = vpop.f32.mrf.mxu0
  %v6858 = vadd.f32 0.0, %v6857
  %6859 = vmatmul.f32.gmra.mxu0 %v6341
  %v6860 = vpop.f32.mrf.mxu0
  %v6861 = vadd.f32 0.0, %v6860
  %6862 = vmatmul.f32.gmra.mxu0 %v6344
  %v6863 = vpop.f32.mrf.mxu0
  %v6864 = vadd.f32 0.0, %v6863
  %6865 = vmatmul.f32.gmra.mxu0 %v6347
  %v6866 = vpop.f32.mrf.mxu0
  %v6867 = vadd.f32 0.0, %v6866
  %6868 = vmatmul.f32.gmra.mxu0 %v6350
  %v6869 = vpop.f32.mrf.mxu0
  %v6870 = vadd.f32 0.0, %v6869
  %6871 = vmatmul.f32.gmra.mxu0 %v6353
  %v6872 = vpop.f32.mrf.mxu0
  %v6873 = vadd.f32 0.0, %v6872
  %6874 = vmatmul.f32.gmra.mxu0 %v6356
  %v6875 = vpop.f32.mrf.mxu0
  %v6876 = vadd.f32 0.0, %v6875
  %6877 = vmatmul.f32.gmra.mxu0 %v6359
  %v6878 = vpop.f32.mrf.mxu0
  %v6879 = vadd.f32 0.0, %v6878
  %6880 = vmatmul.f32.gmra.mxu0 %v6362
  %v6881 = vpop.f32.mrf.mxu0
  %v6882 = vadd.f32 0.0, %v6881
  %6883 = vmatmul.f32.gmra.mxu0 %v6365
  %v6884 = vpop.f32.mrf.mxu0
  %v6885 = vadd.f32 0.0, %v6884
  %6886 = vmatmul.f32.gmra.mxu0 %v6368
  %v6887 = vpop.f32.mrf.mxu0
  %v6888 = vadd.f32 0.0, %v6887
  %6889 = vmatmul.f32.gmra.mxu0 %v6371
  %v6890 = vpop.f32.mrf.mxu0
  %v6891 = vadd.f32 0.0, %v6890
  %6892 = vmatmul.f32.gmra.mxu0 %v6374
  %v6893 = vpop.f32.mrf.mxu0
  %v6894 = vadd.f32 0.0, %v6893
  %6895 = vmatmul.f32.gmra.mxu0 %v6377
  %v6896 = vpop.f32.mrf.mxu0
  %v6897 = vadd.f32 0.0, %v6896
  %6898 = vmatmul.f32.gmra.mxu0 %v6380
  %v6899 = vpop.f32.mrf.mxu0
  %v6900 = vadd.f32 0.0, %v6899
  %6901 = vmatmul.f32.gmra.mxu0 %v6383
  %v6902 = vpop.f32.mrf.mxu0
  %v6903 = vadd.f32 0.0, %v6902
  %6904 = vmatmul.f32.gmra.mxu0 %v6386
  %v6905 = vpop.f32.mrf.mxu0
  %v6906 = vadd.f32 0.0, %v6905
  %6907 = vmatmul.f32.gmra.mxu0 %v6389
  %v6908 = vpop.f32.mrf.mxu0
  %v6909 = vadd.f32 0.0, %v6908
  %6910 = vmatmul.f32.gmra.mxu0 %v6392
  %v6911 = vpop.f32.mrf.mxu0
  %v6912 = vadd.f32 0.0, %v6911
  %6913 = vmatmul.f32.gmra.mxu0 %v6395
  %v6914 = vpop.f32.mrf.mxu0
  %v6915 = vadd.f32 0.0, %v6914
  %6916 = vdwg.mxu0
  %6917 = vst [vmem:[%s8] sm:$0xff] %v6415
  %6918 = vst [vmem:[%s8 + $0x8] sm:$0xff] %v6675
  %6919 = vst [vmem:[%s8 + $0x10] sm:$0xff] %v6418
  %6920 = vst [vmem:[%s8 + $0x18] sm:$0xff] %v6678
  %6921 = vst [vmem:[%s8 + $0x20] sm:$0xff] %v6421
  %6922 = vst [vmem:[%s8 + $0x28] sm:$0xff] %v6681
  %6923 = vst [vmem:[%s8 + $0x30] sm:$0xff] %v6424
  %6924 = vst [vmem:[%s8 + $0x38] sm:$0xff] %v6684
  %6925 = vst [vmem:[%s8 + $0x40] sm:$0xff] %v6427
  %6926 = vst [vmem:[%s8 + $0x48] sm:$0xff] %v6687
  %6927 = vst [vmem:[%s8 + $0x50] sm:$0xff] %v6430
  %6928 = vst [vmem:[%s8 + $0x58] sm:$0xff] %v6690
  %6929 = vst [vmem:[%s8 + $0x60] sm:$0xff] %v6433
  %6930 = vst [vmem:[%s8 + $0x68] sm:$0xff] %v6693
  %6931 = vst [vmem:[%s8 + $0x70] sm:$0xff] %v6436
  %6932 = vst [vmem:[%s8 + $0x78] sm:$0xff] %v6696
  %6933 = vst [vmem:[%s8 + $0x80] sm:$0xff] %v6439
  %6934 = vst [vmem:[%s8 + $0x88] sm:$0xff] %v6699
  %6935 = vst [vmem:[%s8 + $0x90] sm:$0xff] %v6442
  %6936 = vst [vmem:[%s8 + $0x98] sm:$0xff] %v6702
  %6937 = vst [vmem:[%s8 + $0xa0] sm:$0xff] %v6445
  %6938 = vst [vmem:[%s8 + $0xa8] sm:$0xff] %v6705
  %6939 = vst [vmem:[%s8 + $0xb0] sm:$0xff] %v6448
  %6940 = vst [vmem:[%s8 + $0xb8] sm:$0xff] %v6708
  %6941 = vst [vmem:[%s8 + $0xc0] sm:$0xff] %v6451
  %6942 = vst [vmem:[%s8 + $0xc8] sm:$0xff] %v6711
  %6943 = vst [vmem:[%s8 + $0xd0] sm:$0xff] %v6454
  %6944 = vst [vmem:[%s8 + $0xd8] sm:$0xff] %v6714
  %6945 = vst [vmem:[%s8 + $0xe0] sm:$0xff] %v6457
  %6946 = vst [vmem:[%s8 + $0xe8] sm:$0xff] %v6717
  %6947 = vst [vmem:[%s8 + $0xf0] sm:$0xff] %v6460
  %6948 = vst [vmem:[%s8 + $0xf8] sm:$0xff] %v6720
  %6949 = vst [vmem:[%s8 + $0x100] sm:$0xff] %v6463
  %6950 = vst [vmem:[%s8 + $0x108] sm:$0xff] %v6723
  %6951 = vst [vmem:[%s8 + $0x110] sm:$0xff] %v6466
  %6952 = vst [vmem:[%s8 + $0x118] sm:$0xff] %v6726
  %6953 = vst [vmem:[%s8 + $0x120] sm:$0xff] %v6469
  %6954 = vst [vmem:[%s8 + $0x128] sm:$0xff] %v6729
  %6955 = vst [vmem:[%s8 + $0x130] sm:$0xff] %v6472
  %6956 = vst [vmem:[%s8 + $0x138] sm:$0xff] %v6732
  %6957 = vst [vmem:[%s8 + $0x140] sm:$0xff] %v6475
  %6958 = vst [vmem:[%s8 + $0x148] sm:$0xff] %v6735
  %6959 = vst [vmem:[%s8 + $0x150] sm:$0xff] %v6478
  %6960 = vst [vmem:[%s8 + $0x158] sm:$0xff] %v6738
  %6961 = vst [vmem:[%s8 + $0x160] sm:$0xff] %v6481
  %6962 = vst [vmem:[%s8 + $0x168] sm:$0xff] %v6741
  %6963 = vst [vmem:[%s8 + $0x170] sm:$0xff] %v6484
  %6964 = vst [vmem:[%s8 + $0x178] sm:$0xff] %v6744
  %6965 = vst [vmem:[%s8 + $0x180] sm:$0xff] %v6487
  %6966 = vst [vmem:[%s8 + $0x188] sm:$0xff] %v6747
  %6967 = vst [vmem:[%s8 + $0x190] sm:$0xff] %v6490
  %6968 = vst [vmem:[%s8 + $0x198] sm:$0xff] %v6750
  %6969 = vst [vmem:[%s8 + $0x1a0] sm:$0xff] %v6493
  %6970 = vst [vmem:[%s8 + $0x1a8] sm:$0xff] %v6753
  %6971 = vst [vmem:[%s8 + $0x1b0] sm:$0xff] %v6496
  %6972 = vst [vmem:[%s8 + $0x1b8] sm:$0xff] %v6756
  %6973 = vst [vmem:[%s8 + $0x1c0] sm:$0xff] %v6499
  %6974 = vst [vmem:[%s8 + $0x1c8] sm:$0xff] %v6759
  %6975 = vst [vmem:[%s8 + $0x1d0] sm:$0xff] %v6502
  %6976 = vst [vmem:[%s8 + $0x1d8] sm:$0xff] %v6762
  %6977 = vst [vmem:[%s8 + $0x1e0] sm:$0xff] %v6505
  %6978 = vst [vmem:[%s8 + $0x1e8] sm:$0xff] %v6765
  %6979 = vst [vmem:[%s8 + $0x1f0] sm:$0xff] %v6508
  %6980 = vst [vmem:[%s8 + $0x1f8] sm:$0xff] %v6768
  %6981 = vst [vmem:[%s8 + $0x200] sm:$0xff] %v6511
  %6982 = vst [vmem:[%s8 + $0x208] sm:$0xff] %v6771
  %6983 = vst [vmem:[%s8 + $0x210] sm:$0xff] %v6514
  %6984 = vst [vmem:[%s8 + $0x218] sm:$0xff] %v6774
  %6985 = vst [vmem:[%s8 + $0x220] sm:$0xff] %v6517
  %6986 = vst [vmem:[%s8 + $0x228] sm:$0xff] %v6777
  %6987 = vst [vmem:[%s8 + $0x230] sm:$0xff] %v6520
  %6988 = vst [vmem:[%s8 + $0x238] sm:$0xff] %v6780
  %6989 = vst [vmem:[%s8 + $0x240] sm:$0xff] %v6523
  %6990 = vst [vmem:[%s8 + $0x248] sm:$0xff] %v6783
  %6991 = vst [vmem:[%s8 + $0x250] sm:$0xff] %v6526
  %6992 = vst [vmem:[%s8 + $0x258] sm:$0xff] %v6786
  %6993 = vst [vmem:[%s8 + $0x260] sm:$0xff] %v6529
  %6994 = vst [vmem:[%s8 + $0x268] sm:$0xff] %v6789
  %6995 = vst [vmem:[%s8 + $0x270] sm:$0xff] %v6532
  %6996 = vst [vmem:[%s8 + $0x278] sm:$0xff] %v6792
  %6997 = vst [vmem:[%s8 + $0x280] sm:$0xff] %v6535
  %6998 = vst [vmem:[%s8 + $0x288] sm:$0xff] %v6795
  %6999 = vst [vmem:[%s8 + $0x290] sm:$0xff] %v6538
  %7000 = vst [vmem:[%s8 + $0x298] sm:$0xff] %v6798
  %7001 = vst [vmem:[%s8 + $0x2a0] sm:$0xff] %v6541
  %7002 = vst [vmem:[%s8 + $0x2a8] sm:$0xff] %v6801
  %7003 = vst [vmem:[%s8 + $0x2b0] sm:$0xff] %v6544
  %7004 = vst [vmem:[%s8 + $0x2b8] sm:$0xff] %v6804
  %7005 = vst [vmem:[%s8 + $0x2c0] sm:$0xff] %v6547
  %7006 = vst [vmem:[%s8 + $0x2c8] sm:$0xff] %v6807
  %7007 = vst [vmem:[%s8 + $0x2d0] sm:$0xff] %v6550
  %7008 = vst [vmem:[%s8 + $0x2d8] sm:$0xff] %v6810
  %7009 = vst [vmem:[%s8 + $0x2e0] sm:$0xff] %v6553
  %7010 = vst [vmem:[%s8 + $0x2e8] sm:$0xff] %v6813
  %7011 = vst [vmem:[%s8 + $0x2f0] sm:$0xff] %v6556
  %7012 = vst [vmem:[%s8 + $0x2f8] sm:$0xff] %v6816
  %7013 = vst [vmem:[%s8 + $0x300] sm:$0xff] %v6559
  %7014 = vst [vmem:[%s8 + $0x308] sm:$0xff] %v6819
  %7015 = vst [vmem:[%s8 + $0x310] sm:$0xff] %v6562
  %7016 = vst [vmem:[%s8 + $0x318] sm:$0xff] %v6822
  %7017 = vst [vmem:[%s8 + $0x320] sm:$0xff] %v6565
  %7018 = vst [vmem:[%s8 + $0x328] sm:$0xff] %v6825
  %7019 = vst [vmem:[%s8 + $0x330] sm:$0xff] %v6568
  %7020 = vst [vmem:[%s8 + $0x338] sm:$0xff] %v6828
  %7021 = vst [vmem:[%s8 + $0x340] sm:$0xff] %v6571
  %7022 = vst [vmem:[%s8 + $0x348] sm:$0xff] %v6831
  %7023 = vst [vmem:[%s8 + $0x350] sm:$0xff] %v6574
  %7024 = vst [vmem:[%s8 + $0x358] sm:$0xff] %v6834
  %7025 = vst [vmem:[%s8 + $0x360] sm:$0xff] %v6577
  %7026 = vst [vmem:[%s8 + $0x368] sm:$0xff] %v6837
  %7027 = vst [vmem:[%s8 + $0x370] sm:$0xff] %v6580
  %7028 = vst [vmem:[%s8 + $0x378] sm:$0xff] %v6840
  %7029 = vst [vmem:[%s8 + $0x380] sm:$0xff] %v6583
  %7030 = vst [vmem:[%s8 + $0x388] sm:$0xff] %v6843
  %7031 = vst [vmem:[%s8 + $0x390] sm:$0xff] %v6586
  %7032 = vst [vmem:[%s8 + $0x398] sm:$0xff] %v6846
  %7033 = vst [vmem:[%s8 + $0x3a0] sm:$0xff] %v6589
  %7034 = vst [vmem:[%s8 + $0x3a8] sm:$0xff] %v6849
  %7035 = vst [vmem:[%s8 + $0x3b0] sm:$0xff] %v6592
  %7036 = vst [vmem:[%s8 + $0x3b8] sm:$0xff] %v6852
  %7037 = vst [vmem:[%s8 + $0x3c0] sm:$0xff] %v6595
  %7038 = vst [vmem:[%s8 + $0x3c8] sm:$0xff] %v6855
  %7039 = vst [vmem:[%s8 + $0x3d0] sm:$0xff] %v6598
  %7040 = vst [vmem:[%s8 + $0x3d8] sm:$0xff] %v6858
  %7041 = vst [vmem:[%s8 + $0x3e0] sm:$0xff] %v6601
  %7042 = vst [vmem:[%s8 + $0x3e8] sm:$0xff] %v6861
  %7043 = vst [vmem:[%s8 + $0x3f0] sm:$0xff] %v6604
  %7044 = vst [vmem:[%s8 + $0x3f8] sm:$0xff] %v6864
  %7045 = vst [vmem:[%s8 + $0x400] sm:$0xff] %v6607
  %7046 = vst [vmem:[%s8 + $0x408] sm:$0xff] %v6867
  %7047 = vst [vmem:[%s8 + $0x410] sm:$0xff] %v6610
  %7048 = vst [vmem:[%s8 + $0x418] sm:$0xff] %v6870
  %7049 = vst [vmem:[%s8 + $0x420] sm:$0xff] %v6613
  %7050 = vst [vmem:[%s8 + $0x428] sm:$0xff] %v6873
  %7051 = vst [vmem:[%s8 + $0x430] sm:$0xff] %v6616
  %7052 = vst [vmem:[%s8 + $0x438] sm:$0xff] %v6876
  %7053 = vst [vmem:[%s8 + $0x440] sm:$0xff] %v6619
  %7054 = vst [vmem:[%s8 + $0x448] sm:$0xff] %v6879
  %7055 = vst [vmem:[%s8 + $0x450] sm:$0xff] %v6622
  %7056 = vst [vmem:[%s8 + $0x458] sm:$0xff] %v6882
  %7057 = vst [vmem:[%s8 + $0x460] sm:$0xff] %v6625
  %7058 = vst [vmem:[%s8 + $0x468] sm:$0xff] %v6885
  %7059 = vst [vmem:[%s8 + $0x470] sm:$0xff] %v6628
  %7060 = vst [vmem:[%s8 + $0x478] sm:$0xff] %v6888
  %7061 = vst [vmem:[%s8 + $0x480] sm:$0xff] %v6631
  %7062 = vst [vmem:[%s8 + $0x488] sm:$0xff] %v6891
  %7063 = vst [vmem:[%s8 + $0x490] sm:$0xff] %v6634
  %7064 = vst [vmem:[%s8 + $0x498] sm:$0xff] %v6894
  %7065 = vst [vmem:[%s8 + $0x4a0] sm:$0xff] %v6637
  %7066 = vst [vmem:[%s8 + $0x4a8] sm:$0xff] %v6897
  %7067 = vst [vmem:[%s8 + $0x4b0] sm:$0xff] %v6640
  %7068 = vst [vmem:[%s8 + $0x4b8] sm:$0xff] %v6900
  %7069 = vst [vmem:[%s8 + $0x4c0] sm:$0xff] %v6643
  %7070 = vst [vmem:[%s8 + $0x4c8] sm:$0xff] %v6903
  %7071 = vst [vmem:[%s8 + $0x4d0] sm:$0xff] %v6646
  %7072 = vst [vmem:[%s8 + $0x4d8] sm:$0xff] %v6906
  %7073 = vst [vmem:[%s8 + $0x4e0] sm:$0xff] %v6649
  %7074 = vst [vmem:[%s8 + $0x4e8] sm:$0xff] %v6909
  %7075 = vst [vmem:[%s8 + $0x4f0] sm:$0xff] %v6652
  %7076 = vst [vmem:[%s8 + $0x4f8] sm:$0xff] %v6912
  %7077 = vst [vmem:[%s8 + $0x500] sm:$0xff] %v6655
  %7078 = vst [vmem:[%s8 + $0x508] sm:$0xff] %v6915
  %v7079 = vld [vmem:[%s8] sm:$0xff]
  %v7080 = vld [vmem:[%s8 + $0x8] sm:$0xff]
  %v7081 = vld [vmem:[%s8 + $0x10] sm:$0xff]
  %v7082 = vld [vmem:[%s8 + $0x18] sm:$0xff]
  %v7083 = vld [vmem:[%s8 + $0x20] sm:$0xff]
  %v7084 = vld [vmem:[%s8 + $0x28] sm:$0xff]
  %v7085 = vld [vmem:[%s8 + $0x30] sm:$0xff]
  %v7086 = vld [vmem:[%s8 + $0x38] sm:$0xff]
  %v7087 = vld [vmem:[%s8 + $0x40] sm:$0xff]
  %v7088 = vld [vmem:[%s8 + $0x48] sm:$0xff]
  %v7089 = vld [vmem:[%s8 + $0x50] sm:$0xff]
  %v7090 = vld [vmem:[%s8 + $0x58] sm:$0xff]
  %v7091 = vld [vmem:[%s8 + $0x60] sm:$0xff]
  %v7092 = vld [vmem:[%s8 + $0x68] sm:$0xff]
  %v7093 = vld [vmem:[%s8 + $0x70] sm:$0xff]
  %v7094 = vld [vmem:[%s8 + $0x78] sm:$0xff]
  %v7095 = vld [vmem:[%s8 + $0x80] sm:$0xff]
  %v7096 = vld [vmem:[%s8 + $0x88] sm:$0xff]
  %v7097 = vld [vmem:[%s8 + $0x90] sm:$0xff]
  %v7098 = vld [vmem:[%s8 + $0x98] sm:$0xff]
  %v7099 = vld [vmem:[%s8 + $0xa0] sm:$0xff]
  %v7100 = vld [vmem:[%s8 + $0xa8] sm:$0xff]
  %v7101 = vld [vmem:[%s8 + $0xb0] sm:$0xff]
  %v7102 = vld [vmem:[%s8 + $0xb8] sm:$0xff]
  %v7103 = vld [vmem:[%s8 + $0xc0] sm:$0xff]
  %v7104 = vld [vmem:[%s8 + $0xc8] sm:$0xff]
  %v7105 = vld [vmem:[%s8 + $0xd0] sm:$0xff]
  %v7106 = vld [vmem:[%s8 + $0xd8] sm:$0xff]
  %v7107 = vld [vmem:[%s8 + $0xe0] sm:$0xff]
  %v7108 = vld [vmem:[%s8 + $0xe8] sm:$0xff]
  %v7109 = vld [vmem:[%s8 + $0xf0] sm:$0xff]
  %v7110 = vld [vmem:[%s8 + $0xf8] sm:$0xff]
  %v7111 = vld [vmem:[%s8 + $0x100] sm:$0xff]
  %v7112 = vld [vmem:[%s8 + $0x108] sm:$0xff]
  %v7113 = vld [vmem:[%s8 + $0x110] sm:$0xff]
  %v7114 = vld [vmem:[%s8 + $0x118] sm:$0xff]
  %v7115 = vld [vmem:[%s8 + $0x120] sm:$0xff]
  %v7116 = vld [vmem:[%s8 + $0x128] sm:$0xff]
  %v7117 = vld [vmem:[%s8 + $0x130] sm:$0xff]
  %v7118 = vld [vmem:[%s8 + $0x138] sm:$0xff]
  %v7119 = vld [vmem:[%s8 + $0x140] sm:$0xff]
  %v7120 = vld [vmem:[%s8 + $0x148] sm:$0xff]
  %v7121 = vld [vmem:[%s8 + $0x150] sm:$0xff]
  %v7122 = vld [vmem:[%s8 + $0x158] sm:$0xff]
  %v7123 = vld [vmem:[%s8 + $0x160] sm:$0xff]
  %v7124 = vld [vmem:[%s8 + $0x168] sm:$0xff]
  %v7125 = vld [vmem:[%s8 + $0x170] sm:$0xff]
  %v7126 = vld [vmem:[%s8 + $0x178] sm:$0xff]
  %v7127 = vld [vmem:[%s8 + $0x180] sm:$0xff]
  %v7128 = vld [vmem:[%s8 + $0x188] sm:$0xff]
  %v7129 = vld [vmem:[%s8 + $0x190] sm:$0xff]
  %v7130 = vld [vmem:[%s8 + $0x198] sm:$0xff]
  %v7131 = vld [vmem:[%s8 + $0x1a0] sm:$0xff]
  %v7132 = vld [vmem:[%s8 + $0x1a8] sm:$0xff]
  %v7133 = vld [vmem:[%s8 + $0x1b0] sm:$0xff]
  %v7134 = vld [vmem:[%s8 + $0x1b8] sm:$0xff]
  %v7135 = vld [vmem:[%s8 + $0x1c0] sm:$0xff]
  %v7136 = vld [vmem:[%s8 + $0x1c8] sm:$0xff]
  %v7137 = vld [vmem:[%s8 + $0x1d0] sm:$0xff]
  %v7138 = vld [vmem:[%s8 + $0x1d8] sm:$0xff]
  %v7139 = vld [vmem:[%s8 + $0x1e0] sm:$0xff]
  %v7140 = vld [vmem:[%s8 + $0x1e8] sm:$0xff]
  %v7141 = vld [vmem:[%s8 + $0x1f0] sm:$0xff]
  %v7142 = vld [vmem:[%s8 + $0x1f8] sm:$0xff]
  %v7143 = vld [vmem:[%s8 + $0x200] sm:$0xff]
  %v7144 = vld [vmem:[%s8 + $0x208] sm:$0xff]
  %v7145 = vld [vmem:[%s8 + $0x210] sm:$0xff]
  %v7146 = vld [vmem:[%s8 + $0x218] sm:$0xff]
  %v7147 = vld [vmem:[%s8 + $0x220] sm:$0xff]
  %v7148 = vld [vmem:[%s8 + $0x228] sm:$0xff]
  %v7149 = vld [vmem:[%s8 + $0x230] sm:$0xff]
  %v7150 = vld [vmem:[%s8 + $0x238] sm:$0xff]
  %v7151 = vld [vmem:[%s8 + $0x240] sm:$0xff]
  %v7152 = vld [vmem:[%s8 + $0x248] sm:$0xff]
  %v7153 = vld [vmem:[%s8 + $0x250] sm:$0xff]
  %v7154 = vld [vmem:[%s8 + $0x258] sm:$0xff]
  %v7155 = vld [vmem:[%s8 + $0x260] sm:$0xff]
  %v7156 = vld [vmem:[%s8 + $0x268] sm:$0xff]
  %v7157 = vld [vmem:[%s8 + $0x270] sm:$0xff]
  %v7158 = vld [vmem:[%s8 + $0x278] sm:$0xff]
  %v7159 = vld [vmem:[%s8 + $0x280] sm:$0xff]
  %v7160 = vld [vmem:[%s8 + $0x288] sm:$0xff]
  %v7161 = vld [vmem:[%s8 + $0x290] sm:$0xff]
  %v7162 = vld [vmem:[%s8 + $0x298] sm:$0xff]
  %v7163 = vld [vmem:[%s8 + $0x2a0] sm:$0xff]
  %v7164 = vld [vmem:[%s8 + $0x2a8] sm:$0xff]
  %v7165 = vld [vmem:[%s8 + $0x2b0] sm:$0xff]
  %v7166 = vld [vmem:[%s8 + $0x2b8] sm:$0xff]
  %v7167 = vld [vmem:[%s8 + $0x2c0] sm:$0xff]
  %v7168 = vld [vmem:[%s8 + $0x2c8] sm:$0xff]
  %v7169 = vld [vmem:[%s8 + $0x2d0] sm:$0xff]
  %v7170 = vld [vmem:[%s8 + $0x2d8] sm:$0xff]
  %v7171 = vld [vmem:[%s8 + $0x2e0] sm:$0xff]
  %v7172 = vld [vmem:[%s8 + $0x2e8] sm:$0xff]
  %v7173 = vld [vmem:[%s8 + $0x2f0] sm:$0xff]
  %v7174 = vld [vmem:[%s8 + $0x2f8] sm:$0xff]
  %v7175 = vld [vmem:[%s8 + $0x300] sm:$0xff]
  %v7176 = vld [vmem:[%s8 + $0x308] sm:$0xff]
  %v7177 = vld [vmem:[%s8 + $0x310] sm:$0xff]
  %v7178 = vld [vmem:[%s8 + $0x318] sm:$0xff]
  %v7179 = vld [vmem:[%s8 + $0x320] sm:$0xff]
  %v7180 = vld [vmem:[%s8 + $0x328] sm:$0xff]
  %v7181 = vld [vmem:[%s8 + $0x330] sm:$0xff]
  %v7182 = vld [vmem:[%s8 + $0x338] sm:$0xff]
  %v7183 = vld [vmem:[%s8 + $0x340] sm:$0xff]
  %v7184 = vld [vmem:[%s8 + $0x348] sm:$0xff]
  %v7185 = vld [vmem:[%s8 + $0x350] sm:$0xff]
  %v7186 = vld [vmem:[%s8 + $0x358] sm:$0xff]
  %v7187 = vld [vmem:[%s8 + $0x360] sm:$0xff]
  %v7188 = vld [vmem:[%s8 + $0x368] sm:$0xff]
  %v7189 = vld [vmem:[%s8 + $0x370] sm:$0xff]
  %v7190 = vld [vmem:[%s8 + $0x378] sm:$0xff]
  %v7191 = vld [vmem:[%s8 + $0x380] sm:$0xff]
  %v7192 = vld [vmem:[%s8 + $0x388] sm:$0xff]
  %v7193 = vld [vmem:[%s8 + $0x390] sm:$0xff]
  %v7194 = vld [vmem:[%s8 + $0x398] sm:$0xff]
  %v7195 = vld [vmem:[%s8 + $0x3a0] sm:$0xff]
  %v7196 = vld [vmem:[%s8 + $0x3a8] sm:$0xff]
  %v7197 = vld [vmem:[%s8 + $0x3b0] sm:$0xff]
  %v7198 = vld [vmem:[%s8 + $0x3b8] sm:$0xff]
  %v7199 = vld [vmem:[%s8 + $0x3c0] sm:$0xff]
  %v7200 = vld [vmem:[%s8 + $0x3c8] sm:$0xff]
  %v7201 = vld [vmem:[%s8 + $0x3d0] sm:$0xff]
  %v7202 = vld [vmem:[%s8 + $0x3d8] sm:$0xff]
  %v7203 = vld [vmem:[%s8 + $0x3e0] sm:$0xff]
  %v7204 = vld [vmem:[%s8 + $0x3e8] sm:$0xff]
  %v7205 = vld [vmem:[%s8 + $0x3f0] sm:$0xff]
  %v7206 = vld [vmem:[%s8 + $0x3f8] sm:$0xff]
  %v7207 = vld [vmem:[%s8 + $0x400] sm:$0xff]
  %v7208 = vld [vmem:[%s8 + $0x408] sm:$0xff]
  %v7209 = vld [vmem:[%s8 + $0x410] sm:$0xff]
  %v7210 = vld [vmem:[%s8 + $0x418] sm:$0xff]
  %v7211 = vld [vmem:[%s8 + $0x420] sm:$0xff]
  %v7212 = vld [vmem:[%s8 + $0x428] sm:$0xff]
  %v7213 = vld [vmem:[%s8 + $0x430] sm:$0xff]
  %v7214 = vld [vmem:[%s8 + $0x438] sm:$0xff]
  %v7215 = vld [vmem:[%s8 + $0x440] sm:$0xff]
  %v7216 = vld [vmem:[%s8 + $0x448] sm:$0xff]
  %v7217 = vld [vmem:[%s8 + $0x450] sm:$0xff]
  %v7218 = vld [vmem:[%s8 + $0x458] sm:$0xff]
  %v7219 = vld [vmem:[%s8 + $0x460] sm:$0xff]
  %v7220 = vld [vmem:[%s8 + $0x468] sm:$0xff]
  %v7221 = vld [vmem:[%s8 + $0x470] sm:$0xff]
  %v7222 = vld [vmem:[%s8 + $0x478] sm:$0xff]
  %v7223 = vld [vmem:[%s8 + $0x480] sm:$0xff]
  %v7224 = vld [vmem:[%s8 + $0x488] sm:$0xff]
  %v7225 = vld [vmem:[%s8 + $0x490] sm:$0xff]
  %v7226 = vld [vmem:[%s8 + $0x498] sm:$0xff]
  %v7227 = vld [vmem:[%s8 + $0x4a0] sm:$0xff]
  %v7228 = vld [vmem:[%s8 + $0x4a8] sm:$0xff]
  %v7229 = vld [vmem:[%s8 + $0x4b0] sm:$0xff]
  %v7230 = vld [vmem:[%s8 + $0x4b8] sm:$0xff]
  %v7231 = vld [vmem:[%s8 + $0x4c0] sm:$0xff]
  %v7232 = vld [vmem:[%s8 + $0x4c8] sm:$0xff]
  %v7233 = vld [vmem:[%s8 + $0x4d0] sm:$0xff]
  %v7234 = vld [vmem:[%s8 + $0x4d8] sm:$0xff]
  %v7235 = vld [vmem:[%s8 + $0x4e0] sm:$0xff]
  %v7236 = vld [vmem:[%s8 + $0x4e8] sm:$0xff]
  %v7237 = vld [vmem:[%s8 + $0x4f0] sm:$0xff]
  %v7238 = vld [vmem:[%s8 + $0x4f8] sm:$0xff]
  %v7239 = vld [vmem:[%s8 + $0x500] sm:$0xff]
  %v7240 = vld [vmem:[%s8 + $0x508] sm:$0xff]
  %v7241 = vadd.f32 %v7079, %v7081
  %v7242 = vadd.f32 %v7241, %v7083
  %v7243 = vadd.f32 %v7242, %v7085
  %v7244 = vadd.f32 %v7243, %v7087
  %v7245 = vadd.f32 %v7244, %v7089
  %v7246 = vadd.f32 %v7245, %v7091
  %v7247 = vadd.f32 %v7246, %v7093
  %v7248 = vadd.f32 %v7247, %v7095
  %v7249 = vadd.f32 %v7248, %v7097
  %v7250 = vadd.f32 %v7249, %v7099
  %v7251 = vadd.f32 %v7250, %v7101
  %v7252 = vadd.f32 %v7251, %v7103
  %v7253 = vadd.f32 %v7252, %v7105
  %v7254 = vadd.f32 %v7253, %v7107
  %v7255 = vadd.f32 %v7254, %v7109
  %v7256 = vadd.f32 %v7255, %v7111
  %v7257 = vadd.f32 %v7256, %v7113
  %v7258 = vadd.f32 %v7257, %v7115
  %v7259 = vadd.f32 %v7258, %v7117
  %v7260 = vadd.f32 %v7259, %v7119
  %v7261 = vadd.f32 %v7260, %v7121
  %v7262 = vadd.f32 %v7261, %v7123
  %v7263 = vadd.f32 %v7262, %v7125
  %v7264 = vadd.f32 %v7263, %v7127
  %v7265 = vadd.f32 %v7264, %v7129
  %v7266 = vadd.f32 %v7265, %v7131
  %v7267 = vadd.f32 %v7266, %v7133
  %v7268 = vadd.f32 %v7267, %v7135
  %v7269 = vadd.f32 %v7268, %v7137
  %v7270 = vadd.f32 %v7269, %v7139
  %v7271 = vadd.f32 %v7270, %v7141
  %v7272 = vadd.f32 %v7271, %v7143
  %v7273 = vadd.f32 %v7272, %v7145
  %v7274 = vadd.f32 %v7273, %v7147
  %v7275 = vadd.f32 %v7274, %v7149
  %v7276 = vadd.f32 %v7275, %v7151
  %v7277 = vadd.f32 %v7276, %v7153
  %v7278 = vadd.f32 %v7277, %v7155
  %v7279 = vadd.f32 %v7278, %v7157
  %v7280 = vadd.f32 %v7279, %v7159
  %v7281 = vadd.f32 %v7280, %v7161
  %v7282 = vadd.f32 %v7281, %v7163
  %v7283 = vadd.f32 %v7282, %v7165
  %v7284 = vadd.f32 %v7283, %v7167
  %v7285 = vadd.f32 %v7284, %v7169
  %v7286 = vadd.f32 %v7285, %v7171
  %v7287 = vadd.f32 %v7286, %v7173
  %v7288 = vadd.f32 %v7287, %v7175
  %v7289 = vadd.f32 %v7288, %v7177
  %v7290 = vadd.f32 %v7289, %v7179
  %v7291 = vadd.f32 %v7290, %v7181
  %v7292 = vadd.f32 %v7291, %v7183
  %v7293 = vadd.f32 %v7292, %v7185
  %v7294 = vadd.f32 %v7293, %v7187
  %v7295 = vadd.f32 %v7294, %v7189
  %v7296 = vadd.f32 %v7295, %v7191
  %v7297 = vadd.f32 %v7296, %v7193
  %v7298 = vadd.f32 %v7297, %v7195
  %v7299 = vadd.f32 %v7298, %v7197
  %v7300 = vadd.f32 %v7299, %v7199
  %v7301 = vadd.f32 %v7300, %v7201
  %v7302 = vadd.f32 %v7301, %v7203
  %v7303 = vadd.f32 %v7302, %v7205
  %v7304 = vadd.f32 %v7303, %v7207
  %v7305 = vadd.f32 %v7304, %v7209
  %v7306 = vadd.f32 %v7305, %v7211
  %v7307 = vadd.f32 %v7306, %v7213
  %v7308 = vadd.f32 %v7307, %v7215
  %v7309 = vadd.f32 %v7308, %v7217
  %v7310 = vadd.f32 %v7309, %v7219
  %v7311 = vadd.f32 %v7310, %v7221
  %v7312 = vadd.f32 %v7311, %v7223
  %v7313 = vadd.f32 %v7312, %v7225
  %v7314 = vadd.f32 %v7313, %v7227
  %v7315 = vadd.f32 %v7314, %v7229
  %v7316 = vadd.f32 %v7315, %v7231
  %v7317 = vadd.f32 %v7316, %v7233
  %v7318 = vadd.f32 %v7317, %v7235
  %v7319 = vadd.f32 %v7318, %v7237
  %v7320 = vadd.f32 %v7319, %v7239
  %v7321 = vrot.slane %v7320, 4
  %v7322 = vadd.f32 %v7320, %v7321
  %v7323 = vrot.slane %v7322, 2
  %v7324 = vadd.f32 %v7322, %v7323
  %v7325 = vrot.slane %v7324, 1
  %v7326 = vadd.f32 %v7324, %v7325
  %v7327 = vadd.f32 %v7080, %v7082
  %v7328 = vadd.f32 %v7327, %v7084
  %v7329 = vadd.f32 %v7328, %v7086
  %v7330 = vadd.f32 %v7329, %v7088
  %v7331 = vadd.f32 %v7330, %v7090
  %v7332 = vadd.f32 %v7331, %v7092
  %v7333 = vadd.f32 %v7332, %v7094
  %v7334 = vadd.f32 %v7333, %v7096
  %v7335 = vadd.f32 %v7334, %v7098
  %v7336 = vadd.f32 %v7335, %v7100
  %v7337 = vadd.f32 %v7336, %v7102
  %v7338 = vadd.f32 %v7337, %v7104
  %v7339 = vadd.f32 %v7338, %v7106
  %v7340 = vadd.f32 %v7339, %v7108
  %v7341 = vadd.f32 %v7340, %v7110
  %v7342 = vadd.f32 %v7341, %v7112
  %v7343 = vadd.f32 %v7342, %v7114
  %v7344 = vadd.f32 %v7343, %v7116
  %v7345 = vadd.f32 %v7344, %v7118
  %v7346 = vadd.f32 %v7345, %v7120
  %v7347 = vadd.f32 %v7346, %v7122
  %v7348 = vadd.f32 %v7347, %v7124
  %v7349 = vadd.f32 %v7348, %v7126
  %v7350 = vadd.f32 %v7349, %v7128
  %v7351 = vadd.f32 %v7350, %v7130
  %v7352 = vadd.f32 %v7351, %v7132
  %v7353 = vadd.f32 %v7352, %v7134
  %v7354 = vadd.f32 %v7353, %v7136
  %v7355 = vadd.f32 %v7354, %v7138
  %v7356 = vadd.f32 %v7355, %v7140
  %v7357 = vadd.f32 %v7356, %v7142
  %v7358 = vadd.f32 %v7357, %v7144
  %v7359 = vadd.f32 %v7358, %v7146
  %v7360 = vadd.f32 %v7359, %v7148
  %v7361 = vadd.f32 %v7360, %v7150
  %v7362 = vadd.f32 %v7361, %v7152
  %v7363 = vadd.f32 %v7362, %v7154
  %v7364 = vadd.f32 %v7363, %v7156
  %v7365 = vadd.f32 %v7364, %v7158
  %v7366 = vadd.f32 %v7365, %v7160
  %v7367 = vadd.f32 %v7366, %v7162
  %v7368 = vadd.f32 %v7367, %v7164
  %v7369 = vadd.f32 %v7368, %v7166
  %v7370 = vadd.f32 %v7369, %v7168
  %v7371 = vadd.f32 %v7370, %v7170
  %v7372 = vadd.f32 %v7371, %v7172
  %v7373 = vadd.f32 %v7372, %v7174
  %v7374 = vadd.f32 %v7373, %v7176
  %v7375 = vadd.f32 %v7374, %v7178
  %v7376 = vadd.f32 %v7375, %v7180
  %v7377 = vadd.f32 %v7376, %v7182
  %v7378 = vadd.f32 %v7377, %v7184
  %v7379 = vadd.f32 %v7378, %v7186
  %v7380 = vadd.f32 %v7379, %v7188
  %v7381 = vadd.f32 %v7380, %v7190
  %v7382 = vadd.f32 %v7381, %v7192
  %v7383 = vadd.f32 %v7382, %v7194
  %v7384 = vadd.f32 %v7383, %v7196
  %v7385 = vadd.f32 %v7384, %v7198
  %v7386 = vadd.f32 %v7385, %v7200
  %v7387 = vadd.f32 %v7386, %v7202
  %v7388 = vadd.f32 %v7387, %v7204
  %v7389 = vadd.f32 %v7388, %v7206
  %v7390 = vadd.f32 %v7389, %v7208
  %v7391 = vadd.f32 %v7390, %v7210
  %v7392 = vadd.f32 %v7391, %v7212
  %v7393 = vadd.f32 %v7392, %v7214
  %v7394 = vadd.f32 %v7393, %v7216
  %v7395 = vadd.f32 %v7394, %v7218
  %v7396 = vadd.f32 %v7395, %v7220
  %v7397 = vadd.f32 %v7396, %v7222
  %v7398 = vadd.f32 %v7397, %v7224
  %v7399 = vadd.f32 %v7398, %v7226
  %v7400 = vadd.f32 %v7399, %v7228
  %v7401 = vadd.f32 %v7400, %v7230
  %v7402 = vadd.f32 %v7401, %v7232
  %v7403 = vadd.f32 %v7402, %v7234
  %v7404 = vadd.f32 %v7403, %v7236
  %v7405 = vadd.f32 %v7404, %v7238
  %v7406 = vadd.f32 %v7405, %v7240
  %v7407 = vrot.slane %v7406, 4
  %v7408 = vadd.f32 %v7406, %v7407
  %v7409 = vrot.slane %v7408, 2
  %v7410 = vadd.f32 %v7408, %v7409
  %v7411 = vrot.slane %v7410, 1
  %v7412 = vadd.f32 %v7410, %v7411
  %v7413 = vmul.f32 %v7079, %v7079
  %v7414 = vmul.f32 %v7080, %v7080
  %v7415 = vmul.f32 %v7081, %v7081
  %v7416 = vmul.f32 %v7082, %v7082
  %v7417 = vmul.f32 %v7083, %v7083
  %v7418 = vmul.f32 %v7084, %v7084
  %v7419 = vmul.f32 %v7085, %v7085
  %v7420 = vmul.f32 %v7086, %v7086
  %v7421 = vmul.f32 %v7087, %v7087
  %v7422 = vmul.f32 %v7088, %v7088
  %v7423 = vmul.f32 %v7089, %v7089
  %v7424 = vmul.f32 %v7090, %v7090
  %v7425 = vmul.f32 %v7091, %v7091
  %v7426 = vmul.f32 %v7092, %v7092
  %v7427 = vmul.f32 %v7093, %v7093
  %v7428 = vmul.f32 %v7094, %v7094
  %v7429 = vmul.f32 %v7095, %v7095
  %v7430 = vmul.f32 %v7096, %v7096
  %v7431 = vmul.f32 %v7097, %v7097
  %v7432 = vmul.f32 %v7098, %v7098
  %v7433 = vmul.f32 %v7099, %v7099
  %v7434 = vmul.f32 %v7100, %v7100
  %v7435 = vmul.f32 %v7101, %v7101
  %v7436 = vmul.f32 %v7102, %v7102
  %v7437 = vmul.f32 %v7103, %v7103
  %v7438 = vmul.f32 %v7104, %v7104
  %v7439 = vmul.f32 %v7105, %v7105
  %v7440 = vmul.f32 %v7106, %v7106
  %v7441 = vmul.f32 %v7107, %v7107
  %v7442 = vmul.f32 %v7108, %v7108
  %v7443 = vmul.f32 %v7109, %v7109
  %v7444 = vmul.f32 %v7110, %v7110
  %v7445 = vmul.f32 %v7111, %v7111
  %v7446 = vmul.f32 %v7112, %v7112
  %v7447 = vmul.f32 %v7113, %v7113
  %v7448 = vmul.f32 %v7114, %v7114
  %v7449 = vmul.f32 %v7115, %v7115
  %v7450 = vmul.f32 %v7116, %v7116
  %v7451 = vmul.f32 %v7117, %v7117
  %v7452 = vmul.f32 %v7118, %v7118
  %v7453 = vmul.f32 %v7119, %v7119
  %v7454 = vmul.f32 %v7120, %v7120
  %v7455 = vmul.f32 %v7121, %v7121
  %v7456 = vmul.f32 %v7122, %v7122
  %v7457 = vmul.f32 %v7123, %v7123
  %v7458 = vmul.f32 %v7124, %v7124
  %v7459 = vmul.f32 %v7125, %v7125
  %v7460 = vmul.f32 %v7126, %v7126
  %v7461 = vmul.f32 %v7127, %v7127
  %v7462 = vmul.f32 %v7128, %v7128
  %v7463 = vmul.f32 %v7129, %v7129
  %v7464 = vmul.f32 %v7130, %v7130
  %v7465 = vmul.f32 %v7131, %v7131
  %v7466 = vmul.f32 %v7132, %v7132
  %v7467 = vmul.f32 %v7133, %v7133
  %v7468 = vmul.f32 %v7134, %v7134
  %v7469 = vmul.f32 %v7135, %v7135
  %v7470 = vmul.f32 %v7136, %v7136
  %v7471 = vmul.f32 %v7137, %v7137
  %v7472 = vmul.f32 %v7138, %v7138
  %v7473 = vmul.f32 %v7139, %v7139
  %v7474 = vmul.f32 %v7140, %v7140
  %v7475 = vmul.f32 %v7141, %v7141
  %v7476 = vmul.f32 %v7142, %v7142
  %v7477 = vmul.f32 %v7143, %v7143
  %v7478 = vmul.f32 %v7144, %v7144
  %v7479 = vmul.f32 %v7145, %v7145
  %v7480 = vmul.f32 %v7146, %v7146
  %v7481 = vmul.f32 %v7147, %v7147
  %v7482 = vmul.f32 %v7148, %v7148
  %v7483 = vmul.f32 %v7149, %v7149
  %v7484 = vmul.f32 %v7150, %v7150
  %v7485 = vmul.f32 %v7151, %v7151
  %v7486 = vmul.f32 %v7152, %v7152
  %v7487 = vmul.f32 %v7153, %v7153
  %v7488 = vmul.f32 %v7154, %v7154
  %v7489 = vmul.f32 %v7155, %v7155
  %v7490 = vmul.f32 %v7156, %v7156
  %v7491 = vmul.f32 %v7157, %v7157
  %v7492 = vmul.f32 %v7158, %v7158
  %v7493 = vmul.f32 %v7159, %v7159
  %v7494 = vmul.f32 %v7160, %v7160
  %v7495 = vmul.f32 %v7161, %v7161
  %v7496 = vmul.f32 %v7162, %v7162
  %v7497 = vmul.f32 %v7163, %v7163
  %v7498 = vmul.f32 %v7164, %v7164
  %v7499 = vmul.f32 %v7165, %v7165
  %v7500 = vmul.f32 %v7166, %v7166
  %v7501 = vmul.f32 %v7167, %v7167
  %v7502 = vmul.f32 %v7168, %v7168
  %v7503 = vmul.f32 %v7169, %v7169
  %v7504 = vmul.f32 %v7170, %v7170
  %v7505 = vmul.f32 %v7171, %v7171
  %v7506 = vmul.f32 %v7172, %v7172
  %v7507 = vmul.f32 %v7173, %v7173
  %v7508 = vmul.f32 %v7174, %v7174
  %v7509 = vmul.f32 %v7175, %v7175
  %v7510 = vmul.f32 %v7176, %v7176
  %v7511 = vmul.f32 %v7177, %v7177
  %v7512 = vmul.f32 %v7178, %v7178
  %v7513 = vmul.f32 %v7179, %v7179
  %v7514 = vmul.f32 %v7180, %v7180
  %v7515 = vmul.f32 %v7181, %v7181
  %v7516 = vmul.f32 %v7182, %v7182
  %v7517 = vmul.f32 %v7183, %v7183
  %v7518 = vmul.f32 %v7184, %v7184
  %v7519 = vmul.f32 %v7185, %v7185
  %v7520 = vmul.f32 %v7186, %v7186
  %v7521 = vmul.f32 %v7187, %v7187
  %v7522 = vmul.f32 %v7188, %v7188
  %v7523 = vmul.f32 %v7189, %v7189
  %v7524 = vmul.f32 %v7190, %v7190
  %v7525 = vmul.f32 %v7191, %v7191
  %v7526 = vmul.f32 %v7192, %v7192
  %v7527 = vmul.f32 %v7193, %v7193
  %v7528 = vmul.f32 %v7194, %v7194
  %v7529 = vmul.f32 %v7195, %v7195
  %v7530 = vmul.f32 %v7196, %v7196
  %v7531 = vmul.f32 %v7197, %v7197
  %v7532 = vmul.f32 %v7198, %v7198
  %v7533 = vmul.f32 %v7199, %v7199
  %v7534 = vmul.f32 %v7200, %v7200
  %v7535 = vmul.f32 %v7201, %v7201
  %v7536 = vmul.f32 %v7202, %v7202
  %v7537 = vmul.f32 %v7203, %v7203
  %v7538 = vmul.f32 %v7204, %v7204
  %v7539 = vmul.f32 %v7205, %v7205
  %v7540 = vmul.f32 %v7206, %v7206
  %v7541 = vmul.f32 %v7207, %v7207
  %v7542 = vmul.f32 %v7208, %v7208
  %v7543 = vmul.f32 %v7209, %v7209
  %v7544 = vmul.f32 %v7210, %v7210
  %v7545 = vmul.f32 %v7211, %v7211
  %v7546 = vmul.f32 %v7212, %v7212
  %v7547 = vmul.f32 %v7213, %v7213
  %v7548 = vmul.f32 %v7214, %v7214
  %v7549 = vmul.f32 %v7215, %v7215
  %v7550 = vmul.f32 %v7216, %v7216
  %v7551 = vmul.f32 %v7217, %v7217
  %v7552 = vmul.f32 %v7218, %v7218
  %v7553 = vmul.f32 %v7219, %v7219
  %v7554 = vmul.f32 %v7220, %v7220
  %v7555 = vmul.f32 %v7221, %v7221
  %v7556 = vmul.f32 %v7222, %v7222
  %v7557 = vmul.f32 %v7223, %v7223
  %v7558 = vmul.f32 %v7224, %v7224
  %v7559 = vmul.f32 %v7225, %v7225
  %v7560 = vmul.f32 %v7226, %v7226
  %v7561 = vmul.f32 %v7227, %v7227
  %v7562 = vmul.f32 %v7228, %v7228
  %v7563 = vmul.f32 %v7229, %v7229
  %v7564 = vmul.f32 %v7230, %v7230
  %v7565 = vmul.f32 %v7231, %v7231
  %v7566 = vmul.f32 %v7232, %v7232
  %v7567 = vmul.f32 %v7233, %v7233
  %v7568 = vmul.f32 %v7234, %v7234
  %v7569 = vmul.f32 %v7235, %v7235
  %v7570 = vmul.f32 %v7236, %v7236
  %v7571 = vmul.f32 %v7237, %v7237
  %v7572 = vmul.f32 %v7238, %v7238
  %v7573 = vmul.f32 %v7239, %v7239
  %v7574 = vmul.f32 %v7240, %v7240
  %v7575 = vadd.f32 %v7413, %v7415
  %v7576 = vadd.f32 %v7575, %v7417
  %v7577 = vadd.f32 %v7576, %v7419
  %v7578 = vadd.f32 %v7577, %v7421
  %v7579 = vadd.f32 %v7578, %v7423
  %v7580 = vadd.f32 %v7579, %v7425
  %v7581 = vadd.f32 %v7580, %v7427
  %v7582 = vadd.f32 %v7581, %v7429
  %v7583 = vadd.f32 %v7582, %v7431
  %v7584 = vadd.f32 %v7583, %v7433
  %v7585 = vadd.f32 %v7584, %v7435
  %v7586 = vadd.f32 %v7585, %v7437
  %v7587 = vadd.f32 %v7586, %v7439
  %v7588 = vadd.f32 %v7587, %v7441
  %v7589 = vadd.f32 %v7588, %v7443
  %v7590 = vadd.f32 %v7589, %v7445
  %v7591 = vadd.f32 %v7590, %v7447
  %v7592 = vadd.f32 %v7591, %v7449
  %v7593 = vadd.f32 %v7592, %v7451
  %v7594 = vadd.f32 %v7593, %v7453
  %v7595 = vadd.f32 %v7594, %v7455
  %v7596 = vadd.f32 %v7595, %v7457
  %v7597 = vadd.f32 %v7596, %v7459
  %v7598 = vadd.f32 %v7597, %v7461
  %v7599 = vadd.f32 %v7598, %v7463
  %v7600 = vadd.f32 %v7599, %v7465
  %v7601 = vadd.f32 %v7600, %v7467
  %v7602 = vadd.f32 %v7601, %v7469
  %v7603 = vadd.f32 %v7602, %v7471
  %v7604 = vadd.f32 %v7603, %v7473
  %v7605 = vadd.f32 %v7604, %v7475
  %v7606 = vadd.f32 %v7605, %v7477
  %v7607 = vadd.f32 %v7606, %v7479
  %v7608 = vadd.f32 %v7607, %v7481
  %v7609 = vadd.f32 %v7608, %v7483
  %v7610 = vadd.f32 %v7609, %v7485
  %v7611 = vadd.f32 %v7610, %v7487
  %v7612 = vadd.f32 %v7611, %v7489
  %v7613 = vadd.f32 %v7612, %v7491
  %v7614 = vadd.f32 %v7613, %v7493
  %v7615 = vadd.f32 %v7614, %v7495
  %v7616 = vadd.f32 %v7615, %v7497
  %v7617 = vadd.f32 %v7616, %v7499
  %v7618 = vadd.f32 %v7617, %v7501
  %v7619 = vadd.f32 %v7618, %v7503
  %v7620 = vadd.f32 %v7619, %v7505
  %v7621 = vadd.f32 %v7620, %v7507
  %v7622 = vadd.f32 %v7621, %v7509
  %v7623 = vadd.f32 %v7622, %v7511
  %v7624 = vadd.f32 %v7623, %v7513
  %v7625 = vadd.f32 %v7624, %v7515
  %v7626 = vadd.f32 %v7625, %v7517
  %v7627 = vadd.f32 %v7626, %v7519
  %v7628 = vadd.f32 %v7627, %v7521
  %v7629 = vadd.f32 %v7628, %v7523
  %v7630 = vadd.f32 %v7629, %v7525
  %v7631 = vadd.f32 %v7630, %v7527
  %v7632 = vadd.f32 %v7631, %v7529
  %v7633 = vadd.f32 %v7632, %v7531
  %v7634 = vadd.f32 %v7633, %v7533
  %v7635 = vadd.f32 %v7634, %v7535
  %v7636 = vadd.f32 %v7635, %v7537
  %v7637 = vadd.f32 %v7636, %v7539
  %v7638 = vadd.f32 %v7637, %v7541
  %v7639 = vadd.f32 %v7638, %v7543
  %v7640 = vadd.f32 %v7639, %v7545
  %v7641 = vadd.f32 %v7640, %v7547
  %v7642 = vadd.f32 %v7641, %v7549
  %v7643 = vadd.f32 %v7642, %v7551
  %v7644 = vadd.f32 %v7643, %v7553
  %v7645 = vadd.f32 %v7644, %v7555
  %v7646 = vadd.f32 %v7645, %v7557
  %v7647 = vadd.f32 %v7646, %v7559
  %v7648 = vadd.f32 %v7647, %v7561
  %v7649 = vadd.f32 %v7648, %v7563
  %v7650 = vadd.f32 %v7649, %v7565
  %v7651 = vadd.f32 %v7650, %v7567
  %v7652 = vadd.f32 %v7651, %v7569
  %v7653 = vadd.f32 %v7652, %v7571
  %v7654 = vadd.f32 %v7653, %v7573
  %v7655 = vrot.slane %v7654, 4
  %v7656 = vadd.f32 %v7654, %v7655
  %v7657 = vrot.slane %v7656, 2
  %v7658 = vadd.f32 %v7656, %v7657
  %v7659 = vrot.slane %v7658, 1
  %v7660 = vadd.f32 %v7658, %v7659
  %v7661 = vadd.f32 %v7414, %v7416
  %v7662 = vadd.f32 %v7661, %v7418
  %v7663 = vadd.f32 %v7662, %v7420
  %v7664 = vadd.f32 %v7663, %v7422
  %v7665 = vadd.f32 %v7664, %v7424
  %v7666 = vadd.f32 %v7665, %v7426
  %v7667 = vadd.f32 %v7666, %v7428
  %v7668 = vadd.f32 %v7667, %v7430
  %v7669 = vadd.f32 %v7668, %v7432
  %v7670 = vadd.f32 %v7669, %v7434
  %v7671 = vadd.f32 %v7670, %v7436
  %v7672 = vadd.f32 %v7671, %v7438
  %v7673 = vadd.f32 %v7672, %v7440
  %v7674 = vadd.f32 %v7673, %v7442
  %v7675 = vadd.f32 %v7674, %v7444
  %v7676 = vadd.f32 %v7675, %v7446
  %v7677 = vadd.f32 %v7676, %v7448
  %v7678 = vadd.f32 %v7677, %v7450
  %v7679 = vadd.f32 %v7678, %v7452
  %v7680 = vadd.f32 %v7679, %v7454
  %v7681 = vadd.f32 %v7680, %v7456
  %v7682 = vadd.f32 %v7681, %v7458
  %v7683 = vadd.f32 %v7682, %v7460
  %v7684 = vadd.f32 %v7683, %v7462
  %v7685 = vadd.f32 %v7684, %v7464
  %v7686 = vadd.f32 %v7685, %v7466
  %v7687 = vadd.f32 %v7686, %v7468
  %v7688 = vadd.f32 %v7687, %v7470
  %v7689 = vadd.f32 %v7688, %v7472
  %v7690 = vadd.f32 %v7689, %v7474
  %v7691 = vadd.f32 %v7690, %v7476
  %v7692 = vadd.f32 %v7691, %v7478
  %v7693 = vadd.f32 %v7692, %v7480
  %v7694 = vadd.f32 %v7693, %v7482
  %v7695 = vadd.f32 %v7694, %v7484
  %v7696 = vadd.f32 %v7695, %v7486
  %v7697 = vadd.f32 %v7696, %v7488
  %v7698 = vadd.f32 %v7697, %v7490
  %v7699 = vadd.f32 %v7698, %v7492
  %v7700 = vadd.f32 %v7699, %v7494
  %v7701 = vadd.f32 %v7700, %v7496
  %v7702 = vadd.f32 %v7701, %v7498
  %v7703 = vadd.f32 %v7702, %v7500
  %v7704 = vadd.f32 %v7703, %v7502
  %v7705 = vadd.f32 %v7704, %v7504
  %v7706 = vadd.f32 %v7705, %v7506
  %v7707 = vadd.f32 %v7706, %v7508
  %v7708 = vadd.f32 %v7707, %v7510
  %v7709 = vadd.f32 %v7708, %v7512
  %v7710 = vadd.f32 %v7709, %v7514
  %v7711 = vadd.f32 %v7710, %v7516
  %v7712 = vadd.f32 %v7711, %v7518
  %v7713 = vadd.f32 %v7712, %v7520
  %v7714 = vadd.f32 %v7713, %v7522
  %v7715 = vadd.f32 %v7714, %v7524
  %v7716 = vadd.f32 %v7715, %v7526
  %v7717 = vadd.f32 %v7716, %v7528
  %v7718 = vadd.f32 %v7717, %v7530
  %v7719 = vadd.f32 %v7718, %v7532
  %v7720 = vadd.f32 %v7719, %v7534
  %v7721 = vadd.f32 %v7720, %v7536
  %v7722 = vadd.f32 %v7721, %v7538
  %v7723 = vadd.f32 %v7722, %v7540
  %v7724 = vadd.f32 %v7723, %v7542
  %v7725 = vadd.f32 %v7724, %v7544
  %v7726 = vadd.f32 %v7725, %v7546
  %v7727 = vadd.f32 %v7726, %v7548
  %v7728 = vadd.f32 %v7727, %v7550
  %v7729 = vadd.f32 %v7728, %v7552
  %v7730 = vadd.f32 %v7729, %v7554
  %v7731 = vadd.f32 %v7730, %v7556
  %v7732 = vadd.f32 %v7731, %v7558
  %v7733 = vadd.f32 %v7732, %v7560
  %v7734 = vadd.f32 %v7733, %v7562
  %v7735 = vadd.f32 %v7734, %v7564
  %v7736 = vadd.f32 %v7735, %v7566
  %v7737 = vadd.f32 %v7736, %v7568
  %v7738 = vadd.f32 %v7737, %v7570
  %v7739 = vadd.f32 %v7738, %v7572
  %v7740 = vadd.f32 %v7739, %v7574
  %v7741 = vrot.slane %v7740, 4
  %v7742 = vadd.f32 %v7740, %v7741
  %v7743 = vrot.slane %v7742, 2
  %v7744 = vadd.f32 %v7742, %v7743
  %v7745 = vrot.slane %v7744, 1
  %v7746 = vadd.f32 %v7744, %v7745
  %v7747 = vmul.f32 %v7326, 0.001953125
  %v7748 = vmul.f32 %v7412, 0.001953125
  %v7749 = vmul.f32 %v7660, 0.001953125
  %v7750 = vmul.f32 %v7746, 0.001953125
  %v7751 = vmul.f32 %v7747, %v7747
  %v7752 = vmul.f32 %v7748, %v7748
  %v7753 = vsub.f32 %v7749, %v7751
  %v7754 = vsub.f32 %v7750, %v7752
  %v7755 = vmax.f32 %v7753, 0.0
  %v7756 = vmax.f32 %v7754, 0.0
  %v7757 = vld [vmem:[%s6] sm:$0x3]
  %v7758 = vadd.f32 %v7755, 1e-05
  %v7759 = vadd.f32 %v7756, 1e-05
  %v7760 = vrsqrt.pop %v7758
  %v7761 = vmul.f32 %v7760, %v7758
  %v7762 = vmul.f32 %v7761, %v7760
  %v7763 = vmul.f32 0.5, %v7762
  %v7764 = vsub.f32 1.5, %v7763
  %v7765 = vmul.f32 %v7760, %v7764
  %vm7766 = vweird.f32 %v7758
  %vm7767 = vweird.f32 %v7760
  %vm7768 = vmor %vm7766, %vm7767
  %v7769 = vsel %vm7768, %v7760, %v7765
  %v7770 = vrsqrt.pop %v7759
  %v7771 = vmul.f32 %v7770, %v7759
  %v7772 = vmul.f32 %v7771, %v7770
  %v7773 = vmul.f32 0.5, %v7772
  %v7774 = vsub.f32 1.5, %v7773
  %v7775 = vmul.f32 %v7770, %v7774
  %vm7776 = vweird.f32 %v7759
  %vm7777 = vweird.f32 %v7770
  %vm7778 = vmor %vm7776, %vm7777
  %v7779 = vsel %vm7778, %v7770, %v7775
  %v7782 = vrot.slane %v7779, 7
  %vm7783 = vcmask 1040384
  %v7784 = vsel %vm7783, %v7769, %v7782
  %v7786 = vmul.f32 %v7757, %v7784
  %v7787 = vld [vmem:[%s7] sm:$0x3]
  %v7789 = vperm.slane %v7786, 0
  %v7790 = vperm.slane %v7786, 1
  %v7793 = vmul.f32 %v7747, %v7789
  %v7794 = vmul.f32 %v7748, %v7790
  %v7797 = vrot.slane %v7794, 7
  %v7798 = vsel %vm7783, %v7793, %v7797
  %v7800 = vsub.f32 %v7787, %v7798
  %v7801 = vmul.f32 %v7079, %v7789
  %v7802 = vmul.f32 %v7080, %v7790
  %v7803 = vmul.f32 %v7081, %v7789
  %v7804 = vmul.f32 %v7082, %v7790
  %v7805 = vmul.f32 %v7083, %v7789
  %v7806 = vmul.f32 %v7084, %v7790
  %v7807 = vmul.f32 %v7085, %v7789
  %v7808 = vmul.f32 %v7086, %v7790
  %v7809 = vmul.f32 %v7087, %v7789
  %v7810 = vmul.f32 %v7088, %v7790
  %v7811 = vmul.f32 %v7089, %v7789
  %v7812 = vmul.f32 %v7090, %v7790
  %v7813 = vmul.f32 %v7091, %v7789
  %v7814 = vmul.f32 %v7092, %v7790
  %v7815 = vmul.f32 %v7093, %v7789
  %v7816 = vmul.f32 %v7094, %v7790
  %v7817 = vmul.f32 %v7095, %v7789
  %v7818 = vmul.f32 %v7096, %v7790
  %v7819 = vmul.f32 %v7097, %v7789
  %v7820 = vmul.f32 %v7098, %v7790
  %v7821 = vmul.f32 %v7099, %v7789
  %v7822 = vmul.f32 %v7100, %v7790
  %v7823 = vmul.f32 %v7101, %v7789
  %v7824 = vmul.f32 %v7102, %v7790
  %v7825 = vmul.f32 %v7103, %v7789
  %v7826 = vmul.f32 %v7104, %v7790
  %v7827 = vmul.f32 %v7105, %v7789
  %v7828 = vmul.f32 %v7106, %v7790
  %v7829 = vmul.f32 %v7107, %v7789
  %v7830 = vmul.f32 %v7108, %v7790
  %v7831 = vmul.f32 %v7109, %v7789
  %v7832 = vmul.f32 %v7110, %v7790
  %v7833 = vmul.f32 %v7111, %v7789
  %v7834 = vmul.f32 %v7112, %v7790
  %v7835 = vmul.f32 %v7113, %v7789
  %v7836 = vmul.f32 %v7114, %v7790
  %v7837 = vmul.f32 %v7115, %v7789
  %v7838 = vmul.f32 %v7116, %v7790
  %v7839 = vmul.f32 %v7117, %v7789
  %v7840 = vmul.f32 %v7118, %v7790
  %v7841 = vmul.f32 %v7119, %v7789
  %v7842 = vmul.f32 %v7120, %v7790
  %v7843 = vmul.f32 %v7121, %v7789
  %v7844 = vmul.f32 %v7122, %v7790
  %v7845 = vmul.f32 %v7123, %v7789
  %v7846 = vmul.f32 %v7124, %v7790
  %v7847 = vmul.f32 %v7125, %v7789
  %v7848 = vmul.f32 %v7126, %v7790
  %v7849 = vmul.f32 %v7127, %v7789
  %v7850 = vmul.f32 %v7128, %v7790
  %v7851 = vmul.f32 %v7129, %v7789
  %v7852 = vmul.f32 %v7130, %v7790
  %v7853 = vmul.f32 %v7131, %v7789
  %v7854 = vmul.f32 %v7132, %v7790
  %v7855 = vmul.f32 %v7133, %v7789
  %v7856 = vmul.f32 %v7134, %v7790
  %v7857 = vmul.f32 %v7135, %v7789
  %v7858 = vmul.f32 %v7136, %v7790
  %v7859 = vmul.f32 %v7137, %v7789
  %v7860 = vmul.f32 %v7138, %v7790
  %v7861 = vmul.f32 %v7139, %v7789
  %v7862 = vmul.f32 %v7140, %v7790
  %v7863 = vmul.f32 %v7141, %v7789
  %v7864 = vmul.f32 %v7142, %v7790
  %v7865 = vmul.f32 %v7143, %v7789
  %v7866 = vmul.f32 %v7144, %v7790
  %v7867 = vmul.f32 %v7145, %v7789
  %v7868 = vmul.f32 %v7146, %v7790
  %v7869 = vmul.f32 %v7147, %v7789
  %v7870 = vmul.f32 %v7148, %v7790
  %v7871 = vmul.f32 %v7149, %v7789
  %v7872 = vmul.f32 %v7150, %v7790
  %v7873 = vmul.f32 %v7151, %v7789
  %v7874 = vmul.f32 %v7152, %v7790
  %v7875 = vmul.f32 %v7153, %v7789
  %v7876 = vmul.f32 %v7154, %v7790
  %v7877 = vmul.f32 %v7155, %v7789
  %v7878 = vmul.f32 %v7156, %v7790
  %v7879 = vmul.f32 %v7157, %v7789
  %v7880 = vmul.f32 %v7158, %v7790
  %v7881 = vmul.f32 %v7159, %v7789
  %v7882 = vmul.f32 %v7160, %v7790
  %v7883 = vmul.f32 %v7161, %v7789
  %v7884 = vmul.f32 %v7162, %v7790
  %v7885 = vmul.f32 %v7163, %v7789
  %v7886 = vmul.f32 %v7164, %v7790
  %v7887 = vmul.f32 %v7165, %v7789
  %v7888 = vmul.f32 %v7166, %v7790
  %v7889 = vmul.f32 %v7167, %v7789
  %v7890 = vmul.f32 %v7168, %v7790
  %v7891 = vmul.f32 %v7169, %v7789
  %v7892 = vmul.f32 %v7170, %v7790
  %v7893 = vmul.f32 %v7171, %v7789
  %v7894 = vmul.f32 %v7172, %v7790
  %v7895 = vmul.f32 %v7173, %v7789
  %v7896 = vmul.f32 %v7174, %v7790
  %v7897 = vmul.f32 %v7175, %v7789
  %v7898 = vmul.f32 %v7176, %v7790
  %v7899 = vmul.f32 %v7177, %v7789
  %v7900 = vmul.f32 %v7178, %v7790
  %v7901 = vmul.f32 %v7179, %v7789
  %v7902 = vmul.f32 %v7180, %v7790
  %v7903 = vmul.f32 %v7181, %v7789
  %v7904 = vmul.f32 %v7182, %v7790
  %v7905 = vmul.f32 %v7183, %v7789
  %v7906 = vmul.f32 %v7184, %v7790
  %v7907 = vmul.f32 %v7185, %v7789
  %v7908 = vmul.f32 %v7186, %v7790
  %v7909 = vmul.f32 %v7187, %v7789
  %v7910 = vmul.f32 %v7188, %v7790
  %v7911 = vmul.f32 %v7189, %v7789
  %v7912 = vmul.f32 %v7190, %v7790
  %v7913 = vmul.f32 %v7191, %v7789
  %v7914 = vmul.f32 %v7192, %v7790
  %v7915 = vmul.f32 %v7193, %v7789
  %v7916 = vmul.f32 %v7194, %v7790
  %v7917 = vmul.f32 %v7195, %v7789
  %v7918 = vmul.f32 %v7196, %v7790
  %v7919 = vmul.f32 %v7197, %v7789
  %v7920 = vmul.f32 %v7198, %v7790
  %v7921 = vmul.f32 %v7199, %v7789
  %v7922 = vmul.f32 %v7200, %v7790
  %v7923 = vmul.f32 %v7201, %v7789
  %v7924 = vmul.f32 %v7202, %v7790
  %v7925 = vmul.f32 %v7203, %v7789
  %v7926 = vmul.f32 %v7204, %v7790
  %v7927 = vmul.f32 %v7205, %v7789
  %v7928 = vmul.f32 %v7206, %v7790
  %v7929 = vmul.f32 %v7207, %v7789
  %v7930 = vmul.f32 %v7208, %v7790
  %v7931 = vmul.f32 %v7209, %v7789
  %v7932 = vmul.f32 %v7210, %v7790
  %v7933 = vmul.f32 %v7211, %v7789
  %v7934 = vmul.f32 %v7212, %v7790
  %v7935 = vmul.f32 %v7213, %v7789
  %v7936 = vmul.f32 %v7214, %v7790
  %v7937 = vmul.f32 %v7215, %v7789
  %v7938 = vmul.f32 %v7216, %v7790
  %v7939 = vmul.f32 %v7217, %v7789
  %v7940 = vmul.f32 %v7218, %v7790
  %v7941 = vmul.f32 %v7219, %v7789
  %v7942 = vmul.f32 %v7220, %v7790
  %v7943 = vmul.f32 %v7221, %v7789
  %v7944 = vmul.f32 %v7222, %v7790
  %v7945 = vmul.f32 %v7223, %v7789
  %v7946 = vmul.f32 %v7224, %v7790
  %v7947 = vmul.f32 %v7225, %v7789
  %v7948 = vmul.f32 %v7226, %v7790
  %v7949 = vmul.f32 %v7227, %v7789
  %v7950 = vmul.f32 %v7228, %v7790
  %v7951 = vmul.f32 %v7229, %v7789
  %v7952 = vmul.f32 %v7230, %v7790
  %v7953 = vmul.f32 %v7231, %v7789
  %v7954 = vmul.f32 %v7232, %v7790
  %v7955 = vmul.f32 %v7233, %v7789
  %v7956 = vmul.f32 %v7234, %v7790
  %v7957 = vmul.f32 %v7235, %v7789
  %v7958 = vmul.f32 %v7236, %v7790
  %v7959 = vmul.f32 %v7237, %v7789
  %v7960 = vmul.f32 %v7238, %v7790
  %v7961 = vmul.f32 %v7239, %v7789
  %v7962 = vmul.f32 %v7240, %v7790
  %v7964 = vperm.slane %v7800, 0
  %v7965 = vperm.slane %v7800, 1
  %v7968 = vadd.f32 %v7801, %v7964
  %v7969 = vadd.f32 %v7802, %v7965
  %v7970 = vadd.f32 %v7803, %v7964
  %v7971 = vadd.f32 %v7804, %v7965
  %v7972 = vadd.f32 %v7805, %v7964
  %v7973 = vadd.f32 %v7806, %v7965
  %v7974 = vadd.f32 %v7807, %v7964
  %v7975 = vadd.f32 %v7808, %v7965
  %v7976 = vadd.f32 %v7809, %v7964
  %v7977 = vadd.f32 %v7810, %v7965
  %v7978 = vadd.f32 %v7811, %v7964
  %v7979 = vadd.f32 %v7812, %v7965
  %v7980 = vadd.f32 %v7813, %v7964
  %v7981 = vadd.f32 %v7814, %v7965
  %v7982 = vadd.f32 %v7815, %v7964
  %v7983 = vadd.f32 %v7816, %v7965
  %v7984 = vadd.f32 %v7817, %v7964
  %v7985 = vadd.f32 %v7818, %v7965
  %v7986 = vadd.f32 %v7819, %v7964
  %v7987 = vadd.f32 %v7820, %v7965
  %v7988 = vadd.f32 %v7821, %v7964
  %v7989 = vadd.f32 %v7822, %v7965
  %v7990 = vadd.f32 %v7823, %v7964
  %v7991 = vadd.f32 %v7824, %v7965
  %v7992 = vadd.f32 %v7825, %v7964
  %v7993 = vadd.f32 %v7826, %v7965
  %v7994 = vadd.f32 %v7827, %v7964
  %v7995 = vadd.f32 %v7828, %v7965
  %v7996 = vadd.f32 %v7829, %v7964
  %v7997 = vadd.f32 %v7830, %v7965
  %v7998 = vadd.f32 %v7831, %v7964
  %v7999 = vadd.f32 %v7832, %v7965
  %v8000 = vadd.f32 %v7833, %v7964
  %v8001 = vadd.f32 %v7834, %v7965
  %v8002 = vadd.f32 %v7835, %v7964
  %v8003 = vadd.f32 %v7836, %v7965
  %v8004 = vadd.f32 %v7837, %v7964
  %v8005 = vadd.f32 %v7838, %v7965
  %v8006 = vadd.f32 %v7839, %v7964
  %v8007 = vadd.f32 %v7840, %v7965
  %v8008 = vadd.f32 %v7841, %v7964
  %v8009 = vadd.f32 %v7842, %v7965
  %v8010 = vadd.f32 %v7843, %v7964
  %v8011 = vadd.f32 %v7844, %v7965
  %v8012 = vadd.f32 %v7845, %v7964
  %v8013 = vadd.f32 %v7846, %v7965
  %v8014 = vadd.f32 %v7847, %v7964
  %v8015 = vadd.f32 %v7848, %v7965
  %v8016 = vadd.f32 %v7849, %v7964
  %v8017 = vadd.f32 %v7850, %v7965
  %v8018 = vadd.f32 %v7851, %v7964
  %v8019 = vadd.f32 %v7852, %v7965
  %v8020 = vadd.f32 %v7853, %v7964
  %v8021 = vadd.f32 %v7854, %v7965
  %v8022 = vadd.f32 %v7855, %v7964
  %v8023 = vadd.f32 %v7856, %v7965
  %v8024 = vadd.f32 %v7857, %v7964
  %v8025 = vadd.f32 %v7858, %v7965
  %v8026 = vadd.f32 %v7859, %v7964
  %v8027 = vadd.f32 %v7860, %v7965
  %v8028 = vadd.f32 %v7861, %v7964
  %v8029 = vadd.f32 %v7862, %v7965
  %v8030 = vadd.f32 %v7863, %v7964
  %v8031 = vadd.f32 %v7864, %v7965
  %v8032 = vadd.f32 %v7865, %v7964
  %v8033 = vadd.f32 %v7866, %v7965
  %v8034 = vadd.f32 %v7867, %v7964
  %v8035 = vadd.f32 %v7868, %v7965
  %v8036 = vadd.f32 %v7869, %v7964
  %v8037 = vadd.f32 %v7870, %v7965
  %v8038 = vadd.f32 %v7871, %v7964
  %v8039 = vadd.f32 %v7872, %v7965
  %v8040 = vadd.f32 %v7873, %v7964
  %v8041 = vadd.f32 %v7874, %v7965
  %v8042 = vadd.f32 %v7875, %v7964
  %v8043 = vadd.f32 %v7876, %v7965
  %v8044 = vadd.f32 %v7877, %v7964
  %v8045 = vadd.f32 %v7878, %v7965
  %v8046 = vadd.f32 %v7879, %v7964
  %v8047 = vadd.f32 %v7880, %v7965
  %v8048 = vadd.f32 %v7881, %v7964
  %v8049 = vadd.f32 %v7882, %v7965
  %v8050 = vadd.f32 %v7883, %v7964
  %v8051 = vadd.f32 %v7884, %v7965
  %v8052 = vadd.f32 %v7885, %v7964
  %v8053 = vadd.f32 %v7886, %v7965
  %v8054 = vadd.f32 %v7887, %v7964
  %v8055 = vadd.f32 %v7888, %v7965
  %v8056 = vadd.f32 %v7889, %v7964
  %v8057 = vadd.f32 %v7890, %v7965
  %v8058 = vadd.f32 %v7891, %v7964
  %v8059 = vadd.f32 %v7892, %v7965
  %v8060 = vadd.f32 %v7893, %v7964
  %v8061 = vadd.f32 %v7894, %v7965
  %v8062 = vadd.f32 %v7895, %v7964
  %v8063 = vadd.f32 %v7896, %v7965
  %v8064 = vadd.f32 %v7897, %v7964
  %v8065 = vadd.f32 %v7898, %v7965
  %v8066 = vadd.f32 %v7899, %v7964
  %v8067 = vadd.f32 %v7900, %v7965
  %v8068 = vadd.f32 %v7901, %v7964
  %v8069 = vadd.f32 %v7902, %v7965
  %v8070 = vadd.f32 %v7903, %v7964
  %v8071 = vadd.f32 %v7904, %v7965
  %v8072 = vadd.f32 %v7905, %v7964
  %v8073 = vadd.f32 %v7906, %v7965
  %v8074 = vadd.f32 %v7907, %v7964
  %v8075 = vadd.f32 %v7908, %v7965
  %v8076 = vadd.f32 %v7909, %v7964
  %v8077 = vadd.f32 %v7910, %v7965
  %v8078 = vadd.f32 %v7911, %v7964
  %v8079 = vadd.f32 %v7912, %v7965
  %v8080 = vadd.f32 %v7913, %v7964
  %v8081 = vadd.f32 %v7914, %v7965
  %v8082 = vadd.f32 %v7915, %v7964
  %v8083 = vadd.f32 %v7916, %v7965
  %v8084 = vadd.f32 %v7917, %v7964
  %v8085 = vadd.f32 %v7918, %v7965
  %v8086 = vadd.f32 %v7919, %v7964
  %v8087 = vadd.f32 %v7920, %v7965
  %v8088 = vadd.f32 %v7921, %v7964
  %v8089 = vadd.f32 %v7922, %v7965
  %v8090 = vadd.f32 %v7923, %v7964
  %v8091 = vadd.f32 %v7924, %v7965
  %v8092 = vadd.f32 %v7925, %v7964
  %v8093 = vadd.f32 %v7926, %v7965
  %v8094 = vadd.f32 %v7927, %v7964
  %v8095 = vadd.f32 %v7928, %v7965
  %v8096 = vadd.f32 %v7929, %v7964
  %v8097 = vadd.f32 %v7930, %v7965
  %v8098 = vadd.f32 %v7931, %v7964
  %v8099 = vadd.f32 %v7932, %v7965
  %v8100 = vadd.f32 %v7933, %v7964
  %v8101 = vadd.f32 %v7934, %v7965
  %v8102 = vadd.f32 %v7935, %v7964
  %v8103 = vadd.f32 %v7936, %v7965
  %v8104 = vadd.f32 %v7937, %v7964
  %v8105 = vadd.f32 %v7938, %v7965
  %v8106 = vadd.f32 %v7939, %v7964
  %v8107 = vadd.f32 %v7940, %v7965
  %v8108 = vadd.f32 %v7941, %v7964
  %v8109 = vadd.f32 %v7942, %v7965
  %v8110 = vadd.f32 %v7943, %v7964
  %v8111 = vadd.f32 %v7944, %v7965
  %v8112 = vadd.f32 %v7945, %v7964
  %v8113 = vadd.f32 %v7946, %v7965
  %v8114 = vadd.f32 %v7947, %v7964
  %v8115 = vadd.f32 %v7948, %v7965
  %v8116 = vadd.f32 %v7949, %v7964
  %v8117 = vadd.f32 %v7950, %v7965
  %v8118 = vadd.f32 %v7951, %v7964
  %v8119 = vadd.f32 %v7952, %v7965
  %v8120 = vadd.f32 %v7953, %v7964
  %v8121 = vadd.f32 %v7954, %v7965
  %v8122 = vadd.f32 %v7955, %v7964
  %v8123 = vadd.f32 %v7956, %v7965
  %v8124 = vadd.f32 %v7957, %v7964
  %v8125 = vadd.f32 %v7958, %v7965
  %v8126 = vadd.f32 %v7959, %v7964
  %v8127 = vadd.f32 %v7960, %v7965
  %v8128 = vadd.f32 %v7961, %v7964
  %v8129 = vadd.f32 %v7962, %v7965
  %8130 = vst [vmem:[%s8] sm:$0xff] %v7968
  %8131 = vst [vmem:[%s8 + $0x8] sm:$0xff] %v7969
  %8132 = vst [vmem:[%s8 + $0x10] sm:$0xff] %v7970
  %8133 = vst [vmem:[%s8 + $0x18] sm:$0xff] %v7971
  %8134 = vst [vmem:[%s8 + $0x20] sm:$0xff] %v7972
  %8135 = vst [vmem:[%s8 + $0x28] sm:$0xff] %v7973
  %8136 = vst [vmem:[%s8 + $0x30] sm:$0xff] %v7974
  %8137 = vst [vmem:[%s8 + $0x38] sm:$0xff] %v7975
  %8138 = vst [vmem:[%s8 + $0x40] sm:$0xff] %v7976
  %8139 = vst [vmem:[%s8 + $0x48] sm:$0xff] %v7977
  %8140 = vst [vmem:[%s8 + $0x50] sm:$0xff] %v7978
  %8141 = vst [vmem:[%s8 + $0x58] sm:$0xff] %v7979
  %8142 = vst [vmem:[%s8 + $0x60] sm:$0xff] %v7980
  %8143 = vst [vmem:[%s8 + $0x68] sm:$0xff] %v7981
  %8144 = vst [vmem:[%s8 + $0x70] sm:$0xff] %v7982
  %8145 = vst [vmem:[%s8 + $0x78] sm:$0xff] %v7983
  %8146 = vst [vmem:[%s8 + $0x80] sm:$0xff] %v7984
  %8147 = vst [vmem:[%s8 + $0x88] sm:$0xff] %v7985
  %8148 = vst [vmem:[%s8 + $0x90] sm:$0xff] %v7986
  %8149 = vst [vmem:[%s8 + $0x98] sm:$0xff] %v7987
  %8150 = vst [vmem:[%s8 + $0xa0] sm:$0xff] %v7988
  %8151 = vst [vmem:[%s8 + $0xa8] sm:$0xff] %v7989
  %8152 = vst [vmem:[%s8 + $0xb0] sm:$0xff] %v7990
  %8153 = vst [vmem:[%s8 + $0xb8] sm:$0xff] %v7991
  %8154 = vst [vmem:[%s8 + $0xc0] sm:$0xff] %v7992
  %8155 = vst [vmem:[%s8 + $0xc8] sm:$0xff] %v7993
  %8156 = vst [vmem:[%s8 + $0xd0] sm:$0xff] %v7994
  %8157 = vst [vmem:[%s8 + $0xd8] sm:$0xff] %v7995
  %8158 = vst [vmem:[%s8 + $0xe0] sm:$0xff] %v7996
  %8159 = vst [vmem:[%s8 + $0xe8] sm:$0xff] %v7997
  %8160 = vst [vmem:[%s8 + $0xf0] sm:$0xff] %v7998
  %8161 = vst [vmem:[%s8 + $0xf8] sm:$0xff] %v7999
  %8162 = vst [vmem:[%s8 + $0x100] sm:$0xff] %v8000
  %8163 = vst [vmem:[%s8 + $0x108] sm:$0xff] %v8001
  %8164 = vst [vmem:[%s8 + $0x110] sm:$0xff] %v8002
  %8165 = vst [vmem:[%s8 + $0x118] sm:$0xff] %v8003
  %8166 = vst [vmem:[%s8 + $0x120] sm:$0xff] %v8004
  %8167 = vst [vmem:[%s8 + $0x128] sm:$0xff] %v8005
  %8168 = vst [vmem:[%s8 + $0x130] sm:$0xff] %v8006
  %8169 = vst [vmem:[%s8 + $0x138] sm:$0xff] %v8007
  %8170 = vst [vmem:[%s8 + $0x140] sm:$0xff] %v8008
  %8171 = vst [vmem:[%s8 + $0x148] sm:$0xff] %v8009
  %8172 = vst [vmem:[%s8 + $0x150] sm:$0xff] %v8010
  %8173 = vst [vmem:[%s8 + $0x158] sm:$0xff] %v8011
  %8174 = vst [vmem:[%s8 + $0x160] sm:$0xff] %v8012
  %8175 = vst [vmem:[%s8 + $0x168] sm:$0xff] %v8013
  %8176 = vst [vmem:[%s8 + $0x170] sm:$0xff] %v8014
  %8177 = vst [vmem:[%s8 + $0x178] sm:$0xff] %v8015
  %8178 = vst [vmem:[%s8 + $0x180] sm:$0xff] %v8016
  %8179 = vst [vmem:[%s8 + $0x188] sm:$0xff] %v8017
  %8180 = vst [vmem:[%s8 + $0x190] sm:$0xff] %v8018
  %8181 = vst [vmem:[%s8 + $0x198] sm:$0xff] %v8019
  %8182 = vst [vmem:[%s8 + $0x1a0] sm:$0xff] %v8020
  %8183 = vst [vmem:[%s8 + $0x1a8] sm:$0xff] %v8021
  %8184 = vst [vmem:[%s8 + $0x1b0] sm:$0xff] %v8022
  %8185 = vst [vmem:[%s8 + $0x1b8] sm:$0xff] %v8023
  %8186 = vst [vmem:[%s8 + $0x1c0] sm:$0xff] %v8024
  %8187 = vst [vmem:[%s8 + $0x1c8] sm:$0xff] %v8025
  %8188 = vst [vmem:[%s8 + $0x1d0] sm:$0xff] %v8026
  %8189 = vst [vmem:[%s8 + $0x1d8] sm:$0xff] %v8027
  %8190 = vst [vmem:[%s8 + $0x1e0] sm:$0xff] %v8028
  %8191 = vst [vmem:[%s8 + $0x1e8] sm:$0xff] %v8029
  %8192 = vst [vmem:[%s8 + $0x1f0] sm:$0xff] %v8030
  %8193 = vst [vmem:[%s8 + $0x1f8] sm:$0xff] %v8031
  %8194 = vst [vmem:[%s8 + $0x200] sm:$0xff] %v8032
  %8195 = vst [vmem:[%s8 + $0x208] sm:$0xff] %v8033
  %8196 = vst [vmem:[%s8 + $0x210] sm:$0xff] %v8034
  %8197 = vst [vmem:[%s8 + $0x218] sm:$0xff] %v8035
  %8198 = vst [vmem:[%s8 + $0x220] sm:$0xff] %v8036
  %8199 = vst [vmem:[%s8 + $0x228] sm:$0xff] %v8037
  %8200 = vst [vmem:[%s8 + $0x230] sm:$0xff] %v8038
  %8201 = vst [vmem:[%s8 + $0x238] sm:$0xff] %v8039
  %8202 = vst [vmem:[%s8 + $0x240] sm:$0xff] %v8040
  %8203 = vst [vmem:[%s8 + $0x248] sm:$0xff] %v8041
  %8204 = vst [vmem:[%s8 + $0x250] sm:$0xff] %v8042
  %8205 = vst [vmem:[%s8 + $0x258] sm:$0xff] %v8043
  %8206 = vst [vmem:[%s8 + $0x260] sm:$0xff] %v8044
  %8207 = vst [vmem:[%s8 + $0x268] sm:$0xff] %v8045
  %8208 = vst [vmem:[%s8 + $0x270] sm:$0xff] %v8046
  %8209 = vst [vmem:[%s8 + $0x278] sm:$0xff] %v8047
  %8210 = vst [vmem:[%s8 + $0x280] sm:$0xff] %v8048
  %8211 = vst [vmem:[%s8 + $0x288] sm:$0xff] %v8049
  %8212 = vst [vmem:[%s8 + $0x290] sm:$0xff] %v8050
  %8213 = vst [vmem:[%s8 + $0x298] sm:$0xff] %v8051
  %8214 = vst [vmem:[%s8 + $0x2a0] sm:$0xff] %v8052
  %8215 = vst [vmem:[%s8 + $0x2a8] sm:$0xff] %v8053
  %8216 = vst [vmem:[%s8 + $0x2b0] sm:$0xff] %v8054
  %8217 = vst [vmem:[%s8 + $0x2b8] sm:$0xff] %v8055
  %8218 = vst [vmem:[%s8 + $0x2c0] sm:$0xff] %v8056
  %8219 = vst [vmem:[%s8 + $0x2c8] sm:$0xff] %v8057
  %8220 = vst [vmem:[%s8 + $0x2d0] sm:$0xff] %v8058
  %8221 = vst [vmem:[%s8 + $0x2d8] sm:$0xff] %v8059
  %8222 = vst [vmem:[%s8 + $0x2e0] sm:$0xff] %v8060
  %8223 = vst [vmem:[%s8 + $0x2e8] sm:$0xff] %v8061
  %8224 = vst [vmem:[%s8 + $0x2f0] sm:$0xff] %v8062
  %8225 = vst [vmem:[%s8 + $0x2f8] sm:$0xff] %v8063
  %8226 = vst [vmem:[%s8 + $0x300] sm:$0xff] %v8064
  %8227 = vst [vmem:[%s8 + $0x308] sm:$0xff] %v8065
  %8228 = vst [vmem:[%s8 + $0x310] sm:$0xff] %v8066
  %8229 = vst [vmem:[%s8 + $0x318] sm:$0xff] %v8067
  %8230 = vst [vmem:[%s8 + $0x320] sm:$0xff] %v8068
  %8231 = vst [vmem:[%s8 + $0x328] sm:$0xff] %v8069
  %8232 = vst [vmem:[%s8 + $0x330] sm:$0xff] %v8070
  %8233 = vst [vmem:[%s8 + $0x338] sm:$0xff] %v8071
  %8234 = vst [vmem:[%s8 + $0x340] sm:$0xff] %v8072
  %8235 = vst [vmem:[%s8 + $0x348] sm:$0xff] %v8073
  %8236 = vst [vmem:[%s8 + $0x350] sm:$0xff] %v8074
  %8237 = vst [vmem:[%s8 + $0x358] sm:$0xff] %v8075
  %8238 = vst [vmem:[%s8 + $0x360] sm:$0xff] %v8076
  %8239 = vst [vmem:[%s8 + $0x368] sm:$0xff] %v8077
  %8240 = vst [vmem:[%s8 + $0x370] sm:$0xff] %v8078
  %8241 = vst [vmem:[%s8 + $0x378] sm:$0xff] %v8079
  %8242 = vst [vmem:[%s8 + $0x380] sm:$0xff] %v8080
  %8243 = vst [vmem:[%s8 + $0x388] sm:$0xff] %v8081
  %8244 = vst [vmem:[%s8 + $0x390] sm:$0xff] %v8082
  %8245 = vst [vmem:[%s8 + $0x398] sm:$0xff] %v8083
  %8246 = vst [vmem:[%s8 + $0x3a0] sm:$0xff] %v8084
  %8247 = vst [vmem:[%s8 + $0x3a8] sm:$0xff] %v8085
  %8248 = vst [vmem:[%s8 + $0x3b0] sm:$0xff] %v8086
  %8249 = vst [vmem:[%s8 + $0x3b8] sm:$0xff] %v8087
  %8250 = vst [vmem:[%s8 + $0x3c0] sm:$0xff] %v8088
  %8251 = vst [vmem:[%s8 + $0x3c8] sm:$0xff] %v8089
  %8252 = vst [vmem:[%s8 + $0x3d0] sm:$0xff] %v8090
  %8253 = vst [vmem:[%s8 + $0x3d8] sm:$0xff] %v8091
  %8254 = vst [vmem:[%s8 + $0x3e0] sm:$0xff] %v8092
  %8255 = vst [vmem:[%s8 + $0x3e8] sm:$0xff] %v8093
  %8256 = vst [vmem:[%s8 + $0x3f0] sm:$0xff] %v8094
  %8257 = vst [vmem:[%s8 + $0x3f8] sm:$0xff] %v8095
  %8258 = vst [vmem:[%s8 + $0x400] sm:$0xff] %v8096
  %8259 = vst [vmem:[%s8 + $0x408] sm:$0xff] %v8097
  %8260 = vst [vmem:[%s8 + $0x410] sm:$0xff] %v8098
  %8261 = vst [vmem:[%s8 + $0x418] sm:$0xff] %v8099
  %8262 = vst [vmem:[%s8 + $0x420] sm:$0xff] %v8100
  %8263 = vst [vmem:[%s8 + $0x428] sm:$0xff] %v8101
  %8264 = vst [vmem:[%s8 + $0x430] sm:$0xff] %v8102
  %8265 = vst [vmem:[%s8 + $0x438] sm:$0xff] %v8103
  %8266 = vst [vmem:[%s8 + $0x440] sm:$0xff] %v8104
  %8267 = vst [vmem:[%s8 + $0x448] sm:$0xff] %v8105
  %8268 = vst [vmem:[%s8 + $0x450] sm:$0xff] %v8106
  %8269 = vst [vmem:[%s8 + $0x458] sm:$0xff] %v8107
  %8270 = vst [vmem:[%s8 + $0x460] sm:$0xff] %v8108
  %8271 = vst [vmem:[%s8 + $0x468] sm:$0xff] %v8109
  %8272 = vst [vmem:[%s8 + $0x470] sm:$0xff] %v8110
  %8273 = vst [vmem:[%s8 + $0x478] sm:$0xff] %v8111
  %8274 = vst [vmem:[%s8 + $0x480] sm:$0xff] %v8112
  %8275 = vst [vmem:[%s8 + $0x488] sm:$0xff] %v8113
  %8276 = vst [vmem:[%s8 + $0x490] sm:$0xff] %v8114
  %8277 = vst [vmem:[%s8 + $0x498] sm:$0xff] %v8115
  %8278 = vst [vmem:[%s8 + $0x4a0] sm:$0xff] %v8116
  %8279 = vst [vmem:[%s8 + $0x4a8] sm:$0xff] %v8117
  %8280 = vst [vmem:[%s8 + $0x4b0] sm:$0xff] %v8118
  %8281 = vst [vmem:[%s8 + $0x4b8] sm:$0xff] %v8119
  %8282 = vst [vmem:[%s8 + $0x4c0] sm:$0xff] %v8120
  %8283 = vst [vmem:[%s8 + $0x4c8] sm:$0xff] %v8121
  %8284 = vst [vmem:[%s8 + $0x4d0] sm:$0xff] %v8122
  %8285 = vst [vmem:[%s8 + $0x4d8] sm:$0xff] %v8123
  %8286 = vst [vmem:[%s8 + $0x4e0] sm:$0xff] %v8124
  %8287 = vst [vmem:[%s8 + $0x4e8] sm:$0xff] %v8125
  %8288 = vst [vmem:[%s8 + $0x4f0] sm:$0xff] %v8126
  %8289 = vst [vmem:[%s8 + $0x4f8] sm:$0xff] %v8127
  %8290 = vst [vmem:[%s8 + $0x500] sm:$0xff] %v8128
  %8291 = vst [vmem:[%s8 + $0x508] sm:$0xff] %v8129
  // Predicated region
  $region34: #{fused_forward.1} parent=0 // pred_check
    _
  $region35: #{fused_forward.1} parent=0 // pred_check_branch
    %8293 = sbr.rel (0) target = $region37
  $region36: #{fused_forward.1} parent=0 // pred_region
    _
  $region37: #{fused_forward.1} parent=0 // pred_fallthru
    _
  // Predicated region
  $region38: #{fused_forward.1} parent=0 // pred_check
    _
  $region39: #{fused_forward.1} parent=0 // pred_check_branch
    %8295 = sbr.rel (0) target = $region41
  $region40: #{fused_forward.1} parent=0 // pred_region
    _
  $region41: #{fused_forward.1} parent=0 // pred_fallthru
    _

</llo_original>
